<compile_context>
chip_gen: v7x
topology: tpu7x:2x2x1
jax: 0.10.0
libtpu: 0.0.40
codegen_flags: <defaults>
</compile_context>

<pallas_src>
import functools

import jax
import jax.numpy as jnp
from jax import lax
from jax.experimental import pallas as pl
from jax.experimental.pallas import tpu as pltpu
import numpy as np

EPS = 1e-5


def _zero_halo(ref):
    """Zero only the 1-pixel 'same'-padding border of a (N, Hp, Wp, C) scratch."""
    N, Hp, Wp, C = ref.shape
    zrow = jnp.zeros((N, 1, Wp, C), ref.dtype)
    zcol = jnp.zeros((N, Hp, 1, C), ref.dtype)
    ref[:, 0:1, :, :] = zrow
    ref[:, Hp - 1:Hp, :, :] = zrow
    ref[:, :, 0:1, :] = zcol
    ref[:, :, Wp - 1:Wp, :] = zcol


def _im2col_3x3_img(xp, *, stride, Hout, Wout):
    """One image's zero-padded (Hp, Wp, C) value -> (Hout*Wout, 9*C) im2col tile.

    The 9 shifted taps are concatenated on the channel (lane) axis so each conv
    is one wide-K MXU matmul (K = 9*C) instead of 9 narrow K=C matmuls.
    """
    C = xp.shape[-1]
    dy = (Hout - 1) * stride + 1
    dx = (Wout - 1) * stride + 1
    taps = []
    for ky in range(3):
        for kx in range(3):
            taps.append(xp[ky:ky + dy:stride, kx:kx + dx:stride, :])
    return jnp.concatenate(taps, axis=-1).reshape(Hout * Wout, 9 * C)


def _bn_scale_bias(s, q, gamma, beta, inv_m):
    """Fold batch-stat BN into a single scale/bias FMA from sum s and sum-sq q.

    Single-pass E[x^2]-E[x]^2 in f32; acc stays VMEM-resident so a centered
    second pass could be added if |mean| >> std ever becomes a concern.
    """
    mean = s * inv_m
    var = q * inv_m - mean * mean
    scale = gamma * lax.rsqrt(var + EPS)
    bias = beta - mean * scale
    return scale, bias


def basic_block_kernel(x_ref, w1_ref, g1_ref, b1_ref, w2_ref, g2_ref, b2_ref,
                       o_ref, xpad_s, hpad_s, acc_s, *, stride, Hout, Wout):
    N, H, W, Cin = x_ref.shape
    Cout = o_ref.shape[-1]
    HWo = Hout * Wout
    M = N * HWo
    inv_m = 1.0 / M
    unroll = N <= 8
    f32 = jnp.float32

    def _acc_slice(n):
        off = n * HWo
        if HWo % 8 == 0:
            off = pl.multiple_of(off, 8)
        return pl.ds(off, HWo)

    # ---- in-kernel 'same' padding of x: zero the 1-px halo, copy interior ----
    _zero_halo(xpad_s)
    xpad_s[:, 1:H + 1, 1:W + 1, :] = x_ref[...]

    # ---- conv1 (3x3, stride): per-image im2col tile -> bf16 MXU matmul -------
    # f32 result tiles go into the persistent (M, Cout) accumulator; BN sum and
    # sum-of-squares are folded into the carry in the same traversal.
    def conv1_body(n, carry):
        s1, q1 = carry
        p = _im2col_3x3_img(xpad_s[n], stride=stride, Hout=Hout, Wout=Wout)
        a = jnp.dot(p.astype(jnp.bfloat16), w1_ref[...],
                    preferred_element_type=f32)
        acc_s[_acc_slice(n), :] = a
        return (s1 + jnp.sum(a, axis=0, keepdims=True),
                q1 + jnp.sum(a * a, axis=0, keepdims=True))

    s1, q1 = lax.fori_loop(
        0, N, conv1_body,
        (jnp.zeros((1, Cout), f32), jnp.zeros((1, Cout), f32)),
        unroll=unroll)

    # ---- BN1 + ReLU; h never leaves VMEM (padded-h scratch) -------------------
    scale1, bias1 = _bn_scale_bias(s1, q1, g1_ref[...], b1_ref[...], inv_m)
    _zero_halo(hpad_s)
    h = jnp.maximum(acc_s[...] * scale1 + bias1, 0.0)
    hpad_s[:, 1:Hout + 1, 1:Wout + 1, :] = h.reshape(N, Hout, Wout, Cout)

    # ---- conv2 (3x3, stride 1): same tiled structure, acc_s reused -----------
    def conv2_body(n, carry):
        s2, q2 = carry
        p = _im2col_3x3_img(hpad_s[n], stride=1, Hout=Hout, Wout=Wout)
        a = jnp.dot(p.astype(jnp.bfloat16), w2_ref[...],
                    preferred_element_type=f32)
        acc_s[_acc_slice(n), :] = a
        return (s2 + jnp.sum(a, axis=0, keepdims=True),
                q2 + jnp.sum(a * a, axis=0, keepdims=True))

    s2, q2 = lax.fori_loop(
        0, N, conv2_body,
        (jnp.zeros((1, Cout), f32), jnp.zeros((1, Cout), f32)),
        unroll=unroll)

    # ---- BN2 + shortcut + ReLU ------------------------------------------------
    scale2, bias2 = _bn_scale_bias(s2, q2, g2_ref[...], b2_ref[...], inv_m)
    out = acc_s[...] * scale2 + bias2

    if stride == 1 and Cin == Cout:
        sc = x_ref[...].reshape(M, Cin)
    else:
        # Matches the PyTorch shortcut x[:, :, ::2, ::2] + channel zero-pad for
        # the standard stride-2 / channel-doubling block; strided ref read.
        sub = x_ref[:, pl.ds(0, Hout, 2), pl.ds(0, Wout, 2), :].reshape(M, Cin)
        pad_c = (Cout - Cin) // 2
        if pad_c > 0:
            z = jnp.zeros((M, pad_c), f32)
            sc = jnp.concatenate([z, sub, z], axis=-1)
        else:
            sc = sub

    # TODO(synk): lane dim Cout < 128 makes this store masked; a transposed
    # (Cout, M) layout would make it lane-dense (biggest remaining store lever).
    o_ref[...] = jnp.maximum(out + sc, 0.0).reshape(N, Hout, Wout, Cout)


def _vmem_spec():
    return pl.BlockSpec(memory_space=pltpu.MemorySpace.VMEM)


def _padded_vmem_bytes(shape, dtype_bytes=4):
    """VMEM footprint of `shape` including (8, 128) sublane/lane padding."""
    shape = tuple(shape)
    if len(shape) == 1:
        shape = (1,) + shape
    *lead, s, l = shape
    lead_n = int(np.prod(lead, dtype=np.int64)) if lead else 1
    return dtype_bytes * lead_n * (-(-s // 8) * 8) * (-(-l // 128) * 128)


def _physical_vmem_bytes():
    try:
        return int(pltpu.get_tpu_info().vmem_capacity_bytes)
    except Exception:
        return 128 * 2 ** 20   # v5e/v6e physical size as a conservative fallback


def basic_block_forward(x_nchw, params, stride=1):
    """Fused Pallas implementation of BasicBlock.forward.  NCHW f32 in/out."""
    x = jnp.transpose(x_nchw, (0, 2, 3, 1)).astype(jnp.float32)   # -> NHWC
    N, H, W, Cin = x.shape
    w1, w2 = params["w1"], params["w2"]          # PyTorch layout (Cout, Cin, 3, 3)
    g1 = jnp.asarray(params["g1"], jnp.float32)
    b1 = jnp.asarray(params["b1"], jnp.float32)
    g2 = jnp.asarray(params["g2"], jnp.float32)
    b2 = jnp.asarray(params["b2"], jnp.float32)
    Cout = w1.shape[0]
    Hout = (H + 2 - 3) // stride + 1
    Wout = (W + 2 - 3) // stride + 1
    HWo = Hout * Wout
    M = N * HWo

    # (Cout, Cin, 3, 3) -> (ky, kx, Cin, Cout) -> (9*Cin, Cout); row order matches
    # the tap/channel order of _im2col_3x3_img.  bf16 -> native MXU rate.
    w1k = jnp.transpose(w1, (2, 3, 1, 0)).reshape(9 * Cin, Cout).astype(jnp.bfloat16)
    w2k = jnp.transpose(w2, (2, 3, 1, 0)).reshape(9 * Cout, Cout).astype(jnp.bfloat16)

    kernel = functools.partial(basic_block_kernel, stride=stride,
                               Hout=Hout, Wout=Wout)

    # Scoped-VMEM budget: operands + scratches + per-image temporaries with 2x
    # headroom, capped at 75% of physical VMEM (~48 MiB v7x, ~96 MiB v5e/v6e).
    est = sum(_padded_vmem_bytes(s) for s in [
        (N, H, W, Cin),                        # x
        (N, Hout, Wout, Cout),                 # output
        (N, H + 2, W + 2, Cin),                # padded-x scratch
        (N, Hout + 2, Wout + 2, Cout),         # padded-h scratch
        (M, Cout), (M, Cout),                  # conv accumulator + BN-apply temp
        (HWo, 9 * Cin), (HWo, 9 * Cout),       # per-image im2col tiles
        (HWo, Cout),                           # per-image conv tile
    ]) + sum(_padded_vmem_bytes(s, 2) for s in [(9 * Cin, Cout), (9 * Cout, Cout)])
    cap = (_physical_vmem_bytes() * 3) // 4
    vmem_limit = int(min(max(2 * est, 16 * 2 ** 20), cap))

    flops = 2 * M * (9 * Cin) * Cout + 2 * M * (9 * Cout) * Cout
    bytes_accessed = 4 * (x.size + M * Cout + 4 * Cout) + 2 * (w1k.size + w2k.size)

    out = pl.pallas_call(
        kernel,
        out_shape=jax.ShapeDtypeStruct((N, Hout, Wout, Cout), jnp.float32),
        in_specs=[_vmem_spec()] * 7,
        out_specs=_vmem_spec(),
        scratch_shapes=[
            pltpu.VMEM((N, H + 2, W + 2, Cin), jnp.float32),          # padded x
            pltpu.VMEM((N, Hout + 2, Wout + 2, Cout), jnp.float32),   # padded h
            pltpu.VMEM((M, Cout), jnp.float32),                       # conv acc (reused)
        ],
        compiler_params=pltpu.CompilerParams(vmem_limit_bytes=vmem_limit),
        cost_estimate=pl.CostEstimate(flops=flops, transcendentals=0,
                                      bytes_accessed=int(bytes_accessed)),
    )(x, w1k, g1, b1, w2k, g2, b2)

    return jnp.transpose(out, (0, 3, 1, 2))      # -> NCHW


# ----------------------------- pure-JAX reference -----------------------------
def reference_forward(x_nchw, params, stride=1):
    x = jnp.transpose(x_nchw, (0, 2, 3, 1)).astype(jnp.float32)
    Cin = x.shape[-1]
    Cout = params["w1"].shape[0]

    def conv(inp, w, s):
        wh = jnp.transpose(w, (2, 3, 1, 0)).astype(jnp.float32)  # HWIO
        return lax.conv_general_dilated(inp, wh, (s, s), [(1, 1), (1, 1)],
                                        dimension_numbers=("NHWC", "HWIO", "NHWC"))

    def bn(inp, g, b):
        mean = jnp.mean(inp, axis=(0, 1, 2), keepdims=True)
        var = jnp.mean((inp - mean) ** 2, axis=(0, 1, 2), keepdims=True)
        return (inp - mean) * lax.rsqrt(var + EPS) * g.reshape(1, 1, 1, -1) + b.reshape(1, 1, 1, -1)

    h = jax.nn.relu(bn(conv(x, params["w1"], stride), params["g1"], params["b1"]))
    o = bn(conv(h, params["w2"], 1), params["g2"], params["b2"])
    if stride != 1 or Cin != Cout:
        sc = x[:, ::2, ::2, :]
        pad_c = (Cout - Cin) // 2
        sc = jnp.pad(sc, ((0, 0), (0, 0), (0, 0), (pad_c, pad_c)))
    else:
        sc = x
    o = jax.nn.relu(o + sc)
    return jnp.transpose(o, (0, 3, 1, 2))


if __name__ == "__main__":
    key = jax.random.PRNGKey(0)
    k_x, k_w1, k_w2 = jax.random.split(key, 3)

    in_planes, planes, stride = 4, 4, 1
    N, H, W = 2, 16, 16

    x = jax.random.normal(k_x, (N, in_planes, H, W), jnp.float32)
    params = {
        # conv weights in PyTorch layout (Cout, Cin, 3, 3), deterministic init
        "w1": jax.random.normal(k_w1, (planes, in_planes, 3, 3), jnp.float32) * 0.1,
        "w2": jax.random.normal(k_w2, (planes, planes, 3, 3), jnp.float32) * 0.1,
        # BatchNorm affine params, PyTorch default init (gamma=1, beta=0)
        "g1": jnp.ones((1, planes), jnp.float32),
        "b1": jnp.zeros((1, planes), jnp.float32),
        "g2": jnp.ones((1, planes), jnp.float32),
        "b2": jnp.zeros((1, planes), jnp.float32),
    }

    out = jax.block_until_ready(basic_block_forward(x, params, stride=stride))
    ref = jax.block_until_ready(reference_forward(x, params, stride=stride))

    # bf16 MXU inputs (f32 accumulate / f32 BN) vs an all-f32 reference:
    # deviations are O(1e-3), so a 2e-2 tolerance keeps the check meaningful.
    np.testing.assert_allclose(np.asarray(out), np.asarray(ref), rtol=2e-2, atol=2e-2)
    print("KERNEL_OK")
</pallas_src>

<mosaic_0001>
module attributes {stable_mosaic.version = 11 : i64} {
  func.func @basic_block_kernel(%arg0: memref<2x16x16x4xf32, #tpu.memory_space<vmem>>, %arg1: memref<36x4xbf16, #tpu.memory_space<vmem>>, %arg2: memref<1x4xf32, #tpu.memory_space<vmem>>, %arg3: memref<1x4xf32, #tpu.memory_space<vmem>>, %arg4: memref<36x4xbf16, #tpu.memory_space<vmem>>, %arg5: memref<1x4xf32, #tpu.memory_space<vmem>>, %arg6: memref<1x4xf32, #tpu.memory_space<vmem>>, %arg7: memref<2x16x16x4xf32, #tpu.memory_space<vmem>>, %arg8: memref<2x18x18x4xf32, #tpu.memory_space<vmem>>, %arg9: memref<2x18x18x4xf32, #tpu.memory_space<vmem>>, %arg10: memref<512x4xf32, #tpu.memory_space<vmem>>) attributes {dimension_semantics = [], scalar_prefetch = 0 : i64, scratch_operands = 3 : i64, tpu.core_type = #tpu.core_type<tc>} {
    %cst = arith.constant 0.000000e+00 : f32
    %0 = vector.broadcast %cst : f32 to vector<2x1x18x4xf32>
    %cst_0 = arith.constant 0.000000e+00 : f32
    %1 = vector.broadcast %cst_0 : f32 to vector<2x18x1x4xf32>
    %c0 = arith.constant 0 : index
    %c0_1 = arith.constant 0 : index
    %c0_2 = arith.constant 0 : index
    %c0_3 = arith.constant 0 : index
    %2 = vector.load %arg8[%c0, %c0_1, %c0_2, %c0_3] : memref<2x18x18x4xf32, #tpu.memory_space<vmem>>, vector<2x1x18x4xf32>
    tpu.vector_store %arg8[%c0, %c0_1, %c0_2, %c0_3], %0 {strides = array<i32>} : memref<2x18x18x4xf32, #tpu.memory_space<vmem>>, vector<2x1x18x4xf32>,
    %c0_4 = arith.constant 0 : index
    %c17 = arith.constant 17 : index
    %c0_5 = arith.constant 0 : index
    %c0_6 = arith.constant 0 : index
    %3 = vector.load %arg8[%c0_4, %c17, %c0_5, %c0_6] : memref<2x18x18x4xf32, #tpu.memory_space<vmem>>, vector<2x1x18x4xf32>
    tpu.vector_store %arg8[%c0_4, %c17, %c0_5, %c0_6], %0 {strides = array<i32>} : memref<2x18x18x4xf32, #tpu.memory_space<vmem>>, vector<2x1x18x4xf32>,
    %c0_7 = arith.constant 0 : index
    %c0_8 = arith.constant 0 : index
    %c0_9 = arith.constant 0 : index
    %c0_10 = arith.constant 0 : index
    %4 = vector.load %arg8[%c0_7, %c0_8, %c0_9, %c0_10] : memref<2x18x18x4xf32, #tpu.memory_space<vmem>>, vector<2x18x1x4xf32>
    tpu.vector_store %arg8[%c0_7, %c0_8, %c0_9, %c0_10], %1 {strides = array<i32>} : memref<2x18x18x4xf32, #tpu.memory_space<vmem>>, vector<2x18x1x4xf32>,
    %c0_11 = arith.constant 0 : index
    %c0_12 = arith.constant 0 : index
    %c17_13 = arith.constant 17 : index
    %c0_14 = arith.constant 0 : index
    %5 = vector.load %arg8[%c0_11, %c0_12, %c17_13, %c0_14] : memref<2x18x18x4xf32, #tpu.memory_space<vmem>>, vector<2x18x1x4xf32>
    tpu.vector_store %arg8[%c0_11, %c0_12, %c17_13, %c0_14], %1 {strides = array<i32>} : memref<2x18x18x4xf32, #tpu.memory_space<vmem>>, vector<2x18x1x4xf32>,
    %c0_15 = arith.constant 0 : index
    %c0_16 = arith.constant 0 : index
    %c0_17 = arith.constant 0 : index
    %c0_18 = arith.constant 0 : index
    %6 = vector.load %arg0[%c0_15, %c0_16, %c0_17, %c0_18] : memref<2x16x16x4xf32, #tpu.memory_space<vmem>>, vector<2x16x16x4xf32>
    %c0_19 = arith.constant 0 : index
    %c1 = arith.constant 1 : index
    %c1_20 = arith.constant 1 : index
    %c0_21 = arith.constant 0 : index
    %7 = vector.load %arg8[%c0_19, %c1, %c1_20, %c0_21] : memref<2x18x18x4xf32, #tpu.memory_space<vmem>>, vector<2x16x16x4xf32>
    tpu.vector_store %arg8[%c0_19, %c1, %c1_20, %c0_21], %6 {strides = array<i32>} : memref<2x18x18x4xf32, #tpu.memory_space<vmem>>, vector<2x16x16x4xf32>,
    %cst_22 = arith.constant 0.000000e+00 : f32
    %8 = vector.broadcast %cst_22 : f32 to vector<1x4xf32>
    %cst_23 = arith.constant 0.000000e+00 : f32
    %9 = vector.broadcast %cst_23 : f32 to vector<1x4xf32>
    %c0_i32 = arith.constant 0 : i32
    %10 = arith.index_cast %c0_i32 : i32 to index
    %c0_24 = arith.constant 0 : index
    %c0_25 = arith.constant 0 : index
    %c0_26 = arith.constant 0 : index
    %11 = vector.load %arg8[%10, %c0_24, %c0_25, %c0_26] : memref<2x18x18x4xf32, #tpu.memory_space<vmem>>, vector<1x18x18x4xf32>
    %12 = vector.shape_cast %11 : vector<1x18x18x4xf32> to vector<18x18x4xf32>
    %13 = vector.extract_strided_slice %12 {offsets = [0, 0, 0], sizes = [16, 16, 4], strides = [1, 1, 1]} : vector<18x18x4xf32> to vector<16x16x4xf32>
    %14 = vector.extract_strided_slice %12 {offsets = [0, 1, 0], sizes = [16, 16, 4], strides = [1, 1, 1]} : vector<18x18x4xf32> to vector<16x16x4xf32>
    %15 = vector.extract_strided_slice %12 {offsets = [0, 2, 0], sizes = [16, 16, 4], strides = [1, 1, 1]} : vector<18x18x4xf32> to vector<16x16x4xf32>
    %16 = vector.extract_strided_slice %12 {offsets = [1, 0, 0], sizes = [16, 16, 4], strides = [1, 1, 1]} : vector<18x18x4xf32> to vector<16x16x4xf32>
    %17 = vector.extract_strided_slice %12 {offsets = [1, 1, 0], sizes = [16, 16, 4], strides = [1, 1, 1]} : vector<18x18x4xf32> to vector<16x16x4xf32>
    %18 = vector.extract_strided_slice %12 {offsets = [1, 2, 0], sizes = [16, 16, 4], strides = [1, 1, 1]} : vector<18x18x4xf32> to vector<16x16x4xf32>
    %19 = vector.extract_strided_slice %12 {offsets = [2, 0, 0], sizes = [16, 16, 4], strides = [1, 1, 1]} : vector<18x18x4xf32> to vector<16x16x4xf32>
    %20 = vector.extract_strided_slice %12 {offsets = [2, 1, 0], sizes = [16, 16, 4], strides = [1, 1, 1]} : vector<18x18x4xf32> to vector<16x16x4xf32>
    %21 = vector.extract_strided_slice %12 {offsets = [2, 2, 0], sizes = [16, 16, 4], strides = [1, 1, 1]} : vector<18x18x4xf32> to vector<16x16x4xf32>
    %22 = tpu.concatenate %13, %14, %15, %16, %17, %18, %19, %20, %21 in 2 : vector<16x16x4xf32>, vector<16x16x4xf32>, vector<16x16x4xf32>, vector<16x16x4xf32>, vector<16x16x4xf32>, vector<16x16x4xf32>, vector<16x16x4xf32>, vector<16x16x4xf32>, vector<16x16x4xf32> -> vector<16x16x36xf32>
    %23 = vector.shape_cast %22 : vector<16x16x36xf32> to vector<256x36xf32>
    %24 = arith.truncf %23 : vector<256x36xf32> to vector<256x36xbf16>
    %c0_27 = arith.constant 0 : index
    %c0_28 = arith.constant 0 : index
    %25 = vector.load %arg1[%c0_27, %c0_28] : memref<36x4xbf16, #tpu.memory_space<vmem>>, vector<36x4xbf16>
    %cst_29 = arith.constant dense<0.000000e+00> : vector<256x4xf32>
    %26 = tpu.matmul %24, %25, %cst_29 {dimension_numbers = #tpu.dot_dimension_numbers<[1], [0], [0], [1], [0, 0, 1, 1], [], []>} : vector<256x36xbf16>, vector<36x4xbf16>, vector<256x4xf32> -> vector<256x4xf32>
    %c256_i32 = arith.constant 256 : i32
    %27 = arith.muli %c0_i32, %c256_i32 : i32
    %28 = tpu.assume_multiple %27, 8 : i32
    %29 = arith.index_cast %28 : i32 to index
    %c0_30 = arith.constant 0 : index
    %30 = vector.load %arg10[%29, %c0_30] : memref<512x4xf32, #tpu.memory_space<vmem>>, vector<256x4xf32>
    tpu.vector_store %arg10[%29, %c0_30], %26 {strides = array<i32>} : memref<512x4xf32, #tpu.memory_space<vmem>>, vector<256x4xf32>,
    %cst_31 = arith.constant dense<0.000000e+00> : vector<4xf32>
    %31 = vector.multi_reduction <add>, %26, %cst_31 [0] : vector<256x4xf32> to vector<4xf32>
    %32 = vector.shape_cast %31 : vector<4xf32> to vector<1x4xf32>
    %33 = arith.addf %8, %32 : vector<1x4xf32>
    %34 = arith.mulf %26, %26 : vector<256x4xf32>
    %cst_32 = arith.constant dense<0.000000e+00> : vector<4xf32>
    %35 = vector.multi_reduction <add>, %34, %cst_32 [0] : vector<256x4xf32> to vector<4xf32>
    %36 = vector.shape_cast %35 : vector<4xf32> to vector<1x4xf32>
    %37 = arith.addf %9, %36 : vector<1x4xf32>
    %c1_i32 = arith.constant 1 : i32
    %38 = arith.index_cast %c1_i32 : i32 to index
    %c0_33 = arith.constant 0 : index
    %c0_34 = arith.constant 0 : index
    %c0_35 = arith.constant 0 : index
    %39 = vector.load %arg8[%38, %c0_33, %c0_34, %c0_35] : memref<2x18x18x4xf32, #tpu.memory_space<vmem>>, vector<1x18x18x4xf32>
    %40 = vector.shape_cast %39 : vector<1x18x18x4xf32> to vector<18x18x4xf32>
    %41 = vector.extract_strided_slice %40 {offsets = [0, 0, 0], sizes = [16, 16, 4], strides = [1, 1, 1]} : vector<18x18x4xf32> to vector<16x16x4xf32>
    %42 = vector.extract_strided_slice %40 {offsets = [0, 1, 0], sizes = [16, 16, 4], strides = [1, 1, 1]} : vector<18x18x4xf32> to vector<16x16x4xf32>
    %43 = vector.extract_strided_slice %40 {offsets = [0, 2, 0], sizes = [16, 16, 4], strides = [1, 1, 1]} : vector<18x18x4xf32> to vector<16x16x4xf32>
    %44 = vector.extract_strided_slice %40 {offsets = [1, 0, 0], sizes = [16, 16, 4], strides = [1, 1, 1]} : vector<18x18x4xf32> to vector<16x16x4xf32>
    %45 = vector.extract_strided_slice %40 {offsets = [1, 1, 0], sizes = [16, 16, 4], strides = [1, 1, 1]} : vector<18x18x4xf32> to vector<16x16x4xf32>
    %46 = vector.extract_strided_slice %40 {offsets = [1, 2, 0], sizes = [16, 16, 4], strides = [1, 1, 1]} : vector<18x18x4xf32> to vector<16x16x4xf32>
    %47 = vector.extract_strided_slice %40 {offsets = [2, 0, 0], sizes = [16, 16, 4], strides = [1, 1, 1]} : vector<18x18x4xf32> to vector<16x16x4xf32>
    %48 = vector.extract_strided_slice %40 {offsets = [2, 1, 0], sizes = [16, 16, 4], strides = [1, 1, 1]} : vector<18x18x4xf32> to vector<16x16x4xf32>
    %49 = vector.extract_strided_slice %40 {offsets = [2, 2, 0], sizes = [16, 16, 4], strides = [1, 1, 1]} : vector<18x18x4xf32> to vector<16x16x4xf32>
    %50 = tpu.concatenate %41, %42, %43, %44, %45, %46, %47, %48, %49 in 2 : vector<16x16x4xf32>, vector<16x16x4xf32>, vector<16x16x4xf32>, vector<16x16x4xf32>, vector<16x16x4xf32>, vector<16x16x4xf32>, vector<16x16x4xf32>, vector<16x16x4xf32>, vector<16x16x4xf32> -> vector<16x16x36xf32>
    %51 = vector.shape_cast %50 : vector<16x16x36xf32> to vector<256x36xf32>
    %52 = arith.truncf %51 : vector<256x36xf32> to vector<256x36xbf16>
    %c0_36 = arith.constant 0 : index
    %c0_37 = arith.constant 0 : index
    %53 = vector.load %arg1[%c0_36, %c0_37] : memref<36x4xbf16, #tpu.memory_space<vmem>>, vector<36x4xbf16>
    %cst_38 = arith.constant dense<0.000000e+00> : vector<256x4xf32>
    %54 = tpu.matmul %52, %53, %cst_38 {dimension_numbers = #tpu.dot_dimension_numbers<[1], [0], [0], [1], [0, 0, 1, 1], [], []>} : vector<256x36xbf16>, vector<36x4xbf16>, vector<256x4xf32> -> vector<256x4xf32>
    %c256_i32_39 = arith.constant 256 : i32
    %55 = arith.muli %c1_i32, %c256_i32_39 : i32
    %56 = tpu.assume_multiple %55, 8 : i32
    %57 = arith.index_cast %56 : i32 to index
    %c0_40 = arith.constant 0 : index
    %58 = vector.load %arg10[%57, %c0_40] : memref<512x4xf32, #tpu.memory_space<vmem>>, vector<256x4xf32>
    tpu.vector_store %arg10[%57, %c0_40], %54 {strides = array<i32>} : memref<512x4xf32, #tpu.memory_space<vmem>>, vector<256x4xf32>,
    %cst_41 = arith.constant dense<0.000000e+00> : vector<4xf32>
    %59 = vector.multi_reduction <add>, %54, %cst_41 [0] : vector<256x4xf32> to vector<4xf32>
    %60 = vector.shape_cast %59 : vector<4xf32> to vector<1x4xf32>
    %61 = arith.addf %33, %60 : vector<1x4xf32>
    %62 = arith.mulf %54, %54 : vector<256x4xf32>
    %cst_42 = arith.constant dense<0.000000e+00> : vector<4xf32>
    %63 = vector.multi_reduction <add>, %62, %cst_42 [0] : vector<256x4xf32> to vector<4xf32>
    %64 = vector.shape_cast %63 : vector<4xf32> to vector<1x4xf32>
    %65 = arith.addf %37, %64 : vector<1x4xf32>
    %c2_i32 = arith.constant 2 : i32
    %c0_43 = arith.constant 0 : index
    %c0_44 = arith.constant 0 : index
    %66 = vector.load %arg2[%c0_43, %c0_44] : memref<1x4xf32, #tpu.memory_space<vmem>>, vector<1x4xf32>
    %c0_45 = arith.constant 0 : index
    %c0_46 = arith.constant 0 : index
    %67 = vector.load %arg3[%c0_45, %c0_46] : memref<1x4xf32, #tpu.memory_space<vmem>>, vector<1x4xf32>
    %cst_47 = arith.constant 0.001953125 : f32
    %68 = vector.broadcast %cst_47 : f32 to vector<1x4xf32>
    %69 = arith.mulf %61, %68 : vector<1x4xf32>
    %cst_48 = arith.constant 0.001953125 : f32
    %70 = vector.broadcast %cst_48 : f32 to vector<1x4xf32>
    %71 = arith.mulf %65, %70 : vector<1x4xf32>
    %72 = arith.mulf %69, %69 : vector<1x4xf32>
    %73 = arith.subf %71, %72 : vector<1x4xf32>
    %cst_49 = arith.constant 9.99999974E-6 : f32
    %74 = vector.broadcast %cst_49 : f32 to vector<1x4xf32>
    %75 = arith.addf %73, %74 : vector<1x4xf32>
    %76 = math.rsqrt %75 : vector<1x4xf32>
    %77 = arith.mulf %66, %76 : vector<1x4xf32>
    %78 = arith.mulf %69, %77 : vector<1x4xf32>
    %79 = arith.subf %67, %78 : vector<1x4xf32>
    %cst_50 = arith.constant 0.000000e+00 : f32
    %80 = vector.broadcast %cst_50 : f32 to vector<2x1x18x4xf32>
    %cst_51 = arith.constant 0.000000e+00 : f32
    %81 = vector.broadcast %cst_51 : f32 to vector<2x18x1x4xf32>
    %c0_52 = arith.constant 0 : index
    %c0_53 = arith.constant 0 : index
    %c0_54 = arith.constant 0 : index
    %c0_55 = arith.constant 0 : index
    %82 = vector.load %arg9[%c0_52, %c0_53, %c0_54, %c0_55] : memref<2x18x18x4xf32, #tpu.memory_space<vmem>>, vector<2x1x18x4xf32>
    tpu.vector_store %arg9[%c0_52, %c0_53, %c0_54, %c0_55], %80 {strides = array<i32>} : memref<2x18x18x4xf32, #tpu.memory_space<vmem>>, vector<2x1x18x4xf32>,
    %c0_56 = arith.constant 0 : index
    %c17_57 = arith.constant 17 : index
    %c0_58 = arith.constant 0 : index
    %c0_59 = arith.constant 0 : index
    %83 = vector.load %arg9[%c0_56, %c17_57, %c0_58, %c0_59] : memref<2x18x18x4xf32, #tpu.memory_space<vmem>>, vector<2x1x18x4xf32>
    tpu.vector_store %arg9[%c0_56, %c17_57, %c0_58, %c0_59], %80 {strides = array<i32>} : memref<2x18x18x4xf32, #tpu.memory_space<vmem>>, vector<2x1x18x4xf32>,
    %c0_60 = arith.constant 0 : index
    %c0_61 = arith.constant 0 : index
    %c0_62 = arith.constant 0 : index
    %c0_63 = arith.constant 0 : index
    %84 = vector.load %arg9[%c0_60, %c0_61, %c0_62, %c0_63] : memref<2x18x18x4xf32, #tpu.memory_space<vmem>>, vector<2x18x1x4xf32>
    tpu.vector_store %arg9[%c0_60, %c0_61, %c0_62, %c0_63], %81 {strides = array<i32>} : memref<2x18x18x4xf32, #tpu.memory_space<vmem>>, vector<2x18x1x4xf32>,
    %c0_64 = arith.constant 0 : index
    %c0_65 = arith.constant 0 : index
    %c17_66 = arith.constant 17 : index
    %c0_67 = arith.constant 0 : index
    %85 = vector.load %arg9[%c0_64, %c0_65, %c17_66, %c0_67] : memref<2x18x18x4xf32, #tpu.memory_space<vmem>>, vector<2x18x1x4xf32>
    tpu.vector_store %arg9[%c0_64, %c0_65, %c17_66, %c0_67], %81 {strides = array<i32>} : memref<2x18x18x4xf32, #tpu.memory_space<vmem>>, vector<2x18x1x4xf32>,
    %c0_68 = arith.constant 0 : index
    %c0_69 = arith.constant 0 : index
    %86 = vector.load %arg10[%c0_68, %c0_69] : memref<512x4xf32, #tpu.memory_space<vmem>>, vector<512x4xf32>
    %87 = vector.broadcast %77 : vector<1x4xf32> to vector<512x4xf32>
    %88 = arith.mulf %86, %87 : vector<512x4xf32>
    %89 = vector.broadcast %79 : vector<1x4xf32> to vector<512x4xf32>
    %90 = arith.addf %88, %89 : vector<512x4xf32>
    %cst_70 = arith.constant 0.000000e+00 : f32
    %91 = vector.broadcast %cst_70 : f32 to vector<512x4xf32>
    %92 = arith.maximumf %90, %91 : vector<512x4xf32>
    %93 = vector.shape_cast %92 : vector<512x4xf32> to vector<2x16x16x4xf32>
    %c0_71 = arith.constant 0 : index
    %c1_72 = arith.constant 1 : index
    %c1_73 = arith.constant 1 : index
    %c0_74 = arith.constant 0 : index
    %94 = vector.load %arg9[%c0_71, %c1_72, %c1_73, %c0_74] : memref<2x18x18x4xf32, #tpu.memory_space<vmem>>, vector<2x16x16x4xf32>
    tpu.vector_store %arg9[%c0_71, %c1_72, %c1_73, %c0_74], %93 {strides = array<i32>} : memref<2x18x18x4xf32, #tpu.memory_space<vmem>>, vector<2x16x16x4xf32>,
    %cst_75 = arith.constant 0.000000e+00 : f32
    %95 = vector.broadcast %cst_75 : f32 to vector<1x4xf32>
    %cst_76 = arith.constant 0.000000e+00 : f32
    %96 = vector.broadcast %cst_76 : f32 to vector<1x4xf32>
    %c0_i32_77 = arith.constant 0 : i32
    %97 = arith.index_cast %c0_i32_77 : i32 to index
    %c0_78 = arith.constant 0 : index
    %c0_79 = arith.constant 0 : index
    %c0_80 = arith.constant 0 : index
    %98 = vector.load %arg9[%97, %c0_78, %c0_79, %c0_80] : memref<2x18x18x4xf32, #tpu.memory_space<vmem>>, vector<1x18x18x4xf32>
    %99 = vector.shape_cast %98 : vector<1x18x18x4xf32> to vector<18x18x4xf32>
    %100 = vector.extract_strided_slice %99 {offsets = [0, 0, 0], sizes = [16, 16, 4], strides = [1, 1, 1]} : vector<18x18x4xf32> to vector<16x16x4xf32>
    %101 = vector.extract_strided_slice %99 {offsets = [0, 1, 0], sizes = [16, 16, 4], strides = [1, 1, 1]} : vector<18x18x4xf32> to vector<16x16x4xf32>
    %102 = vector.extract_strided_slice %99 {offsets = [0, 2, 0], sizes = [16, 16, 4], strides = [1, 1, 1]} : vector<18x18x4xf32> to vector<16x16x4xf32>
    %103 = vector.extract_strided_slice %99 {offsets = [1, 0, 0], sizes = [16, 16, 4], strides = [1, 1, 1]} : vector<18x18x4xf32> to vector<16x16x4xf32>
    %104 = vector.extract_strided_slice %99 {offsets = [1, 1, 0], sizes = [16, 16, 4], strides = [1, 1, 1]} : vector<18x18x4xf32> to vector<16x16x4xf32>
    %105 = vector.extract_strided_slice %99 {offsets = [1, 2, 0], sizes = [16, 16, 4], strides = [1, 1, 1]} : vector<18x18x4xf32> to vector<16x16x4xf32>
    %106 = vector.extract_strided_slice %99 {offsets = [2, 0, 0], sizes = [16, 16, 4], strides = [1, 1, 1]} : vector<18x18x4xf32> to vector<16x16x4xf32>
    %107 = vector.extract_strided_slice %99 {offsets = [2, 1, 0], sizes = [16, 16, 4], strides = [1, 1, 1]} : vector<18x18x4xf32> to vector<16x16x4xf32>
    %108 = vector.extract_strided_slice %99 {offsets = [2, 2, 0], sizes = [16, 16, 4], strides = [1, 1, 1]} : vector<18x18x4xf32> to vector<16x16x4xf32>
    %109 = tpu.concatenate %100, %101, %102, %103, %104, %105, %106, %107, %108 in 2 : vector<16x16x4xf32>, vector<16x16x4xf32>, vector<16x16x4xf32>, vector<16x16x4xf32>, vector<16x16x4xf32>, vector<16x16x4xf32>, vector<16x16x4xf32>, vector<16x16x4xf32>, vector<16x16x4xf32> -> vector<16x16x36xf32>
    %110 = vector.shape_cast %109 : vector<16x16x36xf32> to vector<256x36xf32>
    %111 = arith.truncf %110 : vector<256x36xf32> to vector<256x36xbf16>
    %c0_81 = arith.constant 0 : index
    %c0_82 = arith.constant 0 : index
    %112 = vector.load %arg4[%c0_81, %c0_82] : memref<36x4xbf16, #tpu.memory_space<vmem>>, vector<36x4xbf16>
    %cst_83 = arith.constant dense<0.000000e+00> : vector<256x4xf32>
    %113 = tpu.matmul %111, %112, %cst_83 {dimension_numbers = #tpu.dot_dimension_numbers<[1], [0], [0], [1], [0, 0, 1, 1], [], []>} : vector<256x36xbf16>, vector<36x4xbf16>, vector<256x4xf32> -> vector<256x4xf32>
    %c256_i32_84 = arith.constant 256 : i32
    %114 = arith.muli %c0_i32_77, %c256_i32_84 : i32
    %115 = tpu.assume_multiple %114, 8 : i32
    %116 = arith.index_cast %115 : i32 to index
    %c0_85 = arith.constant 0 : index
    %117 = vector.load %arg10[%116, %c0_85] : memref<512x4xf32, #tpu.memory_space<vmem>>, vector<256x4xf32>
    tpu.vector_store %arg10[%116, %c0_85], %113 {strides = array<i32>} : memref<512x4xf32, #tpu.memory_space<vmem>>, vector<256x4xf32>,
    %cst_86 = arith.constant dense<0.000000e+00> : vector<4xf32>
    %118 = vector.multi_reduction <add>, %113, %cst_86 [0] : vector<256x4xf32> to vector<4xf32>
    %119 = vector.shape_cast %118 : vector<4xf32> to vector<1x4xf32>
    %120 = arith.addf %95, %119 : vector<1x4xf32>
    %121 = arith.mulf %113, %113 : vector<256x4xf32>
    %cst_87 = arith.constant dense<0.000000e+00> : vector<4xf32>
    %122 = vector.multi_reduction <add>, %121, %cst_87 [0] : vector<256x4xf32> to vector<4xf32>
    %123 = vector.shape_cast %122 : vector<4xf32> to vector<1x4xf32>
    %124 = arith.addf %96, %123 : vector<1x4xf32>
    %c1_i32_88 = arith.constant 1 : i32
    %125 = arith.index_cast %c1_i32_88 : i32 to index
    %c0_89 = arith.constant 0 : index
    %c0_90 = arith.constant 0 : index
    %c0_91 = arith.constant 0 : index
    %126 = vector.load %arg9[%125, %c0_89, %c0_90, %c0_91] : memref<2x18x18x4xf32, #tpu.memory_space<vmem>>, vector<1x18x18x4xf32>
    %127 = vector.shape_cast %126 : vector<1x18x18x4xf32> to vector<18x18x4xf32>
    %128 = vector.extract_strided_slice %127 {offsets = [0, 0, 0], sizes = [16, 16, 4], strides = [1, 1, 1]} : vector<18x18x4xf32> to vector<16x16x4xf32>
    %129 = vector.extract_strided_slice %127 {offsets = [0, 1, 0], sizes = [16, 16, 4], strides = [1, 1, 1]} : vector<18x18x4xf32> to vector<16x16x4xf32>
    %130 = vector.extract_strided_slice %127 {offsets = [0, 2, 0], sizes = [16, 16, 4], strides = [1, 1, 1]} : vector<18x18x4xf32> to vector<16x16x4xf32>
    %131 = vector.extract_strided_slice %127 {offsets = [1, 0, 0], sizes = [16, 16, 4], strides = [1, 1, 1]} : vector<18x18x4xf32> to vector<16x16x4xf32>
    %132 = vector.extract_strided_slice %127 {offsets = [1, 1, 0], sizes = [16, 16, 4], strides = [1, 1, 1]} : vector<18x18x4xf32> to vector<16x16x4xf32>
    %133 = vector.extract_strided_slice %127 {offsets = [1, 2, 0], sizes = [16, 16, 4], strides = [1, 1, 1]} : vector<18x18x4xf32> to vector<16x16x4xf32>
    %134 = vector.extract_strided_slice %127 {offsets = [2, 0, 0], sizes = [16, 16, 4], strides = [1, 1, 1]} : vector<18x18x4xf32> to vector<16x16x4xf32>
    %135 = vector.extract_strided_slice %127 {offsets = [2, 1, 0], sizes = [16, 16, 4], strides = [1, 1, 1]} : vector<18x18x4xf32> to vector<16x16x4xf32>
    %136 = vector.extract_strided_slice %127 {offsets = [2, 2, 0], sizes = [16, 16, 4], strides = [1, 1, 1]} : vector<18x18x4xf32> to vector<16x16x4xf32>
    %137 = tpu.concatenate %128, %129, %130, %131, %132, %133, %134, %135, %136 in 2 : vector<16x16x4xf32>, vector<16x16x4xf32>, vector<16x16x4xf32>, vector<16x16x4xf32>, vector<16x16x4xf32>, vector<16x16x4xf32>, vector<16x16x4xf32>, vector<16x16x4xf32>, vector<16x16x4xf32> -> vector<16x16x36xf32>
    %138 = vector.shape_cast %137 : vector<16x16x36xf32> to vector<256x36xf32>
    %139 = arith.truncf %138 : vector<256x36xf32> to vector<256x36xbf16>
    %c0_92 = arith.constant 0 : index
    %c0_93 = arith.constant 0 : index
    %140 = vector.load %arg4[%c0_92, %c0_93] : memref<36x4xbf16, #tpu.memory_space<vmem>>, vector<36x4xbf16>
    %cst_94 = arith.constant dense<0.000000e+00> : vector<256x4xf32>
    %141 = tpu.matmul %139, %140, %cst_94 {dimension_numbers = #tpu.dot_dimension_numbers<[1], [0], [0], [1], [0, 0, 1, 1], [], []>} : vector<256x36xbf16>, vector<36x4xbf16>, vector<256x4xf32> -> vector<256x4xf32>
    %c256_i32_95 = arith.constant 256 : i32
    %142 = arith.muli %c1_i32_88, %c256_i32_95 : i32
    %143 = tpu.assume_multiple %142, 8 : i32
    %144 = arith.index_cast %143 : i32 to index
    %c0_96 = arith.constant 0 : index
    %145 = vector.load %arg10[%144, %c0_96] : memref<512x4xf32, #tpu.memory_space<vmem>>, vector<256x4xf32>
    tpu.vector_store %arg10[%144, %c0_96], %141 {strides = array<i32>} : memref<512x4xf32, #tpu.memory_space<vmem>>, vector<256x4xf32>,
    %cst_97 = arith.constant dense<0.000000e+00> : vector<4xf32>
    %146 = vector.multi_reduction <add>, %141, %cst_97 [0] : vector<256x4xf32> to vector<4xf32>
    %147 = vector.shape_cast %146 : vector<4xf32> to vector<1x4xf32>
    %148 = arith.addf %120, %147 : vector<1x4xf32>
    %149 = arith.mulf %141, %141 : vector<256x4xf32>
    %cst_98 = arith.constant dense<0.000000e+00> : vector<4xf32>
    %150 = vector.multi_reduction <add>, %149, %cst_98 [0] : vector<256x4xf32> to vector<4xf32>
    %151 = vector.shape_cast %150 : vector<4xf32> to vector<1x4xf32>
    %152 = arith.addf %124, %151 : vector<1x4xf32>
    %c2_i32_99 = arith.constant 2 : i32
    %c0_100 = arith.constant 0 : index
    %c0_101 = arith.constant 0 : index
    %153 = vector.load %arg5[%c0_100, %c0_101] : memref<1x4xf32, #tpu.memory_space<vmem>>, vector<1x4xf32>
    %c0_102 = arith.constant 0 : index
    %c0_103 = arith.constant 0 : index
    %154 = vector.load %arg6[%c0_102, %c0_103] : memref<1x4xf32, #tpu.memory_space<vmem>>, vector<1x4xf32>
    %cst_104 = arith.constant 0.001953125 : f32
    %155 = vector.broadcast %cst_104 : f32 to vector<1x4xf32>
    %156 = arith.mulf %148, %155 : vector<1x4xf32>
    %cst_105 = arith.constant 0.001953125 : f32
    %157 = vector.broadcast %cst_105 : f32 to vector<1x4xf32>
    %158 = arith.mulf %152, %157 : vector<1x4xf32>
    %159 = arith.mulf %156, %156 : vector<1x4xf32>
    %160 = arith.subf %158, %159 : vector<1x4xf32>
    %cst_106 = arith.constant 9.99999974E-6 : f32
    %161 = vector.broadcast %cst_106 : f32 to vector<1x4xf32>
    %162 = arith.addf %160, %161 : vector<1x4xf32>
    %163 = math.rsqrt %162 : vector<1x4xf32>
    %164 = arith.mulf %153, %163 : vector<1x4xf32>
    %165 = arith.mulf %156, %164 : vector<1x4xf32>
    %166 = arith.subf %154, %165 : vector<1x4xf32>
    %c0_107 = arith.constant 0 : index
    %c0_108 = arith.constant 0 : index
    %167 = vector.load %arg10[%c0_107, %c0_108] : memref<512x4xf32, #tpu.memory_space<vmem>>, vector<512x4xf32>
    %168 = vector.broadcast %164 : vector<1x4xf32> to vector<512x4xf32>
    %169 = arith.mulf %167, %168 : vector<512x4xf32>
    %170 = vector.broadcast %166 : vector<1x4xf32> to vector<512x4xf32>
    %171 = arith.addf %169, %170 : vector<512x4xf32>
    %c0_109 = arith.constant 0 : index
    %c0_110 = arith.constant 0 : index
    %c0_111 = arith.constant 0 : index
    %c0_112 = arith.constant 0 : index
    %172 = vector.load %arg0[%c0_109, %c0_110, %c0_111, %c0_112] : memref<2x16x16x4xf32, #tpu.memory_space<vmem>>, vector<2x16x16x4xf32>
    %173 = vector.shape_cast %172 : vector<2x16x16x4xf32> to vector<512x4xf32>
    %174 = arith.addf %171, %173 : vector<512x4xf32>
    %cst_113 = arith.constant 0.000000e+00 : f32
    %175 = vector.broadcast %cst_113 : f32 to vector<512x4xf32>
    %176 = arith.maximumf %174, %175 : vector<512x4xf32>
    %177 = vector.shape_cast %176 : vector<512x4xf32> to vector<2x16x16x4xf32>
    %c0_114 = arith.constant 0 : index
    %c0_115 = arith.constant 0 : index
    %c0_116 = arith.constant 0 : index
    %c0_117 = arith.constant 0 : index
    %178 = vector.load %arg7[%c0_114, %c0_115, %c0_116, %c0_117] : memref<2x16x16x4xf32, #tpu.memory_space<vmem>>, vector<2x16x16x4xf32>
    tpu.vector_store %arg7[%c0_114, %c0_115, %c0_116, %c0_117], %177 {strides = array<i32>} : memref<2x16x16x4xf32, #tpu.memory_space<vmem>>, vector<2x16x16x4xf32>,
    return
  }
}

</mosaic_0001>

<llo_original>
// kernel: tpu_custom_call.1
$region0: #{tpu_custom_call.1}
  #allocation0 [shape = 'u32[]', space=smem, size = 0x4, offset = 0x4, fixed_abs, tag = 'smem constant byte address 0x4 - core index']
  #allocation1 [shape = 'u32[144,128]{1,0:T(1,128)}', space=vmem, size = 0x12000, scoped, tag = 'internal scratch']
  #allocation2 [shape = 'f32[2,18,18,4]{3,2,1,0:T(8,128)}', space=vmem, size = 0x6c000, scoped, tag = 'scratch operand']
  #allocation3 [shape = 'f32[2,18,18,4]{3,2,1,0:T(8,128)}', space=vmem, size = 0x6c000, scoped, tag = 'scratch operand']
  #allocation4 [shape = 'f32[512,4]{1,0:T(8,128)}', space=vmem, size = 0x40000, scoped, tag = 'scratch operand']
  %s0 = inlined_call_operand.vmem [shape: f32[2,16,16,4], index: 0, kind: input, shape index: {}]
  %s1 = inlined_call_operand.vmem [shape: bf16[36,4], index: 1, kind: input, shape index: {}]
  %s2 = inlined_call_operand.vmem [shape: f32[1,4], index: 2, kind: input, shape index: {}]
  %s3 = inlined_call_operand.vmem [shape: f32[1,4], index: 3, kind: input, shape index: {}]
  %s4 = inlined_call_operand.vmem [shape: bf16[36,4], index: 4, kind: input, shape index: {}]
  %s5 = inlined_call_operand.vmem [shape: f32[1,4], index: 5, kind: input, shape index: {}]
  %s6 = inlined_call_operand.vmem [shape: f32[1,4], index: 6, kind: input, shape index: {}]
  %s7 = inlined_call_operand.vmem [shape: f32[2,16,16,4], index: 7, kind: output, shape index: {}]
  %s8 = sld [smem:[#allocation0]]
  $region38: #{tpu_custom_call.1} parent=0
    _
  %s10 = ssub.s32 1, %s8
  %s11 = scalar_select 0, %s10, %s8
  // Predicated region
  $region2: #{tpu_custom_call.1} parent=0 // pred_check
    _
  $region3: #{tpu_custom_call.1} parent=0 // pred_check_branch
    %13 = sbr.rel (0) target = $region5
  $region4: #{tpu_custom_call.1} parent=0 // pred_region
    _
  $region5: #{tpu_custom_call.1} parent=0 // pred_fallthru
    _
  // Predicated region
  $region6: #{tpu_custom_call.1} parent=0 // pred_check
    _
  $region7: #{tpu_custom_call.1} parent=0 // pred_check_branch
    %15 = sbr.rel (0) target = $region9
  $region8: #{tpu_custom_call.1} parent=0 // pred_region
    _
  $region9: #{tpu_custom_call.1} parent=0 // pred_fallthru
    _
  // Predicated region
  $region10: #{tpu_custom_call.1} parent=0 // pred_check
    _
  $region11: #{tpu_custom_call.1} parent=0 // pred_check_branch
    %17 = sbr.rel (0) target = $region13
  $region12: #{tpu_custom_call.1} parent=0 // pred_region
    _
  $region13: #{tpu_custom_call.1} parent=0 // pred_fallthru
    _
  // Predicated region
  $region14: #{tpu_custom_call.1} parent=0 // pred_check
    _
  $region15: #{tpu_custom_call.1} parent=0 // pred_check_branch
    %19 = sbr.rel (0) target = $region17
  $region16: #{tpu_custom_call.1} parent=0 // pred_region
    _
  $region17: #{tpu_custom_call.1} parent=0 // pred_fallthru
    _
  // Predicated region
  $region18: #{tpu_custom_call.1} parent=0 // pred_check
    _
  $region19: #{tpu_custom_call.1} parent=0 // pred_check_branch
    %21 = sbr.rel (0) target = $region21
  $region20: #{tpu_custom_call.1} parent=0 // pred_region
    _
  $region21: #{tpu_custom_call.1} parent=0 // pred_fallthru
    _
  // Predicated region
  $region22: #{tpu_custom_call.1} parent=0 // pred_check
    _
  $region23: #{tpu_custom_call.1} parent=0 // pred_check_branch
    %23 = sbr.rel (0) target = $region25
  $region24: #{tpu_custom_call.1} parent=0 // pred_region
    _
  $region25: #{tpu_custom_call.1} parent=0 // pred_fallthru
    _
  // Predicated region
  $region26: #{tpu_custom_call.1} parent=0 // pred_check
    _
  $region27: #{tpu_custom_call.1} parent=0 // pred_check_branch
    %25 = sbr.rel (0) target = $region29
  $region28: #{tpu_custom_call.1} parent=0 // pred_region
    _
  $region29: #{tpu_custom_call.1} parent=0 // pred_fallthru
    _
  %vm27 = vcmask 31744
  %28 = vst.msk [vmem:[#allocation2] sm:$0xff] %vm27, 0.0
  %29 = vst.msk [vmem:[#allocation2 + $0x8] sm:$0xff] %vm27, 0.0
  %vm30 = vcmask 25600
  %31 = vst.msk [vmem:[#allocation2 + $0x10] sm:$0x3] %vm30, 0.0
  %32 = vst.msk [vmem:[#allocation2 + $0x1b0] sm:$0xff] %vm27, 0.0
  %33 = vst.msk [vmem:[#allocation2 + $0x1b8] sm:$0xff] %vm27, 0.0
  %34 = vst.msk [vmem:[#allocation2 + $0x1c0] sm:$0x3] %vm30, 0.0
  %s35 = scalar_lea.vmem [#allocation2], 408
  %36 = vst.msk [vmem:[%s35] sm:$0xff] %vm27, 0.0
  %37 = vst.msk [vmem:[%s35 + $0x8] sm:$0xff] %vm27, 0.0
  %38 = vst.msk [vmem:[%s35 + $0x10] sm:$0x3] %vm30, 0.0
  %39 = vst.msk [vmem:[%s35 + $0x1b0] sm:$0xff] %vm27, 0.0
  %40 = vst.msk [vmem:[%s35 + $0x1b8] sm:$0xff] %vm27, 0.0
  %41 = vst.msk [vmem:[%s35 + $0x1c0] sm:$0x3] %vm30, 0.0
  %vm42 = vcmask 24576
  %43 = vst.msk [vmem:[#allocation2] sm:$0x1] %vm42, 0.0
  %44 = vst.msk [vmem:[#allocation2 + $0x18] sm:$0x1] %vm42, 0.0
  %45 = vst.msk [vmem:[#allocation2 + $0x30] sm:$0x1] %vm42, 0.0
  %46 = vst.msk [vmem:[#allocation2 + $0x48] sm:$0x1] %vm42, 0.0
  %47 = vst.msk [vmem:[#allocation2 + $0x60] sm:$0x1] %vm42, 0.0
  %48 = vst.msk [vmem:[#allocation2 + $0x78] sm:$0x1] %vm42, 0.0
  %49 = vst.msk [vmem:[#allocation2 + $0x90] sm:$0x1] %vm42, 0.0
  %50 = vst.msk [vmem:[#allocation2 + $0xa8] sm:$0x1] %vm42, 0.0
  %51 = vst.msk [vmem:[#allocation2 + $0xc0] sm:$0x1] %vm42, 0.0
  %52 = vst.msk [vmem:[#allocation2 + $0xd8] sm:$0x1] %vm42, 0.0
  %53 = vst.msk [vmem:[#allocation2 + $0xf0] sm:$0x1] %vm42, 0.0
  %54 = vst.msk [vmem:[#allocation2 + $0x108] sm:$0x1] %vm42, 0.0
  %55 = vst.msk [vmem:[#allocation2 + $0x120] sm:$0x1] %vm42, 0.0
  %56 = vst.msk [vmem:[#allocation2 + $0x138] sm:$0x1] %vm42, 0.0
  %57 = vst.msk [vmem:[#allocation2 + $0x150] sm:$0x1] %vm42, 0.0
  %58 = vst.msk [vmem:[#allocation2 + $0x168] sm:$0x1] %vm42, 0.0
  %59 = vst.msk [vmem:[#allocation2 + $0x180] sm:$0x1] %vm42, 0.0
  %60 = vst.msk [vmem:[#allocation2 + $0x198] sm:$0x1] %vm42, 0.0
  %61 = vst.msk [vmem:[#allocation2 + $0x1b0] sm:$0x1] %vm42, 0.0
  %62 = vst.msk [vmem:[#allocation2 + $0x1c8] sm:$0x1] %vm42, 0.0
  %63 = vst.msk [vmem:[#allocation2 + $0x1e0] sm:$0x1] %vm42, 0.0
  %64 = vst.msk [vmem:[#allocation2 + $0x1f8] sm:$0x1] %vm42, 0.0
  %65 = vst.msk [vmem:[#allocation2 + $0x210] sm:$0x1] %vm42, 0.0
  %66 = vst.msk [vmem:[#allocation2 + $0x228] sm:$0x1] %vm42, 0.0
  %67 = vst.msk [vmem:[#allocation2 + $0x240] sm:$0x1] %vm42, 0.0
  %68 = vst.msk [vmem:[#allocation2 + $0x258] sm:$0x1] %vm42, 0.0
  %69 = vst.msk [vmem:[#allocation2 + $0x270] sm:$0x1] %vm42, 0.0
  %70 = vst.msk [vmem:[#allocation2 + $0x288] sm:$0x1] %vm42, 0.0
  %71 = vst.msk [vmem:[#allocation2 + $0x2a0] sm:$0x1] %vm42, 0.0
  %72 = vst.msk [vmem:[#allocation2 + $0x2b8] sm:$0x1] %vm42, 0.0
  %73 = vst.msk [vmem:[#allocation2 + $0x2d0] sm:$0x1] %vm42, 0.0
  %74 = vst.msk [vmem:[#allocation2 + $0x2e8] sm:$0x1] %vm42, 0.0
  %75 = vst.msk [vmem:[#allocation2 + $0x300] sm:$0x1] %vm42, 0.0
  %76 = vst.msk [vmem:[#allocation2 + $0x318] sm:$0x1] %vm42, 0.0
  %77 = vst.msk [vmem:[#allocation2 + $0x330] sm:$0x1] %vm42, 0.0
  %78 = vst.msk [vmem:[#allocation2 + $0x348] sm:$0x1] %vm42, 0.0
  %79 = vst.msk [vmem:[#allocation2 + $0x11] sm:$0x1] %vm42, 0.0
  %80 = vst.msk [vmem:[#allocation2 + $0x29] sm:$0x1] %vm42, 0.0
  %81 = vst.msk [vmem:[#allocation2 + $0x41] sm:$0x1] %vm42, 0.0
  %82 = vst.msk [vmem:[#allocation2 + $0x59] sm:$0x1] %vm42, 0.0
  %83 = vst.msk [vmem:[#allocation2 + $0x71] sm:$0x1] %vm42, 0.0
  %84 = vst.msk [vmem:[#allocation2 + $0x89] sm:$0x1] %vm42, 0.0
  %85 = vst.msk [vmem:[#allocation2 + $0xa1] sm:$0x1] %vm42, 0.0
  %86 = vst.msk [vmem:[#allocation2 + $0xb9] sm:$0x1] %vm42, 0.0
  %87 = vst.msk [vmem:[#allocation2 + $0xd1] sm:$0x1] %vm42, 0.0
  %88 = vst.msk [vmem:[#allocation2 + $0xe9] sm:$0x1] %vm42, 0.0
  %89 = vst.msk [vmem:[#allocation2 + $0x101] sm:$0x1] %vm42, 0.0
  %90 = vst.msk [vmem:[#allocation2 + $0x119] sm:$0x1] %vm42, 0.0
  %91 = vst.msk [vmem:[#allocation2 + $0x131] sm:$0x1] %vm42, 0.0
  %92 = vst.msk [vmem:[#allocation2 + $0x149] sm:$0x1] %vm42, 0.0
  %93 = vst.msk [vmem:[#allocation2 + $0x161] sm:$0x1] %vm42, 0.0
  %94 = vst.msk [vmem:[#allocation2 + $0x179] sm:$0x1] %vm42, 0.0
  %95 = vst.msk [vmem:[#allocation2 + $0x191] sm:$0x1] %vm42, 0.0
  %96 = vst.msk [vmem:[#allocation2 + $0x1a9] sm:$0x1] %vm42, 0.0
  %97 = vst.msk [vmem:[#allocation2 + $0x1c1] sm:$0x1] %vm42, 0.0
  %98 = vst.msk [vmem:[#allocation2 + $0x1d9] sm:$0x1] %vm42, 0.0
  %99 = vst.msk [vmem:[#allocation2 + $0x1f1] sm:$0x1] %vm42, 0.0
  %100 = vst.msk [vmem:[#allocation2 + $0x209] sm:$0x1] %vm42, 0.0
  %101 = vst.msk [vmem:[#allocation2 + $0x221] sm:$0x1] %vm42, 0.0
  %102 = vst.msk [vmem:[#allocation2 + $0x239] sm:$0x1] %vm42, 0.0
  %103 = vst.msk [vmem:[#allocation2 + $0x251] sm:$0x1] %vm42, 0.0
  %104 = vst.msk [vmem:[#allocation2 + $0x269] sm:$0x1] %vm42, 0.0
  %105 = vst.msk [vmem:[#allocation2 + $0x281] sm:$0x1] %vm42, 0.0
  %106 = vst.msk [vmem:[#allocation2 + $0x299] sm:$0x1] %vm42, 0.0
  %107 = vst.msk [vmem:[#allocation2 + $0x2b1] sm:$0x1] %vm42, 0.0
  %108 = vst.msk [vmem:[#allocation2 + $0x2c9] sm:$0x1] %vm42, 0.0
  %109 = vst.msk [vmem:[#allocation2 + $0x2e1] sm:$0x1] %vm42, 0.0
  %110 = vst.msk [vmem:[#allocation2 + $0x2f9] sm:$0x1] %vm42, 0.0
  %111 = vst.msk [vmem:[#allocation2 + $0x311] sm:$0x1] %vm42, 0.0
  %112 = vst.msk [vmem:[#allocation2 + $0x329] sm:$0x1] %vm42, 0.0
  %113 = vst.msk [vmem:[#allocation2 + $0x341] sm:$0x1] %vm42, 0.0
  %114 = vst.msk [vmem:[#allocation2 + $0x359] sm:$0x1] %vm42, 0.0
  %v115 = vld [vmem:[%s0] sm:$0xff]
  %v116 = vld [vmem:[%s0 + $0x8] sm:$0xff]
  %v117 = vld [vmem:[%s0 + $0x10] sm:$0xff]
  %v118 = vld [vmem:[%s0 + $0x18] sm:$0xff]
  %v119 = vld [vmem:[%s0 + $0x20] sm:$0xff]
  %v120 = vld [vmem:[%s0 + $0x28] sm:$0xff]
  %v121 = vld [vmem:[%s0 + $0x30] sm:$0xff]
  %v122 = vld [vmem:[%s0 + $0x38] sm:$0xff]
  %v123 = vld [vmem:[%s0 + $0x40] sm:$0xff]
  %v124 = vld [vmem:[%s0 + $0x48] sm:$0xff]
  %v125 = vld [vmem:[%s0 + $0x50] sm:$0xff]
  %v126 = vld [vmem:[%s0 + $0x58] sm:$0xff]
  %v127 = vld [vmem:[%s0 + $0x60] sm:$0xff]
  %v128 = vld [vmem:[%s0 + $0x68] sm:$0xff]
  %v129 = vld [vmem:[%s0 + $0x70] sm:$0xff]
  %v130 = vld [vmem:[%s0 + $0x78] sm:$0xff]
  %v131 = vld [vmem:[%s0 + $0x80] sm:$0xff]
  %v132 = vld [vmem:[%s0 + $0x88] sm:$0xff]
  %v133 = vld [vmem:[%s0 + $0x90] sm:$0xff]
  %v134 = vld [vmem:[%s0 + $0x98] sm:$0xff]
  %v135 = vld [vmem:[%s0 + $0xa0] sm:$0xff]
  %v136 = vld [vmem:[%s0 + $0xa8] sm:$0xff]
  %v137 = vld [vmem:[%s0 + $0xb0] sm:$0xff]
  %v138 = vld [vmem:[%s0 + $0xb8] sm:$0xff]
  %v139 = vld [vmem:[%s0 + $0xc0] sm:$0xff]
  %v140 = vld [vmem:[%s0 + $0xc8] sm:$0xff]
  %v141 = vld [vmem:[%s0 + $0xd0] sm:$0xff]
  %v142 = vld [vmem:[%s0 + $0xd8] sm:$0xff]
  %v143 = vld [vmem:[%s0 + $0xe0] sm:$0xff]
  %v144 = vld [vmem:[%s0 + $0xe8] sm:$0xff]
  %v145 = vld [vmem:[%s0 + $0xf0] sm:$0xff]
  %v146 = vld [vmem:[%s0 + $0xf8] sm:$0xff]
  %v147 = vld [vmem:[%s0 + $0x100] sm:$0xff]
  %v148 = vld [vmem:[%s0 + $0x108] sm:$0xff]
  %v149 = vld [vmem:[%s0 + $0x110] sm:$0xff]
  %v150 = vld [vmem:[%s0 + $0x118] sm:$0xff]
  %v151 = vld [vmem:[%s0 + $0x120] sm:$0xff]
  %v152 = vld [vmem:[%s0 + $0x128] sm:$0xff]
  %v153 = vld [vmem:[%s0 + $0x130] sm:$0xff]
  %v154 = vld [vmem:[%s0 + $0x138] sm:$0xff]
  %v155 = vld [vmem:[%s0 + $0x140] sm:$0xff]
  %v156 = vld [vmem:[%s0 + $0x148] sm:$0xff]
  %v157 = vld [vmem:[%s0 + $0x150] sm:$0xff]
  %v158 = vld [vmem:[%s0 + $0x158] sm:$0xff]
  %v159 = vld [vmem:[%s0 + $0x160] sm:$0xff]
  %v160 = vld [vmem:[%s0 + $0x168] sm:$0xff]
  %v161 = vld [vmem:[%s0 + $0x170] sm:$0xff]
  %v162 = vld [vmem:[%s0 + $0x178] sm:$0xff]
  %v163 = vld [vmem:[%s0 + $0x180] sm:$0xff]
  %v164 = vld [vmem:[%s0 + $0x188] sm:$0xff]
  %v165 = vld [vmem:[%s0 + $0x190] sm:$0xff]
  %v166 = vld [vmem:[%s0 + $0x198] sm:$0xff]
  %v167 = vld [vmem:[%s0 + $0x1a0] sm:$0xff]
  %v168 = vld [vmem:[%s0 + $0x1a8] sm:$0xff]
  %v169 = vld [vmem:[%s0 + $0x1b0] sm:$0xff]
  %v170 = vld [vmem:[%s0 + $0x1b8] sm:$0xff]
  %v171 = vld [vmem:[%s0 + $0x1c0] sm:$0xff]
  %v172 = vld [vmem:[%s0 + $0x1c8] sm:$0xff]
  %v173 = vld [vmem:[%s0 + $0x1d0] sm:$0xff]
  %v174 = vld [vmem:[%s0 + $0x1d8] sm:$0xff]
  %v175 = vld [vmem:[%s0 + $0x1e0] sm:$0xff]
  %v176 = vld [vmem:[%s0 + $0x1e8] sm:$0xff]
  %v177 = vld [vmem:[%s0 + $0x1f0] sm:$0xff]
  %v178 = vld [vmem:[%s0 + $0x1f8] sm:$0xff]
  %s179 = scalar_lea.vmem [#allocation2], 24
  %180 = vst.msk [vmem:[%s179 + $0x1] sm:$0xff] %vm27, %v115
  %181 = vst.msk [vmem:[%s179 + $0x9] sm:$0xff] %vm27, %v116
  %182 = vst.msk [vmem:[%s179 + $0x19] sm:$0xff] %vm27, %v117
  %183 = vst.msk [vmem:[%s179 + $0x21] sm:$0xff] %vm27, %v118
  %184 = vst.msk [vmem:[%s179 + $0x31] sm:$0xff] %vm27, %v119
  %185 = vst.msk [vmem:[%s179 + $0x39] sm:$0xff] %vm27, %v120
  %186 = vst.msk [vmem:[%s179 + $0x49] sm:$0xff] %vm27, %v121
  %187 = vst.msk [vmem:[%s179 + $0x51] sm:$0xff] %vm27, %v122
  %188 = vst.msk [vmem:[%s179 + $0x61] sm:$0xff] %vm27, %v123
  %189 = vst.msk [vmem:[%s179 + $0x69] sm:$0xff] %vm27, %v124
  %190 = vst.msk [vmem:[%s179 + $0x79] sm:$0xff] %vm27, %v125
  %191 = vst.msk [vmem:[%s179 + $0x81] sm:$0xff] %vm27, %v126
  %192 = vst.msk [vmem:[%s179 + $0x91] sm:$0xff] %vm27, %v127
  %193 = vst.msk [vmem:[%s179 + $0x99] sm:$0xff] %vm27, %v128
  %194 = vst.msk [vmem:[%s179 + $0xa9] sm:$0xff] %vm27, %v129
  %195 = vst.msk [vmem:[%s179 + $0xb1] sm:$0xff] %vm27, %v130
  %196 = vst.msk [vmem:[%s179 + $0xc1] sm:$0xff] %vm27, %v131
  %197 = vst.msk [vmem:[%s179 + $0xc9] sm:$0xff] %vm27, %v132
  %198 = vst.msk [vmem:[%s179 + $0xd9] sm:$0xff] %vm27, %v133
  %199 = vst.msk [vmem:[%s179 + $0xe1] sm:$0xff] %vm27, %v134
  %200 = vst.msk [vmem:[%s179 + $0xf1] sm:$0xff] %vm27, %v135
  %201 = vst.msk [vmem:[%s179 + $0xf9] sm:$0xff] %vm27, %v136
  %202 = vst.msk [vmem:[%s179 + $0x109] sm:$0xff] %vm27, %v137
  %203 = vst.msk [vmem:[%s179 + $0x111] sm:$0xff] %vm27, %v138
  %204 = vst.msk [vmem:[%s179 + $0x121] sm:$0xff] %vm27, %v139
  %205 = vst.msk [vmem:[%s179 + $0x129] sm:$0xff] %vm27, %v140
  %206 = vst.msk [vmem:[%s179 + $0x139] sm:$0xff] %vm27, %v141
  %207 = vst.msk [vmem:[%s179 + $0x141] sm:$0xff] %vm27, %v142
  %208 = vst.msk [vmem:[%s179 + $0x151] sm:$0xff] %vm27, %v143
  %209 = vst.msk [vmem:[%s179 + $0x159] sm:$0xff] %vm27, %v144
  %210 = vst.msk [vmem:[%s179 + $0x169] sm:$0xff] %vm27, %v145
  %211 = vst.msk [vmem:[%s179 + $0x171] sm:$0xff] %vm27, %v146
  %212 = vst.msk [vmem:[%s179 + $0x1b1] sm:$0xff] %vm27, %v147
  %213 = vst.msk [vmem:[%s179 + $0x1b9] sm:$0xff] %vm27, %v148
  %214 = vst.msk [vmem:[%s179 + $0x1c9] sm:$0xff] %vm27, %v149
  %215 = vst.msk [vmem:[%s179 + $0x1d1] sm:$0xff] %vm27, %v150
  %216 = vst.msk [vmem:[%s179 + $0x1e1] sm:$0xff] %vm27, %v151
  %217 = vst.msk [vmem:[%s179 + $0x1e9] sm:$0xff] %vm27, %v152
  %218 = vst.msk [vmem:[%s179 + $0x1f9] sm:$0xff] %vm27, %v153
  %219 = vst.msk [vmem:[%s179 + $0x201] sm:$0xff] %vm27, %v154
  %220 = vst.msk [vmem:[%s179 + $0x211] sm:$0xff] %vm27, %v155
  %221 = vst.msk [vmem:[%s179 + $0x219] sm:$0xff] %vm27, %v156
  %222 = vst.msk [vmem:[%s179 + $0x229] sm:$0xff] %vm27, %v157
  %223 = vst.msk [vmem:[%s179 + $0x231] sm:$0xff] %vm27, %v158
  %224 = vst.msk [vmem:[%s179 + $0x241] sm:$0xff] %vm27, %v159
  %225 = vst.msk [vmem:[%s179 + $0x249] sm:$0xff] %vm27, %v160
  %226 = vst.msk [vmem:[%s179 + $0x259] sm:$0xff] %vm27, %v161
  %227 = vst.msk [vmem:[%s179 + $0x261] sm:$0xff] %vm27, %v162
  %228 = vst.msk [vmem:[%s179 + $0x271] sm:$0xff] %vm27, %v163
  %229 = vst.msk [vmem:[%s179 + $0x279] sm:$0xff] %vm27, %v164
  %230 = vst.msk [vmem:[%s179 + $0x289] sm:$0xff] %vm27, %v165
  %231 = vst.msk [vmem:[%s179 + $0x291] sm:$0xff] %vm27, %v166
  %232 = vst.msk [vmem:[%s179 + $0x2a1] sm:$0xff] %vm27, %v167
  %233 = vst.msk [vmem:[%s179 + $0x2a9] sm:$0xff] %vm27, %v168
  %234 = vst.msk [vmem:[%s179 + $0x2b9] sm:$0xff] %vm27, %v169
  %235 = vst.msk [vmem:[%s179 + $0x2c1] sm:$0xff] %vm27, %v170
  %236 = vst.msk [vmem:[%s179 + $0x2d1] sm:$0xff] %vm27, %v171
  %237 = vst.msk [vmem:[%s179 + $0x2d9] sm:$0xff] %vm27, %v172
  %238 = vst.msk [vmem:[%s179 + $0x2e9] sm:$0xff] %vm27, %v173
  %239 = vst.msk [vmem:[%s179 + $0x2f1] sm:$0xff] %vm27, %v174
  %240 = vst.msk [vmem:[%s179 + $0x301] sm:$0xff] %vm27, %v175
  %241 = vst.msk [vmem:[%s179 + $0x309] sm:$0xff] %vm27, %v176
  %242 = vst.msk [vmem:[%s179 + $0x319] sm:$0xff] %vm27, %v177
  %243 = vst.msk [vmem:[%s179 + $0x321] sm:$0xff] %vm27, %v178
  %v244 = vld [vmem:[#allocation2] sm:$0xff]
  %v245 = vld [vmem:[#allocation2 + $0x8] sm:$0xff]
  %v246 = vld [vmem:[#allocation2 + $0x10] sm:$0x3]
  %v247 = vld [vmem:[#allocation2 + $0x18] sm:$0xff]
  %v248 = vld [vmem:[#allocation2 + $0x20] sm:$0xff]
  %v249 = vld [vmem:[#allocation2 + $0x28] sm:$0x3]
  %v250 = vld [vmem:[#allocation2 + $0x30] sm:$0xff]
  %v251 = vld [vmem:[#allocation2 + $0x38] sm:$0xff]
  %v252 = vld [vmem:[#allocation2 + $0x40] sm:$0x3]
  %v253 = vld [vmem:[#allocation2 + $0x48] sm:$0xff]
  %v254 = vld [vmem:[#allocation2 + $0x50] sm:$0xff]
  %v255 = vld [vmem:[#allocation2 + $0x58] sm:$0x3]
  %v256 = vld [vmem:[#allocation2 + $0x60] sm:$0xff]
  %v257 = vld [vmem:[#allocation2 + $0x68] sm:$0xff]
  %v258 = vld [vmem:[#allocation2 + $0x70] sm:$0x3]
  %v259 = vld [vmem:[#allocation2 + $0x78] sm:$0xff]
  %v260 = vld [vmem:[#allocation2 + $0x80] sm:$0xff]
  %v261 = vld [vmem:[#allocation2 + $0x88] sm:$0x3]
  %v262 = vld [vmem:[#allocation2 + $0x90] sm:$0xff]
  %v263 = vld [vmem:[#allocation2 + $0x98] sm:$0xff]
  %v264 = vld [vmem:[#allocation2 + $0xa0] sm:$0x3]
  %v265 = vld [vmem:[#allocation2 + $0xa8] sm:$0xff]
  %v266 = vld [vmem:[#allocation2 + $0xb0] sm:$0xff]
  %v267 = vld [vmem:[#allocation2 + $0xb8] sm:$0x3]
  %v268 = vld [vmem:[#allocation2 + $0xc0] sm:$0xff]
  %v269 = vld [vmem:[#allocation2 + $0xc8] sm:$0xff]
  %v270 = vld [vmem:[#allocation2 + $0xd0] sm:$0x3]
  %v271 = vld [vmem:[#allocation2 + $0xd8] sm:$0xff]
  %v272 = vld [vmem:[#allocation2 + $0xe0] sm:$0xff]
  %v273 = vld [vmem:[#allocation2 + $0xe8] sm:$0x3]
  %v274 = vld [vmem:[#allocation2 + $0xf0] sm:$0xff]
  %v275 = vld [vmem:[#allocation2 + $0xf8] sm:$0xff]
  %v276 = vld [vmem:[#allocation2 + $0x100] sm:$0x3]
  %v277 = vld [vmem:[#allocation2 + $0x108] sm:$0xff]
  %v278 = vld [vmem:[#allocation2 + $0x110] sm:$0xff]
  %v279 = vld [vmem:[#allocation2 + $0x118] sm:$0x3]
  %v280 = vld [vmem:[#allocation2 + $0x120] sm:$0xff]
  %v281 = vld [vmem:[#allocation2 + $0x128] sm:$0xff]
  %v282 = vld [vmem:[#allocation2 + $0x130] sm:$0x3]
  %v283 = vld [vmem:[#allocation2 + $0x138] sm:$0xff]
  %v284 = vld [vmem:[#allocation2 + $0x140] sm:$0xff]
  %v285 = vld [vmem:[#allocation2 + $0x148] sm:$0x3]
  %v286 = vld [vmem:[#allocation2 + $0x150] sm:$0xff]
  %v287 = vld [vmem:[#allocation2 + $0x158] sm:$0xff]
  %v288 = vld [vmem:[#allocation2 + $0x160] sm:$0x3]
  %v289 = vld [vmem:[#allocation2 + $0x168] sm:$0xff]
  %v290 = vld [vmem:[#allocation2 + $0x170] sm:$0xff]
  %v291 = vld [vmem:[#allocation2 + $0x178] sm:$0x3]
  %v292 = vld [vmem:[#allocation2 + $0x180] sm:$0xff]
  %v293 = vld [vmem:[#allocation2 + $0x188] sm:$0xff]
  %v294 = vld [vmem:[#allocation2 + $0x190] sm:$0x3]
  %v295 = vld [vmem:[#allocation2 + $0x198] sm:$0xff]
  %v296 = vld [vmem:[#allocation2 + $0x1a0] sm:$0xff]
  %v297 = vld [vmem:[#allocation2 + $0x1a8] sm:$0x3]
  %vm346 = vcmask 1046528
  %v347 = vrot.slane %v244, 1
  %v348 = vrot.slane %v245, 1
  %v349 = vsel %vm346, %v347, %v348
  %v350 = vrot.slane %v246, 1
  %v351 = vsel %vm346, %v348, %v350
  %v352 = vrot.slane %v247, 1
  %v353 = vrot.slane %v248, 1
  %v354 = vsel %vm346, %v352, %v353
  %v355 = vrot.slane %v249, 1
  %v356 = vsel %vm346, %v353, %v355
  %v357 = vrot.slane %v250, 1
  %v358 = vrot.slane %v251, 1
  %v359 = vsel %vm346, %v357, %v358
  %v360 = vrot.slane %v252, 1
  %v361 = vsel %vm346, %v358, %v360
  %v362 = vrot.slane %v253, 1
  %v363 = vrot.slane %v254, 1
  %v364 = vsel %vm346, %v362, %v363
  %v365 = vrot.slane %v255, 1
  %v366 = vsel %vm346, %v363, %v365
  %v367 = vrot.slane %v256, 1
  %v368 = vrot.slane %v257, 1
  %v369 = vsel %vm346, %v367, %v368
  %v370 = vrot.slane %v258, 1
  %v371 = vsel %vm346, %v368, %v370
  %v372 = vrot.slane %v259, 1
  %v373 = vrot.slane %v260, 1
  %v374 = vsel %vm346, %v372, %v373
  %v375 = vrot.slane %v261, 1
  %v376 = vsel %vm346, %v373, %v375
  %v377 = vrot.slane %v262, 1
  %v378 = vrot.slane %v263, 1
  %v379 = vsel %vm346, %v377, %v378
  %v380 = vrot.slane %v264, 1
  %v381 = vsel %vm346, %v378, %v380
  %v382 = vrot.slane %v265, 1
  %v383 = vrot.slane %v266, 1
  %v384 = vsel %vm346, %v382, %v383
  %v385 = vrot.slane %v267, 1
  %v386 = vsel %vm346, %v383, %v385
  %v387 = vrot.slane %v268, 1
  %v388 = vrot.slane %v269, 1
  %v389 = vsel %vm346, %v387, %v388
  %v390 = vrot.slane %v270, 1
  %v391 = vsel %vm346, %v388, %v390
  %v392 = vrot.slane %v271, 1
  %v393 = vrot.slane %v272, 1
  %v394 = vsel %vm346, %v392, %v393
  %v395 = vrot.slane %v273, 1
  %v396 = vsel %vm346, %v393, %v395
  %v397 = vrot.slane %v274, 1
  %v398 = vrot.slane %v275, 1
  %v399 = vsel %vm346, %v397, %v398
  %v400 = vrot.slane %v276, 1
  %v401 = vsel %vm346, %v398, %v400
  %v402 = vrot.slane %v277, 1
  %v403 = vrot.slane %v278, 1
  %v404 = vsel %vm346, %v402, %v403
  %v405 = vrot.slane %v279, 1
  %v406 = vsel %vm346, %v403, %v405
  %v407 = vrot.slane %v280, 1
  %v408 = vrot.slane %v281, 1
  %v409 = vsel %vm346, %v407, %v408
  %v410 = vrot.slane %v282, 1
  %v411 = vsel %vm346, %v408, %v410
  %v412 = vrot.slane %v283, 1
  %v413 = vrot.slane %v284, 1
  %v414 = vsel %vm346, %v412, %v413
  %v415 = vrot.slane %v285, 1
  %v416 = vsel %vm346, %v413, %v415
  %v417 = vrot.slane %v286, 1
  %v418 = vrot.slane %v287, 1
  %v419 = vsel %vm346, %v417, %v418
  %v420 = vrot.slane %v288, 1
  %v421 = vsel %vm346, %v418, %v420
  %v422 = vrot.slane %v289, 1
  %v423 = vrot.slane %v290, 1
  %v424 = vsel %vm346, %v422, %v423
  %v425 = vrot.slane %v291, 1
  %v426 = vsel %vm346, %v423, %v425
  %427 = vrot.lane.b32.xlu0 %v349, 4
  %v428 = vpop.permute.xlu0 %427
  %429 = vrot.lane.b32.xlu0 %v351, 4
  %v430 = vpop.permute.xlu0 %429
  %431 = vrot.lane.b32.xlu0 %v354, 4
  %v432 = vpop.permute.xlu0 %431
  %433 = vrot.lane.b32.xlu0 %v356, 4
  %v434 = vpop.permute.xlu0 %433
  %435 = vrot.lane.b32.xlu0 %v359, 4
  %v436 = vpop.permute.xlu0 %435
  %437 = vrot.lane.b32.xlu0 %v361, 4
  %v438 = vpop.permute.xlu0 %437
  %439 = vrot.lane.b32.xlu0 %v364, 4
  %v440 = vpop.permute.xlu0 %439
  %441 = vrot.lane.b32.xlu0 %v366, 4
  %v442 = vpop.permute.xlu0 %441
  %443 = vrot.lane.b32.xlu0 %v369, 4
  %v444 = vpop.permute.xlu0 %443
  %445 = vrot.lane.b32.xlu0 %v371, 4
  %v446 = vpop.permute.xlu0 %445
  %447 = vrot.lane.b32.xlu0 %v374, 4
  %v448 = vpop.permute.xlu0 %447
  %449 = vrot.lane.b32.xlu0 %v376, 4
  %v450 = vpop.permute.xlu0 %449
  %451 = vrot.lane.b32.xlu0 %v379, 4
  %v452 = vpop.permute.xlu0 %451
  %453 = vrot.lane.b32.xlu0 %v381, 4
  %v454 = vpop.permute.xlu0 %453
  %455 = vrot.lane.b32.xlu0 %v384, 4
  %v456 = vpop.permute.xlu0 %455
  %457 = vrot.lane.b32.xlu0 %v386, 4
  %v458 = vpop.permute.xlu0 %457
  %459 = vrot.lane.b32.xlu0 %v389, 4
  %v460 = vpop.permute.xlu0 %459
  %461 = vrot.lane.b32.xlu0 %v391, 4
  %v462 = vpop.permute.xlu0 %461
  %463 = vrot.lane.b32.xlu0 %v394, 4
  %v464 = vpop.permute.xlu0 %463
  %465 = vrot.lane.b32.xlu0 %v396, 4
  %v466 = vpop.permute.xlu0 %465
  %467 = vrot.lane.b32.xlu0 %v399, 4
  %v468 = vpop.permute.xlu0 %467
  %469 = vrot.lane.b32.xlu0 %v401, 4
  %v470 = vpop.permute.xlu0 %469
  %471 = vrot.lane.b32.xlu0 %v404, 4
  %v472 = vpop.permute.xlu0 %471
  %473 = vrot.lane.b32.xlu0 %v406, 4
  %v474 = vpop.permute.xlu0 %473
  %475 = vrot.lane.b32.xlu0 %v409, 4
  %v476 = vpop.permute.xlu0 %475
  %477 = vrot.lane.b32.xlu0 %v411, 4
  %v478 = vpop.permute.xlu0 %477
  %479 = vrot.lane.b32.xlu0 %v414, 4
  %v480 = vpop.permute.xlu0 %479
  %481 = vrot.lane.b32.xlu0 %v416, 4
  %v482 = vpop.permute.xlu0 %481
  %483 = vrot.lane.b32.xlu0 %v419, 4
  %v484 = vpop.permute.xlu0 %483
  %485 = vrot.lane.b32.xlu0 %v421, 4
  %v486 = vpop.permute.xlu0 %485
  %487 = vrot.lane.b32.xlu0 %v424, 4
  %v488 = vpop.permute.xlu0 %487
  %489 = vrot.lane.b32.xlu0 %v426, 4
  %v490 = vpop.permute.xlu0 %489
  %vm523 = vcmask 1045504
  %v524 = vrot.slane %v244, 2
  %v525 = vrot.slane %v245, 2
  %v526 = vsel %vm523, %v524, %v525
  %v527 = vrot.slane %v246, 2
  %v528 = vsel %vm523, %v525, %v527
  %v529 = vrot.slane %v247, 2
  %v530 = vrot.slane %v248, 2
  %v531 = vsel %vm523, %v529, %v530
  %v532 = vrot.slane %v249, 2
  %v533 = vsel %vm523, %v530, %v532
  %v534 = vrot.slane %v250, 2
  %v535 = vrot.slane %v251, 2
  %v536 = vsel %vm523, %v534, %v535
  %v537 = vrot.slane %v252, 2
  %v538 = vsel %vm523, %v535, %v537
  %v539 = vrot.slane %v253, 2
  %v540 = vrot.slane %v254, 2
  %v541 = vsel %vm523, %v539, %v540
  %v542 = vrot.slane %v255, 2
  %v543 = vsel %vm523, %v540, %v542
  %v544 = vrot.slane %v256, 2
  %v545 = vrot.slane %v257, 2
  %v546 = vsel %vm523, %v544, %v545
  %v547 = vrot.slane %v258, 2
  %v548 = vsel %vm523, %v545, %v547
  %v549 = vrot.slane %v259, 2
  %v550 = vrot.slane %v260, 2
  %v551 = vsel %vm523, %v549, %v550
  %v552 = vrot.slane %v261, 2
  %v553 = vsel %vm523, %v550, %v552
  %v554 = vrot.slane %v262, 2
  %v555 = vrot.slane %v263, 2
  %v556 = vsel %vm523, %v554, %v555
  %v557 = vrot.slane %v264, 2
  %v558 = vsel %vm523, %v555, %v557
  %v559 = vrot.slane %v265, 2
  %v560 = vrot.slane %v266, 2
  %v561 = vsel %vm523, %v559, %v560
  %v562 = vrot.slane %v267, 2
  %v563 = vsel %vm523, %v560, %v562
  %v564 = vrot.slane %v268, 2
  %v565 = vrot.slane %v269, 2
  %v566 = vsel %vm523, %v564, %v565
  %v567 = vrot.slane %v270, 2
  %v568 = vsel %vm523, %v565, %v567
  %v569 = vrot.slane %v271, 2
  %v570 = vrot.slane %v272, 2
  %v571 = vsel %vm523, %v569, %v570
  %v572 = vrot.slane %v273, 2
  %v573 = vsel %vm523, %v570, %v572
  %v574 = vrot.slane %v274, 2
  %v575 = vrot.slane %v275, 2
  %v576 = vsel %vm523, %v574, %v575
  %v577 = vrot.slane %v276, 2
  %v578 = vsel %vm523, %v575, %v577
  %v579 = vrot.slane %v277, 2
  %v580 = vrot.slane %v278, 2
  %v581 = vsel %vm523, %v579, %v580
  %v582 = vrot.slane %v279, 2
  %v583 = vsel %vm523, %v580, %v582
  %v584 = vrot.slane %v280, 2
  %v585 = vrot.slane %v281, 2
  %v586 = vsel %vm523, %v584, %v585
  %v587 = vrot.slane %v282, 2
  %v588 = vsel %vm523, %v585, %v587
  %v589 = vrot.slane %v283, 2
  %v590 = vrot.slane %v284, 2
  %v591 = vsel %vm523, %v589, %v590
  %v592 = vrot.slane %v285, 2
  %v593 = vsel %vm523, %v590, %v592
  %v594 = vrot.slane %v286, 2
  %v595 = vrot.slane %v287, 2
  %v596 = vsel %vm523, %v594, %v595
  %v597 = vrot.slane %v288, 2
  %v598 = vsel %vm523, %v595, %v597
  %v599 = vrot.slane %v289, 2
  %v600 = vrot.slane %v290, 2
  %v601 = vsel %vm523, %v599, %v600
  %v602 = vrot.slane %v291, 2
  %v603 = vsel %vm523, %v600, %v602
  %604 = vrot.lane.b32.xlu0 %v526, 8
  %v605 = vpop.permute.xlu0 %604
  %606 = vrot.lane.b32.xlu0 %v528, 8
  %v607 = vpop.permute.xlu0 %606
  %608 = vrot.lane.b32.xlu0 %v531, 8
  %v609 = vpop.permute.xlu0 %608
  %610 = vrot.lane.b32.xlu0 %v533, 8
  %v611 = vpop.permute.xlu0 %610
  %612 = vrot.lane.b32.xlu0 %v536, 8
  %v613 = vpop.permute.xlu0 %612
  %614 = vrot.lane.b32.xlu0 %v538, 8
  %v615 = vpop.permute.xlu0 %614
  %616 = vrot.lane.b32.xlu0 %v541, 8
  %v617 = vpop.permute.xlu0 %616
  %618 = vrot.lane.b32.xlu0 %v543, 8
  %v619 = vpop.permute.xlu0 %618
  %620 = vrot.lane.b32.xlu0 %v546, 8
  %v621 = vpop.permute.xlu0 %620
  %622 = vrot.lane.b32.xlu0 %v548, 8
  %v623 = vpop.permute.xlu0 %622
  %624 = vrot.lane.b32.xlu0 %v551, 8
  %v625 = vpop.permute.xlu0 %624
  %626 = vrot.lane.b32.xlu0 %v553, 8
  %v627 = vpop.permute.xlu0 %626
  %628 = vrot.lane.b32.xlu0 %v556, 8
  %v629 = vpop.permute.xlu0 %628
  %630 = vrot.lane.b32.xlu0 %v558, 8
  %v631 = vpop.permute.xlu0 %630
  %632 = vrot.lane.b32.xlu0 %v561, 8
  %v633 = vpop.permute.xlu0 %632
  %634 = vrot.lane.b32.xlu0 %v563, 8
  %v635 = vpop.permute.xlu0 %634
  %636 = vrot.lane.b32.xlu0 %v566, 8
  %v637 = vpop.permute.xlu0 %636
  %638 = vrot.lane.b32.xlu0 %v568, 8
  %v639 = vpop.permute.xlu0 %638
  %640 = vrot.lane.b32.xlu0 %v571, 8
  %v641 = vpop.permute.xlu0 %640
  %642 = vrot.lane.b32.xlu0 %v573, 8
  %v643 = vpop.permute.xlu0 %642
  %644 = vrot.lane.b32.xlu0 %v576, 8
  %v645 = vpop.permute.xlu0 %644
  %646 = vrot.lane.b32.xlu0 %v578, 8
  %v647 = vpop.permute.xlu0 %646
  %648 = vrot.lane.b32.xlu0 %v581, 8
  %v649 = vpop.permute.xlu0 %648
  %650 = vrot.lane.b32.xlu0 %v583, 8
  %v651 = vpop.permute.xlu0 %650
  %652 = vrot.lane.b32.xlu0 %v586, 8
  %v653 = vpop.permute.xlu0 %652
  %654 = vrot.lane.b32.xlu0 %v588, 8
  %v655 = vpop.permute.xlu0 %654
  %656 = vrot.lane.b32.xlu0 %v591, 8
  %v657 = vpop.permute.xlu0 %656
  %658 = vrot.lane.b32.xlu0 %v593, 8
  %v659 = vpop.permute.xlu0 %658
  %660 = vrot.lane.b32.xlu0 %v596, 8
  %v661 = vpop.permute.xlu0 %660
  %662 = vrot.lane.b32.xlu0 %v598, 8
  %v663 = vpop.permute.xlu0 %662
  %664 = vrot.lane.b32.xlu0 %v601, 8
  %v665 = vpop.permute.xlu0 %664
  %666 = vrot.lane.b32.xlu0 %v603, 8
  %v667 = vpop.permute.xlu0 %666
  %702 = vrot.lane.b32.xlu0 %v247, 12
  %v703 = vpop.permute.xlu0 %702
  %704 = vrot.lane.b32.xlu0 %v248, 12
  %v705 = vpop.permute.xlu0 %704
  %706 = vrot.lane.b32.xlu0 %v250, 12
  %v707 = vpop.permute.xlu0 %706
  %708 = vrot.lane.b32.xlu0 %v251, 12
  %v709 = vpop.permute.xlu0 %708
  %710 = vrot.lane.b32.xlu0 %v253, 12
  %v711 = vpop.permute.xlu0 %710
  %712 = vrot.lane.b32.xlu0 %v254, 12
  %v713 = vpop.permute.xlu0 %712
  %714 = vrot.lane.b32.xlu0 %v256, 12
  %v715 = vpop.permute.xlu0 %714
  %716 = vrot.lane.b32.xlu0 %v257, 12
  %v717 = vpop.permute.xlu0 %716
  %718 = vrot.lane.b32.xlu0 %v259, 12
  %v719 = vpop.permute.xlu0 %718
  %720 = vrot.lane.b32.xlu0 %v260, 12
  %v721 = vpop.permute.xlu0 %720
  %722 = vrot.lane.b32.xlu0 %v262, 12
  %v723 = vpop.permute.xlu0 %722
  %724 = vrot.lane.b32.xlu0 %v263, 12
  %v725 = vpop.permute.xlu0 %724
  %726 = vrot.lane.b32.xlu0 %v265, 12
  %v727 = vpop.permute.xlu0 %726
  %728 = vrot.lane.b32.xlu0 %v266, 12
  %v729 = vpop.permute.xlu0 %728
  %730 = vrot.lane.b32.xlu0 %v268, 12
  %v731 = vpop.permute.xlu0 %730
  %732 = vrot.lane.b32.xlu0 %v269, 12
  %v733 = vpop.permute.xlu0 %732
  %734 = vrot.lane.b32.xlu0 %v271, 12
  %v735 = vpop.permute.xlu0 %734
  %736 = vrot.lane.b32.xlu0 %v272, 12
  %v737 = vpop.permute.xlu0 %736
  %738 = vrot.lane.b32.xlu0 %v274, 12
  %v739 = vpop.permute.xlu0 %738
  %740 = vrot.lane.b32.xlu0 %v275, 12
  %v741 = vpop.permute.xlu0 %740
  %742 = vrot.lane.b32.xlu0 %v277, 12
  %v743 = vpop.permute.xlu0 %742
  %744 = vrot.lane.b32.xlu0 %v278, 12
  %v745 = vpop.permute.xlu0 %744
  %746 = vrot.lane.b32.xlu0 %v280, 12
  %v747 = vpop.permute.xlu0 %746
  %748 = vrot.lane.b32.xlu0 %v281, 12
  %v749 = vpop.permute.xlu0 %748
  %750 = vrot.lane.b32.xlu0 %v283, 12
  %v751 = vpop.permute.xlu0 %750
  %752 = vrot.lane.b32.xlu0 %v284, 12
  %v753 = vpop.permute.xlu0 %752
  %754 = vrot.lane.b32.xlu0 %v286, 12
  %v755 = vpop.permute.xlu0 %754
  %756 = vrot.lane.b32.xlu0 %v287, 12
  %v757 = vpop.permute.xlu0 %756
  %758 = vrot.lane.b32.xlu0 %v289, 12
  %v759 = vpop.permute.xlu0 %758
  %760 = vrot.lane.b32.xlu0 %v290, 12
  %v761 = vpop.permute.xlu0 %760
  %762 = vrot.lane.b32.xlu0 %v292, 12
  %v763 = vpop.permute.xlu0 %762
  %764 = vrot.lane.b32.xlu0 %v293, 12
  %v765 = vpop.permute.xlu0 %764
  %v799 = vrot.slane %v292, 1
  %v800 = vrot.slane %v293, 1
  %v801 = vsel %vm346, %v799, %v800
  %v802 = vrot.slane %v294, 1
  %v803 = vsel %vm346, %v800, %v802
  %804 = vrot.lane.b32.xlu0 %v354, 16
  %v805 = vpop.permute.xlu0 %804
  %806 = vrot.lane.b32.xlu0 %v356, 16
  %v807 = vpop.permute.xlu0 %806
  %808 = vrot.lane.b32.xlu0 %v359, 16
  %v809 = vpop.permute.xlu0 %808
  %810 = vrot.lane.b32.xlu0 %v361, 16
  %v811 = vpop.permute.xlu0 %810
  %812 = vrot.lane.b32.xlu0 %v364, 16
  %v813 = vpop.permute.xlu0 %812
  %814 = vrot.lane.b32.xlu0 %v366, 16
  %v815 = vpop.permute.xlu0 %814
  %816 = vrot.lane.b32.xlu0 %v369, 16
  %v817 = vpop.permute.xlu0 %816
  %818 = vrot.lane.b32.xlu0 %v371, 16
  %v819 = vpop.permute.xlu0 %818
  %820 = vrot.lane.b32.xlu0 %v374, 16
  %v821 = vpop.permute.xlu0 %820
  %822 = vrot.lane.b32.xlu0 %v376, 16
  %v823 = vpop.permute.xlu0 %822
  %824 = vrot.lane.b32.xlu0 %v379, 16
  %v825 = vpop.permute.xlu0 %824
  %826 = vrot.lane.b32.xlu0 %v381, 16
  %v827 = vpop.permute.xlu0 %826
  %828 = vrot.lane.b32.xlu0 %v384, 16
  %v829 = vpop.permute.xlu0 %828
  %830 = vrot.lane.b32.xlu0 %v386, 16
  %v831 = vpop.permute.xlu0 %830
  %832 = vrot.lane.b32.xlu0 %v389, 16
  %v833 = vpop.permute.xlu0 %832
  %834 = vrot.lane.b32.xlu0 %v391, 16
  %v835 = vpop.permute.xlu0 %834
  %836 = vrot.lane.b32.xlu0 %v394, 16
  %v837 = vpop.permute.xlu0 %836
  %838 = vrot.lane.b32.xlu0 %v396, 16
  %v839 = vpop.permute.xlu0 %838
  %840 = vrot.lane.b32.xlu0 %v399, 16
  %v841 = vpop.permute.xlu0 %840
  %842 = vrot.lane.b32.xlu0 %v401, 16
  %v843 = vpop.permute.xlu0 %842
  %844 = vrot.lane.b32.xlu0 %v404, 16
  %v845 = vpop.permute.xlu0 %844
  %846 = vrot.lane.b32.xlu0 %v406, 16
  %v847 = vpop.permute.xlu0 %846
  %848 = vrot.lane.b32.xlu0 %v409, 16
  %v849 = vpop.permute.xlu0 %848
  %850 = vrot.lane.b32.xlu0 %v411, 16
  %v851 = vpop.permute.xlu0 %850
  %852 = vrot.lane.b32.xlu0 %v414, 16
  %v853 = vpop.permute.xlu0 %852
  %854 = vrot.lane.b32.xlu0 %v416, 16
  %v855 = vpop.permute.xlu0 %854
  %856 = vrot.lane.b32.xlu0 %v419, 16
  %v857 = vpop.permute.xlu0 %856
  %858 = vrot.lane.b32.xlu0 %v421, 16
  %v859 = vpop.permute.xlu0 %858
  %860 = vrot.lane.b32.xlu0 %v424, 16
  %v861 = vpop.permute.xlu0 %860
  %862 = vrot.lane.b32.xlu0 %v426, 16
  %v863 = vpop.permute.xlu0 %862
  %864 = vrot.lane.b32.xlu0 %v801, 16
  %v865 = vpop.permute.xlu0 %864
  %866 = vrot.lane.b32.xlu0 %v803, 16
  %v867 = vpop.permute.xlu0 %866
  %v900 = vrot.slane %v292, 2
  %v901 = vrot.slane %v293, 2
  %v902 = vsel %vm523, %v900, %v901
  %v903 = vrot.slane %v294, 2
  %v904 = vsel %vm523, %v901, %v903
  %905 = vrot.lane.b32.xlu0 %v531, 20
  %v906 = vpop.permute.xlu0 %905
  %907 = vrot.lane.b32.xlu0 %v533, 20
  %v908 = vpop.permute.xlu0 %907
  %909 = vrot.lane.b32.xlu0 %v536, 20
  %v910 = vpop.permute.xlu0 %909
  %911 = vrot.lane.b32.xlu0 %v538, 20
  %v912 = vpop.permute.xlu0 %911
  %913 = vrot.lane.b32.xlu0 %v541, 20
  %v914 = vpop.permute.xlu0 %913
  %915 = vrot.lane.b32.xlu0 %v543, 20
  %v916 = vpop.permute.xlu0 %915
  %917 = vrot.lane.b32.xlu0 %v546, 20
  %v918 = vpop.permute.xlu0 %917
  %919 = vrot.lane.b32.xlu0 %v548, 20
  %v920 = vpop.permute.xlu0 %919
  %921 = vrot.lane.b32.xlu0 %v551, 20
  %v922 = vpop.permute.xlu0 %921
  %923 = vrot.lane.b32.xlu0 %v553, 20
  %v924 = vpop.permute.xlu0 %923
  %925 = vrot.lane.b32.xlu0 %v556, 20
  %v926 = vpop.permute.xlu0 %925
  %927 = vrot.lane.b32.xlu0 %v558, 20
  %v928 = vpop.permute.xlu0 %927
  %929 = vrot.lane.b32.xlu0 %v561, 20
  %v930 = vpop.permute.xlu0 %929
  %931 = vrot.lane.b32.xlu0 %v563, 20
  %v932 = vpop.permute.xlu0 %931
  %933 = vrot.lane.b32.xlu0 %v566, 20
  %v934 = vpop.permute.xlu0 %933
  %935 = vrot.lane.b32.xlu0 %v568, 20
  %v936 = vpop.permute.xlu0 %935
  %937 = vrot.lane.b32.xlu0 %v571, 20
  %v938 = vpop.permute.xlu0 %937
  %939 = vrot.lane.b32.xlu0 %v573, 20
  %v940 = vpop.permute.xlu0 %939
  %941 = vrot.lane.b32.xlu0 %v576, 20
  %v942 = vpop.permute.xlu0 %941
  %943 = vrot.lane.b32.xlu0 %v578, 20
  %v944 = vpop.permute.xlu0 %943
  %945 = vrot.lane.b32.xlu0 %v581, 20
  %v946 = vpop.permute.xlu0 %945
  %947 = vrot.lane.b32.xlu0 %v583, 20
  %v948 = vpop.permute.xlu0 %947
  %949 = vrot.lane.b32.xlu0 %v586, 20
  %v950 = vpop.permute.xlu0 %949
  %951 = vrot.lane.b32.xlu0 %v588, 20
  %v952 = vpop.permute.xlu0 %951
  %953 = vrot.lane.b32.xlu0 %v591, 20
  %v954 = vpop.permute.xlu0 %953
  %955 = vrot.lane.b32.xlu0 %v593, 20
  %v956 = vpop.permute.xlu0 %955
  %957 = vrot.lane.b32.xlu0 %v596, 20
  %v958 = vpop.permute.xlu0 %957
  %959 = vrot.lane.b32.xlu0 %v598, 20
  %v960 = vpop.permute.xlu0 %959
  %961 = vrot.lane.b32.xlu0 %v601, 20
  %v962 = vpop.permute.xlu0 %961
  %963 = vrot.lane.b32.xlu0 %v603, 20
  %v964 = vpop.permute.xlu0 %963
  %965 = vrot.lane.b32.xlu0 %v902, 20
  %v966 = vpop.permute.xlu0 %965
  %967 = vrot.lane.b32.xlu0 %v904, 20
  %v968 = vpop.permute.xlu0 %967
  %1003 = vrot.lane.b32.xlu0 %v250, 24
  %v1004 = vpop.permute.xlu0 %1003
  %1005 = vrot.lane.b32.xlu0 %v251, 24
  %v1006 = vpop.permute.xlu0 %1005
  %1007 = vrot.lane.b32.xlu0 %v253, 24
  %v1008 = vpop.permute.xlu0 %1007
  %1009 = vrot.lane.b32.xlu0 %v254, 24
  %v1010 = vpop.permute.xlu0 %1009
  %1011 = vrot.lane.b32.xlu0 %v256, 24
  %v1012 = vpop.permute.xlu0 %1011
  %1013 = vrot.lane.b32.xlu0 %v257, 24
  %v1014 = vpop.permute.xlu0 %1013
  %1015 = vrot.lane.b32.xlu0 %v259, 24
  %v1016 = vpop.permute.xlu0 %1015
  %1017 = vrot.lane.b32.xlu0 %v260, 24
  %v1018 = vpop.permute.xlu0 %1017
  %1019 = vrot.lane.b32.xlu0 %v262, 24
  %v1020 = vpop.permute.xlu0 %1019
  %1021 = vrot.lane.b32.xlu0 %v263, 24
  %v1022 = vpop.permute.xlu0 %1021
  %1023 = vrot.lane.b32.xlu0 %v265, 24
  %v1024 = vpop.permute.xlu0 %1023
  %1025 = vrot.lane.b32.xlu0 %v266, 24
  %v1026 = vpop.permute.xlu0 %1025
  %1027 = vrot.lane.b32.xlu0 %v268, 24
  %v1028 = vpop.permute.xlu0 %1027
  %1029 = vrot.lane.b32.xlu0 %v269, 24
  %v1030 = vpop.permute.xlu0 %1029
  %1031 = vrot.lane.b32.xlu0 %v271, 24
  %v1032 = vpop.permute.xlu0 %1031
  %1033 = vrot.lane.b32.xlu0 %v272, 24
  %v1034 = vpop.permute.xlu0 %1033
  %1035 = vrot.lane.b32.xlu0 %v274, 24
  %v1036 = vpop.permute.xlu0 %1035
  %1037 = vrot.lane.b32.xlu0 %v275, 24
  %v1038 = vpop.permute.xlu0 %1037
  %1039 = vrot.lane.b32.xlu0 %v277, 24
  %v1040 = vpop.permute.xlu0 %1039
  %1041 = vrot.lane.b32.xlu0 %v278, 24
  %v1042 = vpop.permute.xlu0 %1041
  %1043 = vrot.lane.b32.xlu0 %v280, 24
  %v1044 = vpop.permute.xlu0 %1043
  %1045 = vrot.lane.b32.xlu0 %v281, 24
  %v1046 = vpop.permute.xlu0 %1045
  %1047 = vrot.lane.b32.xlu0 %v283, 24
  %v1048 = vpop.permute.xlu0 %1047
  %1049 = vrot.lane.b32.xlu0 %v284, 24
  %v1050 = vpop.permute.xlu0 %1049
  %1051 = vrot.lane.b32.xlu0 %v286, 24
  %v1052 = vpop.permute.xlu0 %1051
  %1053 = vrot.lane.b32.xlu0 %v287, 24
  %v1054 = vpop.permute.xlu0 %1053
  %1055 = vrot.lane.b32.xlu0 %v289, 24
  %v1056 = vpop.permute.xlu0 %1055
  %1057 = vrot.lane.b32.xlu0 %v290, 24
  %v1058 = vpop.permute.xlu0 %1057
  %1059 = vrot.lane.b32.xlu0 %v292, 24
  %v1060 = vpop.permute.xlu0 %1059
  %1061 = vrot.lane.b32.xlu0 %v293, 24
  %v1062 = vpop.permute.xlu0 %1061
  %1063 = vrot.lane.b32.xlu0 %v295, 24
  %v1064 = vpop.permute.xlu0 %1063
  %1065 = vrot.lane.b32.xlu0 %v296, 24
  %v1066 = vpop.permute.xlu0 %1065
  %v1100 = vrot.slane %v295, 1
  %v1101 = vrot.slane %v296, 1
  %v1102 = vsel %vm346, %v1100, %v1101
  %v1103 = vrot.slane %v297, 1
  %v1104 = vsel %vm346, %v1101, %v1103
  %1105 = vrot.lane.b32.xlu0 %v359, 28
  %v1106 = vpop.permute.xlu0 %1105
  %1107 = vrot.lane.b32.xlu0 %v361, 28
  %v1108 = vpop.permute.xlu0 %1107
  %1109 = vrot.lane.b32.xlu0 %v364, 28
  %v1110 = vpop.permute.xlu0 %1109
  %1111 = vrot.lane.b32.xlu0 %v366, 28
  %v1112 = vpop.permute.xlu0 %1111
  %1113 = vrot.lane.b32.xlu0 %v369, 28
  %v1114 = vpop.permute.xlu0 %1113
  %1115 = vrot.lane.b32.xlu0 %v371, 28
  %v1116 = vpop.permute.xlu0 %1115
  %1117 = vrot.lane.b32.xlu0 %v374, 28
  %v1118 = vpop.permute.xlu0 %1117
  %1119 = vrot.lane.b32.xlu0 %v376, 28
  %v1120 = vpop.permute.xlu0 %1119
  %1121 = vrot.lane.b32.xlu0 %v379, 28
  %v1122 = vpop.permute.xlu0 %1121
  %1123 = vrot.lane.b32.xlu0 %v381, 28
  %v1124 = vpop.permute.xlu0 %1123
  %1125 = vrot.lane.b32.xlu0 %v384, 28
  %v1126 = vpop.permute.xlu0 %1125
  %1127 = vrot.lane.b32.xlu0 %v386, 28
  %v1128 = vpop.permute.xlu0 %1127
  %1129 = vrot.lane.b32.xlu0 %v389, 28
  %v1130 = vpop.permute.xlu0 %1129
  %1131 = vrot.lane.b32.xlu0 %v391, 28
  %v1132 = vpop.permute.xlu0 %1131
  %1133 = vrot.lane.b32.xlu0 %v394, 28
  %v1134 = vpop.permute.xlu0 %1133
  %1135 = vrot.lane.b32.xlu0 %v396, 28
  %v1136 = vpop.permute.xlu0 %1135
  %1137 = vrot.lane.b32.xlu0 %v399, 28
  %v1138 = vpop.permute.xlu0 %1137
  %1139 = vrot.lane.b32.xlu0 %v401, 28
  %v1140 = vpop.permute.xlu0 %1139
  %1141 = vrot.lane.b32.xlu0 %v404, 28
  %v1142 = vpop.permute.xlu0 %1141
  %1143 = vrot.lane.b32.xlu0 %v406, 28
  %v1144 = vpop.permute.xlu0 %1143
  %1145 = vrot.lane.b32.xlu0 %v409, 28
  %v1146 = vpop.permute.xlu0 %1145
  %1147 = vrot.lane.b32.xlu0 %v411, 28
  %v1148 = vpop.permute.xlu0 %1147
  %1149 = vrot.lane.b32.xlu0 %v414, 28
  %v1150 = vpop.permute.xlu0 %1149
  %1151 = vrot.lane.b32.xlu0 %v416, 28
  %v1152 = vpop.permute.xlu0 %1151
  %1153 = vrot.lane.b32.xlu0 %v419, 28
  %v1154 = vpop.permute.xlu0 %1153
  %1155 = vrot.lane.b32.xlu0 %v421, 28
  %v1156 = vpop.permute.xlu0 %1155
  %1157 = vrot.lane.b32.xlu0 %v424, 28
  %v1158 = vpop.permute.xlu0 %1157
  %1159 = vrot.lane.b32.xlu0 %v426, 28
  %v1160 = vpop.permute.xlu0 %1159
  %1161 = vrot.lane.b32.xlu0 %v801, 28
  %v1162 = vpop.permute.xlu0 %1161
  %1163 = vrot.lane.b32.xlu0 %v803, 28
  %v1164 = vpop.permute.xlu0 %1163
  %1165 = vrot.lane.b32.xlu0 %v1102, 28
  %v1166 = vpop.permute.xlu0 %1165
  %1167 = vrot.lane.b32.xlu0 %v1104, 28
  %v1168 = vpop.permute.xlu0 %1167
  %v1201 = vrot.slane %v295, 2
  %v1202 = vrot.slane %v296, 2
  %v1203 = vsel %vm523, %v1201, %v1202
  %v1204 = vrot.slane %v297, 2
  %v1205 = vsel %vm523, %v1202, %v1204
  %1206 = vrot.lane.b32.xlu0 %v536, 32
  %v1207 = vpop.permute.xlu0 %1206
  %1208 = vrot.lane.b32.xlu0 %v538, 32
  %v1209 = vpop.permute.xlu0 %1208
  %1210 = vrot.lane.b32.xlu0 %v541, 32
  %v1211 = vpop.permute.xlu0 %1210
  %1212 = vrot.lane.b32.xlu0 %v543, 32
  %v1213 = vpop.permute.xlu0 %1212
  %1214 = vrot.lane.b32.xlu0 %v546, 32
  %v1215 = vpop.permute.xlu0 %1214
  %1216 = vrot.lane.b32.xlu0 %v548, 32
  %v1217 = vpop.permute.xlu0 %1216
  %1218 = vrot.lane.b32.xlu0 %v551, 32
  %v1219 = vpop.permute.xlu0 %1218
  %1220 = vrot.lane.b32.xlu0 %v553, 32
  %v1221 = vpop.permute.xlu0 %1220
  %1222 = vrot.lane.b32.xlu0 %v556, 32
  %v1223 = vpop.permute.xlu0 %1222
  %1224 = vrot.lane.b32.xlu0 %v558, 32
  %v1225 = vpop.permute.xlu0 %1224
  %1226 = vrot.lane.b32.xlu0 %v561, 32
  %v1227 = vpop.permute.xlu0 %1226
  %1228 = vrot.lane.b32.xlu0 %v563, 32
  %v1229 = vpop.permute.xlu0 %1228
  %1230 = vrot.lane.b32.xlu0 %v566, 32
  %v1231 = vpop.permute.xlu0 %1230
  %1232 = vrot.lane.b32.xlu0 %v568, 32
  %v1233 = vpop.permute.xlu0 %1232
  %1234 = vrot.lane.b32.xlu0 %v571, 32
  %v1235 = vpop.permute.xlu0 %1234
  %1236 = vrot.lane.b32.xlu0 %v573, 32
  %v1237 = vpop.permute.xlu0 %1236
  %1238 = vrot.lane.b32.xlu0 %v576, 32
  %v1239 = vpop.permute.xlu0 %1238
  %1240 = vrot.lane.b32.xlu0 %v578, 32
  %v1241 = vpop.permute.xlu0 %1240
  %1242 = vrot.lane.b32.xlu0 %v581, 32
  %v1243 = vpop.permute.xlu0 %1242
  %1244 = vrot.lane.b32.xlu0 %v583, 32
  %v1245 = vpop.permute.xlu0 %1244
  %1246 = vrot.lane.b32.xlu0 %v586, 32
  %v1247 = vpop.permute.xlu0 %1246
  %1248 = vrot.lane.b32.xlu0 %v588, 32
  %v1249 = vpop.permute.xlu0 %1248
  %1250 = vrot.lane.b32.xlu0 %v591, 32
  %v1251 = vpop.permute.xlu0 %1250
  %1252 = vrot.lane.b32.xlu0 %v593, 32
  %v1253 = vpop.permute.xlu0 %1252
  %1254 = vrot.lane.b32.xlu0 %v596, 32
  %v1255 = vpop.permute.xlu0 %1254
  %1256 = vrot.lane.b32.xlu0 %v598, 32
  %v1257 = vpop.permute.xlu0 %1256
  %1258 = vrot.lane.b32.xlu0 %v601, 32
  %v1259 = vpop.permute.xlu0 %1258
  %1260 = vrot.lane.b32.xlu0 %v603, 32
  %v1261 = vpop.permute.xlu0 %1260
  %1262 = vrot.lane.b32.xlu0 %v902, 32
  %v1263 = vpop.permute.xlu0 %1262
  %1264 = vrot.lane.b32.xlu0 %v904, 32
  %v1265 = vpop.permute.xlu0 %1264
  %1266 = vrot.lane.b32.xlu0 %v1203, 32
  %v1267 = vpop.permute.xlu0 %1266
  %1268 = vrot.lane.b32.xlu0 %v1205, 32
  %v1269 = vpop.permute.xlu0 %1268
  %v1302 = vsel %vm27, %v244, %v428
  %v1303 = vsel %vm27, %v245, %v430
  %v1304 = vsel %vm27, %v247, %v432
  %v1305 = vsel %vm27, %v248, %v434
  %v1306 = vsel %vm27, %v250, %v436
  %v1307 = vsel %vm27, %v251, %v438
  %v1308 = vsel %vm27, %v253, %v440
  %v1309 = vsel %vm27, %v254, %v442
  %v1310 = vsel %vm27, %v256, %v444
  %v1311 = vsel %vm27, %v257, %v446
  %v1312 = vsel %vm27, %v259, %v448
  %v1313 = vsel %vm27, %v260, %v450
  %v1314 = vsel %vm27, %v262, %v452
  %v1315 = vsel %vm27, %v263, %v454
  %v1316 = vsel %vm27, %v265, %v456
  %v1317 = vsel %vm27, %v266, %v458
  %v1318 = vsel %vm27, %v268, %v460
  %v1319 = vsel %vm27, %v269, %v462
  %v1320 = vsel %vm27, %v271, %v464
  %v1321 = vsel %vm27, %v272, %v466
  %v1322 = vsel %vm27, %v274, %v468
  %v1323 = vsel %vm27, %v275, %v470
  %v1324 = vsel %vm27, %v277, %v472
  %v1325 = vsel %vm27, %v278, %v474
  %v1326 = vsel %vm27, %v280, %v476
  %v1327 = vsel %vm27, %v281, %v478
  %v1328 = vsel %vm27, %v283, %v480
  %v1329 = vsel %vm27, %v284, %v482
  %v1330 = vsel %vm27, %v286, %v484
  %v1331 = vsel %vm27, %v287, %v486
  %v1332 = vsel %vm27, %v289, %v488
  %v1333 = vsel %vm27, %v290, %v490
  %vm1334 = vcmask 64512
  %v1335 = vsel %vm1334, %v1302, %v605
  %v1336 = vsel %vm1334, %v1303, %v607
  %v1337 = vsel %vm1334, %v1304, %v609
  %v1338 = vsel %vm1334, %v1305, %v611
  %v1339 = vsel %vm1334, %v1306, %v613
  %v1340 = vsel %vm1334, %v1307, %v615
  %v1341 = vsel %vm1334, %v1308, %v617
  %v1342 = vsel %vm1334, %v1309, %v619
  %v1343 = vsel %vm1334, %v1310, %v621
  %v1344 = vsel %vm1334, %v1311, %v623
  %v1345 = vsel %vm1334, %v1312, %v625
  %v1346 = vsel %vm1334, %v1313, %v627
  %v1347 = vsel %vm1334, %v1314, %v629
  %v1348 = vsel %vm1334, %v1315, %v631
  %v1349 = vsel %vm1334, %v1316, %v633
  %v1350 = vsel %vm1334, %v1317, %v635
  %v1351 = vsel %vm1334, %v1318, %v637
  %v1352 = vsel %vm1334, %v1319, %v639
  %v1353 = vsel %vm1334, %v1320, %v641
  %v1354 = vsel %vm1334, %v1321, %v643
  %v1355 = vsel %vm1334, %v1322, %v645
  %v1356 = vsel %vm1334, %v1323, %v647
  %v1357 = vsel %vm1334, %v1324, %v649
  %v1358 = vsel %vm1334, %v1325, %v651
  %v1359 = vsel %vm1334, %v1326, %v653
  %v1360 = vsel %vm1334, %v1327, %v655
  %v1361 = vsel %vm1334, %v1328, %v657
  %v1362 = vsel %vm1334, %v1329, %v659
  %v1363 = vsel %vm1334, %v1330, %v661
  %v1364 = vsel %vm1334, %v1331, %v663
  %v1365 = vsel %vm1334, %v1332, %v665
  %v1366 = vsel %vm1334, %v1333, %v667
  %vm1367 = vcmask 97280
  %v1368 = vsel %vm1367, %v1335, %v703
  %v1369 = vsel %vm1367, %v1336, %v705
  %v1370 = vsel %vm1367, %v1337, %v707
  %v1371 = vsel %vm1367, %v1338, %v709
  %v1372 = vsel %vm1367, %v1339, %v711
  %v1373 = vsel %vm1367, %v1340, %v713
  %v1374 = vsel %vm1367, %v1341, %v715
  %v1375 = vsel %vm1367, %v1342, %v717
  %v1376 = vsel %vm1367, %v1343, %v719
  %v1377 = vsel %vm1367, %v1344, %v721
  %v1378 = vsel %vm1367, %v1345, %v723
  %v1379 = vsel %vm1367, %v1346, %v725
  %v1380 = vsel %vm1367, %v1347, %v727
  %v1381 = vsel %vm1367, %v1348, %v729
  %v1382 = vsel %vm1367, %v1349, %v731
  %v1383 = vsel %vm1367, %v1350, %v733
  %v1384 = vsel %vm1367, %v1351, %v735
  %v1385 = vsel %vm1367, %v1352, %v737
  %v1386 = vsel %vm1367, %v1353, %v739
  %v1387 = vsel %vm1367, %v1354, %v741
  %v1388 = vsel %vm1367, %v1355, %v743
  %v1389 = vsel %vm1367, %v1356, %v745
  %v1390 = vsel %vm1367, %v1357, %v747
  %v1391 = vsel %vm1367, %v1358, %v749
  %v1392 = vsel %vm1367, %v1359, %v751
  %v1393 = vsel %vm1367, %v1360, %v753
  %v1394 = vsel %vm1367, %v1361, %v755
  %v1395 = vsel %vm1367, %v1362, %v757
  %v1396 = vsel %vm1367, %v1363, %v759
  %v1397 = vsel %vm1367, %v1364, %v761
  %v1398 = vsel %vm1367, %v1365, %v763
  %v1399 = vsel %vm1367, %v1366, %v765
  %vm1400 = vcmask 130048
  %v1401 = vsel %vm1400, %v1368, %v805
  %v1402 = vsel %vm1400, %v1369, %v807
  %v1403 = vsel %vm1400, %v1370, %v809
  %v1404 = vsel %vm1400, %v1371, %v811
  %v1405 = vsel %vm1400, %v1372, %v813
  %v1406 = vsel %vm1400, %v1373, %v815
  %v1407 = vsel %vm1400, %v1374, %v817
  %v1408 = vsel %vm1400, %v1375, %v819
  %v1409 = vsel %vm1400, %v1376, %v821
  %v1410 = vsel %vm1400, %v1377, %v823
  %v1411 = vsel %vm1400, %v1378, %v825
  %v1412 = vsel %vm1400, %v1379, %v827
  %v1413 = vsel %vm1400, %v1380, %v829
  %v1414 = vsel %vm1400, %v1381, %v831
  %v1415 = vsel %vm1400, %v1382, %v833
  %v1416 = vsel %vm1400, %v1383, %v835
  %v1417 = vsel %vm1400, %v1384, %v837
  %v1418 = vsel %vm1400, %v1385, %v839
  %v1419 = vsel %vm1400, %v1386, %v841
  %v1420 = vsel %vm1400, %v1387, %v843
  %v1421 = vsel %vm1400, %v1388, %v845
  %v1422 = vsel %vm1400, %v1389, %v847
  %v1423 = vsel %vm1400, %v1390, %v849
  %v1424 = vsel %vm1400, %v1391, %v851
  %v1425 = vsel %vm1400, %v1392, %v853
  %v1426 = vsel %vm1400, %v1393, %v855
  %v1427 = vsel %vm1400, %v1394, %v857
  %v1428 = vsel %vm1400, %v1395, %v859
  %v1429 = vsel %vm1400, %v1396, %v861
  %v1430 = vsel %vm1400, %v1397, %v863
  %v1431 = vsel %vm1400, %v1398, %v865
  %v1432 = vsel %vm1400, %v1399, %v867
  %vm1433 = vcmask 162816
  %v1434 = vsel %vm1433, %v1401, %v906
  %v1435 = vsel %vm1433, %v1402, %v908
  %v1436 = vsel %vm1433, %v1403, %v910
  %v1437 = vsel %vm1433, %v1404, %v912
  %v1438 = vsel %vm1433, %v1405, %v914
  %v1439 = vsel %vm1433, %v1406, %v916
  %v1440 = vsel %vm1433, %v1407, %v918
  %v1441 = vsel %vm1433, %v1408, %v920
  %v1442 = vsel %vm1433, %v1409, %v922
  %v1443 = vsel %vm1433, %v1410, %v924
  %v1444 = vsel %vm1433, %v1411, %v926
  %v1445 = vsel %vm1433, %v1412, %v928
  %v1446 = vsel %vm1433, %v1413, %v930
  %v1447 = vsel %vm1433, %v1414, %v932
  %v1448 = vsel %vm1433, %v1415, %v934
  %v1449 = vsel %vm1433, %v1416, %v936
  %v1450 = vsel %vm1433, %v1417, %v938
  %v1451 = vsel %vm1433, %v1418, %v940
  %v1452 = vsel %vm1433, %v1419, %v942
  %v1453 = vsel %vm1433, %v1420, %v944
  %v1454 = vsel %vm1433, %v1421, %v946
  %v1455 = vsel %vm1433, %v1422, %v948
  %v1456 = vsel %vm1433, %v1423, %v950
  %v1457 = vsel %vm1433, %v1424, %v952
  %v1458 = vsel %vm1433, %v1425, %v954
  %v1459 = vsel %vm1433, %v1426, %v956
  %v1460 = vsel %vm1433, %v1427, %v958
  %v1461 = vsel %vm1433, %v1428, %v960
  %v1462 = vsel %vm1433, %v1429, %v962
  %v1463 = vsel %vm1433, %v1430, %v964
  %v1464 = vsel %vm1433, %v1431, %v966
  %v1465 = vsel %vm1433, %v1432, %v968
  %vm1466 = vcmask 195584
  %v1467 = vsel %vm1466, %v1434, %v1004
  %v1468 = vsel %vm1466, %v1435, %v1006
  %v1469 = vsel %vm1466, %v1436, %v1008
  %v1470 = vsel %vm1466, %v1437, %v1010
  %v1471 = vsel %vm1466, %v1438, %v1012
  %v1472 = vsel %vm1466, %v1439, %v1014
  %v1473 = vsel %vm1466, %v1440, %v1016
  %v1474 = vsel %vm1466, %v1441, %v1018
  %v1475 = vsel %vm1466, %v1442, %v1020
  %v1476 = vsel %vm1466, %v1443, %v1022
  %v1477 = vsel %vm1466, %v1444, %v1024
  %v1478 = vsel %vm1466, %v1445, %v1026
  %v1479 = vsel %vm1466, %v1446, %v1028
  %v1480 = vsel %vm1466, %v1447, %v1030
  %v1481 = vsel %vm1466, %v1448, %v1032
  %v1482 = vsel %vm1466, %v1449, %v1034
  %v1483 = vsel %vm1466, %v1450, %v1036
  %v1484 = vsel %vm1466, %v1451, %v1038
  %v1485 = vsel %vm1466, %v1452, %v1040
  %v1486 = vsel %vm1466, %v1453, %v1042
  %v1487 = vsel %vm1466, %v1454, %v1044
  %v1488 = vsel %vm1466, %v1455, %v1046
  %v1489 = vsel %vm1466, %v1456, %v1048
  %v1490 = vsel %vm1466, %v1457, %v1050
  %v1491 = vsel %vm1466, %v1458, %v1052
  %v1492 = vsel %vm1466, %v1459, %v1054
  %v1493 = vsel %vm1466, %v1460, %v1056
  %v1494 = vsel %vm1466, %v1461, %v1058
  %v1495 = vsel %vm1466, %v1462, %v1060
  %v1496 = vsel %vm1466, %v1463, %v1062
  %v1497 = vsel %vm1466, %v1464, %v1064
  %v1498 = vsel %vm1466, %v1465, %v1066
  %vm1499 = vcmask 228352
  %v1500 = vsel %vm1499, %v1467, %v1106
  %v1501 = vsel %vm1499, %v1468, %v1108
  %v1502 = vsel %vm1499, %v1469, %v1110
  %v1503 = vsel %vm1499, %v1470, %v1112
  %v1504 = vsel %vm1499, %v1471, %v1114
  %v1505 = vsel %vm1499, %v1472, %v1116
  %v1506 = vsel %vm1499, %v1473, %v1118
  %v1507 = vsel %vm1499, %v1474, %v1120
  %v1508 = vsel %vm1499, %v1475, %v1122
  %v1509 = vsel %vm1499, %v1476, %v1124
  %v1510 = vsel %vm1499, %v1477, %v1126
  %v1511 = vsel %vm1499, %v1478, %v1128
  %v1512 = vsel %vm1499, %v1479, %v1130
  %v1513 = vsel %vm1499, %v1480, %v1132
  %v1514 = vsel %vm1499, %v1481, %v1134
  %v1515 = vsel %vm1499, %v1482, %v1136
  %v1516 = vsel %vm1499, %v1483, %v1138
  %v1517 = vsel %vm1499, %v1484, %v1140
  %v1518 = vsel %vm1499, %v1485, %v1142
  %v1519 = vsel %vm1499, %v1486, %v1144
  %v1520 = vsel %vm1499, %v1487, %v1146
  %v1521 = vsel %vm1499, %v1488, %v1148
  %v1522 = vsel %vm1499, %v1489, %v1150
  %v1523 = vsel %vm1499, %v1490, %v1152
  %v1524 = vsel %vm1499, %v1491, %v1154
  %v1525 = vsel %vm1499, %v1492, %v1156
  %v1526 = vsel %vm1499, %v1493, %v1158
  %v1527 = vsel %vm1499, %v1494, %v1160
  %v1528 = vsel %vm1499, %v1495, %v1162
  %v1529 = vsel %vm1499, %v1496, %v1164
  %v1530 = vsel %vm1499, %v1497, %v1166
  %v1531 = vsel %vm1499, %v1498, %v1168
  %vm1532 = vcmask 261120
  %v1533 = vsel %vm1532, %v1500, %v1207
  %v1534 = vsel %vm1532, %v1501, %v1209
  %v1535 = vsel %vm1532, %v1502, %v1211
  %v1536 = vsel %vm1532, %v1503, %v1213
  %v1537 = vsel %vm1532, %v1504, %v1215
  %v1538 = vsel %vm1532, %v1505, %v1217
  %v1539 = vsel %vm1532, %v1506, %v1219
  %v1540 = vsel %vm1532, %v1507, %v1221
  %v1541 = vsel %vm1532, %v1508, %v1223
  %v1542 = vsel %vm1532, %v1509, %v1225
  %v1543 = vsel %vm1532, %v1510, %v1227
  %v1544 = vsel %vm1532, %v1511, %v1229
  %v1545 = vsel %vm1532, %v1512, %v1231
  %v1546 = vsel %vm1532, %v1513, %v1233
  %v1547 = vsel %vm1532, %v1514, %v1235
  %v1548 = vsel %vm1532, %v1515, %v1237
  %v1549 = vsel %vm1532, %v1516, %v1239
  %v1550 = vsel %vm1532, %v1517, %v1241
  %v1551 = vsel %vm1532, %v1518, %v1243
  %v1552 = vsel %vm1532, %v1519, %v1245
  %v1553 = vsel %vm1532, %v1520, %v1247
  %v1554 = vsel %vm1532, %v1521, %v1249
  %v1555 = vsel %vm1532, %v1522, %v1251
  %v1556 = vsel %vm1532, %v1523, %v1253
  %v1557 = vsel %vm1532, %v1524, %v1255
  %v1558 = vsel %vm1532, %v1525, %v1257
  %v1559 = vsel %vm1532, %v1526, %v1259
  %v1560 = vsel %vm1532, %v1527, %v1261
  %v1561 = vsel %vm1532, %v1528, %v1263
  %v1562 = vsel %vm1532, %v1529, %v1265
  %v1563 = vsel %vm1532, %v1530, %v1267
  %v1564 = vsel %vm1532, %v1531, %v1269
  %v1565 = vpack.c.bf16 %v1534, %v1533
  %v1566 = vpack.c.bf16 %v1536, %v1535
  %v1567 = vpack.c.bf16 %v1538, %v1537
  %v1568 = vpack.c.bf16 %v1540, %v1539
  %v1569 = vpack.c.bf16 %v1542, %v1541
  %v1570 = vpack.c.bf16 %v1544, %v1543
  %v1571 = vpack.c.bf16 %v1546, %v1545
  %v1572 = vpack.c.bf16 %v1548, %v1547
  %v1573 = vpack.c.bf16 %v1550, %v1549
  %v1574 = vpack.c.bf16 %v1552, %v1551
  %v1575 = vpack.c.bf16 %v1554, %v1553
  %v1576 = vpack.c.bf16 %v1556, %v1555
  %v1577 = vpack.c.bf16 %v1558, %v1557
  %v1578 = vpack.c.bf16 %v1560, %v1559
  %v1579 = vpack.c.bf16 %v1562, %v1561
  %v1580 = vpack.c.bf16 %v1564, %v1563
  %v1581 = vld [vmem:[%s1] sm:$0xf]
  %v1582 = vld [vmem:[%s1 + $0x4] sm:$0xf]
  %v1583 = vld [vmem:[%s1 + $0x8] sm:$0xf]
  %v1584 = vld [vmem:[%s1 + $0xc] sm:$0xf]
  %v1585 = vld [vmem:[%s1 + $0x10] sm:$0x3]
  %v1591 = vunpack.c.l.b16 %v1581
  %v1592 = vunpack.c.l.b16 %v1582
  %v1593 = vunpack.c.l.b16 %v1583
  %v1594 = vunpack.c.l.b16 %v1584
  %v1595 = vunpack.c.l.b16 %v1585
  %v1596 = vpack.c.b16 %v1592, %v1591
  %v1597 = vpack.c.b16 %v1594, %v1593
  %v1598 = vpack.c.b16 %v1595, %v1595
  %vm1601 = vcmask 293888
  %v1603 = vsel %vm1601, %v1565, 0
  %v1606 = vsel %vm1601, %v1566, 0
  %v1609 = vsel %vm1601, %v1567, 0
  %v1612 = vsel %vm1601, %v1568, 0
  %v1615 = vsel %vm1601, %v1569, 0
  %v1618 = vsel %vm1601, %v1570, 0
  %v1621 = vsel %vm1601, %v1571, 0
  %v1624 = vsel %vm1601, %v1572, 0
  %v1627 = vsel %vm1601, %v1573, 0
  %v1630 = vsel %vm1601, %v1574, 0
  %v1633 = vsel %vm1601, %v1575, 0
  %v1636 = vsel %vm1601, %v1576, 0
  %v1639 = vsel %vm1601, %v1577, 0
  %v1642 = vsel %vm1601, %v1578, 0
  %v1645 = vsel %vm1601, %v1579, 0
  %v1648 = vsel %vm1601, %v1580, 0
  %vm1650 = vcmask 1041408
  %v1652 = vsel %vm1650, %v1598, 0
  %1654 = vmatprep.subr.bf16.mxu0 0
  %1655 = vmatpush1.bf16.msra.mxu0 %v1596
  %1656 = vmatprep.subr.bf16.mxu0 0
  %1657 = vmatpush1.bf16.msra.mxu0 %v1597
  %1658 = vmatprep.subr.bf16.mxu0 0
  %1659 = vmatpush1.bf16.msra.mxu0 %v1652
  %1660 = vmatprep.subr.bf16.mxu0 0
  %1661 = vmatpush1.bf16.msra.mxu0 0
  %1662 = vmatprep.subr.bf16.mxu0 0
  %1663 = vmatpush1.bf16.msra.mxu0 0
  %1664 = vmatprep.subr.bf16.mxu0 0
  %1665 = vmatpush1.bf16.msra.mxu0 0
  %1666 = vmatprep.subr.bf16.mxu0 0
  %1667 = vmatpush1.bf16.msra.mxu0 0
  %1668 = vmatprep.subr.bf16.mxu0 0
  %1669 = vmatpush1.bf16.msra.mxu0 0
  %1670 = vmatprep.subr.bf16.mxu0 0
  %1671 = vmatpush1.bf16.msra.mxu0 0
  %1672 = vmatprep.subr.bf16.mxu0 0
  %1673 = vmatpush1.bf16.msra.mxu0 0
  %1674 = vmatprep.subr.bf16.mxu0 0
  %1675 = vmatpush1.bf16.msra.mxu0 0
  %1676 = vmatprep.subr.bf16.mxu0 0
  %1677 = vmatpush1.bf16.msra.mxu0 0
  %1678 = vmatprep.subr.bf16.mxu0 0
  %1679 = vmatpush1.bf16.msra.mxu0 0
  %1680 = vmatprep.subr.bf16.mxu0 0
  %1681 = vmatpush1.bf16.msra.mxu0 0
  %1682 = vmatprep.subr.bf16.mxu0 0
  %1683 = vmatpush1.bf16.msra.mxu0 0
  %1684 = vmatprep.subr.bf16.mxu0 0
  %1685 = vmatpush1.bf16.msra.mxu0 0
  %1686 = vmatprep.mubr.bf16.mxu0 0
  %1687 = vmatmul.mubr.bf16.gmra.mrb[0].mxu0 %v1603
  %v1688 = vpop.f32.mrb[0].mxu0
  %v1689 = vadd.f32 0.0, %v1688
  %v1690 = vpop.f32.mrb[0].mxu0
  %v1691 = vpop.f32.mrb[0].mxu0
  %v1692 = vadd.f32 0.0, %v1691
  %v1693 = vpop.f32.mrb[0].mxu0
  %1694 = vmatprep.mubr.bf16.mxu0 0
  %1695 = vmatmul.mubr.bf16.gmra.mrb[0].mxu0 %v1606
  %v1696 = vpop.f32.mrb[0].mxu0
  %v1697 = vadd.f32 0.0, %v1696
  %v1698 = vpop.f32.mrb[0].mxu0
  %v1699 = vpop.f32.mrb[0].mxu0
  %v1700 = vadd.f32 0.0, %v1699
  %v1701 = vpop.f32.mrb[0].mxu0
  %1702 = vmatprep.mubr.bf16.mxu0 0
  %1703 = vmatmul.mubr.bf16.gmra.mrb[0].mxu0 %v1609
  %v1704 = vpop.f32.mrb[0].mxu0
  %v1705 = vadd.f32 0.0, %v1704
  %v1706 = vpop.f32.mrb[0].mxu0
  %v1707 = vpop.f32.mrb[0].mxu0
  %v1708 = vadd.f32 0.0, %v1707
  %v1709 = vpop.f32.mrb[0].mxu0
  %1710 = vmatprep.mubr.bf16.mxu0 0
  %1711 = vmatmul.mubr.bf16.gmra.mrb[0].mxu0 %v1612
  %v1712 = vpop.f32.mrb[0].mxu0
  %v1713 = vadd.f32 0.0, %v1712
  %v1714 = vpop.f32.mrb[0].mxu0
  %v1715 = vpop.f32.mrb[0].mxu0
  %v1716 = vadd.f32 0.0, %v1715
  %v1717 = vpop.f32.mrb[0].mxu0
  %1718 = vmatprep.mubr.bf16.mxu0 0
  %1719 = vmatmul.mubr.bf16.gmra.mrb[0].mxu0 %v1615
  %v1720 = vpop.f32.mrb[0].mxu0
  %v1721 = vadd.f32 0.0, %v1720
  %v1722 = vpop.f32.mrb[0].mxu0
  %v1723 = vpop.f32.mrb[0].mxu0
  %v1724 = vadd.f32 0.0, %v1723
  %v1725 = vpop.f32.mrb[0].mxu0
  %1726 = vmatprep.mubr.bf16.mxu0 0
  %1727 = vmatmul.mubr.bf16.gmra.mrb[0].mxu0 %v1618
  %v1728 = vpop.f32.mrb[0].mxu0
  %v1729 = vadd.f32 0.0, %v1728
  %v1730 = vpop.f32.mrb[0].mxu0
  %v1731 = vpop.f32.mrb[0].mxu0
  %v1732 = vadd.f32 0.0, %v1731
  %v1733 = vpop.f32.mrb[0].mxu0
  %1734 = vmatprep.mubr.bf16.mxu0 0
  %1735 = vmatmul.mubr.bf16.gmra.mrb[0].mxu0 %v1621
  %v1736 = vpop.f32.mrb[0].mxu0
  %v1737 = vadd.f32 0.0, %v1736
  %v1738 = vpop.f32.mrb[0].mxu0
  %v1739 = vpop.f32.mrb[0].mxu0
  %v1740 = vadd.f32 0.0, %v1739
  %v1741 = vpop.f32.mrb[0].mxu0
  %1742 = vmatprep.mubr.bf16.mxu0 0
  %1743 = vmatmul.mubr.bf16.gmra.mrb[0].mxu0 %v1624
  %v1744 = vpop.f32.mrb[0].mxu0
  %v1745 = vadd.f32 0.0, %v1744
  %v1746 = vpop.f32.mrb[0].mxu0
  %v1747 = vpop.f32.mrb[0].mxu0
  %v1748 = vadd.f32 0.0, %v1747
  %v1749 = vpop.f32.mrb[0].mxu0
  %1750 = vmatprep.mubr.bf16.mxu0 0
  %1751 = vmatmul.mubr.bf16.gmra.mrb[0].mxu0 %v1627
  %v1752 = vpop.f32.mrb[0].mxu0
  %v1753 = vadd.f32 0.0, %v1752
  %v1754 = vpop.f32.mrb[0].mxu0
  %v1755 = vpop.f32.mrb[0].mxu0
  %v1756 = vadd.f32 0.0, %v1755
  %v1757 = vpop.f32.mrb[0].mxu0
  %1758 = vmatprep.mubr.bf16.mxu0 0
  %1759 = vmatmul.mubr.bf16.gmra.mrb[0].mxu0 %v1630
  %v1760 = vpop.f32.mrb[0].mxu0
  %v1761 = vadd.f32 0.0, %v1760
  %v1762 = vpop.f32.mrb[0].mxu0
  %v1763 = vpop.f32.mrb[0].mxu0
  %v1764 = vadd.f32 0.0, %v1763
  %v1765 = vpop.f32.mrb[0].mxu0
  %1766 = vmatprep.mubr.bf16.mxu0 0
  %1767 = vmatmul.mubr.bf16.gmra.mrb[0].mxu0 %v1633
  %v1768 = vpop.f32.mrb[0].mxu0
  %v1769 = vadd.f32 0.0, %v1768
  %v1770 = vpop.f32.mrb[0].mxu0
  %v1771 = vpop.f32.mrb[0].mxu0
  %v1772 = vadd.f32 0.0, %v1771
  %v1773 = vpop.f32.mrb[0].mxu0
  %1774 = vmatprep.mubr.bf16.mxu0 0
  %1775 = vmatmul.mubr.bf16.gmra.mrb[0].mxu0 %v1636
  %v1776 = vpop.f32.mrb[0].mxu0
  %v1777 = vadd.f32 0.0, %v1776
  %v1778 = vpop.f32.mrb[0].mxu0
  %v1779 = vpop.f32.mrb[0].mxu0
  %v1780 = vadd.f32 0.0, %v1779
  %v1781 = vpop.f32.mrb[0].mxu0
  %1782 = vmatprep.mubr.bf16.mxu0 0
  %1783 = vmatmul.mubr.bf16.gmra.mrb[0].mxu0 %v1639
  %v1784 = vpop.f32.mrb[0].mxu0
  %v1785 = vadd.f32 0.0, %v1784
  %v1786 = vpop.f32.mrb[0].mxu0
  %v1787 = vpop.f32.mrb[0].mxu0
  %v1788 = vadd.f32 0.0, %v1787
  %v1789 = vpop.f32.mrb[0].mxu0
  %1790 = vmatprep.mubr.bf16.mxu0 0
  %1791 = vmatmul.mubr.bf16.gmra.mrb[0].mxu0 %v1642
  %v1792 = vpop.f32.mrb[0].mxu0
  %v1793 = vadd.f32 0.0, %v1792
  %v1794 = vpop.f32.mrb[0].mxu0
  %v1795 = vpop.f32.mrb[0].mxu0
  %v1796 = vadd.f32 0.0, %v1795
  %v1797 = vpop.f32.mrb[0].mxu0
  %1798 = vmatprep.mubr.bf16.mxu0 0
  %1799 = vmatmul.mubr.bf16.gmra.mrb[0].mxu0 %v1645
  %v1800 = vpop.f32.mrb[0].mxu0
  %v1801 = vadd.f32 0.0, %v1800
  %v1802 = vpop.f32.mrb[0].mxu0
  %v1803 = vpop.f32.mrb[0].mxu0
  %v1804 = vadd.f32 0.0, %v1803
  %v1805 = vpop.f32.mrb[0].mxu0
  %1806 = vmatprep.mubr.bf16.mxu0 0
  %1807 = vmatmul.mubr.bf16.gmra.mrb[0].mxu0 %v1648
  %v1808 = vpop.f32.mrb[0].mxu0
  %v1809 = vadd.f32 0.0, %v1808
  %v1810 = vpop.f32.mrb[0].mxu0
  %v1811 = vpop.f32.mrb[0].mxu0
  %v1812 = vadd.f32 0.0, %v1811
  %v1813 = vpop.f32.mrb[0].mxu0
  %1814 = vdwg.mxu0
  %1815 = vst.msk [vmem:[#allocation4] sm:$0xff] %vm27, %v1689
  %1816 = vst.msk [vmem:[#allocation4 + $0x8] sm:$0xff] %vm27, %v1692
  %1817 = vst.msk [vmem:[#allocation4 + $0x10] sm:$0xff] %vm27, %v1697
  %1818 = vst.msk [vmem:[#allocation4 + $0x18] sm:$0xff] %vm27, %v1700
  %1819 = vst.msk [vmem:[#allocation4 + $0x20] sm:$0xff] %vm27, %v1705
  %1820 = vst.msk [vmem:[#allocation4 + $0x28] sm:$0xff] %vm27, %v1708
  %1821 = vst.msk [vmem:[#allocation4 + $0x30] sm:$0xff] %vm27, %v1713
  %1822 = vst.msk [vmem:[#allocation4 + $0x38] sm:$0xff] %vm27, %v1716
  %1823 = vst.msk [vmem:[#allocation4 + $0x40] sm:$0xff] %vm27, %v1721
  %1824 = vst.msk [vmem:[#allocation4 + $0x48] sm:$0xff] %vm27, %v1724
  %1825 = vst.msk [vmem:[#allocation4 + $0x50] sm:$0xff] %vm27, %v1729
  %1826 = vst.msk [vmem:[#allocation4 + $0x58] sm:$0xff] %vm27, %v1732
  %1827 = vst.msk [vmem:[#allocation4 + $0x60] sm:$0xff] %vm27, %v1737
  %1828 = vst.msk [vmem:[#allocation4 + $0x68] sm:$0xff] %vm27, %v1740
  %1829 = vst.msk [vmem:[#allocation4 + $0x70] sm:$0xff] %vm27, %v1745
  %1830 = vst.msk [vmem:[#allocation4 + $0x78] sm:$0xff] %vm27, %v1748
  %1831 = vst.msk [vmem:[#allocation4 + $0x80] sm:$0xff] %vm27, %v1753
  %1832 = vst.msk [vmem:[#allocation4 + $0x88] sm:$0xff] %vm27, %v1756
  %1833 = vst.msk [vmem:[#allocation4 + $0x90] sm:$0xff] %vm27, %v1761
  %1834 = vst.msk [vmem:[#allocation4 + $0x98] sm:$0xff] %vm27, %v1764
  %1835 = vst.msk [vmem:[#allocation4 + $0xa0] sm:$0xff] %vm27, %v1769
  %1836 = vst.msk [vmem:[#allocation4 + $0xa8] sm:$0xff] %vm27, %v1772
  %1837 = vst.msk [vmem:[#allocation4 + $0xb0] sm:$0xff] %vm27, %v1777
  %1838 = vst.msk [vmem:[#allocation4 + $0xb8] sm:$0xff] %vm27, %v1780
  %1839 = vst.msk [vmem:[#allocation4 + $0xc0] sm:$0xff] %vm27, %v1785
  %1840 = vst.msk [vmem:[#allocation4 + $0xc8] sm:$0xff] %vm27, %v1788
  %1841 = vst.msk [vmem:[#allocation4 + $0xd0] sm:$0xff] %vm27, %v1793
  %1842 = vst.msk [vmem:[#allocation4 + $0xd8] sm:$0xff] %vm27, %v1796
  %1843 = vst.msk [vmem:[#allocation4 + $0xe0] sm:$0xff] %vm27, %v1801
  %1844 = vst.msk [vmem:[#allocation4 + $0xe8] sm:$0xff] %vm27, %v1804
  %1845 = vst.msk [vmem:[#allocation4 + $0xf0] sm:$0xff] %vm27, %v1809
  %1846 = vst.msk [vmem:[#allocation4 + $0xf8] sm:$0xff] %vm27, %v1812
  %v1847 = vsel %vm27, %v1689, 0.0
  %v1848 = vsel %vm27, %v1692, 0.0
  %v1849 = vadd.f32 %v1847, %v1848
  %v1850 = vsel %vm27, %v1697, 0.0
  %v1851 = vadd.f32 %v1849, %v1850
  %v1852 = vsel %vm27, %v1700, 0.0
  %v1853 = vadd.f32 %v1851, %v1852
  %v1854 = vsel %vm27, %v1705, 0.0
  %v1855 = vadd.f32 %v1853, %v1854
  %v1856 = vsel %vm27, %v1708, 0.0
  %v1857 = vadd.f32 %v1855, %v1856
  %v1858 = vsel %vm27, %v1713, 0.0
  %v1859 = vadd.f32 %v1857, %v1858
  %v1860 = vsel %vm27, %v1716, 0.0
  %v1861 = vadd.f32 %v1859, %v1860
  %v1862 = vsel %vm27, %v1721, 0.0
  %v1863 = vadd.f32 %v1861, %v1862
  %v1864 = vsel %vm27, %v1724, 0.0
  %v1865 = vadd.f32 %v1863, %v1864
  %v1866 = vsel %vm27, %v1729, 0.0
  %v1867 = vadd.f32 %v1865, %v1866
  %v1868 = vsel %vm27, %v1732, 0.0
  %v1869 = vadd.f32 %v1867, %v1868
  %v1870 = vsel %vm27, %v1737, 0.0
  %v1871 = vadd.f32 %v1869, %v1870
  %v1872 = vsel %vm27, %v1740, 0.0
  %v1873 = vadd.f32 %v1871, %v1872
  %v1874 = vsel %vm27, %v1745, 0.0
  %v1875 = vadd.f32 %v1873, %v1874
  %v1876 = vsel %vm27, %v1748, 0.0
  %v1877 = vadd.f32 %v1875, %v1876
  %v1878 = vsel %vm27, %v1753, 0.0
  %v1879 = vadd.f32 %v1877, %v1878
  %v1880 = vsel %vm27, %v1756, 0.0
  %v1881 = vadd.f32 %v1879, %v1880
  %v1882 = vsel %vm27, %v1761, 0.0
  %v1883 = vadd.f32 %v1881, %v1882
  %v1884 = vsel %vm27, %v1764, 0.0
  %v1885 = vadd.f32 %v1883, %v1884
  %v1886 = vsel %vm27, %v1769, 0.0
  %v1887 = vadd.f32 %v1885, %v1886
  %v1888 = vsel %vm27, %v1772, 0.0
  %v1889 = vadd.f32 %v1887, %v1888
  %v1890 = vsel %vm27, %v1777, 0.0
  %v1891 = vadd.f32 %v1889, %v1890
  %v1892 = vsel %vm27, %v1780, 0.0
  %v1893 = vadd.f32 %v1891, %v1892
  %v1894 = vsel %vm27, %v1785, 0.0
  %v1895 = vadd.f32 %v1893, %v1894
  %v1896 = vsel %vm27, %v1788, 0.0
  %v1897 = vadd.f32 %v1895, %v1896
  %v1898 = vsel %vm27, %v1793, 0.0
  %v1899 = vadd.f32 %v1897, %v1898
  %v1900 = vsel %vm27, %v1796, 0.0
  %v1901 = vadd.f32 %v1899, %v1900
  %v1902 = vsel %vm27, %v1801, 0.0
  %v1903 = vadd.f32 %v1901, %v1902
  %v1904 = vsel %vm27, %v1804, 0.0
  %v1905 = vadd.f32 %v1903, %v1904
  %v1906 = vsel %vm27, %v1809, 0.0
  %v1907 = vadd.f32 %v1905, %v1906
  %v1908 = vsel %vm27, %v1812, 0.0
  %v1909 = vadd.f32 %v1907, %v1908
  %v1910 = vrot.slane %v1909, 4
  %v1911 = vadd.f32 %v1909, %v1910
  %v1912 = vrot.slane %v1911, 2
  %v1913 = vadd.f32 %v1911, %v1912
  %v1914 = vrot.slane %v1913, 1
  %v1915 = vadd.f32 %v1913, %v1914
  %v1916 = vadd.f32 %v1915, 0.0
  %v1917 = vmul.f32 %v1689, %v1689
  %v1918 = vmul.f32 %v1692, %v1692
  %v1919 = vmul.f32 %v1697, %v1697
  %v1920 = vmul.f32 %v1700, %v1700
  %v1921 = vmul.f32 %v1705, %v1705
  %v1922 = vmul.f32 %v1708, %v1708
  %v1923 = vmul.f32 %v1713, %v1713
  %v1924 = vmul.f32 %v1716, %v1716
  %v1925 = vmul.f32 %v1721, %v1721
  %v1926 = vmul.f32 %v1724, %v1724
  %v1927 = vmul.f32 %v1729, %v1729
  %v1928 = vmul.f32 %v1732, %v1732
  %v1929 = vmul.f32 %v1737, %v1737
  %v1930 = vmul.f32 %v1740, %v1740
  %v1931 = vmul.f32 %v1745, %v1745
  %v1932 = vmul.f32 %v1748, %v1748
  %v1933 = vmul.f32 %v1753, %v1753
  %v1934 = vmul.f32 %v1756, %v1756
  %v1935 = vmul.f32 %v1761, %v1761
  %v1936 = vmul.f32 %v1764, %v1764
  %v1937 = vmul.f32 %v1769, %v1769
  %v1938 = vmul.f32 %v1772, %v1772
  %v1939 = vmul.f32 %v1777, %v1777
  %v1940 = vmul.f32 %v1780, %v1780
  %v1941 = vmul.f32 %v1785, %v1785
  %v1942 = vmul.f32 %v1788, %v1788
  %v1943 = vmul.f32 %v1793, %v1793
  %v1944 = vmul.f32 %v1796, %v1796
  %v1945 = vmul.f32 %v1801, %v1801
  %v1946 = vmul.f32 %v1804, %v1804
  %v1947 = vmul.f32 %v1809, %v1809
  %v1948 = vmul.f32 %v1812, %v1812
  %v1949 = vsel %vm27, %v1917, 0.0
  %v1950 = vsel %vm27, %v1918, 0.0
  %v1951 = vadd.f32 %v1949, %v1950
  %v1952 = vsel %vm27, %v1919, 0.0
  %v1953 = vadd.f32 %v1951, %v1952
  %v1954 = vsel %vm27, %v1920, 0.0
  %v1955 = vadd.f32 %v1953, %v1954
  %v1956 = vsel %vm27, %v1921, 0.0
  %v1957 = vadd.f32 %v1955, %v1956
  %v1958 = vsel %vm27, %v1922, 0.0
  %v1959 = vadd.f32 %v1957, %v1958
  %v1960 = vsel %vm27, %v1923, 0.0
  %v1961 = vadd.f32 %v1959, %v1960
  %v1962 = vsel %vm27, %v1924, 0.0
  %v1963 = vadd.f32 %v1961, %v1962
  %v1964 = vsel %vm27, %v1925, 0.0
  %v1965 = vadd.f32 %v1963, %v1964
  %v1966 = vsel %vm27, %v1926, 0.0
  %v1967 = vadd.f32 %v1965, %v1966
  %v1968 = vsel %vm27, %v1927, 0.0
  %v1969 = vadd.f32 %v1967, %v1968
  %v1970 = vsel %vm27, %v1928, 0.0
  %v1971 = vadd.f32 %v1969, %v1970
  %v1972 = vsel %vm27, %v1929, 0.0
  %v1973 = vadd.f32 %v1971, %v1972
  %v1974 = vsel %vm27, %v1930, 0.0
  %v1975 = vadd.f32 %v1973, %v1974
  %v1976 = vsel %vm27, %v1931, 0.0
  %v1977 = vadd.f32 %v1975, %v1976
  %v1978 = vsel %vm27, %v1932, 0.0
  %v1979 = vadd.f32 %v1977, %v1978
  %v1980 = vsel %vm27, %v1933, 0.0
  %v1981 = vadd.f32 %v1979, %v1980
  %v1982 = vsel %vm27, %v1934, 0.0
  %v1983 = vadd.f32 %v1981, %v1982
  %v1984 = vsel %vm27, %v1935, 0.0
  %v1985 = vadd.f32 %v1983, %v1984
  %v1986 = vsel %vm27, %v1936, 0.0
  %v1987 = vadd.f32 %v1985, %v1986
  %v1988 = vsel %vm27, %v1937, 0.0
  %v1989 = vadd.f32 %v1987, %v1988
  %v1990 = vsel %vm27, %v1938, 0.0
  %v1991 = vadd.f32 %v1989, %v1990
  %v1992 = vsel %vm27, %v1939, 0.0
  %v1993 = vadd.f32 %v1991, %v1992
  %v1994 = vsel %vm27, %v1940, 0.0
  %v1995 = vadd.f32 %v1993, %v1994
  %v1996 = vsel %vm27, %v1941, 0.0
  %v1997 = vadd.f32 %v1995, %v1996
  %v1998 = vsel %vm27, %v1942, 0.0
  %v1999 = vadd.f32 %v1997, %v1998
  %v2000 = vsel %vm27, %v1943, 0.0
  %v2001 = vadd.f32 %v1999, %v2000
  %v2002 = vsel %vm27, %v1944, 0.0
  %v2003 = vadd.f32 %v2001, %v2002
  %v2004 = vsel %vm27, %v1945, 0.0
  %v2005 = vadd.f32 %v2003, %v2004
  %v2006 = vsel %vm27, %v1946, 0.0
  %v2007 = vadd.f32 %v2005, %v2006
  %v2008 = vsel %vm27, %v1947, 0.0
  %v2009 = vadd.f32 %v2007, %v2008
  %v2010 = vsel %vm27, %v1948, 0.0
  %v2011 = vadd.f32 %v2009, %v2010
  %v2012 = vrot.slane %v2011, 4
  %v2013 = vadd.f32 %v2011, %v2012
  %v2014 = vrot.slane %v2013, 2
  %v2015 = vadd.f32 %v2013, %v2014
  %v2016 = vrot.slane %v2015, 1
  %v2017 = vadd.f32 %v2015, %v2016
  %v2018 = vadd.f32 %v2017, 0.0
  %s2019 = scalar_lea.vmem [#allocation2], 432
  %v2020 = vld [vmem:[%s2019] sm:$0xff]
  %v2021 = vld [vmem:[%s2019 + $0x8] sm:$0xff]
  %v2022 = vld [vmem:[%s2019 + $0x10] sm:$0x3]
  %v2023 = vld [vmem:[%s2019 + $0x18] sm:$0xff]
  %v2024 = vld [vmem:[%s2019 + $0x20] sm:$0xff]
  %v2025 = vld [vmem:[%s2019 + $0x28] sm:$0x3]
  %v2026 = vld [vmem:[%s2019 + $0x30] sm:$0xff]
  %v2027 = vld [vmem:[%s2019 + $0x38] sm:$0xff]
  %v2028 = vld [vmem:[%s2019 + $0x40] sm:$0x3]
  %v2029 = vld [vmem:[%s2019 + $0x48] sm:$0xff]
  %v2030 = vld [vmem:[%s2019 + $0x50] sm:$0xff]
  %v2031 = vld [vmem:[%s2019 + $0x58] sm:$0x3]
  %v2032 = vld [vmem:[%s2019 + $0x60] sm:$0xff]
  %v2033 = vld [vmem:[%s2019 + $0x68] sm:$0xff]
  %v2034 = vld [vmem:[%s2019 + $0x70] sm:$0x3]
  %v2035 = vld [vmem:[%s2019 + $0x78] sm:$0xff]
  %v2036 = vld [vmem:[%s2019 + $0x80] sm:$0xff]
  %v2037 = vld [vmem:[%s2019 + $0x88] sm:$0x3]
  %v2038 = vld [vmem:[%s2019 + $0x90] sm:$0xff]
  %v2039 = vld [vmem:[%s2019 + $0x98] sm:$0xff]
  %v2040 = vld [vmem:[%s2019 + $0xa0] sm:$0x3]
  %v2041 = vld [vmem:[%s2019 + $0xa8] sm:$0xff]
  %v2042 = vld [vmem:[%s2019 + $0xb0] sm:$0xff]
  %v2043 = vld [vmem:[%s2019 + $0xb8] sm:$0x3]
  %v2044 = vld [vmem:[%s2019 + $0xc0] sm:$0xff]
  %v2045 = vld [vmem:[%s2019 + $0xc8] sm:$0xff]
  %v2046 = vld [vmem:[%s2019 + $0xd0] sm:$0x3]
  %v2047 = vld [vmem:[%s2019 + $0xd8] sm:$0xff]
  %v2048 = vld [vmem:[%s2019 + $0xe0] sm:$0xff]
  %v2049 = vld [vmem:[%s2019 + $0xe8] sm:$0x3]
  %v2050 = vld [vmem:[%s2019 + $0xf0] sm:$0xff]
  %v2051 = vld [vmem:[%s2019 + $0xf8] sm:$0xff]
  %v2052 = vld [vmem:[%s2019 + $0x100] sm:$0x3]
  %v2053 = vld [vmem:[%s2019 + $0x108] sm:$0xff]
  %v2054 = vld [vmem:[%s2019 + $0x110] sm:$0xff]
  %v2055 = vld [vmem:[%s2019 + $0x118] sm:$0x3]
  %v2056 = vld [vmem:[%s2019 + $0x120] sm:$0xff]
  %v2057 = vld [vmem:[%s2019 + $0x128] sm:$0xff]
  %v2058 = vld [vmem:[%s2019 + $0x130] sm:$0x3]
  %v2059 = vld [vmem:[%s2019 + $0x138] sm:$0xff]
  %v2060 = vld [vmem:[%s2019 + $0x140] sm:$0xff]
  %v2061 = vld [vmem:[%s2019 + $0x148] sm:$0x3]
  %v2062 = vld [vmem:[%s2019 + $0x150] sm:$0xff]
  %v2063 = vld [vmem:[%s2019 + $0x158] sm:$0xff]
  %v2064 = vld [vmem:[%s2019 + $0x160] sm:$0x3]
  %v2065 = vld [vmem:[%s2019 + $0x168] sm:$0xff]
  %v2066 = vld [vmem:[%s2019 + $0x170] sm:$0xff]
  %v2067 = vld [vmem:[%s2019 + $0x178] sm:$0x3]
  %v2068 = vld [vmem:[%s2019 + $0x180] sm:$0xff]
  %v2069 = vld [vmem:[%s2019 + $0x188] sm:$0xff]
  %v2070 = vld [vmem:[%s2019 + $0x190] sm:$0x3]
  %v2071 = vld [vmem:[%s2019 + $0x198] sm:$0xff]
  %v2072 = vld [vmem:[%s2019 + $0x1a0] sm:$0xff]
  %v2073 = vld [vmem:[%s2019 + $0x1a8] sm:$0x3]
  %v2122 = vrot.slane %v2020, 1
  %v2123 = vrot.slane %v2021, 1
  %v2124 = vsel %vm346, %v2122, %v2123
  %v2125 = vrot.slane %v2022, 1
  %v2126 = vsel %vm346, %v2123, %v2125
  %v2127 = vrot.slane %v2023, 1
  %v2128 = vrot.slane %v2024, 1
  %v2129 = vsel %vm346, %v2127, %v2128
  %v2130 = vrot.slane %v2025, 1
  %v2131 = vsel %vm346, %v2128, %v2130
  %v2132 = vrot.slane %v2026, 1
  %v2133 = vrot.slane %v2027, 1
  %v2134 = vsel %vm346, %v2132, %v2133
  %v2135 = vrot.slane %v2028, 1
  %v2136 = vsel %vm346, %v2133, %v2135
  %v2137 = vrot.slane %v2029, 1
  %v2138 = vrot.slane %v2030, 1
  %v2139 = vsel %vm346, %v2137, %v2138
  %v2140 = vrot.slane %v2031, 1
  %v2141 = vsel %vm346, %v2138, %v2140
  %v2142 = vrot.slane %v2032, 1
  %v2143 = vrot.slane %v2033, 1
  %v2144 = vsel %vm346, %v2142, %v2143
  %v2145 = vrot.slane %v2034, 1
  %v2146 = vsel %vm346, %v2143, %v2145
  %v2147 = vrot.slane %v2035, 1
  %v2148 = vrot.slane %v2036, 1
  %v2149 = vsel %vm346, %v2147, %v2148
  %v2150 = vrot.slane %v2037, 1
  %v2151 = vsel %vm346, %v2148, %v2150
  %v2152 = vrot.slane %v2038, 1
  %v2153 = vrot.slane %v2039, 1
  %v2154 = vsel %vm346, %v2152, %v2153
  %v2155 = vrot.slane %v2040, 1
  %v2156 = vsel %vm346, %v2153, %v2155
  %v2157 = vrot.slane %v2041, 1
  %v2158 = vrot.slane %v2042, 1
  %v2159 = vsel %vm346, %v2157, %v2158
  %v2160 = vrot.slane %v2043, 1
  %v2161 = vsel %vm346, %v2158, %v2160
  %v2162 = vrot.slane %v2044, 1
  %v2163 = vrot.slane %v2045, 1
  %v2164 = vsel %vm346, %v2162, %v2163
  %v2165 = vrot.slane %v2046, 1
  %v2166 = vsel %vm346, %v2163, %v2165
  %v2167 = vrot.slane %v2047, 1
  %v2168 = vrot.slane %v2048, 1
  %v2169 = vsel %vm346, %v2167, %v2168
  %v2170 = vrot.slane %v2049, 1
  %v2171 = vsel %vm346, %v2168, %v2170
  %v2172 = vrot.slane %v2050, 1
  %v2173 = vrot.slane %v2051, 1
  %v2174 = vsel %vm346, %v2172, %v2173
  %v2175 = vrot.slane %v2052, 1
  %v2176 = vsel %vm346, %v2173, %v2175
  %v2177 = vrot.slane %v2053, 1
  %v2178 = vrot.slane %v2054, 1
  %v2179 = vsel %vm346, %v2177, %v2178
  %v2180 = vrot.slane %v2055, 1
  %v2181 = vsel %vm346, %v2178, %v2180
  %v2182 = vrot.slane %v2056, 1
  %v2183 = vrot.slane %v2057, 1
  %v2184 = vsel %vm346, %v2182, %v2183
  %v2185 = vrot.slane %v2058, 1
  %v2186 = vsel %vm346, %v2183, %v2185
  %v2187 = vrot.slane %v2059, 1
  %v2188 = vrot.slane %v2060, 1
  %v2189 = vsel %vm346, %v2187, %v2188
  %v2190 = vrot.slane %v2061, 1
  %v2191 = vsel %vm346, %v2188, %v2190
  %v2192 = vrot.slane %v2062, 1
  %v2193 = vrot.slane %v2063, 1
  %v2194 = vsel %vm346, %v2192, %v2193
  %v2195 = vrot.slane %v2064, 1
  %v2196 = vsel %vm346, %v2193, %v2195
  %v2197 = vrot.slane %v2065, 1
  %v2198 = vrot.slane %v2066, 1
  %v2199 = vsel %vm346, %v2197, %v2198
  %v2200 = vrot.slane %v2067, 1
  %v2201 = vsel %vm346, %v2198, %v2200
  %2202 = vrot.lane.b32.xlu0 %v2124, 4
  %v2203 = vpop.permute.xlu0 %2202
  %2204 = vrot.lane.b32.xlu0 %v2126, 4
  %v2205 = vpop.permute.xlu0 %2204
  %2206 = vrot.lane.b32.xlu0 %v2129, 4
  %v2207 = vpop.permute.xlu0 %2206
  %2208 = vrot.lane.b32.xlu0 %v2131, 4
  %v2209 = vpop.permute.xlu0 %2208
  %2210 = vrot.lane.b32.xlu0 %v2134, 4
  %v2211 = vpop.permute.xlu0 %2210
  %2212 = vrot.lane.b32.xlu0 %v2136, 4
  %v2213 = vpop.permute.xlu0 %2212
  %2214 = vrot.lane.b32.xlu0 %v2139, 4
  %v2215 = vpop.permute.xlu0 %2214
  %2216 = vrot.lane.b32.xlu0 %v2141, 4
  %v2217 = vpop.permute.xlu0 %2216
  %2218 = vrot.lane.b32.xlu0 %v2144, 4
  %v2219 = vpop.permute.xlu0 %2218
  %2220 = vrot.lane.b32.xlu0 %v2146, 4
  %v2221 = vpop.permute.xlu0 %2220
  %2222 = vrot.lane.b32.xlu0 %v2149, 4
  %v2223 = vpop.permute.xlu0 %2222
  %2224 = vrot.lane.b32.xlu0 %v2151, 4
  %v2225 = vpop.permute.xlu0 %2224
  %2226 = vrot.lane.b32.xlu0 %v2154, 4
  %v2227 = vpop.permute.xlu0 %2226
  %2228 = vrot.lane.b32.xlu0 %v2156, 4
  %v2229 = vpop.permute.xlu0 %2228
  %2230 = vrot.lane.b32.xlu0 %v2159, 4
  %v2231 = vpop.permute.xlu0 %2230
  %2232 = vrot.lane.b32.xlu0 %v2161, 4
  %v2233 = vpop.permute.xlu0 %2232
  %2234 = vrot.lane.b32.xlu0 %v2164, 4
  %v2235 = vpop.permute.xlu0 %2234
  %2236 = vrot.lane.b32.xlu0 %v2166, 4
  %v2237 = vpop.permute.xlu0 %2236
  %2238 = vrot.lane.b32.xlu0 %v2169, 4
  %v2239 = vpop.permute.xlu0 %2238
  %2240 = vrot.lane.b32.xlu0 %v2171, 4
  %v2241 = vpop.permute.xlu0 %2240
  %2242 = vrot.lane.b32.xlu0 %v2174, 4
  %v2243 = vpop.permute.xlu0 %2242
  %2244 = vrot.lane.b32.xlu0 %v2176, 4
  %v2245 = vpop.permute.xlu0 %2244
  %2246 = vrot.lane.b32.xlu0 %v2179, 4
  %v2247 = vpop.permute.xlu0 %2246
  %2248 = vrot.lane.b32.xlu0 %v2181, 4
  %v2249 = vpop.permute.xlu0 %2248
  %2250 = vrot.lane.b32.xlu0 %v2184, 4
  %v2251 = vpop.permute.xlu0 %2250
  %2252 = vrot.lane.b32.xlu0 %v2186, 4
  %v2253 = vpop.permute.xlu0 %2252
  %2254 = vrot.lane.b32.xlu0 %v2189, 4
  %v2255 = vpop.permute.xlu0 %2254
  %2256 = vrot.lane.b32.xlu0 %v2191, 4
  %v2257 = vpop.permute.xlu0 %2256
  %2258 = vrot.lane.b32.xlu0 %v2194, 4
  %v2259 = vpop.permute.xlu0 %2258
  %2260 = vrot.lane.b32.xlu0 %v2196, 4
  %v2261 = vpop.permute.xlu0 %2260
  %2262 = vrot.lane.b32.xlu0 %v2199, 4
  %v2263 = vpop.permute.xlu0 %2262
  %2264 = vrot.lane.b32.xlu0 %v2201, 4
  %v2265 = vpop.permute.xlu0 %2264
  %v2298 = vrot.slane %v2020, 2
  %v2299 = vrot.slane %v2021, 2
  %v2300 = vsel %vm523, %v2298, %v2299
  %v2301 = vrot.slane %v2022, 2
  %v2302 = vsel %vm523, %v2299, %v2301
  %v2303 = vrot.slane %v2023, 2
  %v2304 = vrot.slane %v2024, 2
  %v2305 = vsel %vm523, %v2303, %v2304
  %v2306 = vrot.slane %v2025, 2
  %v2307 = vsel %vm523, %v2304, %v2306
  %v2308 = vrot.slane %v2026, 2
  %v2309 = vrot.slane %v2027, 2
  %v2310 = vsel %vm523, %v2308, %v2309
  %v2311 = vrot.slane %v2028, 2
  %v2312 = vsel %vm523, %v2309, %v2311
  %v2313 = vrot.slane %v2029, 2
  %v2314 = vrot.slane %v2030, 2
  %v2315 = vsel %vm523, %v2313, %v2314
  %v2316 = vrot.slane %v2031, 2
  %v2317 = vsel %vm523, %v2314, %v2316
  %v2318 = vrot.slane %v2032, 2
  %v2319 = vrot.slane %v2033, 2
  %v2320 = vsel %vm523, %v2318, %v2319
  %v2321 = vrot.slane %v2034, 2
  %v2322 = vsel %vm523, %v2319, %v2321
  %v2323 = vrot.slane %v2035, 2
  %v2324 = vrot.slane %v2036, 2
  %v2325 = vsel %vm523, %v2323, %v2324
  %v2326 = vrot.slane %v2037, 2
  %v2327 = vsel %vm523, %v2324, %v2326
  %v2328 = vrot.slane %v2038, 2
  %v2329 = vrot.slane %v2039, 2
  %v2330 = vsel %vm523, %v2328, %v2329
  %v2331 = vrot.slane %v2040, 2
  %v2332 = vsel %vm523, %v2329, %v2331
  %v2333 = vrot.slane %v2041, 2
  %v2334 = vrot.slane %v2042, 2
  %v2335 = vsel %vm523, %v2333, %v2334
  %v2336 = vrot.slane %v2043, 2
  %v2337 = vsel %vm523, %v2334, %v2336
  %v2338 = vrot.slane %v2044, 2
  %v2339 = vrot.slane %v2045, 2
  %v2340 = vsel %vm523, %v2338, %v2339
  %v2341 = vrot.slane %v2046, 2
  %v2342 = vsel %vm523, %v2339, %v2341
  %v2343 = vrot.slane %v2047, 2
  %v2344 = vrot.slane %v2048, 2
  %v2345 = vsel %vm523, %v2343, %v2344
  %v2346 = vrot.slane %v2049, 2
  %v2347 = vsel %vm523, %v2344, %v2346
  %v2348 = vrot.slane %v2050, 2
  %v2349 = vrot.slane %v2051, 2
  %v2350 = vsel %vm523, %v2348, %v2349
  %v2351 = vrot.slane %v2052, 2
  %v2352 = vsel %vm523, %v2349, %v2351
  %v2353 = vrot.slane %v2053, 2
  %v2354 = vrot.slane %v2054, 2
  %v2355 = vsel %vm523, %v2353, %v2354
  %v2356 = vrot.slane %v2055, 2
  %v2357 = vsel %vm523, %v2354, %v2356
  %v2358 = vrot.slane %v2056, 2
  %v2359 = vrot.slane %v2057, 2
  %v2360 = vsel %vm523, %v2358, %v2359
  %v2361 = vrot.slane %v2058, 2
  %v2362 = vsel %vm523, %v2359, %v2361
  %v2363 = vrot.slane %v2059, 2
  %v2364 = vrot.slane %v2060, 2
  %v2365 = vsel %vm523, %v2363, %v2364
  %v2366 = vrot.slane %v2061, 2
  %v2367 = vsel %vm523, %v2364, %v2366
  %v2368 = vrot.slane %v2062, 2
  %v2369 = vrot.slane %v2063, 2
  %v2370 = vsel %vm523, %v2368, %v2369
  %v2371 = vrot.slane %v2064, 2
  %v2372 = vsel %vm523, %v2369, %v2371
  %v2373 = vrot.slane %v2065, 2
  %v2374 = vrot.slane %v2066, 2
  %v2375 = vsel %vm523, %v2373, %v2374
  %v2376 = vrot.slane %v2067, 2
  %v2377 = vsel %vm523, %v2374, %v2376
  %2378 = vrot.lane.b32.xlu0 %v2300, 8
  %v2379 = vpop.permute.xlu0 %2378
  %2380 = vrot.lane.b32.xlu0 %v2302, 8
  %v2381 = vpop.permute.xlu0 %2380
  %2382 = vrot.lane.b32.xlu0 %v2305, 8
  %v2383 = vpop.permute.xlu0 %2382
  %2384 = vrot.lane.b32.xlu0 %v2307, 8
  %v2385 = vpop.permute.xlu0 %2384
  %2386 = vrot.lane.b32.xlu0 %v2310, 8
  %v2387 = vpop.permute.xlu0 %2386
  %2388 = vrot.lane.b32.xlu0 %v2312, 8
  %v2389 = vpop.permute.xlu0 %2388
  %2390 = vrot.lane.b32.xlu0 %v2315, 8
  %v2391 = vpop.permute.xlu0 %2390
  %2392 = vrot.lane.b32.xlu0 %v2317, 8
  %v2393 = vpop.permute.xlu0 %2392
  %2394 = vrot.lane.b32.xlu0 %v2320, 8
  %v2395 = vpop.permute.xlu0 %2394
  %2396 = vrot.lane.b32.xlu0 %v2322, 8
  %v2397 = vpop.permute.xlu0 %2396
  %2398 = vrot.lane.b32.xlu0 %v2325, 8
  %v2399 = vpop.permute.xlu0 %2398
  %2400 = vrot.lane.b32.xlu0 %v2327, 8
  %v2401 = vpop.permute.xlu0 %2400
  %2402 = vrot.lane.b32.xlu0 %v2330, 8
  %v2403 = vpop.permute.xlu0 %2402
  %2404 = vrot.lane.b32.xlu0 %v2332, 8
  %v2405 = vpop.permute.xlu0 %2404
  %2406 = vrot.lane.b32.xlu0 %v2335, 8
  %v2407 = vpop.permute.xlu0 %2406
  %2408 = vrot.lane.b32.xlu0 %v2337, 8
  %v2409 = vpop.permute.xlu0 %2408
  %2410 = vrot.lane.b32.xlu0 %v2340, 8
  %v2411 = vpop.permute.xlu0 %2410
  %2412 = vrot.lane.b32.xlu0 %v2342, 8
  %v2413 = vpop.permute.xlu0 %2412
  %2414 = vrot.lane.b32.xlu0 %v2345, 8
  %v2415 = vpop.permute.xlu0 %2414
  %2416 = vrot.lane.b32.xlu0 %v2347, 8
  %v2417 = vpop.permute.xlu0 %2416
  %2418 = vrot.lane.b32.xlu0 %v2350, 8
  %v2419 = vpop.permute.xlu0 %2418
  %2420 = vrot.lane.b32.xlu0 %v2352, 8
  %v2421 = vpop.permute.xlu0 %2420
  %2422 = vrot.lane.b32.xlu0 %v2355, 8
  %v2423 = vpop.permute.xlu0 %2422
  %2424 = vrot.lane.b32.xlu0 %v2357, 8
  %v2425 = vpop.permute.xlu0 %2424
  %2426 = vrot.lane.b32.xlu0 %v2360, 8
  %v2427 = vpop.permute.xlu0 %2426
  %2428 = vrot.lane.b32.xlu0 %v2362, 8
  %v2429 = vpop.permute.xlu0 %2428
  %2430 = vrot.lane.b32.xlu0 %v2365, 8
  %v2431 = vpop.permute.xlu0 %2430
  %2432 = vrot.lane.b32.xlu0 %v2367, 8
  %v2433 = vpop.permute.xlu0 %2432
  %2434 = vrot.lane.b32.xlu0 %v2370, 8
  %v2435 = vpop.permute.xlu0 %2434
  %2436 = vrot.lane.b32.xlu0 %v2372, 8
  %v2437 = vpop.permute.xlu0 %2436
  %2438 = vrot.lane.b32.xlu0 %v2375, 8
  %v2439 = vpop.permute.xlu0 %2438
  %2440 = vrot.lane.b32.xlu0 %v2377, 8
  %v2441 = vpop.permute.xlu0 %2440
  %2476 = vrot.lane.b32.xlu0 %v2023, 12
  %v2477 = vpop.permute.xlu0 %2476
  %2478 = vrot.lane.b32.xlu0 %v2024, 12
  %v2479 = vpop.permute.xlu0 %2478
  %2480 = vrot.lane.b32.xlu0 %v2026, 12
  %v2481 = vpop.permute.xlu0 %2480
  %2482 = vrot.lane.b32.xlu0 %v2027, 12
  %v2483 = vpop.permute.xlu0 %2482
  %2484 = vrot.lane.b32.xlu0 %v2029, 12
  %v2485 = vpop.permute.xlu0 %2484
  %2486 = vrot.lane.b32.xlu0 %v2030, 12
  %v2487 = vpop.permute.xlu0 %2486
  %2488 = vrot.lane.b32.xlu0 %v2032, 12
  %v2489 = vpop.permute.xlu0 %2488
  %2490 = vrot.lane.b32.xlu0 %v2033, 12
  %v2491 = vpop.permute.xlu0 %2490
  %2492 = vrot.lane.b32.xlu0 %v2035, 12
  %v2493 = vpop.permute.xlu0 %2492
  %2494 = vrot.lane.b32.xlu0 %v2036, 12
  %v2495 = vpop.permute.xlu0 %2494
  %2496 = vrot.lane.b32.xlu0 %v2038, 12
  %v2497 = vpop.permute.xlu0 %2496
  %2498 = vrot.lane.b32.xlu0 %v2039, 12
  %v2499 = vpop.permute.xlu0 %2498
  %2500 = vrot.lane.b32.xlu0 %v2041, 12
  %v2501 = vpop.permute.xlu0 %2500
  %2502 = vrot.lane.b32.xlu0 %v2042, 12
  %v2503 = vpop.permute.xlu0 %2502
  %2504 = vrot.lane.b32.xlu0 %v2044, 12
  %v2505 = vpop.permute.xlu0 %2504
  %2506 = vrot.lane.b32.xlu0 %v2045, 12
  %v2507 = vpop.permute.xlu0 %2506
  %2508 = vrot.lane.b32.xlu0 %v2047, 12
  %v2509 = vpop.permute.xlu0 %2508
  %2510 = vrot.lane.b32.xlu0 %v2048, 12
  %v2511 = vpop.permute.xlu0 %2510
  %2512 = vrot.lane.b32.xlu0 %v2050, 12
  %v2513 = vpop.permute.xlu0 %2512
  %2514 = vrot.lane.b32.xlu0 %v2051, 12
  %v2515 = vpop.permute.xlu0 %2514
  %2516 = vrot.lane.b32.xlu0 %v2053, 12
  %v2517 = vpop.permute.xlu0 %2516
  %2518 = vrot.lane.b32.xlu0 %v2054, 12
  %v2519 = vpop.permute.xlu0 %2518
  %2520 = vrot.lane.b32.xlu0 %v2056, 12
  %v2521 = vpop.permute.xlu0 %2520
  %2522 = vrot.lane.b32.xlu0 %v2057, 12
  %v2523 = vpop.permute.xlu0 %2522
  %2524 = vrot.lane.b32.xlu0 %v2059, 12
  %v2525 = vpop.permute.xlu0 %2524
  %2526 = vrot.lane.b32.xlu0 %v2060, 12
  %v2527 = vpop.permute.xlu0 %2526
  %2528 = vrot.lane.b32.xlu0 %v2062, 12
  %v2529 = vpop.permute.xlu0 %2528
  %2530 = vrot.lane.b32.xlu0 %v2063, 12
  %v2531 = vpop.permute.xlu0 %2530
  %2532 = vrot.lane.b32.xlu0 %v2065, 12
  %v2533 = vpop.permute.xlu0 %2532
  %2534 = vrot.lane.b32.xlu0 %v2066, 12
  %v2535 = vpop.permute.xlu0 %2534
  %2536 = vrot.lane.b32.xlu0 %v2068, 12
  %v2537 = vpop.permute.xlu0 %2536
  %2538 = vrot.lane.b32.xlu0 %v2069, 12
  %v2539 = vpop.permute.xlu0 %2538
  %v2573 = vrot.slane %v2068, 1
  %v2574 = vrot.slane %v2069, 1
  %v2575 = vsel %vm346, %v2573, %v2574
  %v2576 = vrot.slane %v2070, 1
  %v2577 = vsel %vm346, %v2574, %v2576
  %2578 = vrot.lane.b32.xlu0 %v2129, 16
  %v2579 = vpop.permute.xlu0 %2578
  %2580 = vrot.lane.b32.xlu0 %v2131, 16
  %v2581 = vpop.permute.xlu0 %2580
  %2582 = vrot.lane.b32.xlu0 %v2134, 16
  %v2583 = vpop.permute.xlu0 %2582
  %2584 = vrot.lane.b32.xlu0 %v2136, 16
  %v2585 = vpop.permute.xlu0 %2584
  %2586 = vrot.lane.b32.xlu0 %v2139, 16
  %v2587 = vpop.permute.xlu0 %2586
  %2588 = vrot.lane.b32.xlu0 %v2141, 16
  %v2589 = vpop.permute.xlu0 %2588
  %2590 = vrot.lane.b32.xlu0 %v2144, 16
  %v2591 = vpop.permute.xlu0 %2590
  %2592 = vrot.lane.b32.xlu0 %v2146, 16
  %v2593 = vpop.permute.xlu0 %2592
  %2594 = vrot.lane.b32.xlu0 %v2149, 16
  %v2595 = vpop.permute.xlu0 %2594
  %2596 = vrot.lane.b32.xlu0 %v2151, 16
  %v2597 = vpop.permute.xlu0 %2596
  %2598 = vrot.lane.b32.xlu0 %v2154, 16
  %v2599 = vpop.permute.xlu0 %2598
  %2600 = vrot.lane.b32.xlu0 %v2156, 16
  %v2601 = vpop.permute.xlu0 %2600
  %2602 = vrot.lane.b32.xlu0 %v2159, 16
  %v2603 = vpop.permute.xlu0 %2602
  %2604 = vrot.lane.b32.xlu0 %v2161, 16
  %v2605 = vpop.permute.xlu0 %2604
  %2606 = vrot.lane.b32.xlu0 %v2164, 16
  %v2607 = vpop.permute.xlu0 %2606
  %2608 = vrot.lane.b32.xlu0 %v2166, 16
  %v2609 = vpop.permute.xlu0 %2608
  %2610 = vrot.lane.b32.xlu0 %v2169, 16
  %v2611 = vpop.permute.xlu0 %2610
  %2612 = vrot.lane.b32.xlu0 %v2171, 16
  %v2613 = vpop.permute.xlu0 %2612
  %2614 = vrot.lane.b32.xlu0 %v2174, 16
  %v2615 = vpop.permute.xlu0 %2614
  %2616 = vrot.lane.b32.xlu0 %v2176, 16
  %v2617 = vpop.permute.xlu0 %2616
  %2618 = vrot.lane.b32.xlu0 %v2179, 16
  %v2619 = vpop.permute.xlu0 %2618
  %2620 = vrot.lane.b32.xlu0 %v2181, 16
  %v2621 = vpop.permute.xlu0 %2620
  %2622 = vrot.lane.b32.xlu0 %v2184, 16
  %v2623 = vpop.permute.xlu0 %2622
  %2624 = vrot.lane.b32.xlu0 %v2186, 16
  %v2625 = vpop.permute.xlu0 %2624
  %2626 = vrot.lane.b32.xlu0 %v2189, 16
  %v2627 = vpop.permute.xlu0 %2626
  %2628 = vrot.lane.b32.xlu0 %v2191, 16
  %v2629 = vpop.permute.xlu0 %2628
  %2630 = vrot.lane.b32.xlu0 %v2194, 16
  %v2631 = vpop.permute.xlu0 %2630
  %2632 = vrot.lane.b32.xlu0 %v2196, 16
  %v2633 = vpop.permute.xlu0 %2632
  %2634 = vrot.lane.b32.xlu0 %v2199, 16
  %v2635 = vpop.permute.xlu0 %2634
  %2636 = vrot.lane.b32.xlu0 %v2201, 16
  %v2637 = vpop.permute.xlu0 %2636
  %2638 = vrot.lane.b32.xlu0 %v2575, 16
  %v2639 = vpop.permute.xlu0 %2638
  %2640 = vrot.lane.b32.xlu0 %v2577, 16
  %v2641 = vpop.permute.xlu0 %2640
  %v2674 = vrot.slane %v2068, 2
  %v2675 = vrot.slane %v2069, 2
  %v2676 = vsel %vm523, %v2674, %v2675
  %v2677 = vrot.slane %v2070, 2
  %v2678 = vsel %vm523, %v2675, %v2677
  %2679 = vrot.lane.b32.xlu0 %v2305, 20
  %v2680 = vpop.permute.xlu0 %2679
  %2681 = vrot.lane.b32.xlu0 %v2307, 20
  %v2682 = vpop.permute.xlu0 %2681
  %2683 = vrot.lane.b32.xlu0 %v2310, 20
  %v2684 = vpop.permute.xlu0 %2683
  %2685 = vrot.lane.b32.xlu0 %v2312, 20
  %v2686 = vpop.permute.xlu0 %2685
  %2687 = vrot.lane.b32.xlu0 %v2315, 20
  %v2688 = vpop.permute.xlu0 %2687
  %2689 = vrot.lane.b32.xlu0 %v2317, 20
  %v2690 = vpop.permute.xlu0 %2689
  %2691 = vrot.lane.b32.xlu0 %v2320, 20
  %v2692 = vpop.permute.xlu0 %2691
  %2693 = vrot.lane.b32.xlu0 %v2322, 20
  %v2694 = vpop.permute.xlu0 %2693
  %2695 = vrot.lane.b32.xlu0 %v2325, 20
  %v2696 = vpop.permute.xlu0 %2695
  %2697 = vrot.lane.b32.xlu0 %v2327, 20
  %v2698 = vpop.permute.xlu0 %2697
  %2699 = vrot.lane.b32.xlu0 %v2330, 20
  %v2700 = vpop.permute.xlu0 %2699
  %2701 = vrot.lane.b32.xlu0 %v2332, 20
  %v2702 = vpop.permute.xlu0 %2701
  %2703 = vrot.lane.b32.xlu0 %v2335, 20
  %v2704 = vpop.permute.xlu0 %2703
  %2705 = vrot.lane.b32.xlu0 %v2337, 20
  %v2706 = vpop.permute.xlu0 %2705
  %2707 = vrot.lane.b32.xlu0 %v2340, 20
  %v2708 = vpop.permute.xlu0 %2707
  %2709 = vrot.lane.b32.xlu0 %v2342, 20
  %v2710 = vpop.permute.xlu0 %2709
  %2711 = vrot.lane.b32.xlu0 %v2345, 20
  %v2712 = vpop.permute.xlu0 %2711
  %2713 = vrot.lane.b32.xlu0 %v2347, 20
  %v2714 = vpop.permute.xlu0 %2713
  %2715 = vrot.lane.b32.xlu0 %v2350, 20
  %v2716 = vpop.permute.xlu0 %2715
  %2717 = vrot.lane.b32.xlu0 %v2352, 20
  %v2718 = vpop.permute.xlu0 %2717
  %2719 = vrot.lane.b32.xlu0 %v2355, 20
  %v2720 = vpop.permute.xlu0 %2719
  %2721 = vrot.lane.b32.xlu0 %v2357, 20
  %v2722 = vpop.permute.xlu0 %2721
  %2723 = vrot.lane.b32.xlu0 %v2360, 20
  %v2724 = vpop.permute.xlu0 %2723
  %2725 = vrot.lane.b32.xlu0 %v2362, 20
  %v2726 = vpop.permute.xlu0 %2725
  %2727 = vrot.lane.b32.xlu0 %v2365, 20
  %v2728 = vpop.permute.xlu0 %2727
  %2729 = vrot.lane.b32.xlu0 %v2367, 20
  %v2730 = vpop.permute.xlu0 %2729
  %2731 = vrot.lane.b32.xlu0 %v2370, 20
  %v2732 = vpop.permute.xlu0 %2731
  %2733 = vrot.lane.b32.xlu0 %v2372, 20
  %v2734 = vpop.permute.xlu0 %2733
  %2735 = vrot.lane.b32.xlu0 %v2375, 20
  %v2736 = vpop.permute.xlu0 %2735
  %2737 = vrot.lane.b32.xlu0 %v2377, 20
  %v2738 = vpop.permute.xlu0 %2737
  %2739 = vrot.lane.b32.xlu0 %v2676, 20
  %v2740 = vpop.permute.xlu0 %2739
  %2741 = vrot.lane.b32.xlu0 %v2678, 20
  %v2742 = vpop.permute.xlu0 %2741
  %2777 = vrot.lane.b32.xlu0 %v2026, 24
  %v2778 = vpop.permute.xlu0 %2777
  %2779 = vrot.lane.b32.xlu0 %v2027, 24
  %v2780 = vpop.permute.xlu0 %2779
  %2781 = vrot.lane.b32.xlu0 %v2029, 24
  %v2782 = vpop.permute.xlu0 %2781
  %2783 = vrot.lane.b32.xlu0 %v2030, 24
  %v2784 = vpop.permute.xlu0 %2783
  %2785 = vrot.lane.b32.xlu0 %v2032, 24
  %v2786 = vpop.permute.xlu0 %2785
  %2787 = vrot.lane.b32.xlu0 %v2033, 24
  %v2788 = vpop.permute.xlu0 %2787
  %2789 = vrot.lane.b32.xlu0 %v2035, 24
  %v2790 = vpop.permute.xlu0 %2789
  %2791 = vrot.lane.b32.xlu0 %v2036, 24
  %v2792 = vpop.permute.xlu0 %2791
  %2793 = vrot.lane.b32.xlu0 %v2038, 24
  %v2794 = vpop.permute.xlu0 %2793
  %2795 = vrot.lane.b32.xlu0 %v2039, 24
  %v2796 = vpop.permute.xlu0 %2795
  %2797 = vrot.lane.b32.xlu0 %v2041, 24
  %v2798 = vpop.permute.xlu0 %2797
  %2799 = vrot.lane.b32.xlu0 %v2042, 24
  %v2800 = vpop.permute.xlu0 %2799
  %2801 = vrot.lane.b32.xlu0 %v2044, 24
  %v2802 = vpop.permute.xlu0 %2801
  %2803 = vrot.lane.b32.xlu0 %v2045, 24
  %v2804 = vpop.permute.xlu0 %2803
  %2805 = vrot.lane.b32.xlu0 %v2047, 24
  %v2806 = vpop.permute.xlu0 %2805
  %2807 = vrot.lane.b32.xlu0 %v2048, 24
  %v2808 = vpop.permute.xlu0 %2807
  %2809 = vrot.lane.b32.xlu0 %v2050, 24
  %v2810 = vpop.permute.xlu0 %2809
  %2811 = vrot.lane.b32.xlu0 %v2051, 24
  %v2812 = vpop.permute.xlu0 %2811
  %2813 = vrot.lane.b32.xlu0 %v2053, 24
  %v2814 = vpop.permute.xlu0 %2813
  %2815 = vrot.lane.b32.xlu0 %v2054, 24
  %v2816 = vpop.permute.xlu0 %2815
  %2817 = vrot.lane.b32.xlu0 %v2056, 24
  %v2818 = vpop.permute.xlu0 %2817
  %2819 = vrot.lane.b32.xlu0 %v2057, 24
  %v2820 = vpop.permute.xlu0 %2819
  %2821 = vrot.lane.b32.xlu0 %v2059, 24
  %v2822 = vpop.permute.xlu0 %2821
  %2823 = vrot.lane.b32.xlu0 %v2060, 24
  %v2824 = vpop.permute.xlu0 %2823
  %2825 = vrot.lane.b32.xlu0 %v2062, 24
  %v2826 = vpop.permute.xlu0 %2825
  %2827 = vrot.lane.b32.xlu0 %v2063, 24
  %v2828 = vpop.permute.xlu0 %2827
  %2829 = vrot.lane.b32.xlu0 %v2065, 24
  %v2830 = vpop.permute.xlu0 %2829
  %2831 = vrot.lane.b32.xlu0 %v2066, 24
  %v2832 = vpop.permute.xlu0 %2831
  %2833 = vrot.lane.b32.xlu0 %v2068, 24
  %v2834 = vpop.permute.xlu0 %2833
  %2835 = vrot.lane.b32.xlu0 %v2069, 24
  %v2836 = vpop.permute.xlu0 %2835
  %2837 = vrot.lane.b32.xlu0 %v2071, 24
  %v2838 = vpop.permute.xlu0 %2837
  %2839 = vrot.lane.b32.xlu0 %v2072, 24
  %v2840 = vpop.permute.xlu0 %2839
  %v2874 = vrot.slane %v2071, 1
  %v2875 = vrot.slane %v2072, 1
  %v2876 = vsel %vm346, %v2874, %v2875
  %v2877 = vrot.slane %v2073, 1
  %v2878 = vsel %vm346, %v2875, %v2877
  %2879 = vrot.lane.b32.xlu0 %v2134, 28
  %v2880 = vpop.permute.xlu0 %2879
  %2881 = vrot.lane.b32.xlu0 %v2136, 28
  %v2882 = vpop.permute.xlu0 %2881
  %2883 = vrot.lane.b32.xlu0 %v2139, 28
  %v2884 = vpop.permute.xlu0 %2883
  %2885 = vrot.lane.b32.xlu0 %v2141, 28
  %v2886 = vpop.permute.xlu0 %2885
  %2887 = vrot.lane.b32.xlu0 %v2144, 28
  %v2888 = vpop.permute.xlu0 %2887
  %2889 = vrot.lane.b32.xlu0 %v2146, 28
  %v2890 = vpop.permute.xlu0 %2889
  %2891 = vrot.lane.b32.xlu0 %v2149, 28
  %v2892 = vpop.permute.xlu0 %2891
  %2893 = vrot.lane.b32.xlu0 %v2151, 28
  %v2894 = vpop.permute.xlu0 %2893
  %2895 = vrot.lane.b32.xlu0 %v2154, 28
  %v2896 = vpop.permute.xlu0 %2895
  %2897 = vrot.lane.b32.xlu0 %v2156, 28
  %v2898 = vpop.permute.xlu0 %2897
  %2899 = vrot.lane.b32.xlu0 %v2159, 28
  %v2900 = vpop.permute.xlu0 %2899
  %2901 = vrot.lane.b32.xlu0 %v2161, 28
  %v2902 = vpop.permute.xlu0 %2901
  %2903 = vrot.lane.b32.xlu0 %v2164, 28
  %v2904 = vpop.permute.xlu0 %2903
  %2905 = vrot.lane.b32.xlu0 %v2166, 28
  %v2906 = vpop.permute.xlu0 %2905
  %2907 = vrot.lane.b32.xlu0 %v2169, 28
  %v2908 = vpop.permute.xlu0 %2907
  %2909 = vrot.lane.b32.xlu0 %v2171, 28
  %v2910 = vpop.permute.xlu0 %2909
  %2911 = vrot.lane.b32.xlu0 %v2174, 28
  %v2912 = vpop.permute.xlu0 %2911
  %2913 = vrot.lane.b32.xlu0 %v2176, 28
  %v2914 = vpop.permute.xlu0 %2913
  %2915 = vrot.lane.b32.xlu0 %v2179, 28
  %v2916 = vpop.permute.xlu0 %2915
  %2917 = vrot.lane.b32.xlu0 %v2181, 28
  %v2918 = vpop.permute.xlu0 %2917
  %2919 = vrot.lane.b32.xlu0 %v2184, 28
  %v2920 = vpop.permute.xlu0 %2919
  %2921 = vrot.lane.b32.xlu0 %v2186, 28
  %v2922 = vpop.permute.xlu0 %2921
  %2923 = vrot.lane.b32.xlu0 %v2189, 28
  %v2924 = vpop.permute.xlu0 %2923
  %2925 = vrot.lane.b32.xlu0 %v2191, 28
  %v2926 = vpop.permute.xlu0 %2925
  %2927 = vrot.lane.b32.xlu0 %v2194, 28
  %v2928 = vpop.permute.xlu0 %2927
  %2929 = vrot.lane.b32.xlu0 %v2196, 28
  %v2930 = vpop.permute.xlu0 %2929
  %2931 = vrot.lane.b32.xlu0 %v2199, 28
  %v2932 = vpop.permute.xlu0 %2931
  %2933 = vrot.lane.b32.xlu0 %v2201, 28
  %v2934 = vpop.permute.xlu0 %2933
  %2935 = vrot.lane.b32.xlu0 %v2575, 28
  %v2936 = vpop.permute.xlu0 %2935
  %2937 = vrot.lane.b32.xlu0 %v2577, 28
  %v2938 = vpop.permute.xlu0 %2937
  %2939 = vrot.lane.b32.xlu0 %v2876, 28
  %v2940 = vpop.permute.xlu0 %2939
  %2941 = vrot.lane.b32.xlu0 %v2878, 28
  %v2942 = vpop.permute.xlu0 %2941
  %v2975 = vrot.slane %v2071, 2
  %v2976 = vrot.slane %v2072, 2
  %v2977 = vsel %vm523, %v2975, %v2976
  %v2978 = vrot.slane %v2073, 2
  %v2979 = vsel %vm523, %v2976, %v2978
  %2980 = vrot.lane.b32.xlu0 %v2310, 32
  %v2981 = vpop.permute.xlu0 %2980
  %2982 = vrot.lane.b32.xlu0 %v2312, 32
  %v2983 = vpop.permute.xlu0 %2982
  %2984 = vrot.lane.b32.xlu0 %v2315, 32
  %v2985 = vpop.permute.xlu0 %2984
  %2986 = vrot.lane.b32.xlu0 %v2317, 32
  %v2987 = vpop.permute.xlu0 %2986
  %2988 = vrot.lane.b32.xlu0 %v2320, 32
  %v2989 = vpop.permute.xlu0 %2988
  %2990 = vrot.lane.b32.xlu0 %v2322, 32
  %v2991 = vpop.permute.xlu0 %2990
  %2992 = vrot.lane.b32.xlu0 %v2325, 32
  %v2993 = vpop.permute.xlu0 %2992
  %2994 = vrot.lane.b32.xlu0 %v2327, 32
  %v2995 = vpop.permute.xlu0 %2994
  %2996 = vrot.lane.b32.xlu0 %v2330, 32
  %v2997 = vpop.permute.xlu0 %2996
  %2998 = vrot.lane.b32.xlu0 %v2332, 32
  %v2999 = vpop.permute.xlu0 %2998
  %3000 = vrot.lane.b32.xlu0 %v2335, 32
  %v3001 = vpop.permute.xlu0 %3000
  %3002 = vrot.lane.b32.xlu0 %v2337, 32
  %v3003 = vpop.permute.xlu0 %3002
  %3004 = vrot.lane.b32.xlu0 %v2340, 32
  %v3005 = vpop.permute.xlu0 %3004
  %3006 = vrot.lane.b32.xlu0 %v2342, 32
  %v3007 = vpop.permute.xlu0 %3006
  %3008 = vrot.lane.b32.xlu0 %v2345, 32
  %v3009 = vpop.permute.xlu0 %3008
  %3010 = vrot.lane.b32.xlu0 %v2347, 32
  %v3011 = vpop.permute.xlu0 %3010
  %3012 = vrot.lane.b32.xlu0 %v2350, 32
  %v3013 = vpop.permute.xlu0 %3012
  %3014 = vrot.lane.b32.xlu0 %v2352, 32
  %v3015 = vpop.permute.xlu0 %3014
  %3016 = vrot.lane.b32.xlu0 %v2355, 32
  %v3017 = vpop.permute.xlu0 %3016
  %3018 = vrot.lane.b32.xlu0 %v2357, 32
  %v3019 = vpop.permute.xlu0 %3018
  %3020 = vrot.lane.b32.xlu0 %v2360, 32
  %v3021 = vpop.permute.xlu0 %3020
  %3022 = vrot.lane.b32.xlu0 %v2362, 32
  %v3023 = vpop.permute.xlu0 %3022
  %3024 = vrot.lane.b32.xlu0 %v2365, 32
  %v3025 = vpop.permute.xlu0 %3024
  %3026 = vrot.lane.b32.xlu0 %v2367, 32
  %v3027 = vpop.permute.xlu0 %3026
  %3028 = vrot.lane.b32.xlu0 %v2370, 32
  %v3029 = vpop.permute.xlu0 %3028
  %3030 = vrot.lane.b32.xlu0 %v2372, 32
  %v3031 = vpop.permute.xlu0 %3030
  %3032 = vrot.lane.b32.xlu0 %v2375, 32
  %v3033 = vpop.permute.xlu0 %3032
  %3034 = vrot.lane.b32.xlu0 %v2377, 32
  %v3035 = vpop.permute.xlu0 %3034
  %3036 = vrot.lane.b32.xlu0 %v2676, 32
  %v3037 = vpop.permute.xlu0 %3036
  %3038 = vrot.lane.b32.xlu0 %v2678, 32
  %v3039 = vpop.permute.xlu0 %3038
  %3040 = vrot.lane.b32.xlu0 %v2977, 32
  %v3041 = vpop.permute.xlu0 %3040
  %3042 = vrot.lane.b32.xlu0 %v2979, 32
  %v3043 = vpop.permute.xlu0 %3042
  %v3076 = vsel %vm27, %v2020, %v2203
  %v3077 = vsel %vm27, %v2021, %v2205
  %v3078 = vsel %vm27, %v2023, %v2207
  %v3079 = vsel %vm27, %v2024, %v2209
  %v3080 = vsel %vm27, %v2026, %v2211
  %v3081 = vsel %vm27, %v2027, %v2213
  %v3082 = vsel %vm27, %v2029, %v2215
  %v3083 = vsel %vm27, %v2030, %v2217
  %v3084 = vsel %vm27, %v2032, %v2219
  %v3085 = vsel %vm27, %v2033, %v2221
  %v3086 = vsel %vm27, %v2035, %v2223
  %v3087 = vsel %vm27, %v2036, %v2225
  %v3088 = vsel %vm27, %v2038, %v2227
  %v3089 = vsel %vm27, %v2039, %v2229
  %v3090 = vsel %vm27, %v2041, %v2231
  %v3091 = vsel %vm27, %v2042, %v2233
  %v3092 = vsel %vm27, %v2044, %v2235
  %v3093 = vsel %vm27, %v2045, %v2237
  %v3094 = vsel %vm27, %v2047, %v2239
  %v3095 = vsel %vm27, %v2048, %v2241
  %v3096 = vsel %vm27, %v2050, %v2243
  %v3097 = vsel %vm27, %v2051, %v2245
  %v3098 = vsel %vm27, %v2053, %v2247
  %v3099 = vsel %vm27, %v2054, %v2249
  %v3100 = vsel %vm27, %v2056, %v2251
  %v3101 = vsel %vm27, %v2057, %v2253
  %v3102 = vsel %vm27, %v2059, %v2255
  %v3103 = vsel %vm27, %v2060, %v2257
  %v3104 = vsel %vm27, %v2062, %v2259
  %v3105 = vsel %vm27, %v2063, %v2261
  %v3106 = vsel %vm27, %v2065, %v2263
  %v3107 = vsel %vm27, %v2066, %v2265
  %v3108 = vsel %vm1334, %v3076, %v2379
  %v3109 = vsel %vm1334, %v3077, %v2381
  %v3110 = vsel %vm1334, %v3078, %v2383
  %v3111 = vsel %vm1334, %v3079, %v2385
  %v3112 = vsel %vm1334, %v3080, %v2387
  %v3113 = vsel %vm1334, %v3081, %v2389
  %v3114 = vsel %vm1334, %v3082, %v2391
  %v3115 = vsel %vm1334, %v3083, %v2393
  %v3116 = vsel %vm1334, %v3084, %v2395
  %v3117 = vsel %vm1334, %v3085, %v2397
  %v3118 = vsel %vm1334, %v3086, %v2399
  %v3119 = vsel %vm1334, %v3087, %v2401
  %v3120 = vsel %vm1334, %v3088, %v2403
  %v3121 = vsel %vm1334, %v3089, %v2405
  %v3122 = vsel %vm1334, %v3090, %v2407
  %v3123 = vsel %vm1334, %v3091, %v2409
  %v3124 = vsel %vm1334, %v3092, %v2411
  %v3125 = vsel %vm1334, %v3093, %v2413
  %v3126 = vsel %vm1334, %v3094, %v2415
  %v3127 = vsel %vm1334, %v3095, %v2417
  %v3128 = vsel %vm1334, %v3096, %v2419
  %v3129 = vsel %vm1334, %v3097, %v2421
  %v3130 = vsel %vm1334, %v3098, %v2423
  %v3131 = vsel %vm1334, %v3099, %v2425
  %v3132 = vsel %vm1334, %v3100, %v2427
  %v3133 = vsel %vm1334, %v3101, %v2429
  %v3134 = vsel %vm1334, %v3102, %v2431
  %v3135 = vsel %vm1334, %v3103, %v2433
  %v3136 = vsel %vm1334, %v3104, %v2435
  %v3137 = vsel %vm1334, %v3105, %v2437
  %v3138 = vsel %vm1334, %v3106, %v2439
  %v3139 = vsel %vm1334, %v3107, %v2441
  %v3140 = vsel %vm1367, %v3108, %v2477
  %v3141 = vsel %vm1367, %v3109, %v2479
  %v3142 = vsel %vm1367, %v3110, %v2481
  %v3143 = vsel %vm1367, %v3111, %v2483
  %v3144 = vsel %vm1367, %v3112, %v2485
  %v3145 = vsel %vm1367, %v3113, %v2487
  %v3146 = vsel %vm1367, %v3114, %v2489
  %v3147 = vsel %vm1367, %v3115, %v2491
  %v3148 = vsel %vm1367, %v3116, %v2493
  %v3149 = vsel %vm1367, %v3117, %v2495
  %v3150 = vsel %vm1367, %v3118, %v2497
  %v3151 = vsel %vm1367, %v3119, %v2499
  %v3152 = vsel %vm1367, %v3120, %v2501
  %v3153 = vsel %vm1367, %v3121, %v2503
  %v3154 = vsel %vm1367, %v3122, %v2505
  %v3155 = vsel %vm1367, %v3123, %v2507
  %v3156 = vsel %vm1367, %v3124, %v2509
  %v3157 = vsel %vm1367, %v3125, %v2511
  %v3158 = vsel %vm1367, %v3126, %v2513
  %v3159 = vsel %vm1367, %v3127, %v2515
  %v3160 = vsel %vm1367, %v3128, %v2517
  %v3161 = vsel %vm1367, %v3129, %v2519
  %v3162 = vsel %vm1367, %v3130, %v2521
  %v3163 = vsel %vm1367, %v3131, %v2523
  %v3164 = vsel %vm1367, %v3132, %v2525
  %v3165 = vsel %vm1367, %v3133, %v2527
  %v3166 = vsel %vm1367, %v3134, %v2529
  %v3167 = vsel %vm1367, %v3135, %v2531
  %v3168 = vsel %vm1367, %v3136, %v2533
  %v3169 = vsel %vm1367, %v3137, %v2535
  %v3170 = vsel %vm1367, %v3138, %v2537
  %v3171 = vsel %vm1367, %v3139, %v2539
  %v3172 = vsel %vm1400, %v3140, %v2579
  %v3173 = vsel %vm1400, %v3141, %v2581
  %v3174 = vsel %vm1400, %v3142, %v2583
  %v3175 = vsel %vm1400, %v3143, %v2585
  %v3176 = vsel %vm1400, %v3144, %v2587
  %v3177 = vsel %vm1400, %v3145, %v2589
  %v3178 = vsel %vm1400, %v3146, %v2591
  %v3179 = vsel %vm1400, %v3147, %v2593
  %v3180 = vsel %vm1400, %v3148, %v2595
  %v3181 = vsel %vm1400, %v3149, %v2597
  %v3182 = vsel %vm1400, %v3150, %v2599
  %v3183 = vsel %vm1400, %v3151, %v2601
  %v3184 = vsel %vm1400, %v3152, %v2603
  %v3185 = vsel %vm1400, %v3153, %v2605
  %v3186 = vsel %vm1400, %v3154, %v2607
  %v3187 = vsel %vm1400, %v3155, %v2609
  %v3188 = vsel %vm1400, %v3156, %v2611
  %v3189 = vsel %vm1400, %v3157, %v2613
  %v3190 = vsel %vm1400, %v3158, %v2615
  %v3191 = vsel %vm1400, %v3159, %v2617
  %v3192 = vsel %vm1400, %v3160, %v2619
  %v3193 = vsel %vm1400, %v3161, %v2621
  %v3194 = vsel %vm1400, %v3162, %v2623
  %v3195 = vsel %vm1400, %v3163, %v2625
  %v3196 = vsel %vm1400, %v3164, %v2627
  %v3197 = vsel %vm1400, %v3165, %v2629
  %v3198 = vsel %vm1400, %v3166, %v2631
  %v3199 = vsel %vm1400, %v3167, %v2633
  %v3200 = vsel %vm1400, %v3168, %v2635
  %v3201 = vsel %vm1400, %v3169, %v2637
  %v3202 = vsel %vm1400, %v3170, %v2639
  %v3203 = vsel %vm1400, %v3171, %v2641
  %v3204 = vsel %vm1433, %v3172, %v2680
  %v3205 = vsel %vm1433, %v3173, %v2682
  %v3206 = vsel %vm1433, %v3174, %v2684
  %v3207 = vsel %vm1433, %v3175, %v2686
  %v3208 = vsel %vm1433, %v3176, %v2688
  %v3209 = vsel %vm1433, %v3177, %v2690
  %v3210 = vsel %vm1433, %v3178, %v2692
  %v3211 = vsel %vm1433, %v3179, %v2694
  %v3212 = vsel %vm1433, %v3180, %v2696
  %v3213 = vsel %vm1433, %v3181, %v2698
  %v3214 = vsel %vm1433, %v3182, %v2700
  %v3215 = vsel %vm1433, %v3183, %v2702
  %v3216 = vsel %vm1433, %v3184, %v2704
  %v3217 = vsel %vm1433, %v3185, %v2706
  %v3218 = vsel %vm1433, %v3186, %v2708
  %v3219 = vsel %vm1433, %v3187, %v2710
  %v3220 = vsel %vm1433, %v3188, %v2712
  %v3221 = vsel %vm1433, %v3189, %v2714
  %v3222 = vsel %vm1433, %v3190, %v2716
  %v3223 = vsel %vm1433, %v3191, %v2718
  %v3224 = vsel %vm1433, %v3192, %v2720
  %v3225 = vsel %vm1433, %v3193, %v2722
  %v3226 = vsel %vm1433, %v3194, %v2724
  %v3227 = vsel %vm1433, %v3195, %v2726
  %v3228 = vsel %vm1433, %v3196, %v2728
  %v3229 = vsel %vm1433, %v3197, %v2730
  %v3230 = vsel %vm1433, %v3198, %v2732
  %v3231 = vsel %vm1433, %v3199, %v2734
  %v3232 = vsel %vm1433, %v3200, %v2736
  %v3233 = vsel %vm1433, %v3201, %v2738
  %v3234 = vsel %vm1433, %v3202, %v2740
  %v3235 = vsel %vm1433, %v3203, %v2742
  %v3236 = vsel %vm1466, %v3204, %v2778
  %v3237 = vsel %vm1466, %v3205, %v2780
  %v3238 = vsel %vm1466, %v3206, %v2782
  %v3239 = vsel %vm1466, %v3207, %v2784
  %v3240 = vsel %vm1466, %v3208, %v2786
  %v3241 = vsel %vm1466, %v3209, %v2788
  %v3242 = vsel %vm1466, %v3210, %v2790
  %v3243 = vsel %vm1466, %v3211, %v2792
  %v3244 = vsel %vm1466, %v3212, %v2794
  %v3245 = vsel %vm1466, %v3213, %v2796
  %v3246 = vsel %vm1466, %v3214, %v2798
  %v3247 = vsel %vm1466, %v3215, %v2800
  %v3248 = vsel %vm1466, %v3216, %v2802
  %v3249 = vsel %vm1466, %v3217, %v2804
  %v3250 = vsel %vm1466, %v3218, %v2806
  %v3251 = vsel %vm1466, %v3219, %v2808
  %v3252 = vsel %vm1466, %v3220, %v2810
  %v3253 = vsel %vm1466, %v3221, %v2812
  %v3254 = vsel %vm1466, %v3222, %v2814
  %v3255 = vsel %vm1466, %v3223, %v2816
  %v3256 = vsel %vm1466, %v3224, %v2818
  %v3257 = vsel %vm1466, %v3225, %v2820
  %v3258 = vsel %vm1466, %v3226, %v2822
  %v3259 = vsel %vm1466, %v3227, %v2824
  %v3260 = vsel %vm1466, %v3228, %v2826
  %v3261 = vsel %vm1466, %v3229, %v2828
  %v3262 = vsel %vm1466, %v3230, %v2830
  %v3263 = vsel %vm1466, %v3231, %v2832
  %v3264 = vsel %vm1466, %v3232, %v2834
  %v3265 = vsel %vm1466, %v3233, %v2836
  %v3266 = vsel %vm1466, %v3234, %v2838
  %v3267 = vsel %vm1466, %v3235, %v2840
  %v3268 = vsel %vm1499, %v3236, %v2880
  %v3269 = vsel %vm1499, %v3237, %v2882
  %v3270 = vsel %vm1499, %v3238, %v2884
  %v3271 = vsel %vm1499, %v3239, %v2886
  %v3272 = vsel %vm1499, %v3240, %v2888
  %v3273 = vsel %vm1499, %v3241, %v2890
  %v3274 = vsel %vm1499, %v3242, %v2892
  %v3275 = vsel %vm1499, %v3243, %v2894
  %v3276 = vsel %vm1499, %v3244, %v2896
  %v3277 = vsel %vm1499, %v3245, %v2898
  %v3278 = vsel %vm1499, %v3246, %v2900
  %v3279 = vsel %vm1499, %v3247, %v2902
  %v3280 = vsel %vm1499, %v3248, %v2904
  %v3281 = vsel %vm1499, %v3249, %v2906
  %v3282 = vsel %vm1499, %v3250, %v2908
  %v3283 = vsel %vm1499, %v3251, %v2910
  %v3284 = vsel %vm1499, %v3252, %v2912
  %v3285 = vsel %vm1499, %v3253, %v2914
  %v3286 = vsel %vm1499, %v3254, %v2916
  %v3287 = vsel %vm1499, %v3255, %v2918
  %v3288 = vsel %vm1499, %v3256, %v2920
  %v3289 = vsel %vm1499, %v3257, %v2922
  %v3290 = vsel %vm1499, %v3258, %v2924
  %v3291 = vsel %vm1499, %v3259, %v2926
  %v3292 = vsel %vm1499, %v3260, %v2928
  %v3293 = vsel %vm1499, %v3261, %v2930
  %v3294 = vsel %vm1499, %v3262, %v2932
  %v3295 = vsel %vm1499, %v3263, %v2934
  %v3296 = vsel %vm1499, %v3264, %v2936
  %v3297 = vsel %vm1499, %v3265, %v2938
  %v3298 = vsel %vm1499, %v3266, %v2940
  %v3299 = vsel %vm1499, %v3267, %v2942
  %v3300 = vsel %vm1532, %v3268, %v2981
  %v3301 = vsel %vm1532, %v3269, %v2983
  %v3302 = vsel %vm1532, %v3270, %v2985
  %v3303 = vsel %vm1532, %v3271, %v2987
  %v3304 = vsel %vm1532, %v3272, %v2989
  %v3305 = vsel %vm1532, %v3273, %v2991
  %v3306 = vsel %vm1532, %v3274, %v2993
  %v3307 = vsel %vm1532, %v3275, %v2995
  %v3308 = vsel %vm1532, %v3276, %v2997
  %v3309 = vsel %vm1532, %v3277, %v2999
  %v3310 = vsel %vm1532, %v3278, %v3001
  %v3311 = vsel %vm1532, %v3279, %v3003
  %v3312 = vsel %vm1532, %v3280, %v3005
  %v3313 = vsel %vm1532, %v3281, %v3007
  %v3314 = vsel %vm1532, %v3282, %v3009
  %v3315 = vsel %vm1532, %v3283, %v3011
  %v3316 = vsel %vm1532, %v3284, %v3013
  %v3317 = vsel %vm1532, %v3285, %v3015
  %v3318 = vsel %vm1532, %v3286, %v3017
  %v3319 = vsel %vm1532, %v3287, %v3019
  %v3320 = vsel %vm1532, %v3288, %v3021
  %v3321 = vsel %vm1532, %v3289, %v3023
  %v3322 = vsel %vm1532, %v3290, %v3025
  %v3323 = vsel %vm1532, %v3291, %v3027
  %v3324 = vsel %vm1532, %v3292, %v3029
  %v3325 = vsel %vm1532, %v3293, %v3031
  %v3326 = vsel %vm1532, %v3294, %v3033
  %v3327 = vsel %vm1532, %v3295, %v3035
  %v3328 = vsel %vm1532, %v3296, %v3037
  %v3329 = vsel %vm1532, %v3297, %v3039
  %v3330 = vsel %vm1532, %v3298, %v3041
  %v3331 = vsel %vm1532, %v3299, %v3043
  %v3332 = vpack.c.bf16 %v3301, %v3300
  %v3333 = vpack.c.bf16 %v3303, %v3302
  %v3334 = vpack.c.bf16 %v3305, %v3304
  %v3335 = vpack.c.bf16 %v3307, %v3306
  %v3336 = vpack.c.bf16 %v3309, %v3308
  %v3337 = vpack.c.bf16 %v3311, %v3310
  %v3338 = vpack.c.bf16 %v3313, %v3312
  %v3339 = vpack.c.bf16 %v3315, %v3314
  %v3340 = vpack.c.bf16 %v3317, %v3316
  %v3341 = vpack.c.bf16 %v3319, %v3318
  %v3342 = vpack.c.bf16 %v3321, %v3320
  %v3343 = vpack.c.bf16 %v3323, %v3322
  %v3344 = vpack.c.bf16 %v3325, %v3324
  %v3345 = vpack.c.bf16 %v3327, %v3326
  %v3346 = vpack.c.bf16 %v3329, %v3328
  %v3347 = vpack.c.bf16 %v3331, %v3330
  %v3348 = vld [vmem:[%s1] sm:$0xf]
  %v3349 = vld [vmem:[%s1 + $0x4] sm:$0xf]
  %v3350 = vld [vmem:[%s1 + $0x8] sm:$0xf]
  %v3351 = vld [vmem:[%s1 + $0xc] sm:$0xf]
  %v3352 = vld [vmem:[%s1 + $0x10] sm:$0x3]
  %v3358 = vunpack.c.l.b16 %v3348
  %v3359 = vunpack.c.l.b16 %v3349
  %v3360 = vunpack.c.l.b16 %v3350
  %v3361 = vunpack.c.l.b16 %v3351
  %v3362 = vunpack.c.l.b16 %v3352
  %v3363 = vpack.c.b16 %v3359, %v3358
  %v3364 = vpack.c.b16 %v3361, %v3360
  %v3365 = vpack.c.b16 %v3362, %v3362
  %v3369 = vsel %vm1601, %v3332, 0
  %v3372 = vsel %vm1601, %v3333, 0
  %v3375 = vsel %vm1601, %v3334, 0
  %v3378 = vsel %vm1601, %v3335, 0
  %v3381 = vsel %vm1601, %v3336, 0
  %v3384 = vsel %vm1601, %v3337, 0
  %v3387 = vsel %vm1601, %v3338, 0
  %v3390 = vsel %vm1601, %v3339, 0
  %v3393 = vsel %vm1601, %v3340, 0
  %v3396 = vsel %vm1601, %v3341, 0
  %v3399 = vsel %vm1601, %v3342, 0
  %v3402 = vsel %vm1601, %v3343, 0
  %v3405 = vsel %vm1601, %v3344, 0
  %v3408 = vsel %vm1601, %v3345, 0
  %v3411 = vsel %vm1601, %v3346, 0
  %v3414 = vsel %vm1601, %v3347, 0
  %v3417 = vsel %vm1650, %v3365, 0
  %3419 = vmatprep.subr.bf16.mxu0 0
  %3420 = vmatpush1.bf16.msra.mxu0 %v3363
  %3421 = vmatprep.subr.bf16.mxu0 0
  %3422 = vmatpush1.bf16.msra.mxu0 %v3364
  %3423 = vmatprep.subr.bf16.mxu0 0
  %3424 = vmatpush1.bf16.msra.mxu0 %v3417
  %3425 = vmatprep.subr.bf16.mxu0 0
  %3426 = vmatpush1.bf16.msra.mxu0 0
  %3427 = vmatprep.subr.bf16.mxu0 0
  %3428 = vmatpush1.bf16.msra.mxu0 0
  %3429 = vmatprep.subr.bf16.mxu0 0
  %3430 = vmatpush1.bf16.msra.mxu0 0
  %3431 = vmatprep.subr.bf16.mxu0 0
  %3432 = vmatpush1.bf16.msra.mxu0 0
  %3433 = vmatprep.subr.bf16.mxu0 0
  %3434 = vmatpush1.bf16.msra.mxu0 0
  %3435 = vmatprep.subr.bf16.mxu0 0
  %3436 = vmatpush1.bf16.msra.mxu0 0
  %3437 = vmatprep.subr.bf16.mxu0 0
  %3438 = vmatpush1.bf16.msra.mxu0 0
  %3439 = vmatprep.subr.bf16.mxu0 0
  %3440 = vmatpush1.bf16.msra.mxu0 0
  %3441 = vmatprep.subr.bf16.mxu0 0
  %3442 = vmatpush1.bf16.msra.mxu0 0
  %3443 = vmatprep.subr.bf16.mxu0 0
  %3444 = vmatpush1.bf16.msra.mxu0 0
  %3445 = vmatprep.subr.bf16.mxu0 0
  %3446 = vmatpush1.bf16.msra.mxu0 0
  %3447 = vmatprep.subr.bf16.mxu0 0
  %3448 = vmatpush1.bf16.msra.mxu0 0
  %3449 = vmatprep.subr.bf16.mxu0 0
  %3450 = vmatpush1.bf16.msra.mxu0 0
  %3451 = vmatprep.mubr.bf16.mxu0 0
  %3452 = vmatmul.mubr.bf16.gmra.mrb[0].mxu0 %v3369
  %v3453 = vpop.f32.mrb[0].mxu0
  %v3454 = vadd.f32 0.0, %v3453
  %v3455 = vpop.f32.mrb[0].mxu0
  %v3456 = vpop.f32.mrb[0].mxu0
  %v3457 = vadd.f32 0.0, %v3456
  %v3458 = vpop.f32.mrb[0].mxu0
  %3459 = vmatprep.mubr.bf16.mxu0 0
  %3460 = vmatmul.mubr.bf16.gmra.mrb[0].mxu0 %v3372
  %v3461 = vpop.f32.mrb[0].mxu0
  %v3462 = vadd.f32 0.0, %v3461
  %v3463 = vpop.f32.mrb[0].mxu0
  %v3464 = vpop.f32.mrb[0].mxu0
  %v3465 = vadd.f32 0.0, %v3464
  %v3466 = vpop.f32.mrb[0].mxu0
  %3467 = vmatprep.mubr.bf16.mxu0 0
  %3468 = vmatmul.mubr.bf16.gmra.mrb[0].mxu0 %v3375
  %v3469 = vpop.f32.mrb[0].mxu0
  %v3470 = vadd.f32 0.0, %v3469
  %v3471 = vpop.f32.mrb[0].mxu0
  %v3472 = vpop.f32.mrb[0].mxu0
  %v3473 = vadd.f32 0.0, %v3472
  %v3474 = vpop.f32.mrb[0].mxu0
  %3475 = vmatprep.mubr.bf16.mxu0 0
  %3476 = vmatmul.mubr.bf16.gmra.mrb[0].mxu0 %v3378
  %v3477 = vpop.f32.mrb[0].mxu0
  %v3478 = vadd.f32 0.0, %v3477
  %v3479 = vpop.f32.mrb[0].mxu0
  %v3480 = vpop.f32.mrb[0].mxu0
  %v3481 = vadd.f32 0.0, %v3480
  %v3482 = vpop.f32.mrb[0].mxu0
  %3483 = vmatprep.mubr.bf16.mxu0 0
  %3484 = vmatmul.mubr.bf16.gmra.mrb[0].mxu0 %v3381
  %v3485 = vpop.f32.mrb[0].mxu0
  %v3486 = vadd.f32 0.0, %v3485
  %v3487 = vpop.f32.mrb[0].mxu0
  %v3488 = vpop.f32.mrb[0].mxu0
  %v3489 = vadd.f32 0.0, %v3488
  %v3490 = vpop.f32.mrb[0].mxu0
  %3491 = vmatprep.mubr.bf16.mxu0 0
  %3492 = vmatmul.mubr.bf16.gmra.mrb[0].mxu0 %v3384
  %v3493 = vpop.f32.mrb[0].mxu0
  %v3494 = vadd.f32 0.0, %v3493
  %v3495 = vpop.f32.mrb[0].mxu0
  %v3496 = vpop.f32.mrb[0].mxu0
  %v3497 = vadd.f32 0.0, %v3496
  %v3498 = vpop.f32.mrb[0].mxu0
  %3499 = vmatprep.mubr.bf16.mxu0 0
  %3500 = vmatmul.mubr.bf16.gmra.mrb[0].mxu0 %v3387
  %v3501 = vpop.f32.mrb[0].mxu0
  %v3502 = vadd.f32 0.0, %v3501
  %v3503 = vpop.f32.mrb[0].mxu0
  %v3504 = vpop.f32.mrb[0].mxu0
  %v3505 = vadd.f32 0.0, %v3504
  %v3506 = vpop.f32.mrb[0].mxu0
  %3507 = vmatprep.mubr.bf16.mxu0 0
  %3508 = vmatmul.mubr.bf16.gmra.mrb[0].mxu0 %v3390
  %v3509 = vpop.f32.mrb[0].mxu0
  %v3510 = vadd.f32 0.0, %v3509
  %v3511 = vpop.f32.mrb[0].mxu0
  %v3512 = vpop.f32.mrb[0].mxu0
  %v3513 = vadd.f32 0.0, %v3512
  %v3514 = vpop.f32.mrb[0].mxu0
  %3515 = vmatprep.mubr.bf16.mxu0 0
  %3516 = vmatmul.mubr.bf16.gmra.mrb[0].mxu0 %v3393
  %v3517 = vpop.f32.mrb[0].mxu0
  %v3518 = vadd.f32 0.0, %v3517
  %v3519 = vpop.f32.mrb[0].mxu0
  %v3520 = vpop.f32.mrb[0].mxu0
  %v3521 = vadd.f32 0.0, %v3520
  %v3522 = vpop.f32.mrb[0].mxu0
  %3523 = vmatprep.mubr.bf16.mxu0 0
  %3524 = vmatmul.mubr.bf16.gmra.mrb[0].mxu0 %v3396
  %v3525 = vpop.f32.mrb[0].mxu0
  %v3526 = vadd.f32 0.0, %v3525
  %v3527 = vpop.f32.mrb[0].mxu0
  %v3528 = vpop.f32.mrb[0].mxu0
  %v3529 = vadd.f32 0.0, %v3528
  %v3530 = vpop.f32.mrb[0].mxu0
  %3531 = vmatprep.mubr.bf16.mxu0 0
  %3532 = vmatmul.mubr.bf16.gmra.mrb[0].mxu0 %v3399
  %v3533 = vpop.f32.mrb[0].mxu0
  %v3534 = vadd.f32 0.0, %v3533
  %v3535 = vpop.f32.mrb[0].mxu0
  %v3536 = vpop.f32.mrb[0].mxu0
  %v3537 = vadd.f32 0.0, %v3536
  %v3538 = vpop.f32.mrb[0].mxu0
  %3539 = vmatprep.mubr.bf16.mxu0 0
  %3540 = vmatmul.mubr.bf16.gmra.mrb[0].mxu0 %v3402
  %v3541 = vpop.f32.mrb[0].mxu0
  %v3542 = vadd.f32 0.0, %v3541
  %v3543 = vpop.f32.mrb[0].mxu0
  %v3544 = vpop.f32.mrb[0].mxu0
  %v3545 = vadd.f32 0.0, %v3544
  %v3546 = vpop.f32.mrb[0].mxu0
  %3547 = vmatprep.mubr.bf16.mxu0 0
  %3548 = vmatmul.mubr.bf16.gmra.mrb[0].mxu0 %v3405
  %v3549 = vpop.f32.mrb[0].mxu0
  %v3550 = vadd.f32 0.0, %v3549
  %v3551 = vpop.f32.mrb[0].mxu0
  %v3552 = vpop.f32.mrb[0].mxu0
  %v3553 = vadd.f32 0.0, %v3552
  %v3554 = vpop.f32.mrb[0].mxu0
  %3555 = vmatprep.mubr.bf16.mxu0 0
  %3556 = vmatmul.mubr.bf16.gmra.mrb[0].mxu0 %v3408
  %v3557 = vpop.f32.mrb[0].mxu0
  %v3558 = vadd.f32 0.0, %v3557
  %v3559 = vpop.f32.mrb[0].mxu0
  %v3560 = vpop.f32.mrb[0].mxu0
  %v3561 = vadd.f32 0.0, %v3560
  %v3562 = vpop.f32.mrb[0].mxu0
  %3563 = vmatprep.mubr.bf16.mxu0 0
  %3564 = vmatmul.mubr.bf16.gmra.mrb[0].mxu0 %v3411
  %v3565 = vpop.f32.mrb[0].mxu0
  %v3566 = vadd.f32 0.0, %v3565
  %v3567 = vpop.f32.mrb[0].mxu0
  %v3568 = vpop.f32.mrb[0].mxu0
  %v3569 = vadd.f32 0.0, %v3568
  %v3570 = vpop.f32.mrb[0].mxu0
  %3571 = vmatprep.mubr.bf16.mxu0 0
  %3572 = vmatmul.mubr.bf16.gmra.mrb[0].mxu0 %v3414
  %v3573 = vpop.f32.mrb[0].mxu0
  %v3574 = vadd.f32 0.0, %v3573
  %v3575 = vpop.f32.mrb[0].mxu0
  %v3576 = vpop.f32.mrb[0].mxu0
  %v3577 = vadd.f32 0.0, %v3576
  %v3578 = vpop.f32.mrb[0].mxu0
  %3579 = vdwg.mxu0
  %s3580 = scalar_lea.vmem [#allocation4], 256
  %3581 = vst.msk [vmem:[%s3580] sm:$0xff] %vm27, %v3454
  %3582 = vst.msk [vmem:[%s3580 + $0x8] sm:$0xff] %vm27, %v3457
  %3583 = vst.msk [vmem:[%s3580 + $0x10] sm:$0xff] %vm27, %v3462
  %3584 = vst.msk [vmem:[%s3580 + $0x18] sm:$0xff] %vm27, %v3465
  %3585 = vst.msk [vmem:[%s3580 + $0x20] sm:$0xff] %vm27, %v3470
  %3586 = vst.msk [vmem:[%s3580 + $0x28] sm:$0xff] %vm27, %v3473
  %3587 = vst.msk [vmem:[%s3580 + $0x30] sm:$0xff] %vm27, %v3478
  %3588 = vst.msk [vmem:[%s3580 + $0x38] sm:$0xff] %vm27, %v3481
  %3589 = vst.msk [vmem:[%s3580 + $0x40] sm:$0xff] %vm27, %v3486
  %3590 = vst.msk [vmem:[%s3580 + $0x48] sm:$0xff] %vm27, %v3489
  %3591 = vst.msk [vmem:[%s3580 + $0x50] sm:$0xff] %vm27, %v3494
  %3592 = vst.msk [vmem:[%s3580 + $0x58] sm:$0xff] %vm27, %v3497
  %3593 = vst.msk [vmem:[%s3580 + $0x60] sm:$0xff] %vm27, %v3502
  %3594 = vst.msk [vmem:[%s3580 + $0x68] sm:$0xff] %vm27, %v3505
  %3595 = vst.msk [vmem:[%s3580 + $0x70] sm:$0xff] %vm27, %v3510
  %3596 = vst.msk [vmem:[%s3580 + $0x78] sm:$0xff] %vm27, %v3513
  %3597 = vst.msk [vmem:[%s3580 + $0x80] sm:$0xff] %vm27, %v3518
  %3598 = vst.msk [vmem:[%s3580 + $0x88] sm:$0xff] %vm27, %v3521
  %3599 = vst.msk [vmem:[%s3580 + $0x90] sm:$0xff] %vm27, %v3526
  %3600 = vst.msk [vmem:[%s3580 + $0x98] sm:$0xff] %vm27, %v3529
  %3601 = vst.msk [vmem:[%s3580 + $0xa0] sm:$0xff] %vm27, %v3534
  %3602 = vst.msk [vmem:[%s3580 + $0xa8] sm:$0xff] %vm27, %v3537
  %3603 = vst.msk [vmem:[%s3580 + $0xb0] sm:$0xff] %vm27, %v3542
  %3604 = vst.msk [vmem:[%s3580 + $0xb8] sm:$0xff] %vm27, %v3545
  %3605 = vst.msk [vmem:[%s3580 + $0xc0] sm:$0xff] %vm27, %v3550
  %3606 = vst.msk [vmem:[%s3580 + $0xc8] sm:$0xff] %vm27, %v3553
  %3607 = vst.msk [vmem:[%s3580 + $0xd0] sm:$0xff] %vm27, %v3558
  %3608 = vst.msk [vmem:[%s3580 + $0xd8] sm:$0xff] %vm27, %v3561
  %3609 = vst.msk [vmem:[%s3580 + $0xe0] sm:$0xff] %vm27, %v3566
  %3610 = vst.msk [vmem:[%s3580 + $0xe8] sm:$0xff] %vm27, %v3569
  %3611 = vst.msk [vmem:[%s3580 + $0xf0] sm:$0xff] %vm27, %v3574
  %3612 = vst.msk [vmem:[%s3580 + $0xf8] sm:$0xff] %vm27, %v3577
  %v3613 = vsel %vm27, %v3454, 0.0
  %v3614 = vsel %vm27, %v3457, 0.0
  %v3615 = vadd.f32 %v3613, %v3614
  %v3616 = vsel %vm27, %v3462, 0.0
  %v3617 = vadd.f32 %v3615, %v3616
  %v3618 = vsel %vm27, %v3465, 0.0
  %v3619 = vadd.f32 %v3617, %v3618
  %v3620 = vsel %vm27, %v3470, 0.0
  %v3621 = vadd.f32 %v3619, %v3620
  %v3622 = vsel %vm27, %v3473, 0.0
  %v3623 = vadd.f32 %v3621, %v3622
  %v3624 = vsel %vm27, %v3478, 0.0
  %v3625 = vadd.f32 %v3623, %v3624
  %v3626 = vsel %vm27, %v3481, 0.0
  %v3627 = vadd.f32 %v3625, %v3626
  %v3628 = vsel %vm27, %v3486, 0.0
  %v3629 = vadd.f32 %v3627, %v3628
  %v3630 = vsel %vm27, %v3489, 0.0
  %v3631 = vadd.f32 %v3629, %v3630
  %v3632 = vsel %vm27, %v3494, 0.0
  %v3633 = vadd.f32 %v3631, %v3632
  %v3634 = vsel %vm27, %v3497, 0.0
  %v3635 = vadd.f32 %v3633, %v3634
  %v3636 = vsel %vm27, %v3502, 0.0
  %v3637 = vadd.f32 %v3635, %v3636
  %v3638 = vsel %vm27, %v3505, 0.0
  %v3639 = vadd.f32 %v3637, %v3638
  %v3640 = vsel %vm27, %v3510, 0.0
  %v3641 = vadd.f32 %v3639, %v3640
  %v3642 = vsel %vm27, %v3513, 0.0
  %v3643 = vadd.f32 %v3641, %v3642
  %v3644 = vsel %vm27, %v3518, 0.0
  %v3645 = vadd.f32 %v3643, %v3644
  %v3646 = vsel %vm27, %v3521, 0.0
  %v3647 = vadd.f32 %v3645, %v3646
  %v3648 = vsel %vm27, %v3526, 0.0
  %v3649 = vadd.f32 %v3647, %v3648
  %v3650 = vsel %vm27, %v3529, 0.0
  %v3651 = vadd.f32 %v3649, %v3650
  %v3652 = vsel %vm27, %v3534, 0.0
  %v3653 = vadd.f32 %v3651, %v3652
  %v3654 = vsel %vm27, %v3537, 0.0
  %v3655 = vadd.f32 %v3653, %v3654
  %v3656 = vsel %vm27, %v3542, 0.0
  %v3657 = vadd.f32 %v3655, %v3656
  %v3658 = vsel %vm27, %v3545, 0.0
  %v3659 = vadd.f32 %v3657, %v3658
  %v3660 = vsel %vm27, %v3550, 0.0
  %v3661 = vadd.f32 %v3659, %v3660
  %v3662 = vsel %vm27, %v3553, 0.0
  %v3663 = vadd.f32 %v3661, %v3662
  %v3664 = vsel %vm27, %v3558, 0.0
  %v3665 = vadd.f32 %v3663, %v3664
  %v3666 = vsel %vm27, %v3561, 0.0
  %v3667 = vadd.f32 %v3665, %v3666
  %v3668 = vsel %vm27, %v3566, 0.0
  %v3669 = vadd.f32 %v3667, %v3668
  %v3670 = vsel %vm27, %v3569, 0.0
  %v3671 = vadd.f32 %v3669, %v3670
  %v3672 = vsel %vm27, %v3574, 0.0
  %v3673 = vadd.f32 %v3671, %v3672
  %v3674 = vsel %vm27, %v3577, 0.0
  %v3675 = vadd.f32 %v3673, %v3674
  %v3676 = vrot.slane %v3675, 4
  %v3677 = vadd.f32 %v3675, %v3676
  %v3678 = vrot.slane %v3677, 2
  %v3679 = vadd.f32 %v3677, %v3678
  %v3680 = vrot.slane %v3679, 1
  %v3681 = vadd.f32 %v3679, %v3680
  %v3682 = vadd.f32 %v1916, %v3681
  %v3683 = vmul.f32 %v3454, %v3454
  %v3684 = vmul.f32 %v3457, %v3457
  %v3685 = vmul.f32 %v3462, %v3462
  %v3686 = vmul.f32 %v3465, %v3465
  %v3687 = vmul.f32 %v3470, %v3470
  %v3688 = vmul.f32 %v3473, %v3473
  %v3689 = vmul.f32 %v3478, %v3478
  %v3690 = vmul.f32 %v3481, %v3481
  %v3691 = vmul.f32 %v3486, %v3486
  %v3692 = vmul.f32 %v3489, %v3489
  %v3693 = vmul.f32 %v3494, %v3494
  %v3694 = vmul.f32 %v3497, %v3497
  %v3695 = vmul.f32 %v3502, %v3502
  %v3696 = vmul.f32 %v3505, %v3505
  %v3697 = vmul.f32 %v3510, %v3510
  %v3698 = vmul.f32 %v3513, %v3513
  %v3699 = vmul.f32 %v3518, %v3518
  %v3700 = vmul.f32 %v3521, %v3521
  %v3701 = vmul.f32 %v3526, %v3526
  %v3702 = vmul.f32 %v3529, %v3529
  %v3703 = vmul.f32 %v3534, %v3534
  %v3704 = vmul.f32 %v3537, %v3537
  %v3705 = vmul.f32 %v3542, %v3542
  %v3706 = vmul.f32 %v3545, %v3545
  %v3707 = vmul.f32 %v3550, %v3550
  %v3708 = vmul.f32 %v3553, %v3553
  %v3709 = vmul.f32 %v3558, %v3558
  %v3710 = vmul.f32 %v3561, %v3561
  %v3711 = vmul.f32 %v3566, %v3566
  %v3712 = vmul.f32 %v3569, %v3569
  %v3713 = vmul.f32 %v3574, %v3574
  %v3714 = vmul.f32 %v3577, %v3577
  %v3715 = vsel %vm27, %v3683, 0.0
  %v3716 = vsel %vm27, %v3684, 0.0
  %v3717 = vadd.f32 %v3715, %v3716
  %v3718 = vsel %vm27, %v3685, 0.0
  %v3719 = vadd.f32 %v3717, %v3718
  %v3720 = vsel %vm27, %v3686, 0.0
  %v3721 = vadd.f32 %v3719, %v3720
  %v3722 = vsel %vm27, %v3687, 0.0
  %v3723 = vadd.f32 %v3721, %v3722
  %v3724 = vsel %vm27, %v3688, 0.0
  %v3725 = vadd.f32 %v3723, %v3724
  %v3726 = vsel %vm27, %v3689, 0.0
  %v3727 = vadd.f32 %v3725, %v3726
  %v3728 = vsel %vm27, %v3690, 0.0
  %v3729 = vadd.f32 %v3727, %v3728
  %v3730 = vsel %vm27, %v3691, 0.0
  %v3731 = vadd.f32 %v3729, %v3730
  %v3732 = vsel %vm27, %v3692, 0.0
  %v3733 = vadd.f32 %v3731, %v3732
  %v3734 = vsel %vm27, %v3693, 0.0
  %v3735 = vadd.f32 %v3733, %v3734
  %v3736 = vsel %vm27, %v3694, 0.0
  %v3737 = vadd.f32 %v3735, %v3736
  %v3738 = vsel %vm27, %v3695, 0.0
  %v3739 = vadd.f32 %v3737, %v3738
  %v3740 = vsel %vm27, %v3696, 0.0
  %v3741 = vadd.f32 %v3739, %v3740
  %v3742 = vsel %vm27, %v3697, 0.0
  %v3743 = vadd.f32 %v3741, %v3742
  %v3744 = vsel %vm27, %v3698, 0.0
  %v3745 = vadd.f32 %v3743, %v3744
  %v3746 = vsel %vm27, %v3699, 0.0
  %v3747 = vadd.f32 %v3745, %v3746
  %v3748 = vsel %vm27, %v3700, 0.0
  %v3749 = vadd.f32 %v3747, %v3748
  %v3750 = vsel %vm27, %v3701, 0.0
  %v3751 = vadd.f32 %v3749, %v3750
  %v3752 = vsel %vm27, %v3702, 0.0
  %v3753 = vadd.f32 %v3751, %v3752
  %v3754 = vsel %vm27, %v3703, 0.0
  %v3755 = vadd.f32 %v3753, %v3754
  %v3756 = vsel %vm27, %v3704, 0.0
  %v3757 = vadd.f32 %v3755, %v3756
  %v3758 = vsel %vm27, %v3705, 0.0
  %v3759 = vadd.f32 %v3757, %v3758
  %v3760 = vsel %vm27, %v3706, 0.0
  %v3761 = vadd.f32 %v3759, %v3760
  %v3762 = vsel %vm27, %v3707, 0.0
  %v3763 = vadd.f32 %v3761, %v3762
  %v3764 = vsel %vm27, %v3708, 0.0
  %v3765 = vadd.f32 %v3763, %v3764
  %v3766 = vsel %vm27, %v3709, 0.0
  %v3767 = vadd.f32 %v3765, %v3766
  %v3768 = vsel %vm27, %v3710, 0.0
  %v3769 = vadd.f32 %v3767, %v3768
  %v3770 = vsel %vm27, %v3711, 0.0
  %v3771 = vadd.f32 %v3769, %v3770
  %v3772 = vsel %vm27, %v3712, 0.0
  %v3773 = vadd.f32 %v3771, %v3772
  %v3774 = vsel %vm27, %v3713, 0.0
  %v3775 = vadd.f32 %v3773, %v3774
  %v3776 = vsel %vm27, %v3714, 0.0
  %v3777 = vadd.f32 %v3775, %v3776
  %v3778 = vrot.slane %v3777, 4
  %v3779 = vadd.f32 %v3777, %v3778
  %v3780 = vrot.slane %v3779, 2
  %v3781 = vadd.f32 %v3779, %v3780
  %v3782 = vrot.slane %v3781, 1
  %v3783 = vadd.f32 %v3781, %v3782
  %v3784 = vadd.f32 %v2018, %v3783
  %v3785 = vld [vmem:[%s2] sm:$0x1]
  %v3786 = vld [vmem:[%s3] sm:$0x1]
  %v3787 = vmul.f32 %v3682, 0.001953125
  %v3788 = vmul.f32 %v3784, 0.001953125
  %v3789 = vmul.f32 %v3787, %v3787
  %v3790 = vsub.f32 %v3788, %v3789
  %v3791 = vadd.f32 %v3790, 1e-05
  %v3792 = vrsqrt.pop %v3791
  %v3793 = vmul.f32 %v3785, %v3792
  %v3794 = vmul.f32 %v3787, %v3793
  %v3795 = vsub.f32 %v3786, %v3794
  %3796 = vst.msk [vmem:[#allocation3] sm:$0xff] %vm27, 0.0
  %3797 = vst.msk [vmem:[#allocation3 + $0x8] sm:$0xff] %vm27, 0.0
  %3798 = vst.msk [vmem:[#allocation3 + $0x10] sm:$0x3] %vm30, 0.0
  %3799 = vst.msk [vmem:[#allocation3 + $0x1b0] sm:$0xff] %vm27, 0.0
  %3800 = vst.msk [vmem:[#allocation3 + $0x1b8] sm:$0xff] %vm27, 0.0
  %3801 = vst.msk [vmem:[#allocation3 + $0x1c0] sm:$0x3] %vm30, 0.0
  %s3802 = scalar_lea.vmem [#allocation3], 408
  %3803 = vst.msk [vmem:[%s3802] sm:$0xff] %vm27, 0.0
  %3804 = vst.msk [vmem:[%s3802 + $0x8] sm:$0xff] %vm27, 0.0
  %3805 = vst.msk [vmem:[%s3802 + $0x10] sm:$0x3] %vm30, 0.0
  %3806 = vst.msk [vmem:[%s3802 + $0x1b0] sm:$0xff] %vm27, 0.0
  %3807 = vst.msk [vmem:[%s3802 + $0x1b8] sm:$0xff] %vm27, 0.0
  %3808 = vst.msk [vmem:[%s3802 + $0x1c0] sm:$0x3] %vm30, 0.0
  %3809 = vst.msk [vmem:[#allocation3] sm:$0x1] %vm42, 0.0
  %3810 = vst.msk [vmem:[#allocation3 + $0x18] sm:$0x1] %vm42, 0.0
  %3811 = vst.msk [vmem:[#allocation3 + $0x30] sm:$0x1] %vm42, 0.0
  %3812 = vst.msk [vmem:[#allocation3 + $0x48] sm:$0x1] %vm42, 0.0
  %3813 = vst.msk [vmem:[#allocation3 + $0x60] sm:$0x1] %vm42, 0.0
  %3814 = vst.msk [vmem:[#allocation3 + $0x78] sm:$0x1] %vm42, 0.0
  %3815 = vst.msk [vmem:[#allocation3 + $0x90] sm:$0x1] %vm42, 0.0
  %3816 = vst.msk [vmem:[#allocation3 + $0xa8] sm:$0x1] %vm42, 0.0
  %3817 = vst.msk [vmem:[#allocation3 + $0xc0] sm:$0x1] %vm42, 0.0
  %3818 = vst.msk [vmem:[#allocation3 + $0xd8] sm:$0x1] %vm42, 0.0
  %3819 = vst.msk [vmem:[#allocation3 + $0xf0] sm:$0x1] %vm42, 0.0
  %3820 = vst.msk [vmem:[#allocation3 + $0x108] sm:$0x1] %vm42, 0.0
  %3821 = vst.msk [vmem:[#allocation3 + $0x120] sm:$0x1] %vm42, 0.0
  %3822 = vst.msk [vmem:[#allocation3 + $0x138] sm:$0x1] %vm42, 0.0
  %3823 = vst.msk [vmem:[#allocation3 + $0x150] sm:$0x1] %vm42, 0.0
  %3824 = vst.msk [vmem:[#allocation3 + $0x168] sm:$0x1] %vm42, 0.0
  %3825 = vst.msk [vmem:[#allocation3 + $0x180] sm:$0x1] %vm42, 0.0
  %3826 = vst.msk [vmem:[#allocation3 + $0x198] sm:$0x1] %vm42, 0.0
  %3827 = vst.msk [vmem:[#allocation3 + $0x1b0] sm:$0x1] %vm42, 0.0
  %3828 = vst.msk [vmem:[#allocation3 + $0x1c8] sm:$0x1] %vm42, 0.0
  %3829 = vst.msk [vmem:[#allocation3 + $0x1e0] sm:$0x1] %vm42, 0.0
  %3830 = vst.msk [vmem:[#allocation3 + $0x1f8] sm:$0x1] %vm42, 0.0
  %3831 = vst.msk [vmem:[#allocation3 + $0x210] sm:$0x1] %vm42, 0.0
  %3832 = vst.msk [vmem:[#allocation3 + $0x228] sm:$0x1] %vm42, 0.0
  %3833 = vst.msk [vmem:[#allocation3 + $0x240] sm:$0x1] %vm42, 0.0
  %3834 = vst.msk [vmem:[#allocation3 + $0x258] sm:$0x1] %vm42, 0.0
  %3835 = vst.msk [vmem:[#allocation3 + $0x270] sm:$0x1] %vm42, 0.0
  %3836 = vst.msk [vmem:[#allocation3 + $0x288] sm:$0x1] %vm42, 0.0
  %3837 = vst.msk [vmem:[#allocation3 + $0x2a0] sm:$0x1] %vm42, 0.0
  %3838 = vst.msk [vmem:[#allocation3 + $0x2b8] sm:$0x1] %vm42, 0.0
  %3839 = vst.msk [vmem:[#allocation3 + $0x2d0] sm:$0x1] %vm42, 0.0
  %3840 = vst.msk [vmem:[#allocation3 + $0x2e8] sm:$0x1] %vm42, 0.0
  %3841 = vst.msk [vmem:[#allocation3 + $0x300] sm:$0x1] %vm42, 0.0
  %3842 = vst.msk [vmem:[#allocation3 + $0x318] sm:$0x1] %vm42, 0.0
  %3843 = vst.msk [vmem:[#allocation3 + $0x330] sm:$0x1] %vm42, 0.0
  %3844 = vst.msk [vmem:[#allocation3 + $0x348] sm:$0x1] %vm42, 0.0
  %3845 = vst.msk [vmem:[#allocation3 + $0x11] sm:$0x1] %vm42, 0.0
  %3846 = vst.msk [vmem:[#allocation3 + $0x29] sm:$0x1] %vm42, 0.0
  %3847 = vst.msk [vmem:[#allocation3 + $0x41] sm:$0x1] %vm42, 0.0
  %3848 = vst.msk [vmem:[#allocation3 + $0x59] sm:$0x1] %vm42, 0.0
  %3849 = vst.msk [vmem:[#allocation3 + $0x71] sm:$0x1] %vm42, 0.0
  %3850 = vst.msk [vmem:[#allocation3 + $0x89] sm:$0x1] %vm42, 0.0
  %3851 = vst.msk [vmem:[#allocation3 + $0xa1] sm:$0x1] %vm42, 0.0
  %3852 = vst.msk [vmem:[#allocation3 + $0xb9] sm:$0x1] %vm42, 0.0
  %3853 = vst.msk [vmem:[#allocation3 + $0xd1] sm:$0x1] %vm42, 0.0
  %3854 = vst.msk [vmem:[#allocation3 + $0xe9] sm:$0x1] %vm42, 0.0
  %3855 = vst.msk [vmem:[#allocation3 + $0x101] sm:$0x1] %vm42, 0.0
  %3856 = vst.msk [vmem:[#allocation3 + $0x119] sm:$0x1] %vm42, 0.0
  %3857 = vst.msk [vmem:[#allocation3 + $0x131] sm:$0x1] %vm42, 0.0
  %3858 = vst.msk [vmem:[#allocation3 + $0x149] sm:$0x1] %vm42, 0.0
  %3859 = vst.msk [vmem:[#allocation3 + $0x161] sm:$0x1] %vm42, 0.0
  %3860 = vst.msk [vmem:[#allocation3 + $0x179] sm:$0x1] %vm42, 0.0
  %3861 = vst.msk [vmem:[#allocation3 + $0x191] sm:$0x1] %vm42, 0.0
  %3862 = vst.msk [vmem:[#allocation3 + $0x1a9] sm:$0x1] %vm42, 0.0
  %3863 = vst.msk [vmem:[#allocation3 + $0x1c1] sm:$0x1] %vm42, 0.0
  %3864 = vst.msk [vmem:[#allocation3 + $0x1d9] sm:$0x1] %vm42, 0.0
  %3865 = vst.msk [vmem:[#allocation3 + $0x1f1] sm:$0x1] %vm42, 0.0
  %3866 = vst.msk [vmem:[#allocation3 + $0x209] sm:$0x1] %vm42, 0.0
  %3867 = vst.msk [vmem:[#allocation3 + $0x221] sm:$0x1] %vm42, 0.0
  %3868 = vst.msk [vmem:[#allocation3 + $0x239] sm:$0x1] %vm42, 0.0
  %3869 = vst.msk [vmem:[#allocation3 + $0x251] sm:$0x1] %vm42, 0.0
  %3870 = vst.msk [vmem:[#allocation3 + $0x269] sm:$0x1] %vm42, 0.0
  %3871 = vst.msk [vmem:[#allocation3 + $0x281] sm:$0x1] %vm42, 0.0
  %3872 = vst.msk [vmem:[#allocation3 + $0x299] sm:$0x1] %vm42, 0.0
  %3873 = vst.msk [vmem:[#allocation3 + $0x2b1] sm:$0x1] %vm42, 0.0
  %3874 = vst.msk [vmem:[#allocation3 + $0x2c9] sm:$0x1] %vm42, 0.0
  %3875 = vst.msk [vmem:[#allocation3 + $0x2e1] sm:$0x1] %vm42, 0.0
  %3876 = vst.msk [vmem:[#allocation3 + $0x2f9] sm:$0x1] %vm42, 0.0
  %3877 = vst.msk [vmem:[#allocation3 + $0x311] sm:$0x1] %vm42, 0.0
  %3878 = vst.msk [vmem:[#allocation3 + $0x329] sm:$0x1] %vm42, 0.0
  %3879 = vst.msk [vmem:[#allocation3 + $0x341] sm:$0x1] %vm42, 0.0
  %3880 = vst.msk [vmem:[#allocation3 + $0x359] sm:$0x1] %vm42, 0.0
  %v3881 = vld [vmem:[#allocation4] sm:$0xff]
  %v3882 = vld [vmem:[#allocation4 + $0x8] sm:$0xff]
  %v3883 = vld [vmem:[#allocation4 + $0x10] sm:$0xff]
  %v3884 = vld [vmem:[#allocation4 + $0x18] sm:$0xff]
  %v3885 = vld [vmem:[#allocation4 + $0x20] sm:$0xff]
  %v3886 = vld [vmem:[#allocation4 + $0x28] sm:$0xff]
  %v3887 = vld [vmem:[#allocation4 + $0x30] sm:$0xff]
  %v3888 = vld [vmem:[#allocation4 + $0x38] sm:$0xff]
  %v3889 = vld [vmem:[#allocation4 + $0x40] sm:$0xff]
  %v3890 = vld [vmem:[#allocation4 + $0x48] sm:$0xff]
  %v3891 = vld [vmem:[#allocation4 + $0x50] sm:$0xff]
  %v3892 = vld [vmem:[#allocation4 + $0x58] sm:$0xff]
  %v3893 = vld [vmem:[#allocation4 + $0x60] sm:$0xff]
  %v3894 = vld [vmem:[#allocation4 + $0x68] sm:$0xff]
  %v3895 = vld [vmem:[#allocation4 + $0x70] sm:$0xff]
  %v3896 = vld [vmem:[#allocation4 + $0x78] sm:$0xff]
  %v3897 = vld [vmem:[#allocation4 + $0x80] sm:$0xff]
  %v3898 = vld [vmem:[#allocation4 + $0x88] sm:$0xff]
  %v3899 = vld [vmem:[#allocation4 + $0x90] sm:$0xff]
  %v3900 = vld [vmem:[#allocation4 + $0x98] sm:$0xff]
  %v3901 = vld [vmem:[#allocation4 + $0xa0] sm:$0xff]
  %v3902 = vld [vmem:[#allocation4 + $0xa8] sm:$0xff]
  %v3903 = vld [vmem:[#allocation4 + $0xb0] sm:$0xff]
  %v3904 = vld [vmem:[#allocation4 + $0xb8] sm:$0xff]
  %v3905 = vld [vmem:[#allocation4 + $0xc0] sm:$0xff]
  %v3906 = vld [vmem:[#allocation4 + $0xc8] sm:$0xff]
  %v3907 = vld [vmem:[#allocation4 + $0xd0] sm:$0xff]
  %v3908 = vld [vmem:[#allocation4 + $0xd8] sm:$0xff]
  %v3909 = vld [vmem:[#allocation4 + $0xe0] sm:$0xff]
  %v3910 = vld [vmem:[#allocation4 + $0xe8] sm:$0xff]
  %v3911 = vld [vmem:[#allocation4 + $0xf0] sm:$0xff]
  %v3912 = vld [vmem:[#allocation4 + $0xf8] sm:$0xff]
  %v3913 = vld [vmem:[#allocation4 + $0x100] sm:$0xff]
  %v3914 = vld [vmem:[#allocation4 + $0x108] sm:$0xff]
  %v3915 = vld [vmem:[#allocation4 + $0x110] sm:$0xff]
  %v3916 = vld [vmem:[#allocation4 + $0x118] sm:$0xff]
  %v3917 = vld [vmem:[#allocation4 + $0x120] sm:$0xff]
  %v3918 = vld [vmem:[#allocation4 + $0x128] sm:$0xff]
  %v3919 = vld [vmem:[#allocation4 + $0x130] sm:$0xff]
  %v3920 = vld [vmem:[#allocation4 + $0x138] sm:$0xff]
  %v3921 = vld [vmem:[#allocation4 + $0x140] sm:$0xff]
  %v3922 = vld [vmem:[#allocation4 + $0x148] sm:$0xff]
  %v3923 = vld [vmem:[#allocation4 + $0x150] sm:$0xff]
  %v3924 = vld [vmem:[#allocation4 + $0x158] sm:$0xff]
  %v3925 = vld [vmem:[#allocation4 + $0x160] sm:$0xff]
  %v3926 = vld [vmem:[#allocation4 + $0x168] sm:$0xff]
  %v3927 = vld [vmem:[#allocation4 + $0x170] sm:$0xff]
  %v3928 = vld [vmem:[#allocation4 + $0x178] sm:$0xff]
  %v3929 = vld [vmem:[#allocation4 + $0x180] sm:$0xff]
  %v3930 = vld [vmem:[#allocation4 + $0x188] sm:$0xff]
  %v3931 = vld [vmem:[#allocation4 + $0x190] sm:$0xff]
  %v3932 = vld [vmem:[#allocation4 + $0x198] sm:$0xff]
  %v3933 = vld [vmem:[#allocation4 + $0x1a0] sm:$0xff]
  %v3934 = vld [vmem:[#allocation4 + $0x1a8] sm:$0xff]
  %v3935 = vld [vmem:[#allocation4 + $0x1b0] sm:$0xff]
  %v3936 = vld [vmem:[#allocation4 + $0x1b8] sm:$0xff]
  %v3937 = vld [vmem:[#allocation4 + $0x1c0] sm:$0xff]
  %v3938 = vld [vmem:[#allocation4 + $0x1c8] sm:$0xff]
  %v3939 = vld [vmem:[#allocation4 + $0x1d0] sm:$0xff]
  %v3940 = vld [vmem:[#allocation4 + $0x1d8] sm:$0xff]
  %v3941 = vld [vmem:[#allocation4 + $0x1e0] sm:$0xff]
  %v3942 = vld [vmem:[#allocation4 + $0x1e8] sm:$0xff]
  %v3943 = vld [vmem:[#allocation4 + $0x1f0] sm:$0xff]
  %v3944 = vld [vmem:[#allocation4 + $0x1f8] sm:$0xff]
  %v3946 = vlaneseq
  %v3947 = vshrl.u32 %v3946, 7
  %v3948 = vsub.s32 0, %v3947
  %v3949 = vrot.slane %v3793, %v3948
  %v3951 = vmul.f32 %v3881, %v3949
  %v3952 = vmul.f32 %v3882, %v3949
  %v3953 = vmul.f32 %v3883, %v3949
  %v3954 = vmul.f32 %v3884, %v3949
  %v3955 = vmul.f32 %v3885, %v3949
  %v3956 = vmul.f32 %v3886, %v3949
  %v3957 = vmul.f32 %v3887, %v3949
  %v3958 = vmul.f32 %v3888, %v3949
  %v3959 = vmul.f32 %v3889, %v3949
  %v3960 = vmul.f32 %v3890, %v3949
  %v3961 = vmul.f32 %v3891, %v3949
  %v3962 = vmul.f32 %v3892, %v3949
  %v3963 = vmul.f32 %v3893, %v3949
  %v3964 = vmul.f32 %v3894, %v3949
  %v3965 = vmul.f32 %v3895, %v3949
  %v3966 = vmul.f32 %v3896, %v3949
  %v3967 = vmul.f32 %v3897, %v3949
  %v3968 = vmul.f32 %v3898, %v3949
  %v3969 = vmul.f32 %v3899, %v3949
  %v3970 = vmul.f32 %v3900, %v3949
  %v3971 = vmul.f32 %v3901, %v3949
  %v3972 = vmul.f32 %v3902, %v3949
  %v3973 = vmul.f32 %v3903, %v3949
  %v3974 = vmul.f32 %v3904, %v3949
  %v3975 = vmul.f32 %v3905, %v3949
  %v3976 = vmul.f32 %v3906, %v3949
  %v3977 = vmul.f32 %v3907, %v3949
  %v3978 = vmul.f32 %v3908, %v3949
  %v3979 = vmul.f32 %v3909, %v3949
  %v3980 = vmul.f32 %v3910, %v3949
  %v3981 = vmul.f32 %v3911, %v3949
  %v3982 = vmul.f32 %v3912, %v3949
  %v3983 = vmul.f32 %v3913, %v3949
  %v3984 = vmul.f32 %v3914, %v3949
  %v3985 = vmul.f32 %v3915, %v3949
  %v3986 = vmul.f32 %v3916, %v3949
  %v3987 = vmul.f32 %v3917, %v3949
  %v3988 = vmul.f32 %v3918, %v3949
  %v3989 = vmul.f32 %v3919, %v3949
  %v3990 = vmul.f32 %v3920, %v3949
  %v3991 = vmul.f32 %v3921, %v3949
  %v3992 = vmul.f32 %v3922, %v3949
  %v3993 = vmul.f32 %v3923, %v3949
  %v3994 = vmul.f32 %v3924, %v3949
  %v3995 = vmul.f32 %v3925, %v3949
  %v3996 = vmul.f32 %v3926, %v3949
  %v3997 = vmul.f32 %v3927, %v3949
  %v3998 = vmul.f32 %v3928, %v3949
  %v3999 = vmul.f32 %v3929, %v3949
  %v4000 = vmul.f32 %v3930, %v3949
  %v4001 = vmul.f32 %v3931, %v3949
  %v4002 = vmul.f32 %v3932, %v3949
  %v4003 = vmul.f32 %v3933, %v3949
  %v4004 = vmul.f32 %v3934, %v3949
  %v4005 = vmul.f32 %v3935, %v3949
  %v4006 = vmul.f32 %v3936, %v3949
  %v4007 = vmul.f32 %v3937, %v3949
  %v4008 = vmul.f32 %v3938, %v3949
  %v4009 = vmul.f32 %v3939, %v3949
  %v4010 = vmul.f32 %v3940, %v3949
  %v4011 = vmul.f32 %v3941, %v3949
  %v4012 = vmul.f32 %v3942, %v3949
  %v4013 = vmul.f32 %v3943, %v3949
  %v4014 = vmul.f32 %v3944, %v3949
  %v4016 = vlaneseq
  %v4017 = vshrl.u32 %v4016, 7
  %v4018 = vsub.s32 0, %v4017
  %v4019 = vrot.slane %v3795, %v4018
  %v4021 = vadd.f32 %v3951, %v4019
  %v4022 = vadd.f32 %v3952, %v4019
  %v4023 = vadd.f32 %v3953, %v4019
  %v4024 = vadd.f32 %v3954, %v4019
  %v4025 = vadd.f32 %v3955, %v4019
  %v4026 = vadd.f32 %v3956, %v4019
  %v4027 = vadd.f32 %v3957, %v4019
  %v4028 = vadd.f32 %v3958, %v4019
  %v4029 = vadd.f32 %v3959, %v4019
  %v4030 = vadd.f32 %v3960, %v4019
  %v4031 = vadd.f32 %v3961, %v4019
  %v4032 = vadd.f32 %v3962, %v4019
  %v4033 = vadd.f32 %v3963, %v4019
  %v4034 = vadd.f32 %v3964, %v4019
  %v4035 = vadd.f32 %v3965, %v4019
  %v4036 = vadd.f32 %v3966, %v4019
  %v4037 = vadd.f32 %v3967, %v4019
  %v4038 = vadd.f32 %v3968, %v4019
  %v4039 = vadd.f32 %v3969, %v4019
  %v4040 = vadd.f32 %v3970, %v4019
  %v4041 = vadd.f32 %v3971, %v4019
  %v4042 = vadd.f32 %v3972, %v4019
  %v4043 = vadd.f32 %v3973, %v4019
  %v4044 = vadd.f32 %v3974, %v4019
  %v4045 = vadd.f32 %v3975, %v4019
  %v4046 = vadd.f32 %v3976, %v4019
  %v4047 = vadd.f32 %v3977, %v4019
  %v4048 = vadd.f32 %v3978, %v4019
  %v4049 = vadd.f32 %v3979, %v4019
  %v4050 = vadd.f32 %v3980, %v4019
  %v4051 = vadd.f32 %v3981, %v4019
  %v4052 = vadd.f32 %v3982, %v4019
  %v4053 = vadd.f32 %v3983, %v4019
  %v4054 = vadd.f32 %v3984, %v4019
  %v4055 = vadd.f32 %v3985, %v4019
  %v4056 = vadd.f32 %v3986, %v4019
  %v4057 = vadd.f32 %v3987, %v4019
  %v4058 = vadd.f32 %v3988, %v4019
  %v4059 = vadd.f32 %v3989, %v4019
  %v4060 = vadd.f32 %v3990, %v4019
  %v4061 = vadd.f32 %v3991, %v4019
  %v4062 = vadd.f32 %v3992, %v4019
  %v4063 = vadd.f32 %v3993, %v4019
  %v4064 = vadd.f32 %v3994, %v4019
  %v4065 = vadd.f32 %v3995, %v4019
  %v4066 = vadd.f32 %v3996, %v4019
  %v4067 = vadd.f32 %v3997, %v4019
  %v4068 = vadd.f32 %v3998, %v4019
  %v4069 = vadd.f32 %v3999, %v4019
  %v4070 = vadd.f32 %v4000, %v4019
  %v4071 = vadd.f32 %v4001, %v4019
  %v4072 = vadd.f32 %v4002, %v4019
  %v4073 = vadd.f32 %v4003, %v4019
  %v4074 = vadd.f32 %v4004, %v4019
  %v4075 = vadd.f32 %v4005, %v4019
  %v4076 = vadd.f32 %v4006, %v4019
  %v4077 = vadd.f32 %v4007, %v4019
  %v4078 = vadd.f32 %v4008, %v4019
  %v4079 = vadd.f32 %v4009, %v4019
  %v4080 = vadd.f32 %v4010, %v4019
  %v4081 = vadd.f32 %v4011, %v4019
  %v4082 = vadd.f32 %v4012, %v4019
  %v4083 = vadd.f32 %v4013, %v4019
  %v4084 = vadd.f32 %v4014, %v4019
  %v4085 = vmax.f32 %v4021, 0.0
  %v4086 = vmax.f32 %v4022, 0.0
  %v4087 = vmax.f32 %v4023, 0.0
  %v4088 = vmax.f32 %v4024, 0.0
  %v4089 = vmax.f32 %v4025, 0.0
  %v4090 = vmax.f32 %v4026, 0.0
  %v4091 = vmax.f32 %v4027, 0.0
  %v4092 = vmax.f32 %v4028, 0.0
  %v4093 = vmax.f32 %v4029, 0.0
  %v4094 = vmax.f32 %v4030, 0.0
  %v4095 = vmax.f32 %v4031, 0.0
  %v4096 = vmax.f32 %v4032, 0.0
  %v4097 = vmax.f32 %v4033, 0.0
  %v4098 = vmax.f32 %v4034, 0.0
  %v4099 = vmax.f32 %v4035, 0.0
  %v4100 = vmax.f32 %v4036, 0.0
  %v4101 = vmax.f32 %v4037, 0.0
  %v4102 = vmax.f32 %v4038, 0.0
  %v4103 = vmax.f32 %v4039, 0.0
  %v4104 = vmax.f32 %v4040, 0.0
  %v4105 = vmax.f32 %v4041, 0.0
  %v4106 = vmax.f32 %v4042, 0.0
  %v4107 = vmax.f32 %v4043, 0.0
  %v4108 = vmax.f32 %v4044, 0.0
  %v4109 = vmax.f32 %v4045, 0.0
  %v4110 = vmax.f32 %v4046, 0.0
  %v4111 = vmax.f32 %v4047, 0.0
  %v4112 = vmax.f32 %v4048, 0.0
  %v4113 = vmax.f32 %v4049, 0.0
  %v4114 = vmax.f32 %v4050, 0.0
  %v4115 = vmax.f32 %v4051, 0.0
  %v4116 = vmax.f32 %v4052, 0.0
  %v4117 = vmax.f32 %v4053, 0.0
  %v4118 = vmax.f32 %v4054, 0.0
  %v4119 = vmax.f32 %v4055, 0.0
  %v4120 = vmax.f32 %v4056, 0.0
  %v4121 = vmax.f32 %v4057, 0.0
  %v4122 = vmax.f32 %v4058, 0.0
  %v4123 = vmax.f32 %v4059, 0.0
  %v4124 = vmax.f32 %v4060, 0.0
  %v4125 = vmax.f32 %v4061, 0.0
  %v4126 = vmax.f32 %v4062, 0.0
  %v4127 = vmax.f32 %v4063, 0.0
  %v4128 = vmax.f32 %v4064, 0.0
  %v4129 = vmax.f32 %v4065, 0.0
  %v4130 = vmax.f32 %v4066, 0.0
  %v4131 = vmax.f32 %v4067, 0.0
  %v4132 = vmax.f32 %v4068, 0.0
  %v4133 = vmax.f32 %v4069, 0.0
  %v4134 = vmax.f32 %v4070, 0.0
  %v4135 = vmax.f32 %v4071, 0.0
  %v4136 = vmax.f32 %v4072, 0.0
  %v4137 = vmax.f32 %v4073, 0.0
  %v4138 = vmax.f32 %v4074, 0.0
  %v4139 = vmax.f32 %v4075, 0.0
  %v4140 = vmax.f32 %v4076, 0.0
  %v4141 = vmax.f32 %v4077, 0.0
  %v4142 = vmax.f32 %v4078, 0.0
  %v4143 = vmax.f32 %v4079, 0.0
  %v4144 = vmax.f32 %v4080, 0.0
  %v4145 = vmax.f32 %v4081, 0.0
  %v4146 = vmax.f32 %v4082, 0.0
  %v4147 = vmax.f32 %v4083, 0.0
  %v4148 = vmax.f32 %v4084, 0.0
  %s4149 = scalar_lea.vmem [#allocation3], 24
  %4150 = vst.msk [vmem:[%s4149 + $0x1] sm:$0xff] %vm27, %v4085
  %4151 = vst.msk [vmem:[%s4149 + $0x9] sm:$0xff] %vm27, %v4086
  %4152 = vst.msk [vmem:[%s4149 + $0x19] sm:$0xff] %vm27, %v4087
  %4153 = vst.msk [vmem:[%s4149 + $0x21] sm:$0xff] %vm27, %v4088
  %4154 = vst.msk [vmem:[%s4149 + $0x31] sm:$0xff] %vm27, %v4089
  %4155 = vst.msk [vmem:[%s4149 + $0x39] sm:$0xff] %vm27, %v4090
  %4156 = vst.msk [vmem:[%s4149 + $0x49] sm:$0xff] %vm27, %v4091
  %4157 = vst.msk [vmem:[%s4149 + $0x51] sm:$0xff] %vm27, %v4092
  %4158 = vst.msk [vmem:[%s4149 + $0x61] sm:$0xff] %vm27, %v4093
  %4159 = vst.msk [vmem:[%s4149 + $0x69] sm:$0xff] %vm27, %v4094
  %4160 = vst.msk [vmem:[%s4149 + $0x79] sm:$0xff] %vm27, %v4095
  %4161 = vst.msk [vmem:[%s4149 + $0x81] sm:$0xff] %vm27, %v4096
  %4162 = vst.msk [vmem:[%s4149 + $0x91] sm:$0xff] %vm27, %v4097
  %4163 = vst.msk [vmem:[%s4149 + $0x99] sm:$0xff] %vm27, %v4098
  %4164 = vst.msk [vmem:[%s4149 + $0xa9] sm:$0xff] %vm27, %v4099
  %4165 = vst.msk [vmem:[%s4149 + $0xb1] sm:$0xff] %vm27, %v4100
  %4166 = vst.msk [vmem:[%s4149 + $0xc1] sm:$0xff] %vm27, %v4101
  %4167 = vst.msk [vmem:[%s4149 + $0xc9] sm:$0xff] %vm27, %v4102
  %4168 = vst.msk [vmem:[%s4149 + $0xd9] sm:$0xff] %vm27, %v4103
  %4169 = vst.msk [vmem:[%s4149 + $0xe1] sm:$0xff] %vm27, %v4104
  %4170 = vst.msk [vmem:[%s4149 + $0xf1] sm:$0xff] %vm27, %v4105
  %4171 = vst.msk [vmem:[%s4149 + $0xf9] sm:$0xff] %vm27, %v4106
  %4172 = vst.msk [vmem:[%s4149 + $0x109] sm:$0xff] %vm27, %v4107
  %4173 = vst.msk [vmem:[%s4149 + $0x111] sm:$0xff] %vm27, %v4108
  %4174 = vst.msk [vmem:[%s4149 + $0x121] sm:$0xff] %vm27, %v4109
  %4175 = vst.msk [vmem:[%s4149 + $0x129] sm:$0xff] %vm27, %v4110
  %4176 = vst.msk [vmem:[%s4149 + $0x139] sm:$0xff] %vm27, %v4111
  %4177 = vst.msk [vmem:[%s4149 + $0x141] sm:$0xff] %vm27, %v4112
  %4178 = vst.msk [vmem:[%s4149 + $0x151] sm:$0xff] %vm27, %v4113
  %4179 = vst.msk [vmem:[%s4149 + $0x159] sm:$0xff] %vm27, %v4114
  %4180 = vst.msk [vmem:[%s4149 + $0x169] sm:$0xff] %vm27, %v4115
  %4181 = vst.msk [vmem:[%s4149 + $0x171] sm:$0xff] %vm27, %v4116
  %4182 = vst.msk [vmem:[%s4149 + $0x1b1] sm:$0xff] %vm27, %v4117
  %4183 = vst.msk [vmem:[%s4149 + $0x1b9] sm:$0xff] %vm27, %v4118
  %4184 = vst.msk [vmem:[%s4149 + $0x1c9] sm:$0xff] %vm27, %v4119
  %4185 = vst.msk [vmem:[%s4149 + $0x1d1] sm:$0xff] %vm27, %v4120
  %4186 = vst.msk [vmem:[%s4149 + $0x1e1] sm:$0xff] %vm27, %v4121
  %4187 = vst.msk [vmem:[%s4149 + $0x1e9] sm:$0xff] %vm27, %v4122
  %4188 = vst.msk [vmem:[%s4149 + $0x1f9] sm:$0xff] %vm27, %v4123
  %4189 = vst.msk [vmem:[%s4149 + $0x201] sm:$0xff] %vm27, %v4124
  %4190 = vst.msk [vmem:[%s4149 + $0x211] sm:$0xff] %vm27, %v4125
  %4191 = vst.msk [vmem:[%s4149 + $0x219] sm:$0xff] %vm27, %v4126
  %4192 = vst.msk [vmem:[%s4149 + $0x229] sm:$0xff] %vm27, %v4127
  %4193 = vst.msk [vmem:[%s4149 + $0x231] sm:$0xff] %vm27, %v4128
  %4194 = vst.msk [vmem:[%s4149 + $0x241] sm:$0xff] %vm27, %v4129
  %4195 = vst.msk [vmem:[%s4149 + $0x249] sm:$0xff] %vm27, %v4130
  %4196 = vst.msk [vmem:[%s4149 + $0x259] sm:$0xff] %vm27, %v4131
  %4197 = vst.msk [vmem:[%s4149 + $0x261] sm:$0xff] %vm27, %v4132
  %4198 = vst.msk [vmem:[%s4149 + $0x271] sm:$0xff] %vm27, %v4133
  %4199 = vst.msk [vmem:[%s4149 + $0x279] sm:$0xff] %vm27, %v4134
  %4200 = vst.msk [vmem:[%s4149 + $0x289] sm:$0xff] %vm27, %v4135
  %4201 = vst.msk [vmem:[%s4149 + $0x291] sm:$0xff] %vm27, %v4136
  %4202 = vst.msk [vmem:[%s4149 + $0x2a1] sm:$0xff] %vm27, %v4137
  %4203 = vst.msk [vmem:[%s4149 + $0x2a9] sm:$0xff] %vm27, %v4138
  %4204 = vst.msk [vmem:[%s4149 + $0x2b9] sm:$0xff] %vm27, %v4139
  %4205 = vst.msk [vmem:[%s4149 + $0x2c1] sm:$0xff] %vm27, %v4140
  %4206 = vst.msk [vmem:[%s4149 + $0x2d1] sm:$0xff] %vm27, %v4141
  %4207 = vst.msk [vmem:[%s4149 + $0x2d9] sm:$0xff] %vm27, %v4142
  %4208 = vst.msk [vmem:[%s4149 + $0x2e9] sm:$0xff] %vm27, %v4143
  %4209 = vst.msk [vmem:[%s4149 + $0x2f1] sm:$0xff] %vm27, %v4144
  %4210 = vst.msk [vmem:[%s4149 + $0x301] sm:$0xff] %vm27, %v4145
  %4211 = vst.msk [vmem:[%s4149 + $0x309] sm:$0xff] %vm27, %v4146
  %4212 = vst.msk [vmem:[%s4149 + $0x319] sm:$0xff] %vm27, %v4147
  %4213 = vst.msk [vmem:[%s4149 + $0x321] sm:$0xff] %vm27, %v4148
  %v4214 = vld [vmem:[#allocation3] sm:$0xff]
  %v4215 = vld [vmem:[#allocation3 + $0x8] sm:$0xff]
  %v4216 = vld [vmem:[#allocation3 + $0x10] sm:$0x3]
  %v4217 = vld [vmem:[#allocation3 + $0x18] sm:$0xff]
  %v4218 = vld [vmem:[#allocation3 + $0x20] sm:$0xff]
  %v4219 = vld [vmem:[#allocation3 + $0x28] sm:$0x3]
  %v4220 = vld [vmem:[#allocation3 + $0x30] sm:$0xff]
  %v4221 = vld [vmem:[#allocation3 + $0x38] sm:$0xff]
  %v4222 = vld [vmem:[#allocation3 + $0x40] sm:$0x3]
  %v4223 = vld [vmem:[#allocation3 + $0x48] sm:$0xff]
  %v4224 = vld [vmem:[#allocation3 + $0x50] sm:$0xff]
  %v4225 = vld [vmem:[#allocation3 + $0x58] sm:$0x3]
  %v4226 = vld [vmem:[#allocation3 + $0x60] sm:$0xff]
  %v4227 = vld [vmem:[#allocation3 + $0x68] sm:$0xff]
  %v4228 = vld [vmem:[#allocation3 + $0x70] sm:$0x3]
  %v4229 = vld [vmem:[#allocation3 + $0x78] sm:$0xff]
  %v4230 = vld [vmem:[#allocation3 + $0x80] sm:$0xff]
  %v4231 = vld [vmem:[#allocation3 + $0x88] sm:$0x3]
  %v4232 = vld [vmem:[#allocation3 + $0x90] sm:$0xff]
  %v4233 = vld [vmem:[#allocation3 + $0x98] sm:$0xff]
  %v4234 = vld [vmem:[#allocation3 + $0xa0] sm:$0x3]
  %v4235 = vld [vmem:[#allocation3 + $0xa8] sm:$0xff]
  %v4236 = vld [vmem:[#allocation3 + $0xb0] sm:$0xff]
  %v4237 = vld [vmem:[#allocation3 + $0xb8] sm:$0x3]
  %v4238 = vld [vmem:[#allocation3 + $0xc0] sm:$0xff]
  %v4239 = vld [vmem:[#allocation3 + $0xc8] sm:$0xff]
  %v4240 = vld [vmem:[#allocation3 + $0xd0] sm:$0x3]
  %v4241 = vld [vmem:[#allocation3 + $0xd8] sm:$0xff]
  %v4242 = vld [vmem:[#allocation3 + $0xe0] sm:$0xff]
  %v4243 = vld [vmem:[#allocation3 + $0xe8] sm:$0x3]
  %v4244 = vld [vmem:[#allocation3 + $0xf0] sm:$0xff]
  %v4245 = vld [vmem:[#allocation3 + $0xf8] sm:$0xff]
  %v4246 = vld [vmem:[#allocation3 + $0x100] sm:$0x3]
  %v4247 = vld [vmem:[#allocation3 + $0x108] sm:$0xff]
  %v4248 = vld [vmem:[#allocation3 + $0x110] sm:$0xff]
  %v4249 = vld [vmem:[#allocation3 + $0x118] sm:$0x3]
  %v4250 = vld [vmem:[#allocation3 + $0x120] sm:$0xff]
  %v4251 = vld [vmem:[#allocation3 + $0x128] sm:$0xff]
  %v4252 = vld [vmem:[#allocation3 + $0x130] sm:$0x3]
  %v4253 = vld [vmem:[#allocation3 + $0x138] sm:$0xff]
  %v4254 = vld [vmem:[#allocation3 + $0x140] sm:$0xff]
  %v4255 = vld [vmem:[#allocation3 + $0x148] sm:$0x3]
  %v4256 = vld [vmem:[#allocation3 + $0x150] sm:$0xff]
  %v4257 = vld [vmem:[#allocation3 + $0x158] sm:$0xff]
  %v4258 = vld [vmem:[#allocation3 + $0x160] sm:$0x3]
  %v4259 = vld [vmem:[#allocation3 + $0x168] sm:$0xff]
  %v4260 = vld [vmem:[#allocation3 + $0x170] sm:$0xff]
  %v4261 = vld [vmem:[#allocation3 + $0x178] sm:$0x3]
  %v4262 = vld [vmem:[#allocation3 + $0x180] sm:$0xff]
  %v4263 = vld [vmem:[#allocation3 + $0x188] sm:$0xff]
  %v4264 = vld [vmem:[#allocation3 + $0x190] sm:$0x3]
  %v4265 = vld [vmem:[#allocation3 + $0x198] sm:$0xff]
  %v4266 = vld [vmem:[#allocation3 + $0x1a0] sm:$0xff]
  %v4267 = vld [vmem:[#allocation3 + $0x1a8] sm:$0x3]
  %v4316 = vrot.slane %v4214, 1
  %v4317 = vrot.slane %v4215, 1
  %v4318 = vsel %vm346, %v4316, %v4317
  %v4319 = vrot.slane %v4216, 1
  %v4320 = vsel %vm346, %v4317, %v4319
  %v4321 = vrot.slane %v4217, 1
  %v4322 = vrot.slane %v4218, 1
  %v4323 = vsel %vm346, %v4321, %v4322
  %v4324 = vrot.slane %v4219, 1
  %v4325 = vsel %vm346, %v4322, %v4324
  %v4326 = vrot.slane %v4220, 1
  %v4327 = vrot.slane %v4221, 1
  %v4328 = vsel %vm346, %v4326, %v4327
  %v4329 = vrot.slane %v4222, 1
  %v4330 = vsel %vm346, %v4327, %v4329
  %v4331 = vrot.slane %v4223, 1
  %v4332 = vrot.slane %v4224, 1
  %v4333 = vsel %vm346, %v4331, %v4332
  %v4334 = vrot.slane %v4225, 1
  %v4335 = vsel %vm346, %v4332, %v4334
  %v4336 = vrot.slane %v4226, 1
  %v4337 = vrot.slane %v4227, 1
  %v4338 = vsel %vm346, %v4336, %v4337
  %v4339 = vrot.slane %v4228, 1
  %v4340 = vsel %vm346, %v4337, %v4339
  %v4341 = vrot.slane %v4229, 1
  %v4342 = vrot.slane %v4230, 1
  %v4343 = vsel %vm346, %v4341, %v4342
  %v4344 = vrot.slane %v4231, 1
  %v4345 = vsel %vm346, %v4342, %v4344
  %v4346 = vrot.slane %v4232, 1
  %v4347 = vrot.slane %v4233, 1
  %v4348 = vsel %vm346, %v4346, %v4347
  %v4349 = vrot.slane %v4234, 1
  %v4350 = vsel %vm346, %v4347, %v4349
  %v4351 = vrot.slane %v4235, 1
  %v4352 = vrot.slane %v4236, 1
  %v4353 = vsel %vm346, %v4351, %v4352
  %v4354 = vrot.slane %v4237, 1
  %v4355 = vsel %vm346, %v4352, %v4354
  %v4356 = vrot.slane %v4238, 1
  %v4357 = vrot.slane %v4239, 1
  %v4358 = vsel %vm346, %v4356, %v4357
  %v4359 = vrot.slane %v4240, 1
  %v4360 = vsel %vm346, %v4357, %v4359
  %v4361 = vrot.slane %v4241, 1
  %v4362 = vrot.slane %v4242, 1
  %v4363 = vsel %vm346, %v4361, %v4362
  %v4364 = vrot.slane %v4243, 1
  %v4365 = vsel %vm346, %v4362, %v4364
  %v4366 = vrot.slane %v4244, 1
  %v4367 = vrot.slane %v4245, 1
  %v4368 = vsel %vm346, %v4366, %v4367
  %v4369 = vrot.slane %v4246, 1
  %v4370 = vsel %vm346, %v4367, %v4369
  %v4371 = vrot.slane %v4247, 1
  %v4372 = vrot.slane %v4248, 1
  %v4373 = vsel %vm346, %v4371, %v4372
  %v4374 = vrot.slane %v4249, 1
  %v4375 = vsel %vm346, %v4372, %v4374
  %v4376 = vrot.slane %v4250, 1
  %v4377 = vrot.slane %v4251, 1
  %v4378 = vsel %vm346, %v4376, %v4377
  %v4379 = vrot.slane %v4252, 1
  %v4380 = vsel %vm346, %v4377, %v4379
  %v4381 = vrot.slane %v4253, 1
  %v4382 = vrot.slane %v4254, 1
  %v4383 = vsel %vm346, %v4381, %v4382
  %v4384 = vrot.slane %v4255, 1
  %v4385 = vsel %vm346, %v4382, %v4384
  %v4386 = vrot.slane %v4256, 1
  %v4387 = vrot.slane %v4257, 1
  %v4388 = vsel %vm346, %v4386, %v4387
  %v4389 = vrot.slane %v4258, 1
  %v4390 = vsel %vm346, %v4387, %v4389
  %v4391 = vrot.slane %v4259, 1
  %v4392 = vrot.slane %v4260, 1
  %v4393 = vsel %vm346, %v4391, %v4392
  %v4394 = vrot.slane %v4261, 1
  %v4395 = vsel %vm346, %v4392, %v4394
  %4396 = vrot.lane.b32.xlu0 %v4318, 4
  %v4397 = vpop.permute.xlu0 %4396
  %4398 = vrot.lane.b32.xlu0 %v4320, 4
  %v4399 = vpop.permute.xlu0 %4398
  %4400 = vrot.lane.b32.xlu0 %v4323, 4
  %v4401 = vpop.permute.xlu0 %4400
  %4402 = vrot.lane.b32.xlu0 %v4325, 4
  %v4403 = vpop.permute.xlu0 %4402
  %4404 = vrot.lane.b32.xlu0 %v4328, 4
  %v4405 = vpop.permute.xlu0 %4404
  %4406 = vrot.lane.b32.xlu0 %v4330, 4
  %v4407 = vpop.permute.xlu0 %4406
  %4408 = vrot.lane.b32.xlu0 %v4333, 4
  %v4409 = vpop.permute.xlu0 %4408
  %4410 = vrot.lane.b32.xlu0 %v4335, 4
  %v4411 = vpop.permute.xlu0 %4410
  %4412 = vrot.lane.b32.xlu0 %v4338, 4
  %v4413 = vpop.permute.xlu0 %4412
  %4414 = vrot.lane.b32.xlu0 %v4340, 4
  %v4415 = vpop.permute.xlu0 %4414
  %4416 = vrot.lane.b32.xlu0 %v4343, 4
  %v4417 = vpop.permute.xlu0 %4416
  %4418 = vrot.lane.b32.xlu0 %v4345, 4
  %v4419 = vpop.permute.xlu0 %4418
  %4420 = vrot.lane.b32.xlu0 %v4348, 4
  %v4421 = vpop.permute.xlu0 %4420
  %4422 = vrot.lane.b32.xlu0 %v4350, 4
  %v4423 = vpop.permute.xlu0 %4422
  %4424 = vrot.lane.b32.xlu0 %v4353, 4
  %v4425 = vpop.permute.xlu0 %4424
  %4426 = vrot.lane.b32.xlu0 %v4355, 4
  %v4427 = vpop.permute.xlu0 %4426
  %4428 = vrot.lane.b32.xlu0 %v4358, 4
  %v4429 = vpop.permute.xlu0 %4428
  %4430 = vrot.lane.b32.xlu0 %v4360, 4
  %v4431 = vpop.permute.xlu0 %4430
  %4432 = vrot.lane.b32.xlu0 %v4363, 4
  %v4433 = vpop.permute.xlu0 %4432
  %4434 = vrot.lane.b32.xlu0 %v4365, 4
  %v4435 = vpop.permute.xlu0 %4434
  %4436 = vrot.lane.b32.xlu0 %v4368, 4
  %v4437 = vpop.permute.xlu0 %4436
  %4438 = vrot.lane.b32.xlu0 %v4370, 4
  %v4439 = vpop.permute.xlu0 %4438
  %4440 = vrot.lane.b32.xlu0 %v4373, 4
  %v4441 = vpop.permute.xlu0 %4440
  %4442 = vrot.lane.b32.xlu0 %v4375, 4
  %v4443 = vpop.permute.xlu0 %4442
  %4444 = vrot.lane.b32.xlu0 %v4378, 4
  %v4445 = vpop.permute.xlu0 %4444
  %4446 = vrot.lane.b32.xlu0 %v4380, 4
  %v4447 = vpop.permute.xlu0 %4446
  %4448 = vrot.lane.b32.xlu0 %v4383, 4
  %v4449 = vpop.permute.xlu0 %4448
  %4450 = vrot.lane.b32.xlu0 %v4385, 4
  %v4451 = vpop.permute.xlu0 %4450
  %4452 = vrot.lane.b32.xlu0 %v4388, 4
  %v4453 = vpop.permute.xlu0 %4452
  %4454 = vrot.lane.b32.xlu0 %v4390, 4
  %v4455 = vpop.permute.xlu0 %4454
  %4456 = vrot.lane.b32.xlu0 %v4393, 4
  %v4457 = vpop.permute.xlu0 %4456
  %4458 = vrot.lane.b32.xlu0 %v4395, 4
  %v4459 = vpop.permute.xlu0 %4458
  %v4492 = vrot.slane %v4214, 2
  %v4493 = vrot.slane %v4215, 2
  %v4494 = vsel %vm523, %v4492, %v4493
  %v4495 = vrot.slane %v4216, 2
  %v4496 = vsel %vm523, %v4493, %v4495
  %v4497 = vrot.slane %v4217, 2
  %v4498 = vrot.slane %v4218, 2
  %v4499 = vsel %vm523, %v4497, %v4498
  %v4500 = vrot.slane %v4219, 2
  %v4501 = vsel %vm523, %v4498, %v4500
  %v4502 = vrot.slane %v4220, 2
  %v4503 = vrot.slane %v4221, 2
  %v4504 = vsel %vm523, %v4502, %v4503
  %v4505 = vrot.slane %v4222, 2
  %v4506 = vsel %vm523, %v4503, %v4505
  %v4507 = vrot.slane %v4223, 2
  %v4508 = vrot.slane %v4224, 2
  %v4509 = vsel %vm523, %v4507, %v4508
  %v4510 = vrot.slane %v4225, 2
  %v4511 = vsel %vm523, %v4508, %v4510
  %v4512 = vrot.slane %v4226, 2
  %v4513 = vrot.slane %v4227, 2
  %v4514 = vsel %vm523, %v4512, %v4513
  %v4515 = vrot.slane %v4228, 2
  %v4516 = vsel %vm523, %v4513, %v4515
  %v4517 = vrot.slane %v4229, 2
  %v4518 = vrot.slane %v4230, 2
  %v4519 = vsel %vm523, %v4517, %v4518
  %v4520 = vrot.slane %v4231, 2
  %v4521 = vsel %vm523, %v4518, %v4520
  %v4522 = vrot.slane %v4232, 2
  %v4523 = vrot.slane %v4233, 2
  %v4524 = vsel %vm523, %v4522, %v4523
  %v4525 = vrot.slane %v4234, 2
  %v4526 = vsel %vm523, %v4523, %v4525
  %v4527 = vrot.slane %v4235, 2
  %v4528 = vrot.slane %v4236, 2
  %v4529 = vsel %vm523, %v4527, %v4528
  %v4530 = vrot.slane %v4237, 2
  %v4531 = vsel %vm523, %v4528, %v4530
  %v4532 = vrot.slane %v4238, 2
  %v4533 = vrot.slane %v4239, 2
  %v4534 = vsel %vm523, %v4532, %v4533
  %v4535 = vrot.slane %v4240, 2
  %v4536 = vsel %vm523, %v4533, %v4535
  %v4537 = vrot.slane %v4241, 2
  %v4538 = vrot.slane %v4242, 2
  %v4539 = vsel %vm523, %v4537, %v4538
  %v4540 = vrot.slane %v4243, 2
  %v4541 = vsel %vm523, %v4538, %v4540
  %v4542 = vrot.slane %v4244, 2
  %v4543 = vrot.slane %v4245, 2
  %v4544 = vsel %vm523, %v4542, %v4543
  %v4545 = vrot.slane %v4246, 2
  %v4546 = vsel %vm523, %v4543, %v4545
  %v4547 = vrot.slane %v4247, 2
  %v4548 = vrot.slane %v4248, 2
  %v4549 = vsel %vm523, %v4547, %v4548
  %v4550 = vrot.slane %v4249, 2
  %v4551 = vsel %vm523, %v4548, %v4550
  %v4552 = vrot.slane %v4250, 2
  %v4553 = vrot.slane %v4251, 2
  %v4554 = vsel %vm523, %v4552, %v4553
  %v4555 = vrot.slane %v4252, 2
  %v4556 = vsel %vm523, %v4553, %v4555
  %v4557 = vrot.slane %v4253, 2
  %v4558 = vrot.slane %v4254, 2
  %v4559 = vsel %vm523, %v4557, %v4558
  %v4560 = vrot.slane %v4255, 2
  %v4561 = vsel %vm523, %v4558, %v4560
  %v4562 = vrot.slane %v4256, 2
  %v4563 = vrot.slane %v4257, 2
  %v4564 = vsel %vm523, %v4562, %v4563
  %v4565 = vrot.slane %v4258, 2
  %v4566 = vsel %vm523, %v4563, %v4565
  %v4567 = vrot.slane %v4259, 2
  %v4568 = vrot.slane %v4260, 2
  %v4569 = vsel %vm523, %v4567, %v4568
  %v4570 = vrot.slane %v4261, 2
  %v4571 = vsel %vm523, %v4568, %v4570
  %4572 = vrot.lane.b32.xlu0 %v4494, 8
  %v4573 = vpop.permute.xlu0 %4572
  %4574 = vrot.lane.b32.xlu0 %v4496, 8
  %v4575 = vpop.permute.xlu0 %4574
  %4576 = vrot.lane.b32.xlu0 %v4499, 8
  %v4577 = vpop.permute.xlu0 %4576
  %4578 = vrot.lane.b32.xlu0 %v4501, 8
  %v4579 = vpop.permute.xlu0 %4578
  %4580 = vrot.lane.b32.xlu0 %v4504, 8
  %v4581 = vpop.permute.xlu0 %4580
  %4582 = vrot.lane.b32.xlu0 %v4506, 8
  %v4583 = vpop.permute.xlu0 %4582
  %4584 = vrot.lane.b32.xlu0 %v4509, 8
  %v4585 = vpop.permute.xlu0 %4584
  %4586 = vrot.lane.b32.xlu0 %v4511, 8
  %v4587 = vpop.permute.xlu0 %4586
  %4588 = vrot.lane.b32.xlu0 %v4514, 8
  %v4589 = vpop.permute.xlu0 %4588
  %4590 = vrot.lane.b32.xlu0 %v4516, 8
  %v4591 = vpop.permute.xlu0 %4590
  %4592 = vrot.lane.b32.xlu0 %v4519, 8
  %v4593 = vpop.permute.xlu0 %4592
  %4594 = vrot.lane.b32.xlu0 %v4521, 8
  %v4595 = vpop.permute.xlu0 %4594
  %4596 = vrot.lane.b32.xlu0 %v4524, 8
  %v4597 = vpop.permute.xlu0 %4596
  %4598 = vrot.lane.b32.xlu0 %v4526, 8
  %v4599 = vpop.permute.xlu0 %4598
  %4600 = vrot.lane.b32.xlu0 %v4529, 8
  %v4601 = vpop.permute.xlu0 %4600
  %4602 = vrot.lane.b32.xlu0 %v4531, 8
  %v4603 = vpop.permute.xlu0 %4602
  %4604 = vrot.lane.b32.xlu0 %v4534, 8
  %v4605 = vpop.permute.xlu0 %4604
  %4606 = vrot.lane.b32.xlu0 %v4536, 8
  %v4607 = vpop.permute.xlu0 %4606
  %4608 = vrot.lane.b32.xlu0 %v4539, 8
  %v4609 = vpop.permute.xlu0 %4608
  %4610 = vrot.lane.b32.xlu0 %v4541, 8
  %v4611 = vpop.permute.xlu0 %4610
  %4612 = vrot.lane.b32.xlu0 %v4544, 8
  %v4613 = vpop.permute.xlu0 %4612
  %4614 = vrot.lane.b32.xlu0 %v4546, 8
  %v4615 = vpop.permute.xlu0 %4614
  %4616 = vrot.lane.b32.xlu0 %v4549, 8
  %v4617 = vpop.permute.xlu0 %4616
  %4618 = vrot.lane.b32.xlu0 %v4551, 8
  %v4619 = vpop.permute.xlu0 %4618
  %4620 = vrot.lane.b32.xlu0 %v4554, 8
  %v4621 = vpop.permute.xlu0 %4620
  %4622 = vrot.lane.b32.xlu0 %v4556, 8
  %v4623 = vpop.permute.xlu0 %4622
  %4624 = vrot.lane.b32.xlu0 %v4559, 8
  %v4625 = vpop.permute.xlu0 %4624
  %4626 = vrot.lane.b32.xlu0 %v4561, 8
  %v4627 = vpop.permute.xlu0 %4626
  %4628 = vrot.lane.b32.xlu0 %v4564, 8
  %v4629 = vpop.permute.xlu0 %4628
  %4630 = vrot.lane.b32.xlu0 %v4566, 8
  %v4631 = vpop.permute.xlu0 %4630
  %4632 = vrot.lane.b32.xlu0 %v4569, 8
  %v4633 = vpop.permute.xlu0 %4632
  %4634 = vrot.lane.b32.xlu0 %v4571, 8
  %v4635 = vpop.permute.xlu0 %4634
  %4670 = vrot.lane.b32.xlu0 %v4217, 12
  %v4671 = vpop.permute.xlu0 %4670
  %4672 = vrot.lane.b32.xlu0 %v4218, 12
  %v4673 = vpop.permute.xlu0 %4672
  %4674 = vrot.lane.b32.xlu0 %v4220, 12
  %v4675 = vpop.permute.xlu0 %4674
  %4676 = vrot.lane.b32.xlu0 %v4221, 12
  %v4677 = vpop.permute.xlu0 %4676
  %4678 = vrot.lane.b32.xlu0 %v4223, 12
  %v4679 = vpop.permute.xlu0 %4678
  %4680 = vrot.lane.b32.xlu0 %v4224, 12
  %v4681 = vpop.permute.xlu0 %4680
  %4682 = vrot.lane.b32.xlu0 %v4226, 12
  %v4683 = vpop.permute.xlu0 %4682
  %4684 = vrot.lane.b32.xlu0 %v4227, 12
  %v4685 = vpop.permute.xlu0 %4684
  %4686 = vrot.lane.b32.xlu0 %v4229, 12
  %v4687 = vpop.permute.xlu0 %4686
  %4688 = vrot.lane.b32.xlu0 %v4230, 12
  %v4689 = vpop.permute.xlu0 %4688
  %4690 = vrot.lane.b32.xlu0 %v4232, 12
  %v4691 = vpop.permute.xlu0 %4690
  %4692 = vrot.lane.b32.xlu0 %v4233, 12
  %v4693 = vpop.permute.xlu0 %4692
  %4694 = vrot.lane.b32.xlu0 %v4235, 12
  %v4695 = vpop.permute.xlu0 %4694
  %4696 = vrot.lane.b32.xlu0 %v4236, 12
  %v4697 = vpop.permute.xlu0 %4696
  %4698 = vrot.lane.b32.xlu0 %v4238, 12
  %v4699 = vpop.permute.xlu0 %4698
  %4700 = vrot.lane.b32.xlu0 %v4239, 12
  %v4701 = vpop.permute.xlu0 %4700
  %4702 = vrot.lane.b32.xlu0 %v4241, 12
  %v4703 = vpop.permute.xlu0 %4702
  %4704 = vrot.lane.b32.xlu0 %v4242, 12
  %v4705 = vpop.permute.xlu0 %4704
  %4706 = vrot.lane.b32.xlu0 %v4244, 12
  %v4707 = vpop.permute.xlu0 %4706
  %4708 = vrot.lane.b32.xlu0 %v4245, 12
  %v4709 = vpop.permute.xlu0 %4708
  %4710 = vrot.lane.b32.xlu0 %v4247, 12
  %v4711 = vpop.permute.xlu0 %4710
  %4712 = vrot.lane.b32.xlu0 %v4248, 12
  %v4713 = vpop.permute.xlu0 %4712
  %4714 = vrot.lane.b32.xlu0 %v4250, 12
  %v4715 = vpop.permute.xlu0 %4714
  %4716 = vrot.lane.b32.xlu0 %v4251, 12
  %v4717 = vpop.permute.xlu0 %4716
  %4718 = vrot.lane.b32.xlu0 %v4253, 12
  %v4719 = vpop.permute.xlu0 %4718
  %4720 = vrot.lane.b32.xlu0 %v4254, 12
  %v4721 = vpop.permute.xlu0 %4720
  %4722 = vrot.lane.b32.xlu0 %v4256, 12
  %v4723 = vpop.permute.xlu0 %4722
  %4724 = vrot.lane.b32.xlu0 %v4257, 12
  %v4725 = vpop.permute.xlu0 %4724
  %4726 = vrot.lane.b32.xlu0 %v4259, 12
  %v4727 = vpop.permute.xlu0 %4726
  %4728 = vrot.lane.b32.xlu0 %v4260, 12
  %v4729 = vpop.permute.xlu0 %4728
  %4730 = vrot.lane.b32.xlu0 %v4262, 12
  %v4731 = vpop.permute.xlu0 %4730
  %4732 = vrot.lane.b32.xlu0 %v4263, 12
  %v4733 = vpop.permute.xlu0 %4732
  %v4767 = vrot.slane %v4262, 1
  %v4768 = vrot.slane %v4263, 1
  %v4769 = vsel %vm346, %v4767, %v4768
  %v4770 = vrot.slane %v4264, 1
  %v4771 = vsel %vm346, %v4768, %v4770
  %4772 = vrot.lane.b32.xlu0 %v4323, 16
  %v4773 = vpop.permute.xlu0 %4772
  %4774 = vrot.lane.b32.xlu0 %v4325, 16
  %v4775 = vpop.permute.xlu0 %4774
  %4776 = vrot.lane.b32.xlu0 %v4328, 16
  %v4777 = vpop.permute.xlu0 %4776
  %4778 = vrot.lane.b32.xlu0 %v4330, 16
  %v4779 = vpop.permute.xlu0 %4778
  %4780 = vrot.lane.b32.xlu0 %v4333, 16
  %v4781 = vpop.permute.xlu0 %4780
  %4782 = vrot.lane.b32.xlu0 %v4335, 16
  %v4783 = vpop.permute.xlu0 %4782
  %4784 = vrot.lane.b32.xlu0 %v4338, 16
  %v4785 = vpop.permute.xlu0 %4784
  %4786 = vrot.lane.b32.xlu0 %v4340, 16
  %v4787 = vpop.permute.xlu0 %4786
  %4788 = vrot.lane.b32.xlu0 %v4343, 16
  %v4789 = vpop.permute.xlu0 %4788
  %4790 = vrot.lane.b32.xlu0 %v4345, 16
  %v4791 = vpop.permute.xlu0 %4790
  %4792 = vrot.lane.b32.xlu0 %v4348, 16
  %v4793 = vpop.permute.xlu0 %4792
  %4794 = vrot.lane.b32.xlu0 %v4350, 16
  %v4795 = vpop.permute.xlu0 %4794
  %4796 = vrot.lane.b32.xlu0 %v4353, 16
  %v4797 = vpop.permute.xlu0 %4796
  %4798 = vrot.lane.b32.xlu0 %v4355, 16
  %v4799 = vpop.permute.xlu0 %4798
  %4800 = vrot.lane.b32.xlu0 %v4358, 16
  %v4801 = vpop.permute.xlu0 %4800
  %4802 = vrot.lane.b32.xlu0 %v4360, 16
  %v4803 = vpop.permute.xlu0 %4802
  %4804 = vrot.lane.b32.xlu0 %v4363, 16
  %v4805 = vpop.permute.xlu0 %4804
  %4806 = vrot.lane.b32.xlu0 %v4365, 16
  %v4807 = vpop.permute.xlu0 %4806
  %4808 = vrot.lane.b32.xlu0 %v4368, 16
  %v4809 = vpop.permute.xlu0 %4808
  %4810 = vrot.lane.b32.xlu0 %v4370, 16
  %v4811 = vpop.permute.xlu0 %4810
  %4812 = vrot.lane.b32.xlu0 %v4373, 16
  %v4813 = vpop.permute.xlu0 %4812
  %4814 = vrot.lane.b32.xlu0 %v4375, 16
  %v4815 = vpop.permute.xlu0 %4814
  %4816 = vrot.lane.b32.xlu0 %v4378, 16
  %v4817 = vpop.permute.xlu0 %4816
  %4818 = vrot.lane.b32.xlu0 %v4380, 16
  %v4819 = vpop.permute.xlu0 %4818
  %4820 = vrot.lane.b32.xlu0 %v4383, 16
  %v4821 = vpop.permute.xlu0 %4820
  %4822 = vrot.lane.b32.xlu0 %v4385, 16
  %v4823 = vpop.permute.xlu0 %4822
  %4824 = vrot.lane.b32.xlu0 %v4388, 16
  %v4825 = vpop.permute.xlu0 %4824
  %4826 = vrot.lane.b32.xlu0 %v4390, 16
  %v4827 = vpop.permute.xlu0 %4826
  %4828 = vrot.lane.b32.xlu0 %v4393, 16
  %v4829 = vpop.permute.xlu0 %4828
  %4830 = vrot.lane.b32.xlu0 %v4395, 16
  %v4831 = vpop.permute.xlu0 %4830
  %4832 = vrot.lane.b32.xlu0 %v4769, 16
  %v4833 = vpop.permute.xlu0 %4832
  %4834 = vrot.lane.b32.xlu0 %v4771, 16
  %v4835 = vpop.permute.xlu0 %4834
  %v4868 = vrot.slane %v4262, 2
  %v4869 = vrot.slane %v4263, 2
  %v4870 = vsel %vm523, %v4868, %v4869
  %v4871 = vrot.slane %v4264, 2
  %v4872 = vsel %vm523, %v4869, %v4871
  %4873 = vrot.lane.b32.xlu0 %v4499, 20
  %v4874 = vpop.permute.xlu0 %4873
  %4875 = vrot.lane.b32.xlu0 %v4501, 20
  %v4876 = vpop.permute.xlu0 %4875
  %4877 = vrot.lane.b32.xlu0 %v4504, 20
  %v4878 = vpop.permute.xlu0 %4877
  %4879 = vrot.lane.b32.xlu0 %v4506, 20
  %v4880 = vpop.permute.xlu0 %4879
  %4881 = vrot.lane.b32.xlu0 %v4509, 20
  %v4882 = vpop.permute.xlu0 %4881
  %4883 = vrot.lane.b32.xlu0 %v4511, 20
  %v4884 = vpop.permute.xlu0 %4883
  %4885 = vrot.lane.b32.xlu0 %v4514, 20
  %v4886 = vpop.permute.xlu0 %4885
  %4887 = vrot.lane.b32.xlu0 %v4516, 20
  %v4888 = vpop.permute.xlu0 %4887
  %4889 = vrot.lane.b32.xlu0 %v4519, 20
  %v4890 = vpop.permute.xlu0 %4889
  %4891 = vrot.lane.b32.xlu0 %v4521, 20
  %v4892 = vpop.permute.xlu0 %4891
  %4893 = vrot.lane.b32.xlu0 %v4524, 20
  %v4894 = vpop.permute.xlu0 %4893
  %4895 = vrot.lane.b32.xlu0 %v4526, 20
  %v4896 = vpop.permute.xlu0 %4895
  %4897 = vrot.lane.b32.xlu0 %v4529, 20
  %v4898 = vpop.permute.xlu0 %4897
  %4899 = vrot.lane.b32.xlu0 %v4531, 20
  %v4900 = vpop.permute.xlu0 %4899
  %4901 = vrot.lane.b32.xlu0 %v4534, 20
  %v4902 = vpop.permute.xlu0 %4901
  %4903 = vrot.lane.b32.xlu0 %v4536, 20
  %v4904 = vpop.permute.xlu0 %4903
  %4905 = vrot.lane.b32.xlu0 %v4539, 20
  %v4906 = vpop.permute.xlu0 %4905
  %4907 = vrot.lane.b32.xlu0 %v4541, 20
  %v4908 = vpop.permute.xlu0 %4907
  %4909 = vrot.lane.b32.xlu0 %v4544, 20
  %v4910 = vpop.permute.xlu0 %4909
  %4911 = vrot.lane.b32.xlu0 %v4546, 20
  %v4912 = vpop.permute.xlu0 %4911
  %4913 = vrot.lane.b32.xlu0 %v4549, 20
  %v4914 = vpop.permute.xlu0 %4913
  %4915 = vrot.lane.b32.xlu0 %v4551, 20
  %v4916 = vpop.permute.xlu0 %4915
  %4917 = vrot.lane.b32.xlu0 %v4554, 20
  %v4918 = vpop.permute.xlu0 %4917
  %4919 = vrot.lane.b32.xlu0 %v4556, 20
  %v4920 = vpop.permute.xlu0 %4919
  %4921 = vrot.lane.b32.xlu0 %v4559, 20
  %v4922 = vpop.permute.xlu0 %4921
  %4923 = vrot.lane.b32.xlu0 %v4561, 20
  %v4924 = vpop.permute.xlu0 %4923
  %4925 = vrot.lane.b32.xlu0 %v4564, 20
  %v4926 = vpop.permute.xlu0 %4925
  %4927 = vrot.lane.b32.xlu0 %v4566, 20
  %v4928 = vpop.permute.xlu0 %4927
  %4929 = vrot.lane.b32.xlu0 %v4569, 20
  %v4930 = vpop.permute.xlu0 %4929
  %4931 = vrot.lane.b32.xlu0 %v4571, 20
  %v4932 = vpop.permute.xlu0 %4931
  %4933 = vrot.lane.b32.xlu0 %v4870, 20
  %v4934 = vpop.permute.xlu0 %4933
  %4935 = vrot.lane.b32.xlu0 %v4872, 20
  %v4936 = vpop.permute.xlu0 %4935
  %4971 = vrot.lane.b32.xlu0 %v4220, 24
  %v4972 = vpop.permute.xlu0 %4971
  %4973 = vrot.lane.b32.xlu0 %v4221, 24
  %v4974 = vpop.permute.xlu0 %4973
  %4975 = vrot.lane.b32.xlu0 %v4223, 24
  %v4976 = vpop.permute.xlu0 %4975
  %4977 = vrot.lane.b32.xlu0 %v4224, 24
  %v4978 = vpop.permute.xlu0 %4977
  %4979 = vrot.lane.b32.xlu0 %v4226, 24
  %v4980 = vpop.permute.xlu0 %4979
  %4981 = vrot.lane.b32.xlu0 %v4227, 24
  %v4982 = vpop.permute.xlu0 %4981
  %4983 = vrot.lane.b32.xlu0 %v4229, 24
  %v4984 = vpop.permute.xlu0 %4983
  %4985 = vrot.lane.b32.xlu0 %v4230, 24
  %v4986 = vpop.permute.xlu0 %4985
  %4987 = vrot.lane.b32.xlu0 %v4232, 24
  %v4988 = vpop.permute.xlu0 %4987
  %4989 = vrot.lane.b32.xlu0 %v4233, 24
  %v4990 = vpop.permute.xlu0 %4989
  %4991 = vrot.lane.b32.xlu0 %v4235, 24
  %v4992 = vpop.permute.xlu0 %4991
  %4993 = vrot.lane.b32.xlu0 %v4236, 24
  %v4994 = vpop.permute.xlu0 %4993
  %4995 = vrot.lane.b32.xlu0 %v4238, 24
  %v4996 = vpop.permute.xlu0 %4995
  %4997 = vrot.lane.b32.xlu0 %v4239, 24
  %v4998 = vpop.permute.xlu0 %4997
  %4999 = vrot.lane.b32.xlu0 %v4241, 24
  %v5000 = vpop.permute.xlu0 %4999
  %5001 = vrot.lane.b32.xlu0 %v4242, 24
  %v5002 = vpop.permute.xlu0 %5001
  %5003 = vrot.lane.b32.xlu0 %v4244, 24
  %v5004 = vpop.permute.xlu0 %5003
  %5005 = vrot.lane.b32.xlu0 %v4245, 24
  %v5006 = vpop.permute.xlu0 %5005
  %5007 = vrot.lane.b32.xlu0 %v4247, 24
  %v5008 = vpop.permute.xlu0 %5007
  %5009 = vrot.lane.b32.xlu0 %v4248, 24
  %v5010 = vpop.permute.xlu0 %5009
  %5011 = vrot.lane.b32.xlu0 %v4250, 24
  %v5012 = vpop.permute.xlu0 %5011
  %5013 = vrot.lane.b32.xlu0 %v4251, 24
  %v5014 = vpop.permute.xlu0 %5013
  %5015 = vrot.lane.b32.xlu0 %v4253, 24
  %v5016 = vpop.permute.xlu0 %5015
  %5017 = vrot.lane.b32.xlu0 %v4254, 24
  %v5018 = vpop.permute.xlu0 %5017
  %5019 = vrot.lane.b32.xlu0 %v4256, 24
  %v5020 = vpop.permute.xlu0 %5019
  %5021 = vrot.lane.b32.xlu0 %v4257, 24
  %v5022 = vpop.permute.xlu0 %5021
  %5023 = vrot.lane.b32.xlu0 %v4259, 24
  %v5024 = vpop.permute.xlu0 %5023
  %5025 = vrot.lane.b32.xlu0 %v4260, 24
  %v5026 = vpop.permute.xlu0 %5025
  %5027 = vrot.lane.b32.xlu0 %v4262, 24
  %v5028 = vpop.permute.xlu0 %5027
  %5029 = vrot.lane.b32.xlu0 %v4263, 24
  %v5030 = vpop.permute.xlu0 %5029
  %5031 = vrot.lane.b32.xlu0 %v4265, 24
  %v5032 = vpop.permute.xlu0 %5031
  %5033 = vrot.lane.b32.xlu0 %v4266, 24
  %v5034 = vpop.permute.xlu0 %5033
  %v5068 = vrot.slane %v4265, 1
  %v5069 = vrot.slane %v4266, 1
  %v5070 = vsel %vm346, %v5068, %v5069
  %v5071 = vrot.slane %v4267, 1
  %v5072 = vsel %vm346, %v5069, %v5071
  %5073 = vrot.lane.b32.xlu0 %v4328, 28
  %v5074 = vpop.permute.xlu0 %5073
  %5075 = vrot.lane.b32.xlu0 %v4330, 28
  %v5076 = vpop.permute.xlu0 %5075
  %5077 = vrot.lane.b32.xlu0 %v4333, 28
  %v5078 = vpop.permute.xlu0 %5077
  %5079 = vrot.lane.b32.xlu0 %v4335, 28
  %v5080 = vpop.permute.xlu0 %5079
  %5081 = vrot.lane.b32.xlu0 %v4338, 28
  %v5082 = vpop.permute.xlu0 %5081
  %5083 = vrot.lane.b32.xlu0 %v4340, 28
  %v5084 = vpop.permute.xlu0 %5083
  %5085 = vrot.lane.b32.xlu0 %v4343, 28
  %v5086 = vpop.permute.xlu0 %5085
  %5087 = vrot.lane.b32.xlu0 %v4345, 28
  %v5088 = vpop.permute.xlu0 %5087
  %5089 = vrot.lane.b32.xlu0 %v4348, 28
  %v5090 = vpop.permute.xlu0 %5089
  %5091 = vrot.lane.b32.xlu0 %v4350, 28
  %v5092 = vpop.permute.xlu0 %5091
  %5093 = vrot.lane.b32.xlu0 %v4353, 28
  %v5094 = vpop.permute.xlu0 %5093
  %5095 = vrot.lane.b32.xlu0 %v4355, 28
  %v5096 = vpop.permute.xlu0 %5095
  %5097 = vrot.lane.b32.xlu0 %v4358, 28
  %v5098 = vpop.permute.xlu0 %5097
  %5099 = vrot.lane.b32.xlu0 %v4360, 28
  %v5100 = vpop.permute.xlu0 %5099
  %5101 = vrot.lane.b32.xlu0 %v4363, 28
  %v5102 = vpop.permute.xlu0 %5101
  %5103 = vrot.lane.b32.xlu0 %v4365, 28
  %v5104 = vpop.permute.xlu0 %5103
  %5105 = vrot.lane.b32.xlu0 %v4368, 28
  %v5106 = vpop.permute.xlu0 %5105
  %5107 = vrot.lane.b32.xlu0 %v4370, 28
  %v5108 = vpop.permute.xlu0 %5107
  %5109 = vrot.lane.b32.xlu0 %v4373, 28
  %v5110 = vpop.permute.xlu0 %5109
  %5111 = vrot.lane.b32.xlu0 %v4375, 28
  %v5112 = vpop.permute.xlu0 %5111
  %5113 = vrot.lane.b32.xlu0 %v4378, 28
  %v5114 = vpop.permute.xlu0 %5113
  %5115 = vrot.lane.b32.xlu0 %v4380, 28
  %v5116 = vpop.permute.xlu0 %5115
  %5117 = vrot.lane.b32.xlu0 %v4383, 28
  %v5118 = vpop.permute.xlu0 %5117
  %5119 = vrot.lane.b32.xlu0 %v4385, 28
  %v5120 = vpop.permute.xlu0 %5119
  %5121 = vrot.lane.b32.xlu0 %v4388, 28
  %v5122 = vpop.permute.xlu0 %5121
  %5123 = vrot.lane.b32.xlu0 %v4390, 28
  %v5124 = vpop.permute.xlu0 %5123
  %5125 = vrot.lane.b32.xlu0 %v4393, 28
  %v5126 = vpop.permute.xlu0 %5125
  %5127 = vrot.lane.b32.xlu0 %v4395, 28
  %v5128 = vpop.permute.xlu0 %5127
  %5129 = vrot.lane.b32.xlu0 %v4769, 28
  %v5130 = vpop.permute.xlu0 %5129
  %5131 = vrot.lane.b32.xlu0 %v4771, 28
  %v5132 = vpop.permute.xlu0 %5131
  %5133 = vrot.lane.b32.xlu0 %v5070, 28
  %v5134 = vpop.permute.xlu0 %5133
  %5135 = vrot.lane.b32.xlu0 %v5072, 28
  %v5136 = vpop.permute.xlu0 %5135
  %v5169 = vrot.slane %v4265, 2
  %v5170 = vrot.slane %v4266, 2
  %v5171 = vsel %vm523, %v5169, %v5170
  %v5172 = vrot.slane %v4267, 2
  %v5173 = vsel %vm523, %v5170, %v5172
  %5174 = vrot.lane.b32.xlu0 %v4504, 32
  %v5175 = vpop.permute.xlu0 %5174
  %5176 = vrot.lane.b32.xlu0 %v4506, 32
  %v5177 = vpop.permute.xlu0 %5176
  %5178 = vrot.lane.b32.xlu0 %v4509, 32
  %v5179 = vpop.permute.xlu0 %5178
  %5180 = vrot.lane.b32.xlu0 %v4511, 32
  %v5181 = vpop.permute.xlu0 %5180
  %5182 = vrot.lane.b32.xlu0 %v4514, 32
  %v5183 = vpop.permute.xlu0 %5182
  %5184 = vrot.lane.b32.xlu0 %v4516, 32
  %v5185 = vpop.permute.xlu0 %5184
  %5186 = vrot.lane.b32.xlu0 %v4519, 32
  %v5187 = vpop.permute.xlu0 %5186
  %5188 = vrot.lane.b32.xlu0 %v4521, 32
  %v5189 = vpop.permute.xlu0 %5188
  %5190 = vrot.lane.b32.xlu0 %v4524, 32
  %v5191 = vpop.permute.xlu0 %5190
  %5192 = vrot.lane.b32.xlu0 %v4526, 32
  %v5193 = vpop.permute.xlu0 %5192
  %5194 = vrot.lane.b32.xlu0 %v4529, 32
  %v5195 = vpop.permute.xlu0 %5194
  %5196 = vrot.lane.b32.xlu0 %v4531, 32
  %v5197 = vpop.permute.xlu0 %5196
  %5198 = vrot.lane.b32.xlu0 %v4534, 32
  %v5199 = vpop.permute.xlu0 %5198
  %5200 = vrot.lane.b32.xlu0 %v4536, 32
  %v5201 = vpop.permute.xlu0 %5200
  %5202 = vrot.lane.b32.xlu0 %v4539, 32
  %v5203 = vpop.permute.xlu0 %5202
  %5204 = vrot.lane.b32.xlu0 %v4541, 32
  %v5205 = vpop.permute.xlu0 %5204
  %5206 = vrot.lane.b32.xlu0 %v4544, 32
  %v5207 = vpop.permute.xlu0 %5206
  %5208 = vrot.lane.b32.xlu0 %v4546, 32
  %v5209 = vpop.permute.xlu0 %5208
  %5210 = vrot.lane.b32.xlu0 %v4549, 32
  %v5211 = vpop.permute.xlu0 %5210
  %5212 = vrot.lane.b32.xlu0 %v4551, 32
  %v5213 = vpop.permute.xlu0 %5212
  %5214 = vrot.lane.b32.xlu0 %v4554, 32
  %v5215 = vpop.permute.xlu0 %5214
  %5216 = vrot.lane.b32.xlu0 %v4556, 32
  %v5217 = vpop.permute.xlu0 %5216
  %5218 = vrot.lane.b32.xlu0 %v4559, 32
  %v5219 = vpop.permute.xlu0 %5218
  %5220 = vrot.lane.b32.xlu0 %v4561, 32
  %v5221 = vpop.permute.xlu0 %5220
  %5222 = vrot.lane.b32.xlu0 %v4564, 32
  %v5223 = vpop.permute.xlu0 %5222
  %5224 = vrot.lane.b32.xlu0 %v4566, 32
  %v5225 = vpop.permute.xlu0 %5224
  %5226 = vrot.lane.b32.xlu0 %v4569, 32
  %v5227 = vpop.permute.xlu0 %5226
  %5228 = vrot.lane.b32.xlu0 %v4571, 32
  %v5229 = vpop.permute.xlu0 %5228
  %5230 = vrot.lane.b32.xlu0 %v4870, 32
  %v5231 = vpop.permute.xlu0 %5230
  %5232 = vrot.lane.b32.xlu0 %v4872, 32
  %v5233 = vpop.permute.xlu0 %5232
  %5234 = vrot.lane.b32.xlu0 %v5171, 32
  %v5235 = vpop.permute.xlu0 %5234
  %5236 = vrot.lane.b32.xlu0 %v5173, 32
  %v5237 = vpop.permute.xlu0 %5236
  %v5270 = vsel %vm27, %v4214, %v4397
  %v5271 = vsel %vm27, %v4215, %v4399
  %v5272 = vsel %vm27, %v4217, %v4401
  %v5273 = vsel %vm27, %v4218, %v4403
  %v5274 = vsel %vm27, %v4220, %v4405
  %v5275 = vsel %vm27, %v4221, %v4407
  %v5276 = vsel %vm27, %v4223, %v4409
  %v5277 = vsel %vm27, %v4224, %v4411
  %v5278 = vsel %vm27, %v4226, %v4413
  %v5279 = vsel %vm27, %v4227, %v4415
  %v5280 = vsel %vm27, %v4229, %v4417
  %v5281 = vsel %vm27, %v4230, %v4419
  %v5282 = vsel %vm27, %v4232, %v4421
  %v5283 = vsel %vm27, %v4233, %v4423
  %v5284 = vsel %vm27, %v4235, %v4425
  %v5285 = vsel %vm27, %v4236, %v4427
  %v5286 = vsel %vm27, %v4238, %v4429
  %v5287 = vsel %vm27, %v4239, %v4431
  %v5288 = vsel %vm27, %v4241, %v4433
  %v5289 = vsel %vm27, %v4242, %v4435
  %v5290 = vsel %vm27, %v4244, %v4437
  %v5291 = vsel %vm27, %v4245, %v4439
  %v5292 = vsel %vm27, %v4247, %v4441
  %v5293 = vsel %vm27, %v4248, %v4443
  %v5294 = vsel %vm27, %v4250, %v4445
  %v5295 = vsel %vm27, %v4251, %v4447
  %v5296 = vsel %vm27, %v4253, %v4449
  %v5297 = vsel %vm27, %v4254, %v4451
  %v5298 = vsel %vm27, %v4256, %v4453
  %v5299 = vsel %vm27, %v4257, %v4455
  %v5300 = vsel %vm27, %v4259, %v4457
  %v5301 = vsel %vm27, %v4260, %v4459
  %v5302 = vsel %vm1334, %v5270, %v4573
  %v5303 = vsel %vm1334, %v5271, %v4575
  %v5304 = vsel %vm1334, %v5272, %v4577
  %v5305 = vsel %vm1334, %v5273, %v4579
  %v5306 = vsel %vm1334, %v5274, %v4581
  %v5307 = vsel %vm1334, %v5275, %v4583
  %v5308 = vsel %vm1334, %v5276, %v4585
  %v5309 = vsel %vm1334, %v5277, %v4587
  %v5310 = vsel %vm1334, %v5278, %v4589
  %v5311 = vsel %vm1334, %v5279, %v4591
  %v5312 = vsel %vm1334, %v5280, %v4593
  %v5313 = vsel %vm1334, %v5281, %v4595
  %v5314 = vsel %vm1334, %v5282, %v4597
  %v5315 = vsel %vm1334, %v5283, %v4599
  %v5316 = vsel %vm1334, %v5284, %v4601
  %v5317 = vsel %vm1334, %v5285, %v4603
  %v5318 = vsel %vm1334, %v5286, %v4605
  %v5319 = vsel %vm1334, %v5287, %v4607
  %v5320 = vsel %vm1334, %v5288, %v4609
  %v5321 = vsel %vm1334, %v5289, %v4611
  %v5322 = vsel %vm1334, %v5290, %v4613
  %v5323 = vsel %vm1334, %v5291, %v4615
  %v5324 = vsel %vm1334, %v5292, %v4617
  %v5325 = vsel %vm1334, %v5293, %v4619
  %v5326 = vsel %vm1334, %v5294, %v4621
  %v5327 = vsel %vm1334, %v5295, %v4623
  %v5328 = vsel %vm1334, %v5296, %v4625
  %v5329 = vsel %vm1334, %v5297, %v4627
  %v5330 = vsel %vm1334, %v5298, %v4629
  %v5331 = vsel %vm1334, %v5299, %v4631
  %v5332 = vsel %vm1334, %v5300, %v4633
  %v5333 = vsel %vm1334, %v5301, %v4635
  %v5334 = vsel %vm1367, %v5302, %v4671
  %v5335 = vsel %vm1367, %v5303, %v4673
  %v5336 = vsel %vm1367, %v5304, %v4675
  %v5337 = vsel %vm1367, %v5305, %v4677
  %v5338 = vsel %vm1367, %v5306, %v4679
  %v5339 = vsel %vm1367, %v5307, %v4681
  %v5340 = vsel %vm1367, %v5308, %v4683
  %v5341 = vsel %vm1367, %v5309, %v4685
  %v5342 = vsel %vm1367, %v5310, %v4687
  %v5343 = vsel %vm1367, %v5311, %v4689
  %v5344 = vsel %vm1367, %v5312, %v4691
  %v5345 = vsel %vm1367, %v5313, %v4693
  %v5346 = vsel %vm1367, %v5314, %v4695
  %v5347 = vsel %vm1367, %v5315, %v4697
  %v5348 = vsel %vm1367, %v5316, %v4699
  %v5349 = vsel %vm1367, %v5317, %v4701
  %v5350 = vsel %vm1367, %v5318, %v4703
  %v5351 = vsel %vm1367, %v5319, %v4705
  %v5352 = vsel %vm1367, %v5320, %v4707
  %v5353 = vsel %vm1367, %v5321, %v4709
  %v5354 = vsel %vm1367, %v5322, %v4711
  %v5355 = vsel %vm1367, %v5323, %v4713
  %v5356 = vsel %vm1367, %v5324, %v4715
  %v5357 = vsel %vm1367, %v5325, %v4717
  %v5358 = vsel %vm1367, %v5326, %v4719
  %v5359 = vsel %vm1367, %v5327, %v4721
  %v5360 = vsel %vm1367, %v5328, %v4723
  %v5361 = vsel %vm1367, %v5329, %v4725
  %v5362 = vsel %vm1367, %v5330, %v4727
  %v5363 = vsel %vm1367, %v5331, %v4729
  %v5364 = vsel %vm1367, %v5332, %v4731
  %v5365 = vsel %vm1367, %v5333, %v4733
  %v5366 = vsel %vm1400, %v5334, %v4773
  %v5367 = vsel %vm1400, %v5335, %v4775
  %v5368 = vsel %vm1400, %v5336, %v4777
  %v5369 = vsel %vm1400, %v5337, %v4779
  %v5370 = vsel %vm1400, %v5338, %v4781
  %v5371 = vsel %vm1400, %v5339, %v4783
  %v5372 = vsel %vm1400, %v5340, %v4785
  %v5373 = vsel %vm1400, %v5341, %v4787
  %v5374 = vsel %vm1400, %v5342, %v4789
  %v5375 = vsel %vm1400, %v5343, %v4791
  %v5376 = vsel %vm1400, %v5344, %v4793
  %v5377 = vsel %vm1400, %v5345, %v4795
  %v5378 = vsel %vm1400, %v5346, %v4797
  %v5379 = vsel %vm1400, %v5347, %v4799
  %v5380 = vsel %vm1400, %v5348, %v4801
  %v5381 = vsel %vm1400, %v5349, %v4803
  %v5382 = vsel %vm1400, %v5350, %v4805
  %v5383 = vsel %vm1400, %v5351, %v4807
  %v5384 = vsel %vm1400, %v5352, %v4809
  %v5385 = vsel %vm1400, %v5353, %v4811
  %v5386 = vsel %vm1400, %v5354, %v4813
  %v5387 = vsel %vm1400, %v5355, %v4815
  %v5388 = vsel %vm1400, %v5356, %v4817
  %v5389 = vsel %vm1400, %v5357, %v4819
  %v5390 = vsel %vm1400, %v5358, %v4821
  %v5391 = vsel %vm1400, %v5359, %v4823
  %v5392 = vsel %vm1400, %v5360, %v4825
  %v5393 = vsel %vm1400, %v5361, %v4827
  %v5394 = vsel %vm1400, %v5362, %v4829
  %v5395 = vsel %vm1400, %v5363, %v4831
  %v5396 = vsel %vm1400, %v5364, %v4833
  %v5397 = vsel %vm1400, %v5365, %v4835
  %v5398 = vsel %vm1433, %v5366, %v4874
  %v5399 = vsel %vm1433, %v5367, %v4876
  %v5400 = vsel %vm1433, %v5368, %v4878
  %v5401 = vsel %vm1433, %v5369, %v4880
  %v5402 = vsel %vm1433, %v5370, %v4882
  %v5403 = vsel %vm1433, %v5371, %v4884
  %v5404 = vsel %vm1433, %v5372, %v4886
  %v5405 = vsel %vm1433, %v5373, %v4888
  %v5406 = vsel %vm1433, %v5374, %v4890
  %v5407 = vsel %vm1433, %v5375, %v4892
  %v5408 = vsel %vm1433, %v5376, %v4894
  %v5409 = vsel %vm1433, %v5377, %v4896
  %v5410 = vsel %vm1433, %v5378, %v4898
  %v5411 = vsel %vm1433, %v5379, %v4900
  %v5412 = vsel %vm1433, %v5380, %v4902
  %v5413 = vsel %vm1433, %v5381, %v4904
  %v5414 = vsel %vm1433, %v5382, %v4906
  %v5415 = vsel %vm1433, %v5383, %v4908
  %v5416 = vsel %vm1433, %v5384, %v4910
  %v5417 = vsel %vm1433, %v5385, %v4912
  %v5418 = vsel %vm1433, %v5386, %v4914
  %v5419 = vsel %vm1433, %v5387, %v4916
  %v5420 = vsel %vm1433, %v5388, %v4918
  %v5421 = vsel %vm1433, %v5389, %v4920
  %v5422 = vsel %vm1433, %v5390, %v4922
  %v5423 = vsel %vm1433, %v5391, %v4924
  %v5424 = vsel %vm1433, %v5392, %v4926
  %v5425 = vsel %vm1433, %v5393, %v4928
  %v5426 = vsel %vm1433, %v5394, %v4930
  %v5427 = vsel %vm1433, %v5395, %v4932
  %v5428 = vsel %vm1433, %v5396, %v4934
  %v5429 = vsel %vm1433, %v5397, %v4936
  %v5430 = vsel %vm1466, %v5398, %v4972
  %v5431 = vsel %vm1466, %v5399, %v4974
  %v5432 = vsel %vm1466, %v5400, %v4976
  %v5433 = vsel %vm1466, %v5401, %v4978
  %v5434 = vsel %vm1466, %v5402, %v4980
  %v5435 = vsel %vm1466, %v5403, %v4982
  %v5436 = vsel %vm1466, %v5404, %v4984
  %v5437 = vsel %vm1466, %v5405, %v4986
  %v5438 = vsel %vm1466, %v5406, %v4988
  %v5439 = vsel %vm1466, %v5407, %v4990
  %v5440 = vsel %vm1466, %v5408, %v4992
  %v5441 = vsel %vm1466, %v5409, %v4994
  %v5442 = vsel %vm1466, %v5410, %v4996
  %v5443 = vsel %vm1466, %v5411, %v4998
  %v5444 = vsel %vm1466, %v5412, %v5000
  %v5445 = vsel %vm1466, %v5413, %v5002
  %v5446 = vsel %vm1466, %v5414, %v5004
  %v5447 = vsel %vm1466, %v5415, %v5006
  %v5448 = vsel %vm1466, %v5416, %v5008
  %v5449 = vsel %vm1466, %v5417, %v5010
  %v5450 = vsel %vm1466, %v5418, %v5012
  %v5451 = vsel %vm1466, %v5419, %v5014
  %v5452 = vsel %vm1466, %v5420, %v5016
  %v5453 = vsel %vm1466, %v5421, %v5018
  %v5454 = vsel %vm1466, %v5422, %v5020
  %v5455 = vsel %vm1466, %v5423, %v5022
  %v5456 = vsel %vm1466, %v5424, %v5024
  %v5457 = vsel %vm1466, %v5425, %v5026
  %v5458 = vsel %vm1466, %v5426, %v5028
  %v5459 = vsel %vm1466, %v5427, %v5030
  %v5460 = vsel %vm1466, %v5428, %v5032
  %v5461 = vsel %vm1466, %v5429, %v5034
  %v5462 = vsel %vm1499, %v5430, %v5074
  %v5463 = vsel %vm1499, %v5431, %v5076
  %v5464 = vsel %vm1499, %v5432, %v5078
  %v5465 = vsel %vm1499, %v5433, %v5080
  %v5466 = vsel %vm1499, %v5434, %v5082
  %v5467 = vsel %vm1499, %v5435, %v5084
  %v5468 = vsel %vm1499, %v5436, %v5086
  %v5469 = vsel %vm1499, %v5437, %v5088
  %v5470 = vsel %vm1499, %v5438, %v5090
  %v5471 = vsel %vm1499, %v5439, %v5092
  %v5472 = vsel %vm1499, %v5440, %v5094
  %v5473 = vsel %vm1499, %v5441, %v5096
  %v5474 = vsel %vm1499, %v5442, %v5098
  %v5475 = vsel %vm1499, %v5443, %v5100
  %v5476 = vsel %vm1499, %v5444, %v5102
  %v5477 = vsel %vm1499, %v5445, %v5104
  %v5478 = vsel %vm1499, %v5446, %v5106
  %v5479 = vsel %vm1499, %v5447, %v5108
  %v5480 = vsel %vm1499, %v5448, %v5110
  %v5481 = vsel %vm1499, %v5449, %v5112
  %v5482 = vsel %vm1499, %v5450, %v5114
  %v5483 = vsel %vm1499, %v5451, %v5116
  %v5484 = vsel %vm1499, %v5452, %v5118
  %v5485 = vsel %vm1499, %v5453, %v5120
  %v5486 = vsel %vm1499, %v5454, %v5122
  %v5487 = vsel %vm1499, %v5455, %v5124
  %v5488 = vsel %vm1499, %v5456, %v5126
  %v5489 = vsel %vm1499, %v5457, %v5128
  %v5490 = vsel %vm1499, %v5458, %v5130
  %v5491 = vsel %vm1499, %v5459, %v5132
  %v5492 = vsel %vm1499, %v5460, %v5134
  %v5493 = vsel %vm1499, %v5461, %v5136
  %v5494 = vsel %vm1532, %v5462, %v5175
  %v5495 = vsel %vm1532, %v5463, %v5177
  %v5496 = vsel %vm1532, %v5464, %v5179
  %v5497 = vsel %vm1532, %v5465, %v5181
  %v5498 = vsel %vm1532, %v5466, %v5183
  %v5499 = vsel %vm1532, %v5467, %v5185
  %v5500 = vsel %vm1532, %v5468, %v5187
  %v5501 = vsel %vm1532, %v5469, %v5189
  %v5502 = vsel %vm1532, %v5470, %v5191
  %v5503 = vsel %vm1532, %v5471, %v5193
  %v5504 = vsel %vm1532, %v5472, %v5195
  %v5505 = vsel %vm1532, %v5473, %v5197
  %v5506 = vsel %vm1532, %v5474, %v5199
  %v5507 = vsel %vm1532, %v5475, %v5201
  %v5508 = vsel %vm1532, %v5476, %v5203
  %v5509 = vsel %vm1532, %v5477, %v5205
  %v5510 = vsel %vm1532, %v5478, %v5207
  %v5511 = vsel %vm1532, %v5479, %v5209
  %v5512 = vsel %vm1532, %v5480, %v5211
  %v5513 = vsel %vm1532, %v5481, %v5213
  %v5514 = vsel %vm1532, %v5482, %v5215
  %v5515 = vsel %vm1532, %v5483, %v5217
  %v5516 = vsel %vm1532, %v5484, %v5219
  %v5517 = vsel %vm1532, %v5485, %v5221
  %v5518 = vsel %vm1532, %v5486, %v5223
  %v5519 = vsel %vm1532, %v5487, %v5225
  %v5520 = vsel %vm1532, %v5488, %v5227
  %v5521 = vsel %vm1532, %v5489, %v5229
  %v5522 = vsel %vm1532, %v5490, %v5231
  %v5523 = vsel %vm1532, %v5491, %v5233
  %v5524 = vsel %vm1532, %v5492, %v5235
  %v5525 = vsel %vm1532, %v5493, %v5237
  %v5526 = vpack.c.bf16 %v5495, %v5494
  %v5527 = vpack.c.bf16 %v5497, %v5496
  %v5528 = vpack.c.bf16 %v5499, %v5498
  %v5529 = vpack.c.bf16 %v5501, %v5500
  %v5530 = vpack.c.bf16 %v5503, %v5502
  %v5531 = vpack.c.bf16 %v5505, %v5504
  %v5532 = vpack.c.bf16 %v5507, %v5506
  %v5533 = vpack.c.bf16 %v5509, %v5508
  %v5534 = vpack.c.bf16 %v5511, %v5510
  %v5535 = vpack.c.bf16 %v5513, %v5512
  %v5536 = vpack.c.bf16 %v5515, %v5514
  %v5537 = vpack.c.bf16 %v5517, %v5516
  %v5538 = vpack.c.bf16 %v5519, %v5518
  %v5539 = vpack.c.bf16 %v5521, %v5520
  %v5540 = vpack.c.bf16 %v5523, %v5522
  %v5541 = vpack.c.bf16 %v5525, %v5524
  %v5542 = vld [vmem:[%s4] sm:$0xf]
  %v5543 = vld [vmem:[%s4 + $0x4] sm:$0xf]
  %v5544 = vld [vmem:[%s4 + $0x8] sm:$0xf]
  %v5545 = vld [vmem:[%s4 + $0xc] sm:$0xf]
  %v5546 = vld [vmem:[%s4 + $0x10] sm:$0x3]
  %v5552 = vunpack.c.l.b16 %v5542
  %v5553 = vunpack.c.l.b16 %v5543
  %v5554 = vunpack.c.l.b16 %v5544
  %v5555 = vunpack.c.l.b16 %v5545
  %v5556 = vunpack.c.l.b16 %v5546
  %v5557 = vpack.c.b16 %v5553, %v5552
  %v5558 = vpack.c.b16 %v5555, %v5554
  %v5559 = vpack.c.b16 %v5556, %v5556
  %v5563 = vsel %vm1601, %v5526, 0
  %v5566 = vsel %vm1601, %v5527, 0
  %v5569 = vsel %vm1601, %v5528, 0
  %v5572 = vsel %vm1601, %v5529, 0
  %v5575 = vsel %vm1601, %v5530, 0
  %v5578 = vsel %vm1601, %v5531, 0
  %v5581 = vsel %vm1601, %v5532, 0
  %v5584 = vsel %vm1601, %v5533, 0
  %v5587 = vsel %vm1601, %v5534, 0
  %v5590 = vsel %vm1601, %v5535, 0
  %v5593 = vsel %vm1601, %v5536, 0
  %v5596 = vsel %vm1601, %v5537, 0
  %v5599 = vsel %vm1601, %v5538, 0
  %v5602 = vsel %vm1601, %v5539, 0
  %v5605 = vsel %vm1601, %v5540, 0
  %v5608 = vsel %vm1601, %v5541, 0
  %v5611 = vsel %vm1650, %v5559, 0
  %5613 = vmatprep.subr.bf16.mxu0 0
  %5614 = vmatpush1.bf16.msra.mxu0 %v5557
  %5615 = vmatprep.subr.bf16.mxu0 0
  %5616 = vmatpush1.bf16.msra.mxu0 %v5558
  %5617 = vmatprep.subr.bf16.mxu0 0
  %5618 = vmatpush1.bf16.msra.mxu0 %v5611
  %5619 = vmatprep.subr.bf16.mxu0 0
  %5620 = vmatpush1.bf16.msra.mxu0 0
  %5621 = vmatprep.subr.bf16.mxu0 0
  %5622 = vmatpush1.bf16.msra.mxu0 0
  %5623 = vmatprep.subr.bf16.mxu0 0
  %5624 = vmatpush1.bf16.msra.mxu0 0
  %5625 = vmatprep.subr.bf16.mxu0 0
  %5626 = vmatpush1.bf16.msra.mxu0 0
  %5627 = vmatprep.subr.bf16.mxu0 0
  %5628 = vmatpush1.bf16.msra.mxu0 0
  %5629 = vmatprep.subr.bf16.mxu0 0
  %5630 = vmatpush1.bf16.msra.mxu0 0
  %5631 = vmatprep.subr.bf16.mxu0 0
  %5632 = vmatpush1.bf16.msra.mxu0 0
  %5633 = vmatprep.subr.bf16.mxu0 0
  %5634 = vmatpush1.bf16.msra.mxu0 0
  %5635 = vmatprep.subr.bf16.mxu0 0
  %5636 = vmatpush1.bf16.msra.mxu0 0
  %5637 = vmatprep.subr.bf16.mxu0 0
  %5638 = vmatpush1.bf16.msra.mxu0 0
  %5639 = vmatprep.subr.bf16.mxu0 0
  %5640 = vmatpush1.bf16.msra.mxu0 0
  %5641 = vmatprep.subr.bf16.mxu0 0
  %5642 = vmatpush1.bf16.msra.mxu0 0
  %5643 = vmatprep.subr.bf16.mxu0 0
  %5644 = vmatpush1.bf16.msra.mxu0 0
  %5645 = vmatprep.mubr.bf16.mxu0 0
  %5646 = vmatmul.mubr.bf16.gmra.mrb[0].mxu0 %v5563
  %v5647 = vpop.f32.mrb[0].mxu0
  %v5648 = vadd.f32 0.0, %v5647
  %v5649 = vpop.f32.mrb[0].mxu0
  %v5650 = vpop.f32.mrb[0].mxu0
  %v5651 = vadd.f32 0.0, %v5650
  %v5652 = vpop.f32.mrb[0].mxu0
  %5653 = vmatprep.mubr.bf16.mxu0 0
  %5654 = vmatmul.mubr.bf16.gmra.mrb[0].mxu0 %v5566
  %v5655 = vpop.f32.mrb[0].mxu0
  %v5656 = vadd.f32 0.0, %v5655
  %v5657 = vpop.f32.mrb[0].mxu0
  %v5658 = vpop.f32.mrb[0].mxu0
  %v5659 = vadd.f32 0.0, %v5658
  %v5660 = vpop.f32.mrb[0].mxu0
  %5661 = vmatprep.mubr.bf16.mxu0 0
  %5662 = vmatmul.mubr.bf16.gmra.mrb[0].mxu0 %v5569
  %v5663 = vpop.f32.mrb[0].mxu0
  %v5664 = vadd.f32 0.0, %v5663
  %v5665 = vpop.f32.mrb[0].mxu0
  %v5666 = vpop.f32.mrb[0].mxu0
  %v5667 = vadd.f32 0.0, %v5666
  %v5668 = vpop.f32.mrb[0].mxu0
  %5669 = vmatprep.mubr.bf16.mxu0 0
  %5670 = vmatmul.mubr.bf16.gmra.mrb[0].mxu0 %v5572
  %v5671 = vpop.f32.mrb[0].mxu0
  %v5672 = vadd.f32 0.0, %v5671
  %v5673 = vpop.f32.mrb[0].mxu0
  %v5674 = vpop.f32.mrb[0].mxu0
  %v5675 = vadd.f32 0.0, %v5674
  %v5676 = vpop.f32.mrb[0].mxu0
  %5677 = vmatprep.mubr.bf16.mxu0 0
  %5678 = vmatmul.mubr.bf16.gmra.mrb[0].mxu0 %v5575
  %v5679 = vpop.f32.mrb[0].mxu0
  %v5680 = vadd.f32 0.0, %v5679
  %v5681 = vpop.f32.mrb[0].mxu0
  %v5682 = vpop.f32.mrb[0].mxu0
  %v5683 = vadd.f32 0.0, %v5682
  %v5684 = vpop.f32.mrb[0].mxu0
  %5685 = vmatprep.mubr.bf16.mxu0 0
  %5686 = vmatmul.mubr.bf16.gmra.mrb[0].mxu0 %v5578
  %v5687 = vpop.f32.mrb[0].mxu0
  %v5688 = vadd.f32 0.0, %v5687
  %v5689 = vpop.f32.mrb[0].mxu0
  %v5690 = vpop.f32.mrb[0].mxu0
  %v5691 = vadd.f32 0.0, %v5690
  %v5692 = vpop.f32.mrb[0].mxu0
  %5693 = vmatprep.mubr.bf16.mxu0 0
  %5694 = vmatmul.mubr.bf16.gmra.mrb[0].mxu0 %v5581
  %v5695 = vpop.f32.mrb[0].mxu0
  %v5696 = vadd.f32 0.0, %v5695
  %v5697 = vpop.f32.mrb[0].mxu0
  %v5698 = vpop.f32.mrb[0].mxu0
  %v5699 = vadd.f32 0.0, %v5698
  %v5700 = vpop.f32.mrb[0].mxu0
  %5701 = vmatprep.mubr.bf16.mxu0 0
  %5702 = vmatmul.mubr.bf16.gmra.mrb[0].mxu0 %v5584
  %v5703 = vpop.f32.mrb[0].mxu0
  %v5704 = vadd.f32 0.0, %v5703
  %v5705 = vpop.f32.mrb[0].mxu0
  %v5706 = vpop.f32.mrb[0].mxu0
  %v5707 = vadd.f32 0.0, %v5706
  %v5708 = vpop.f32.mrb[0].mxu0
  %5709 = vmatprep.mubr.bf16.mxu0 0
  %5710 = vmatmul.mubr.bf16.gmra.mrb[0].mxu0 %v5587
  %v5711 = vpop.f32.mrb[0].mxu0
  %v5712 = vadd.f32 0.0, %v5711
  %v5713 = vpop.f32.mrb[0].mxu0
  %v5714 = vpop.f32.mrb[0].mxu0
  %v5715 = vadd.f32 0.0, %v5714
  %v5716 = vpop.f32.mrb[0].mxu0
  %5717 = vmatprep.mubr.bf16.mxu0 0
  %5718 = vmatmul.mubr.bf16.gmra.mrb[0].mxu0 %v5590
  %v5719 = vpop.f32.mrb[0].mxu0
  %v5720 = vadd.f32 0.0, %v5719
  %v5721 = vpop.f32.mrb[0].mxu0
  %v5722 = vpop.f32.mrb[0].mxu0
  %v5723 = vadd.f32 0.0, %v5722
  %v5724 = vpop.f32.mrb[0].mxu0
  %5725 = vmatprep.mubr.bf16.mxu0 0
  %5726 = vmatmul.mubr.bf16.gmra.mrb[0].mxu0 %v5593
  %v5727 = vpop.f32.mrb[0].mxu0
  %v5728 = vadd.f32 0.0, %v5727
  %v5729 = vpop.f32.mrb[0].mxu0
  %v5730 = vpop.f32.mrb[0].mxu0
  %v5731 = vadd.f32 0.0, %v5730
  %v5732 = vpop.f32.mrb[0].mxu0
  %5733 = vmatprep.mubr.bf16.mxu0 0
  %5734 = vmatmul.mubr.bf16.gmra.mrb[0].mxu0 %v5596
  %v5735 = vpop.f32.mrb[0].mxu0
  %v5736 = vadd.f32 0.0, %v5735
  %v5737 = vpop.f32.mrb[0].mxu0
  %v5738 = vpop.f32.mrb[0].mxu0
  %v5739 = vadd.f32 0.0, %v5738
  %v5740 = vpop.f32.mrb[0].mxu0
  %5741 = vmatprep.mubr.bf16.mxu0 0
  %5742 = vmatmul.mubr.bf16.gmra.mrb[0].mxu0 %v5599
  %v5743 = vpop.f32.mrb[0].mxu0
  %v5744 = vadd.f32 0.0, %v5743
  %v5745 = vpop.f32.mrb[0].mxu0
  %v5746 = vpop.f32.mrb[0].mxu0
  %v5747 = vadd.f32 0.0, %v5746
  %v5748 = vpop.f32.mrb[0].mxu0
  %5749 = vmatprep.mubr.bf16.mxu0 0
  %5750 = vmatmul.mubr.bf16.gmra.mrb[0].mxu0 %v5602
  %v5751 = vpop.f32.mrb[0].mxu0
  %v5752 = vadd.f32 0.0, %v5751
  %v5753 = vpop.f32.mrb[0].mxu0
  %v5754 = vpop.f32.mrb[0].mxu0
  %v5755 = vadd.f32 0.0, %v5754
  %v5756 = vpop.f32.mrb[0].mxu0
  %5757 = vmatprep.mubr.bf16.mxu0 0
  %5758 = vmatmul.mubr.bf16.gmra.mrb[0].mxu0 %v5605
  %v5759 = vpop.f32.mrb[0].mxu0
  %v5760 = vadd.f32 0.0, %v5759
  %v5761 = vpop.f32.mrb[0].mxu0
  %v5762 = vpop.f32.mrb[0].mxu0
  %v5763 = vadd.f32 0.0, %v5762
  %v5764 = vpop.f32.mrb[0].mxu0
  %5765 = vmatprep.mubr.bf16.mxu0 0
  %5766 = vmatmul.mubr.bf16.gmra.mrb[0].mxu0 %v5608
  %v5767 = vpop.f32.mrb[0].mxu0
  %v5768 = vadd.f32 0.0, %v5767
  %v5769 = vpop.f32.mrb[0].mxu0
  %v5770 = vpop.f32.mrb[0].mxu0
  %v5771 = vadd.f32 0.0, %v5770
  %v5772 = vpop.f32.mrb[0].mxu0
  %5773 = vdwg.mxu0
  %5774 = vst.msk [vmem:[#allocation4] sm:$0xff] %vm27, %v5648
  %5775 = vst.msk [vmem:[#allocation4 + $0x8] sm:$0xff] %vm27, %v5651
  %5776 = vst.msk [vmem:[#allocation4 + $0x10] sm:$0xff] %vm27, %v5656
  %5777 = vst.msk [vmem:[#allocation4 + $0x18] sm:$0xff] %vm27, %v5659
  %5778 = vst.msk [vmem:[#allocation4 + $0x20] sm:$0xff] %vm27, %v5664
  %5779 = vst.msk [vmem:[#allocation4 + $0x28] sm:$0xff] %vm27, %v5667
  %5780 = vst.msk [vmem:[#allocation4 + $0x30] sm:$0xff] %vm27, %v5672
  %5781 = vst.msk [vmem:[#allocation4 + $0x38] sm:$0xff] %vm27, %v5675
  %5782 = vst.msk [vmem:[#allocation4 + $0x40] sm:$0xff] %vm27, %v5680
  %5783 = vst.msk [vmem:[#allocation4 + $0x48] sm:$0xff] %vm27, %v5683
  %5784 = vst.msk [vmem:[#allocation4 + $0x50] sm:$0xff] %vm27, %v5688
  %5785 = vst.msk [vmem:[#allocation4 + $0x58] sm:$0xff] %vm27, %v5691
  %5786 = vst.msk [vmem:[#allocation4 + $0x60] sm:$0xff] %vm27, %v5696
  %5787 = vst.msk [vmem:[#allocation4 + $0x68] sm:$0xff] %vm27, %v5699
  %5788 = vst.msk [vmem:[#allocation4 + $0x70] sm:$0xff] %vm27, %v5704
  %5789 = vst.msk [vmem:[#allocation4 + $0x78] sm:$0xff] %vm27, %v5707
  %5790 = vst.msk [vmem:[#allocation4 + $0x80] sm:$0xff] %vm27, %v5712
  %5791 = vst.msk [vmem:[#allocation4 + $0x88] sm:$0xff] %vm27, %v5715
  %5792 = vst.msk [vmem:[#allocation4 + $0x90] sm:$0xff] %vm27, %v5720
  %5793 = vst.msk [vmem:[#allocation4 + $0x98] sm:$0xff] %vm27, %v5723
  %5794 = vst.msk [vmem:[#allocation4 + $0xa0] sm:$0xff] %vm27, %v5728
  %5795 = vst.msk [vmem:[#allocation4 + $0xa8] sm:$0xff] %vm27, %v5731
  %5796 = vst.msk [vmem:[#allocation4 + $0xb0] sm:$0xff] %vm27, %v5736
  %5797 = vst.msk [vmem:[#allocation4 + $0xb8] sm:$0xff] %vm27, %v5739
  %5798 = vst.msk [vmem:[#allocation4 + $0xc0] sm:$0xff] %vm27, %v5744
  %5799 = vst.msk [vmem:[#allocation4 + $0xc8] sm:$0xff] %vm27, %v5747
  %5800 = vst.msk [vmem:[#allocation4 + $0xd0] sm:$0xff] %vm27, %v5752
  %5801 = vst.msk [vmem:[#allocation4 + $0xd8] sm:$0xff] %vm27, %v5755
  %5802 = vst.msk [vmem:[#allocation4 + $0xe0] sm:$0xff] %vm27, %v5760
  %5803 = vst.msk [vmem:[#allocation4 + $0xe8] sm:$0xff] %vm27, %v5763
  %5804 = vst.msk [vmem:[#allocation4 + $0xf0] sm:$0xff] %vm27, %v5768
  %5805 = vst.msk [vmem:[#allocation4 + $0xf8] sm:$0xff] %vm27, %v5771
  %v5806 = vsel %vm27, %v5648, 0.0
  %v5807 = vsel %vm27, %v5651, 0.0
  %v5808 = vadd.f32 %v5806, %v5807
  %v5809 = vsel %vm27, %v5656, 0.0
  %v5810 = vadd.f32 %v5808, %v5809
  %v5811 = vsel %vm27, %v5659, 0.0
  %v5812 = vadd.f32 %v5810, %v5811
  %v5813 = vsel %vm27, %v5664, 0.0
  %v5814 = vadd.f32 %v5812, %v5813
  %v5815 = vsel %vm27, %v5667, 0.0
  %v5816 = vadd.f32 %v5814, %v5815
  %v5817 = vsel %vm27, %v5672, 0.0
  %v5818 = vadd.f32 %v5816, %v5817
  %v5819 = vsel %vm27, %v5675, 0.0
  %v5820 = vadd.f32 %v5818, %v5819
  %v5821 = vsel %vm27, %v5680, 0.0
  %v5822 = vadd.f32 %v5820, %v5821
  %v5823 = vsel %vm27, %v5683, 0.0
  %v5824 = vadd.f32 %v5822, %v5823
  %v5825 = vsel %vm27, %v5688, 0.0
  %v5826 = vadd.f32 %v5824, %v5825
  %v5827 = vsel %vm27, %v5691, 0.0
  %v5828 = vadd.f32 %v5826, %v5827
  %v5829 = vsel %vm27, %v5696, 0.0
  %v5830 = vadd.f32 %v5828, %v5829
  %v5831 = vsel %vm27, %v5699, 0.0
  %v5832 = vadd.f32 %v5830, %v5831
  %v5833 = vsel %vm27, %v5704, 0.0
  %v5834 = vadd.f32 %v5832, %v5833
  %v5835 = vsel %vm27, %v5707, 0.0
  %v5836 = vadd.f32 %v5834, %v5835
  %v5837 = vsel %vm27, %v5712, 0.0
  %v5838 = vadd.f32 %v5836, %v5837
  %v5839 = vsel %vm27, %v5715, 0.0
  %v5840 = vadd.f32 %v5838, %v5839
  %v5841 = vsel %vm27, %v5720, 0.0
  %v5842 = vadd.f32 %v5840, %v5841
  %v5843 = vsel %vm27, %v5723, 0.0
  %v5844 = vadd.f32 %v5842, %v5843
  %v5845 = vsel %vm27, %v5728, 0.0
  %v5846 = vadd.f32 %v5844, %v5845
  %v5847 = vsel %vm27, %v5731, 0.0
  %v5848 = vadd.f32 %v5846, %v5847
  %v5849 = vsel %vm27, %v5736, 0.0
  %v5850 = vadd.f32 %v5848, %v5849
  %v5851 = vsel %vm27, %v5739, 0.0
  %v5852 = vadd.f32 %v5850, %v5851
  %v5853 = vsel %vm27, %v5744, 0.0
  %v5854 = vadd.f32 %v5852, %v5853
  %v5855 = vsel %vm27, %v5747, 0.0
  %v5856 = vadd.f32 %v5854, %v5855
  %v5857 = vsel %vm27, %v5752, 0.0
  %v5858 = vadd.f32 %v5856, %v5857
  %v5859 = vsel %vm27, %v5755, 0.0
  %v5860 = vadd.f32 %v5858, %v5859
  %v5861 = vsel %vm27, %v5760, 0.0
  %v5862 = vadd.f32 %v5860, %v5861
  %v5863 = vsel %vm27, %v5763, 0.0
  %v5864 = vadd.f32 %v5862, %v5863
  %v5865 = vsel %vm27, %v5768, 0.0
  %v5866 = vadd.f32 %v5864, %v5865
  %v5867 = vsel %vm27, %v5771, 0.0
  %v5868 = vadd.f32 %v5866, %v5867
  %v5869 = vrot.slane %v5868, 4
  %v5870 = vadd.f32 %v5868, %v5869
  %v5871 = vrot.slane %v5870, 2
  %v5872 = vadd.f32 %v5870, %v5871
  %v5873 = vrot.slane %v5872, 1
  %v5874 = vadd.f32 %v5872, %v5873
  %v5875 = vadd.f32 %v5874, 0.0
  %v5876 = vmul.f32 %v5648, %v5648
  %v5877 = vmul.f32 %v5651, %v5651
  %v5878 = vmul.f32 %v5656, %v5656
  %v5879 = vmul.f32 %v5659, %v5659
  %v5880 = vmul.f32 %v5664, %v5664
  %v5881 = vmul.f32 %v5667, %v5667
  %v5882 = vmul.f32 %v5672, %v5672
  %v5883 = vmul.f32 %v5675, %v5675
  %v5884 = vmul.f32 %v5680, %v5680
  %v5885 = vmul.f32 %v5683, %v5683
  %v5886 = vmul.f32 %v5688, %v5688
  %v5887 = vmul.f32 %v5691, %v5691
  %v5888 = vmul.f32 %v5696, %v5696
  %v5889 = vmul.f32 %v5699, %v5699
  %v5890 = vmul.f32 %v5704, %v5704
  %v5891 = vmul.f32 %v5707, %v5707
  %v5892 = vmul.f32 %v5712, %v5712
  %v5893 = vmul.f32 %v5715, %v5715
  %v5894 = vmul.f32 %v5720, %v5720
  %v5895 = vmul.f32 %v5723, %v5723
  %v5896 = vmul.f32 %v5728, %v5728
  %v5897 = vmul.f32 %v5731, %v5731
  %v5898 = vmul.f32 %v5736, %v5736
  %v5899 = vmul.f32 %v5739, %v5739
  %v5900 = vmul.f32 %v5744, %v5744
  %v5901 = vmul.f32 %v5747, %v5747
  %v5902 = vmul.f32 %v5752, %v5752
  %v5903 = vmul.f32 %v5755, %v5755
  %v5904 = vmul.f32 %v5760, %v5760
  %v5905 = vmul.f32 %v5763, %v5763
  %v5906 = vmul.f32 %v5768, %v5768
  %v5907 = vmul.f32 %v5771, %v5771
  %v5908 = vsel %vm27, %v5876, 0.0
  %v5909 = vsel %vm27, %v5877, 0.0
  %v5910 = vadd.f32 %v5908, %v5909
  %v5911 = vsel %vm27, %v5878, 0.0
  %v5912 = vadd.f32 %v5910, %v5911
  %v5913 = vsel %vm27, %v5879, 0.0
  %v5914 = vadd.f32 %v5912, %v5913
  %v5915 = vsel %vm27, %v5880, 0.0
  %v5916 = vadd.f32 %v5914, %v5915
  %v5917 = vsel %vm27, %v5881, 0.0
  %v5918 = vadd.f32 %v5916, %v5917
  %v5919 = vsel %vm27, %v5882, 0.0
  %v5920 = vadd.f32 %v5918, %v5919
  %v5921 = vsel %vm27, %v5883, 0.0
  %v5922 = vadd.f32 %v5920, %v5921
  %v5923 = vsel %vm27, %v5884, 0.0
  %v5924 = vadd.f32 %v5922, %v5923
  %v5925 = vsel %vm27, %v5885, 0.0
  %v5926 = vadd.f32 %v5924, %v5925
  %v5927 = vsel %vm27, %v5886, 0.0
  %v5928 = vadd.f32 %v5926, %v5927
  %v5929 = vsel %vm27, %v5887, 0.0
  %v5930 = vadd.f32 %v5928, %v5929
  %v5931 = vsel %vm27, %v5888, 0.0
  %v5932 = vadd.f32 %v5930, %v5931
  %v5933 = vsel %vm27, %v5889, 0.0
  %v5934 = vadd.f32 %v5932, %v5933
  %v5935 = vsel %vm27, %v5890, 0.0
  %v5936 = vadd.f32 %v5934, %v5935
  %v5937 = vsel %vm27, %v5891, 0.0
  %v5938 = vadd.f32 %v5936, %v5937
  %v5939 = vsel %vm27, %v5892, 0.0
  %v5940 = vadd.f32 %v5938, %v5939
  %v5941 = vsel %vm27, %v5893, 0.0
  %v5942 = vadd.f32 %v5940, %v5941
  %v5943 = vsel %vm27, %v5894, 0.0
  %v5944 = vadd.f32 %v5942, %v5943
  %v5945 = vsel %vm27, %v5895, 0.0
  %v5946 = vadd.f32 %v5944, %v5945
  %v5947 = vsel %vm27, %v5896, 0.0
  %v5948 = vadd.f32 %v5946, %v5947
  %v5949 = vsel %vm27, %v5897, 0.0
  %v5950 = vadd.f32 %v5948, %v5949
  %v5951 = vsel %vm27, %v5898, 0.0
  %v5952 = vadd.f32 %v5950, %v5951
  %v5953 = vsel %vm27, %v5899, 0.0
  %v5954 = vadd.f32 %v5952, %v5953
  %v5955 = vsel %vm27, %v5900, 0.0
  %v5956 = vadd.f32 %v5954, %v5955
  %v5957 = vsel %vm27, %v5901, 0.0
  %v5958 = vadd.f32 %v5956, %v5957
  %v5959 = vsel %vm27, %v5902, 0.0
  %v5960 = vadd.f32 %v5958, %v5959
  %v5961 = vsel %vm27, %v5903, 0.0
  %v5962 = vadd.f32 %v5960, %v5961
  %v5963 = vsel %vm27, %v5904, 0.0
  %v5964 = vadd.f32 %v5962, %v5963
  %v5965 = vsel %vm27, %v5905, 0.0
  %v5966 = vadd.f32 %v5964, %v5965
  %v5967 = vsel %vm27, %v5906, 0.0
  %v5968 = vadd.f32 %v5966, %v5967
  %v5969 = vsel %vm27, %v5907, 0.0
  %v5970 = vadd.f32 %v5968, %v5969
  %v5971 = vrot.slane %v5970, 4
  %v5972 = vadd.f32 %v5970, %v5971
  %v5973 = vrot.slane %v5972, 2
  %v5974 = vadd.f32 %v5972, %v5973
  %v5975 = vrot.slane %v5974, 1
  %v5976 = vadd.f32 %v5974, %v5975
  %v5977 = vadd.f32 %v5976, 0.0
  %s5978 = scalar_lea.vmem [#allocation3], 432
  %v5979 = vld [vmem:[%s5978] sm:$0xff]
  %v5980 = vld [vmem:[%s5978 + $0x8] sm:$0xff]
  %v5981 = vld [vmem:[%s5978 + $0x10] sm:$0x3]
  %v5982 = vld [vmem:[%s5978 + $0x18] sm:$0xff]
  %v5983 = vld [vmem:[%s5978 + $0x20] sm:$0xff]
  %v5984 = vld [vmem:[%s5978 + $0x28] sm:$0x3]
  %v5985 = vld [vmem:[%s5978 + $0x30] sm:$0xff]
  %v5986 = vld [vmem:[%s5978 + $0x38] sm:$0xff]
  %v5987 = vld [vmem:[%s5978 + $0x40] sm:$0x3]
  %v5988 = vld [vmem:[%s5978 + $0x48] sm:$0xff]
  %v5989 = vld [vmem:[%s5978 + $0x50] sm:$0xff]
  %v5990 = vld [vmem:[%s5978 + $0x58] sm:$0x3]
  %v5991 = vld [vmem:[%s5978 + $0x60] sm:$0xff]
  %v5992 = vld [vmem:[%s5978 + $0x68] sm:$0xff]
  %v5993 = vld [vmem:[%s5978 + $0x70] sm:$0x3]
  %v5994 = vld [vmem:[%s5978 + $0x78] sm:$0xff]
  %v5995 = vld [vmem:[%s5978 + $0x80] sm:$0xff]
  %v5996 = vld [vmem:[%s5978 + $0x88] sm:$0x3]
  %v5997 = vld [vmem:[%s5978 + $0x90] sm:$0xff]
  %v5998 = vld [vmem:[%s5978 + $0x98] sm:$0xff]
  %v5999 = vld [vmem:[%s5978 + $0xa0] sm:$0x3]
  %v6000 = vld [vmem:[%s5978 + $0xa8] sm:$0xff]
  %v6001 = vld [vmem:[%s5978 + $0xb0] sm:$0xff]
  %v6002 = vld [vmem:[%s5978 + $0xb8] sm:$0x3]
  %v6003 = vld [vmem:[%s5978 + $0xc0] sm:$0xff]
  %v6004 = vld [vmem:[%s5978 + $0xc8] sm:$0xff]
  %v6005 = vld [vmem:[%s5978 + $0xd0] sm:$0x3]
  %v6006 = vld [vmem:[%s5978 + $0xd8] sm:$0xff]
  %v6007 = vld [vmem:[%s5978 + $0xe0] sm:$0xff]
  %v6008 = vld [vmem:[%s5978 + $0xe8] sm:$0x3]
  %v6009 = vld [vmem:[%s5978 + $0xf0] sm:$0xff]
  %v6010 = vld [vmem:[%s5978 + $0xf8] sm:$0xff]
  %v6011 = vld [vmem:[%s5978 + $0x100] sm:$0x3]
  %v6012 = vld [vmem:[%s5978 + $0x108] sm:$0xff]
  %v6013 = vld [vmem:[%s5978 + $0x110] sm:$0xff]
  %v6014 = vld [vmem:[%s5978 + $0x118] sm:$0x3]
  %v6015 = vld [vmem:[%s5978 + $0x120] sm:$0xff]
  %v6016 = vld [vmem:[%s5978 + $0x128] sm:$0xff]
  %v6017 = vld [vmem:[%s5978 + $0x130] sm:$0x3]
  %v6018 = vld [vmem:[%s5978 + $0x138] sm:$0xff]
  %v6019 = vld [vmem:[%s5978 + $0x140] sm:$0xff]
  %v6020 = vld [vmem:[%s5978 + $0x148] sm:$0x3]
  %v6021 = vld [vmem:[%s5978 + $0x150] sm:$0xff]
  %v6022 = vld [vmem:[%s5978 + $0x158] sm:$0xff]
  %v6023 = vld [vmem:[%s5978 + $0x160] sm:$0x3]
  %v6024 = vld [vmem:[%s5978 + $0x168] sm:$0xff]
  %v6025 = vld [vmem:[%s5978 + $0x170] sm:$0xff]
  %v6026 = vld [vmem:[%s5978 + $0x178] sm:$0x3]
  %v6027 = vld [vmem:[%s5978 + $0x180] sm:$0xff]
  %v6028 = vld [vmem:[%s5978 + $0x188] sm:$0xff]
  %v6029 = vld [vmem:[%s5978 + $0x190] sm:$0x3]
  %v6030 = vld [vmem:[%s5978 + $0x198] sm:$0xff]
  %v6031 = vld [vmem:[%s5978 + $0x1a0] sm:$0xff]
  %v6032 = vld [vmem:[%s5978 + $0x1a8] sm:$0x3]
  %v6081 = vrot.slane %v5979, 1
  %v6082 = vrot.slane %v5980, 1
  %v6083 = vsel %vm346, %v6081, %v6082
  %v6084 = vrot.slane %v5981, 1
  %v6085 = vsel %vm346, %v6082, %v6084
  %v6086 = vrot.slane %v5982, 1
  %v6087 = vrot.slane %v5983, 1
  %v6088 = vsel %vm346, %v6086, %v6087
  %v6089 = vrot.slane %v5984, 1
  %v6090 = vsel %vm346, %v6087, %v6089
  %v6091 = vrot.slane %v5985, 1
  %v6092 = vrot.slane %v5986, 1
  %v6093 = vsel %vm346, %v6091, %v6092
  %v6094 = vrot.slane %v5987, 1
  %v6095 = vsel %vm346, %v6092, %v6094
  %v6096 = vrot.slane %v5988, 1
  %v6097 = vrot.slane %v5989, 1
  %v6098 = vsel %vm346, %v6096, %v6097
  %v6099 = vrot.slane %v5990, 1
  %v6100 = vsel %vm346, %v6097, %v6099
  %v6101 = vrot.slane %v5991, 1
  %v6102 = vrot.slane %v5992, 1
  %v6103 = vsel %vm346, %v6101, %v6102
  %v6104 = vrot.slane %v5993, 1
  %v6105 = vsel %vm346, %v6102, %v6104
  %v6106 = vrot.slane %v5994, 1
  %v6107 = vrot.slane %v5995, 1
  %v6108 = vsel %vm346, %v6106, %v6107
  %v6109 = vrot.slane %v5996, 1
  %v6110 = vsel %vm346, %v6107, %v6109
  %v6111 = vrot.slane %v5997, 1
  %v6112 = vrot.slane %v5998, 1
  %v6113 = vsel %vm346, %v6111, %v6112
  %v6114 = vrot.slane %v5999, 1
  %v6115 = vsel %vm346, %v6112, %v6114
  %v6116 = vrot.slane %v6000, 1
  %v6117 = vrot.slane %v6001, 1
  %v6118 = vsel %vm346, %v6116, %v6117
  %v6119 = vrot.slane %v6002, 1
  %v6120 = vsel %vm346, %v6117, %v6119
  %v6121 = vrot.slane %v6003, 1
  %v6122 = vrot.slane %v6004, 1
  %v6123 = vsel %vm346, %v6121, %v6122
  %v6124 = vrot.slane %v6005, 1
  %v6125 = vsel %vm346, %v6122, %v6124
  %v6126 = vrot.slane %v6006, 1
  %v6127 = vrot.slane %v6007, 1
  %v6128 = vsel %vm346, %v6126, %v6127
  %v6129 = vrot.slane %v6008, 1
  %v6130 = vsel %vm346, %v6127, %v6129
  %v6131 = vrot.slane %v6009, 1
  %v6132 = vrot.slane %v6010, 1
  %v6133 = vsel %vm346, %v6131, %v6132
  %v6134 = vrot.slane %v6011, 1
  %v6135 = vsel %vm346, %v6132, %v6134
  %v6136 = vrot.slane %v6012, 1
  %v6137 = vrot.slane %v6013, 1
  %v6138 = vsel %vm346, %v6136, %v6137
  %v6139 = vrot.slane %v6014, 1
  %v6140 = vsel %vm346, %v6137, %v6139
  %v6141 = vrot.slane %v6015, 1
  %v6142 = vrot.slane %v6016, 1
  %v6143 = vsel %vm346, %v6141, %v6142
  %v6144 = vrot.slane %v6017, 1
  %v6145 = vsel %vm346, %v6142, %v6144
  %v6146 = vrot.slane %v6018, 1
  %v6147 = vrot.slane %v6019, 1
  %v6148 = vsel %vm346, %v6146, %v6147
  %v6149 = vrot.slane %v6020, 1
  %v6150 = vsel %vm346, %v6147, %v6149
  %v6151 = vrot.slane %v6021, 1
  %v6152 = vrot.slane %v6022, 1
  %v6153 = vsel %vm346, %v6151, %v6152
  %v6154 = vrot.slane %v6023, 1
  %v6155 = vsel %vm346, %v6152, %v6154
  %v6156 = vrot.slane %v6024, 1
  %v6157 = vrot.slane %v6025, 1
  %v6158 = vsel %vm346, %v6156, %v6157
  %v6159 = vrot.slane %v6026, 1
  %v6160 = vsel %vm346, %v6157, %v6159
  %6161 = vrot.lane.b32.xlu0 %v6083, 4
  %v6162 = vpop.permute.xlu0 %6161
  %6163 = vrot.lane.b32.xlu0 %v6085, 4
  %v6164 = vpop.permute.xlu0 %6163
  %6165 = vrot.lane.b32.xlu0 %v6088, 4
  %v6166 = vpop.permute.xlu0 %6165
  %6167 = vrot.lane.b32.xlu0 %v6090, 4
  %v6168 = vpop.permute.xlu0 %6167
  %6169 = vrot.lane.b32.xlu0 %v6093, 4
  %v6170 = vpop.permute.xlu0 %6169
  %6171 = vrot.lane.b32.xlu0 %v6095, 4
  %v6172 = vpop.permute.xlu0 %6171
  %6173 = vrot.lane.b32.xlu0 %v6098, 4
  %v6174 = vpop.permute.xlu0 %6173
  %6175 = vrot.lane.b32.xlu0 %v6100, 4
  %v6176 = vpop.permute.xlu0 %6175
  %6177 = vrot.lane.b32.xlu0 %v6103, 4
  %v6178 = vpop.permute.xlu0 %6177
  %6179 = vrot.lane.b32.xlu0 %v6105, 4
  %v6180 = vpop.permute.xlu0 %6179
  %6181 = vrot.lane.b32.xlu0 %v6108, 4
  %v6182 = vpop.permute.xlu0 %6181
  %6183 = vrot.lane.b32.xlu0 %v6110, 4
  %v6184 = vpop.permute.xlu0 %6183
  %6185 = vrot.lane.b32.xlu0 %v6113, 4
  %v6186 = vpop.permute.xlu0 %6185
  %6187 = vrot.lane.b32.xlu0 %v6115, 4
  %v6188 = vpop.permute.xlu0 %6187
  %6189 = vrot.lane.b32.xlu0 %v6118, 4
  %v6190 = vpop.permute.xlu0 %6189
  %6191 = vrot.lane.b32.xlu0 %v6120, 4
  %v6192 = vpop.permute.xlu0 %6191
  %6193 = vrot.lane.b32.xlu0 %v6123, 4
  %v6194 = vpop.permute.xlu0 %6193
  %6195 = vrot.lane.b32.xlu0 %v6125, 4
  %v6196 = vpop.permute.xlu0 %6195
  %6197 = vrot.lane.b32.xlu0 %v6128, 4
  %v6198 = vpop.permute.xlu0 %6197
  %6199 = vrot.lane.b32.xlu0 %v6130, 4
  %v6200 = vpop.permute.xlu0 %6199
  %6201 = vrot.lane.b32.xlu0 %v6133, 4
  %v6202 = vpop.permute.xlu0 %6201
  %6203 = vrot.lane.b32.xlu0 %v6135, 4
  %v6204 = vpop.permute.xlu0 %6203
  %6205 = vrot.lane.b32.xlu0 %v6138, 4
  %v6206 = vpop.permute.xlu0 %6205
  %6207 = vrot.lane.b32.xlu0 %v6140, 4
  %v6208 = vpop.permute.xlu0 %6207
  %6209 = vrot.lane.b32.xlu0 %v6143, 4
  %v6210 = vpop.permute.xlu0 %6209
  %6211 = vrot.lane.b32.xlu0 %v6145, 4
  %v6212 = vpop.permute.xlu0 %6211
  %6213 = vrot.lane.b32.xlu0 %v6148, 4
  %v6214 = vpop.permute.xlu0 %6213
  %6215 = vrot.lane.b32.xlu0 %v6150, 4
  %v6216 = vpop.permute.xlu0 %6215
  %6217 = vrot.lane.b32.xlu0 %v6153, 4
  %v6218 = vpop.permute.xlu0 %6217
  %6219 = vrot.lane.b32.xlu0 %v6155, 4
  %v6220 = vpop.permute.xlu0 %6219
  %6221 = vrot.lane.b32.xlu0 %v6158, 4
  %v6222 = vpop.permute.xlu0 %6221
  %6223 = vrot.lane.b32.xlu0 %v6160, 4
  %v6224 = vpop.permute.xlu0 %6223
  %v6257 = vrot.slane %v5979, 2
  %v6258 = vrot.slane %v5980, 2
  %v6259 = vsel %vm523, %v6257, %v6258
  %v6260 = vrot.slane %v5981, 2
  %v6261 = vsel %vm523, %v6258, %v6260
  %v6262 = vrot.slane %v5982, 2
  %v6263 = vrot.slane %v5983, 2
  %v6264 = vsel %vm523, %v6262, %v6263
  %v6265 = vrot.slane %v5984, 2
  %v6266 = vsel %vm523, %v6263, %v6265
  %v6267 = vrot.slane %v5985, 2
  %v6268 = vrot.slane %v5986, 2
  %v6269 = vsel %vm523, %v6267, %v6268
  %v6270 = vrot.slane %v5987, 2
  %v6271 = vsel %vm523, %v6268, %v6270
  %v6272 = vrot.slane %v5988, 2
  %v6273 = vrot.slane %v5989, 2
  %v6274 = vsel %vm523, %v6272, %v6273
  %v6275 = vrot.slane %v5990, 2
  %v6276 = vsel %vm523, %v6273, %v6275
  %v6277 = vrot.slane %v5991, 2
  %v6278 = vrot.slane %v5992, 2
  %v6279 = vsel %vm523, %v6277, %v6278
  %v6280 = vrot.slane %v5993, 2
  %v6281 = vsel %vm523, %v6278, %v6280
  %v6282 = vrot.slane %v5994, 2
  %v6283 = vrot.slane %v5995, 2
  %v6284 = vsel %vm523, %v6282, %v6283
  %v6285 = vrot.slane %v5996, 2
  %v6286 = vsel %vm523, %v6283, %v6285
  %v6287 = vrot.slane %v5997, 2
  %v6288 = vrot.slane %v5998, 2
  %v6289 = vsel %vm523, %v6287, %v6288
  %v6290 = vrot.slane %v5999, 2
  %v6291 = vsel %vm523, %v6288, %v6290
  %v6292 = vrot.slane %v6000, 2
  %v6293 = vrot.slane %v6001, 2
  %v6294 = vsel %vm523, %v6292, %v6293
  %v6295 = vrot.slane %v6002, 2
  %v6296 = vsel %vm523, %v6293, %v6295
  %v6297 = vrot.slane %v6003, 2
  %v6298 = vrot.slane %v6004, 2
  %v6299 = vsel %vm523, %v6297, %v6298
  %v6300 = vrot.slane %v6005, 2
  %v6301 = vsel %vm523, %v6298, %v6300
  %v6302 = vrot.slane %v6006, 2
  %v6303 = vrot.slane %v6007, 2
  %v6304 = vsel %vm523, %v6302, %v6303
  %v6305 = vrot.slane %v6008, 2
  %v6306 = vsel %vm523, %v6303, %v6305
  %v6307 = vrot.slane %v6009, 2
  %v6308 = vrot.slane %v6010, 2
  %v6309 = vsel %vm523, %v6307, %v6308
  %v6310 = vrot.slane %v6011, 2
  %v6311 = vsel %vm523, %v6308, %v6310
  %v6312 = vrot.slane %v6012, 2
  %v6313 = vrot.slane %v6013, 2
  %v6314 = vsel %vm523, %v6312, %v6313
  %v6315 = vrot.slane %v6014, 2
  %v6316 = vsel %vm523, %v6313, %v6315
  %v6317 = vrot.slane %v6015, 2
  %v6318 = vrot.slane %v6016, 2
  %v6319 = vsel %vm523, %v6317, %v6318
  %v6320 = vrot.slane %v6017, 2
  %v6321 = vsel %vm523, %v6318, %v6320
  %v6322 = vrot.slane %v6018, 2
  %v6323 = vrot.slane %v6019, 2
  %v6324 = vsel %vm523, %v6322, %v6323
  %v6325 = vrot.slane %v6020, 2
  %v6326 = vsel %vm523, %v6323, %v6325
  %v6327 = vrot.slane %v6021, 2
  %v6328 = vrot.slane %v6022, 2
  %v6329 = vsel %vm523, %v6327, %v6328
  %v6330 = vrot.slane %v6023, 2
  %v6331 = vsel %vm523, %v6328, %v6330
  %v6332 = vrot.slane %v6024, 2
  %v6333 = vrot.slane %v6025, 2
  %v6334 = vsel %vm523, %v6332, %v6333
  %v6335 = vrot.slane %v6026, 2
  %v6336 = vsel %vm523, %v6333, %v6335
  %6337 = vrot.lane.b32.xlu0 %v6259, 8
  %v6338 = vpop.permute.xlu0 %6337
  %6339 = vrot.lane.b32.xlu0 %v6261, 8
  %v6340 = vpop.permute.xlu0 %6339
  %6341 = vrot.lane.b32.xlu0 %v6264, 8
  %v6342 = vpop.permute.xlu0 %6341
  %6343 = vrot.lane.b32.xlu0 %v6266, 8
  %v6344 = vpop.permute.xlu0 %6343
  %6345 = vrot.lane.b32.xlu0 %v6269, 8
  %v6346 = vpop.permute.xlu0 %6345
  %6347 = vrot.lane.b32.xlu0 %v6271, 8
  %v6348 = vpop.permute.xlu0 %6347
  %6349 = vrot.lane.b32.xlu0 %v6274, 8
  %v6350 = vpop.permute.xlu0 %6349
  %6351 = vrot.lane.b32.xlu0 %v6276, 8
  %v6352 = vpop.permute.xlu0 %6351
  %6353 = vrot.lane.b32.xlu0 %v6279, 8
  %v6354 = vpop.permute.xlu0 %6353
  %6355 = vrot.lane.b32.xlu0 %v6281, 8
  %v6356 = vpop.permute.xlu0 %6355
  %6357 = vrot.lane.b32.xlu0 %v6284, 8
  %v6358 = vpop.permute.xlu0 %6357
  %6359 = vrot.lane.b32.xlu0 %v6286, 8
  %v6360 = vpop.permute.xlu0 %6359
  %6361 = vrot.lane.b32.xlu0 %v6289, 8
  %v6362 = vpop.permute.xlu0 %6361
  %6363 = vrot.lane.b32.xlu0 %v6291, 8
  %v6364 = vpop.permute.xlu0 %6363
  %6365 = vrot.lane.b32.xlu0 %v6294, 8
  %v6366 = vpop.permute.xlu0 %6365
  %6367 = vrot.lane.b32.xlu0 %v6296, 8
  %v6368 = vpop.permute.xlu0 %6367
  %6369 = vrot.lane.b32.xlu0 %v6299, 8
  %v6370 = vpop.permute.xlu0 %6369
  %6371 = vrot.lane.b32.xlu0 %v6301, 8
  %v6372 = vpop.permute.xlu0 %6371
  %6373 = vrot.lane.b32.xlu0 %v6304, 8
  %v6374 = vpop.permute.xlu0 %6373
  %6375 = vrot.lane.b32.xlu0 %v6306, 8
  %v6376 = vpop.permute.xlu0 %6375
  %6377 = vrot.lane.b32.xlu0 %v6309, 8
  %v6378 = vpop.permute.xlu0 %6377
  %6379 = vrot.lane.b32.xlu0 %v6311, 8
  %v6380 = vpop.permute.xlu0 %6379
  %6381 = vrot.lane.b32.xlu0 %v6314, 8
  %v6382 = vpop.permute.xlu0 %6381
  %6383 = vrot.lane.b32.xlu0 %v6316, 8
  %v6384 = vpop.permute.xlu0 %6383
  %6385 = vrot.lane.b32.xlu0 %v6319, 8
  %v6386 = vpop.permute.xlu0 %6385
  %6387 = vrot.lane.b32.xlu0 %v6321, 8
  %v6388 = vpop.permute.xlu0 %6387
  %6389 = vrot.lane.b32.xlu0 %v6324, 8
  %v6390 = vpop.permute.xlu0 %6389
  %6391 = vrot.lane.b32.xlu0 %v6326, 8
  %v6392 = vpop.permute.xlu0 %6391
  %6393 = vrot.lane.b32.xlu0 %v6329, 8
  %v6394 = vpop.permute.xlu0 %6393
  %6395 = vrot.lane.b32.xlu0 %v6331, 8
  %v6396 = vpop.permute.xlu0 %6395
  %6397 = vrot.lane.b32.xlu0 %v6334, 8
  %v6398 = vpop.permute.xlu0 %6397
  %6399 = vrot.lane.b32.xlu0 %v6336, 8
  %v6400 = vpop.permute.xlu0 %6399
  %6435 = vrot.lane.b32.xlu0 %v5982, 12
  %v6436 = vpop.permute.xlu0 %6435
  %6437 = vrot.lane.b32.xlu0 %v5983, 12
  %v6438 = vpop.permute.xlu0 %6437
  %6439 = vrot.lane.b32.xlu0 %v5985, 12
  %v6440 = vpop.permute.xlu0 %6439
  %6441 = vrot.lane.b32.xlu0 %v5986, 12
  %v6442 = vpop.permute.xlu0 %6441
  %6443 = vrot.lane.b32.xlu0 %v5988, 12
  %v6444 = vpop.permute.xlu0 %6443
  %6445 = vrot.lane.b32.xlu0 %v5989, 12
  %v6446 = vpop.permute.xlu0 %6445
  %6447 = vrot.lane.b32.xlu0 %v5991, 12
  %v6448 = vpop.permute.xlu0 %6447
  %6449 = vrot.lane.b32.xlu0 %v5992, 12
  %v6450 = vpop.permute.xlu0 %6449
  %6451 = vrot.lane.b32.xlu0 %v5994, 12
  %v6452 = vpop.permute.xlu0 %6451
  %6453 = vrot.lane.b32.xlu0 %v5995, 12
  %v6454 = vpop.permute.xlu0 %6453
  %6455 = vrot.lane.b32.xlu0 %v5997, 12
  %v6456 = vpop.permute.xlu0 %6455
  %6457 = vrot.lane.b32.xlu0 %v5998, 12
  %v6458 = vpop.permute.xlu0 %6457
  %6459 = vrot.lane.b32.xlu0 %v6000, 12
  %v6460 = vpop.permute.xlu0 %6459
  %6461 = vrot.lane.b32.xlu0 %v6001, 12
  %v6462 = vpop.permute.xlu0 %6461
  %6463 = vrot.lane.b32.xlu0 %v6003, 12
  %v6464 = vpop.permute.xlu0 %6463
  %6465 = vrot.lane.b32.xlu0 %v6004, 12
  %v6466 = vpop.permute.xlu0 %6465
  %6467 = vrot.lane.b32.xlu0 %v6006, 12
  %v6468 = vpop.permute.xlu0 %6467
  %6469 = vrot.lane.b32.xlu0 %v6007, 12
  %v6470 = vpop.permute.xlu0 %6469
  %6471 = vrot.lane.b32.xlu0 %v6009, 12
  %v6472 = vpop.permute.xlu0 %6471
  %6473 = vrot.lane.b32.xlu0 %v6010, 12
  %v6474 = vpop.permute.xlu0 %6473
  %6475 = vrot.lane.b32.xlu0 %v6012, 12
  %v6476 = vpop.permute.xlu0 %6475
  %6477 = vrot.lane.b32.xlu0 %v6013, 12
  %v6478 = vpop.permute.xlu0 %6477
  %6479 = vrot.lane.b32.xlu0 %v6015, 12
  %v6480 = vpop.permute.xlu0 %6479
  %6481 = vrot.lane.b32.xlu0 %v6016, 12
  %v6482 = vpop.permute.xlu0 %6481
  %6483 = vrot.lane.b32.xlu0 %v6018, 12
  %v6484 = vpop.permute.xlu0 %6483
  %6485 = vrot.lane.b32.xlu0 %v6019, 12
  %v6486 = vpop.permute.xlu0 %6485
  %6487 = vrot.lane.b32.xlu0 %v6021, 12
  %v6488 = vpop.permute.xlu0 %6487
  %6489 = vrot.lane.b32.xlu0 %v6022, 12
  %v6490 = vpop.permute.xlu0 %6489
  %6491 = vrot.lane.b32.xlu0 %v6024, 12
  %v6492 = vpop.permute.xlu0 %6491
  %6493 = vrot.lane.b32.xlu0 %v6025, 12
  %v6494 = vpop.permute.xlu0 %6493
  %6495 = vrot.lane.b32.xlu0 %v6027, 12
  %v6496 = vpop.permute.xlu0 %6495
  %6497 = vrot.lane.b32.xlu0 %v6028, 12
  %v6498 = vpop.permute.xlu0 %6497
  %v6532 = vrot.slane %v6027, 1
  %v6533 = vrot.slane %v6028, 1
  %v6534 = vsel %vm346, %v6532, %v6533
  %v6535 = vrot.slane %v6029, 1
  %v6536 = vsel %vm346, %v6533, %v6535
  %6537 = vrot.lane.b32.xlu0 %v6088, 16
  %v6538 = vpop.permute.xlu0 %6537
  %6539 = vrot.lane.b32.xlu0 %v6090, 16
  %v6540 = vpop.permute.xlu0 %6539
  %6541 = vrot.lane.b32.xlu0 %v6093, 16
  %v6542 = vpop.permute.xlu0 %6541
  %6543 = vrot.lane.b32.xlu0 %v6095, 16
  %v6544 = vpop.permute.xlu0 %6543
  %6545 = vrot.lane.b32.xlu0 %v6098, 16
  %v6546 = vpop.permute.xlu0 %6545
  %6547 = vrot.lane.b32.xlu0 %v6100, 16
  %v6548 = vpop.permute.xlu0 %6547
  %6549 = vrot.lane.b32.xlu0 %v6103, 16
  %v6550 = vpop.permute.xlu0 %6549
  %6551 = vrot.lane.b32.xlu0 %v6105, 16
  %v6552 = vpop.permute.xlu0 %6551
  %6553 = vrot.lane.b32.xlu0 %v6108, 16
  %v6554 = vpop.permute.xlu0 %6553
  %6555 = vrot.lane.b32.xlu0 %v6110, 16
  %v6556 = vpop.permute.xlu0 %6555
  %6557 = vrot.lane.b32.xlu0 %v6113, 16
  %v6558 = vpop.permute.xlu0 %6557
  %6559 = vrot.lane.b32.xlu0 %v6115, 16
  %v6560 = vpop.permute.xlu0 %6559
  %6561 = vrot.lane.b32.xlu0 %v6118, 16
  %v6562 = vpop.permute.xlu0 %6561
  %6563 = vrot.lane.b32.xlu0 %v6120, 16
  %v6564 = vpop.permute.xlu0 %6563
  %6565 = vrot.lane.b32.xlu0 %v6123, 16
  %v6566 = vpop.permute.xlu0 %6565
  %6567 = vrot.lane.b32.xlu0 %v6125, 16
  %v6568 = vpop.permute.xlu0 %6567
  %6569 = vrot.lane.b32.xlu0 %v6128, 16
  %v6570 = vpop.permute.xlu0 %6569
  %6571 = vrot.lane.b32.xlu0 %v6130, 16
  %v6572 = vpop.permute.xlu0 %6571
  %6573 = vrot.lane.b32.xlu0 %v6133, 16
  %v6574 = vpop.permute.xlu0 %6573
  %6575 = vrot.lane.b32.xlu0 %v6135, 16
  %v6576 = vpop.permute.xlu0 %6575
  %6577 = vrot.lane.b32.xlu0 %v6138, 16
  %v6578 = vpop.permute.xlu0 %6577
  %6579 = vrot.lane.b32.xlu0 %v6140, 16
  %v6580 = vpop.permute.xlu0 %6579
  %6581 = vrot.lane.b32.xlu0 %v6143, 16
  %v6582 = vpop.permute.xlu0 %6581
  %6583 = vrot.lane.b32.xlu0 %v6145, 16
  %v6584 = vpop.permute.xlu0 %6583
  %6585 = vrot.lane.b32.xlu0 %v6148, 16
  %v6586 = vpop.permute.xlu0 %6585
  %6587 = vrot.lane.b32.xlu0 %v6150, 16
  %v6588 = vpop.permute.xlu0 %6587
  %6589 = vrot.lane.b32.xlu0 %v6153, 16
  %v6590 = vpop.permute.xlu0 %6589
  %6591 = vrot.lane.b32.xlu0 %v6155, 16
  %v6592 = vpop.permute.xlu0 %6591
  %6593 = vrot.lane.b32.xlu0 %v6158, 16
  %v6594 = vpop.permute.xlu0 %6593
  %6595 = vrot.lane.b32.xlu0 %v6160, 16
  %v6596 = vpop.permute.xlu0 %6595
  %6597 = vrot.lane.b32.xlu0 %v6534, 16
  %v6598 = vpop.permute.xlu0 %6597
  %6599 = vrot.lane.b32.xlu0 %v6536, 16
  %v6600 = vpop.permute.xlu0 %6599
  %v6633 = vrot.slane %v6027, 2
  %v6634 = vrot.slane %v6028, 2
  %v6635 = vsel %vm523, %v6633, %v6634
  %v6636 = vrot.slane %v6029, 2
  %v6637 = vsel %vm523, %v6634, %v6636
  %6638 = vrot.lane.b32.xlu0 %v6264, 20
  %v6639 = vpop.permute.xlu0 %6638
  %6640 = vrot.lane.b32.xlu0 %v6266, 20
  %v6641 = vpop.permute.xlu0 %6640
  %6642 = vrot.lane.b32.xlu0 %v6269, 20
  %v6643 = vpop.permute.xlu0 %6642
  %6644 = vrot.lane.b32.xlu0 %v6271, 20
  %v6645 = vpop.permute.xlu0 %6644
  %6646 = vrot.lane.b32.xlu0 %v6274, 20
  %v6647 = vpop.permute.xlu0 %6646
  %6648 = vrot.lane.b32.xlu0 %v6276, 20
  %v6649 = vpop.permute.xlu0 %6648
  %6650 = vrot.lane.b32.xlu0 %v6279, 20
  %v6651 = vpop.permute.xlu0 %6650
  %6652 = vrot.lane.b32.xlu0 %v6281, 20
  %v6653 = vpop.permute.xlu0 %6652
  %6654 = vrot.lane.b32.xlu0 %v6284, 20
  %v6655 = vpop.permute.xlu0 %6654
  %6656 = vrot.lane.b32.xlu0 %v6286, 20
  %v6657 = vpop.permute.xlu0 %6656
  %6658 = vrot.lane.b32.xlu0 %v6289, 20
  %v6659 = vpop.permute.xlu0 %6658
  %6660 = vrot.lane.b32.xlu0 %v6291, 20
  %v6661 = vpop.permute.xlu0 %6660
  %6662 = vrot.lane.b32.xlu0 %v6294, 20
  %v6663 = vpop.permute.xlu0 %6662
  %6664 = vrot.lane.b32.xlu0 %v6296, 20
  %v6665 = vpop.permute.xlu0 %6664
  %6666 = vrot.lane.b32.xlu0 %v6299, 20
  %v6667 = vpop.permute.xlu0 %6666
  %6668 = vrot.lane.b32.xlu0 %v6301, 20
  %v6669 = vpop.permute.xlu0 %6668
  %6670 = vrot.lane.b32.xlu0 %v6304, 20
  %v6671 = vpop.permute.xlu0 %6670
  %6672 = vrot.lane.b32.xlu0 %v6306, 20
  %v6673 = vpop.permute.xlu0 %6672
  %6674 = vrot.lane.b32.xlu0 %v6309, 20
  %v6675 = vpop.permute.xlu0 %6674
  %6676 = vrot.lane.b32.xlu0 %v6311, 20
  %v6677 = vpop.permute.xlu0 %6676
  %6678 = vrot.lane.b32.xlu0 %v6314, 20
  %v6679 = vpop.permute.xlu0 %6678
  %6680 = vrot.lane.b32.xlu0 %v6316, 20
  %v6681 = vpop.permute.xlu0 %6680
  %6682 = vrot.lane.b32.xlu0 %v6319, 20
  %v6683 = vpop.permute.xlu0 %6682
  %6684 = vrot.lane.b32.xlu0 %v6321, 20
  %v6685 = vpop.permute.xlu0 %6684
  %6686 = vrot.lane.b32.xlu0 %v6324, 20
  %v6687 = vpop.permute.xlu0 %6686
  %6688 = vrot.lane.b32.xlu0 %v6326, 20
  %v6689 = vpop.permute.xlu0 %6688
  %6690 = vrot.lane.b32.xlu0 %v6329, 20
  %v6691 = vpop.permute.xlu0 %6690
  %6692 = vrot.lane.b32.xlu0 %v6331, 20
  %v6693 = vpop.permute.xlu0 %6692
  %6694 = vrot.lane.b32.xlu0 %v6334, 20
  %v6695 = vpop.permute.xlu0 %6694
  %6696 = vrot.lane.b32.xlu0 %v6336, 20
  %v6697 = vpop.permute.xlu0 %6696
  %6698 = vrot.lane.b32.xlu0 %v6635, 20
  %v6699 = vpop.permute.xlu0 %6698
  %6700 = vrot.lane.b32.xlu0 %v6637, 20
  %v6701 = vpop.permute.xlu0 %6700
  %6736 = vrot.lane.b32.xlu0 %v5985, 24
  %v6737 = vpop.permute.xlu0 %6736
  %6738 = vrot.lane.b32.xlu0 %v5986, 24
  %v6739 = vpop.permute.xlu0 %6738
  %6740 = vrot.lane.b32.xlu0 %v5988, 24
  %v6741 = vpop.permute.xlu0 %6740
  %6742 = vrot.lane.b32.xlu0 %v5989, 24
  %v6743 = vpop.permute.xlu0 %6742
  %6744 = vrot.lane.b32.xlu0 %v5991, 24
  %v6745 = vpop.permute.xlu0 %6744
  %6746 = vrot.lane.b32.xlu0 %v5992, 24
  %v6747 = vpop.permute.xlu0 %6746
  %6748 = vrot.lane.b32.xlu0 %v5994, 24
  %v6749 = vpop.permute.xlu0 %6748
  %6750 = vrot.lane.b32.xlu0 %v5995, 24
  %v6751 = vpop.permute.xlu0 %6750
  %6752 = vrot.lane.b32.xlu0 %v5997, 24
  %v6753 = vpop.permute.xlu0 %6752
  %6754 = vrot.lane.b32.xlu0 %v5998, 24
  %v6755 = vpop.permute.xlu0 %6754
  %6756 = vrot.lane.b32.xlu0 %v6000, 24
  %v6757 = vpop.permute.xlu0 %6756
  %6758 = vrot.lane.b32.xlu0 %v6001, 24
  %v6759 = vpop.permute.xlu0 %6758
  %6760 = vrot.lane.b32.xlu0 %v6003, 24
  %v6761 = vpop.permute.xlu0 %6760
  %6762 = vrot.lane.b32.xlu0 %v6004, 24
  %v6763 = vpop.permute.xlu0 %6762
  %6764 = vrot.lane.b32.xlu0 %v6006, 24
  %v6765 = vpop.permute.xlu0 %6764
  %6766 = vrot.lane.b32.xlu0 %v6007, 24
  %v6767 = vpop.permute.xlu0 %6766
  %6768 = vrot.lane.b32.xlu0 %v6009, 24
  %v6769 = vpop.permute.xlu0 %6768
  %6770 = vrot.lane.b32.xlu0 %v6010, 24
  %v6771 = vpop.permute.xlu0 %6770
  %6772 = vrot.lane.b32.xlu0 %v6012, 24
  %v6773 = vpop.permute.xlu0 %6772
  %6774 = vrot.lane.b32.xlu0 %v6013, 24
  %v6775 = vpop.permute.xlu0 %6774
  %6776 = vrot.lane.b32.xlu0 %v6015, 24
  %v6777 = vpop.permute.xlu0 %6776
  %6778 = vrot.lane.b32.xlu0 %v6016, 24
  %v6779 = vpop.permute.xlu0 %6778
  %6780 = vrot.lane.b32.xlu0 %v6018, 24
  %v6781 = vpop.permute.xlu0 %6780
  %6782 = vrot.lane.b32.xlu0 %v6019, 24
  %v6783 = vpop.permute.xlu0 %6782
  %6784 = vrot.lane.b32.xlu0 %v6021, 24
  %v6785 = vpop.permute.xlu0 %6784
  %6786 = vrot.lane.b32.xlu0 %v6022, 24
  %v6787 = vpop.permute.xlu0 %6786
  %6788 = vrot.lane.b32.xlu0 %v6024, 24
  %v6789 = vpop.permute.xlu0 %6788
  %6790 = vrot.lane.b32.xlu0 %v6025, 24
  %v6791 = vpop.permute.xlu0 %6790
  %6792 = vrot.lane.b32.xlu0 %v6027, 24
  %v6793 = vpop.permute.xlu0 %6792
  %6794 = vrot.lane.b32.xlu0 %v6028, 24
  %v6795 = vpop.permute.xlu0 %6794
  %6796 = vrot.lane.b32.xlu0 %v6030, 24
  %v6797 = vpop.permute.xlu0 %6796
  %6798 = vrot.lane.b32.xlu0 %v6031, 24
  %v6799 = vpop.permute.xlu0 %6798
  %v6833 = vrot.slane %v6030, 1
  %v6834 = vrot.slane %v6031, 1
  %v6835 = vsel %vm346, %v6833, %v6834
  %v6836 = vrot.slane %v6032, 1
  %v6837 = vsel %vm346, %v6834, %v6836
  %6838 = vrot.lane.b32.xlu0 %v6093, 28
  %v6839 = vpop.permute.xlu0 %6838
  %6840 = vrot.lane.b32.xlu0 %v6095, 28
  %v6841 = vpop.permute.xlu0 %6840
  %6842 = vrot.lane.b32.xlu0 %v6098, 28
  %v6843 = vpop.permute.xlu0 %6842
  %6844 = vrot.lane.b32.xlu0 %v6100, 28
  %v6845 = vpop.permute.xlu0 %6844
  %6846 = vrot.lane.b32.xlu0 %v6103, 28
  %v6847 = vpop.permute.xlu0 %6846
  %6848 = vrot.lane.b32.xlu0 %v6105, 28
  %v6849 = vpop.permute.xlu0 %6848
  %6850 = vrot.lane.b32.xlu0 %v6108, 28
  %v6851 = vpop.permute.xlu0 %6850
  %6852 = vrot.lane.b32.xlu0 %v6110, 28
  %v6853 = vpop.permute.xlu0 %6852
  %6854 = vrot.lane.b32.xlu0 %v6113, 28
  %v6855 = vpop.permute.xlu0 %6854
  %6856 = vrot.lane.b32.xlu0 %v6115, 28
  %v6857 = vpop.permute.xlu0 %6856
  %6858 = vrot.lane.b32.xlu0 %v6118, 28
  %v6859 = vpop.permute.xlu0 %6858
  %6860 = vrot.lane.b32.xlu0 %v6120, 28
  %v6861 = vpop.permute.xlu0 %6860
  %6862 = vrot.lane.b32.xlu0 %v6123, 28
  %v6863 = vpop.permute.xlu0 %6862
  %6864 = vrot.lane.b32.xlu0 %v6125, 28
  %v6865 = vpop.permute.xlu0 %6864
  %6866 = vrot.lane.b32.xlu0 %v6128, 28
  %v6867 = vpop.permute.xlu0 %6866
  %6868 = vrot.lane.b32.xlu0 %v6130, 28
  %v6869 = vpop.permute.xlu0 %6868
  %6870 = vrot.lane.b32.xlu0 %v6133, 28
  %v6871 = vpop.permute.xlu0 %6870
  %6872 = vrot.lane.b32.xlu0 %v6135, 28
  %v6873 = vpop.permute.xlu0 %6872
  %6874 = vrot.lane.b32.xlu0 %v6138, 28
  %v6875 = vpop.permute.xlu0 %6874
  %6876 = vrot.lane.b32.xlu0 %v6140, 28
  %v6877 = vpop.permute.xlu0 %6876
  %6878 = vrot.lane.b32.xlu0 %v6143, 28
  %v6879 = vpop.permute.xlu0 %6878
  %6880 = vrot.lane.b32.xlu0 %v6145, 28
  %v6881 = vpop.permute.xlu0 %6880
  %6882 = vrot.lane.b32.xlu0 %v6148, 28
  %v6883 = vpop.permute.xlu0 %6882
  %6884 = vrot.lane.b32.xlu0 %v6150, 28
  %v6885 = vpop.permute.xlu0 %6884
  %6886 = vrot.lane.b32.xlu0 %v6153, 28
  %v6887 = vpop.permute.xlu0 %6886
  %6888 = vrot.lane.b32.xlu0 %v6155, 28
  %v6889 = vpop.permute.xlu0 %6888
  %6890 = vrot.lane.b32.xlu0 %v6158, 28
  %v6891 = vpop.permute.xlu0 %6890
  %6892 = vrot.lane.b32.xlu0 %v6160, 28
  %v6893 = vpop.permute.xlu0 %6892
  %6894 = vrot.lane.b32.xlu0 %v6534, 28
  %v6895 = vpop.permute.xlu0 %6894
  %6896 = vrot.lane.b32.xlu0 %v6536, 28
  %v6897 = vpop.permute.xlu0 %6896
  %6898 = vrot.lane.b32.xlu0 %v6835, 28
  %v6899 = vpop.permute.xlu0 %6898
  %6900 = vrot.lane.b32.xlu0 %v6837, 28
  %v6901 = vpop.permute.xlu0 %6900
  %v6934 = vrot.slane %v6030, 2
  %v6935 = vrot.slane %v6031, 2
  %v6936 = vsel %vm523, %v6934, %v6935
  %v6937 = vrot.slane %v6032, 2
  %v6938 = vsel %vm523, %v6935, %v6937
  %6939 = vrot.lane.b32.xlu0 %v6269, 32
  %v6940 = vpop.permute.xlu0 %6939
  %6941 = vrot.lane.b32.xlu0 %v6271, 32
  %v6942 = vpop.permute.xlu0 %6941
  %6943 = vrot.lane.b32.xlu0 %v6274, 32
  %v6944 = vpop.permute.xlu0 %6943
  %6945 = vrot.lane.b32.xlu0 %v6276, 32
  %v6946 = vpop.permute.xlu0 %6945
  %6947 = vrot.lane.b32.xlu0 %v6279, 32
  %v6948 = vpop.permute.xlu0 %6947
  %6949 = vrot.lane.b32.xlu0 %v6281, 32
  %v6950 = vpop.permute.xlu0 %6949
  %6951 = vrot.lane.b32.xlu0 %v6284, 32
  %v6952 = vpop.permute.xlu0 %6951
  %6953 = vrot.lane.b32.xlu0 %v6286, 32
  %v6954 = vpop.permute.xlu0 %6953
  %6955 = vrot.lane.b32.xlu0 %v6289, 32
  %v6956 = vpop.permute.xlu0 %6955
  %6957 = vrot.lane.b32.xlu0 %v6291, 32
  %v6958 = vpop.permute.xlu0 %6957
  %6959 = vrot.lane.b32.xlu0 %v6294, 32
  %v6960 = vpop.permute.xlu0 %6959
  %6961 = vrot.lane.b32.xlu0 %v6296, 32
  %v6962 = vpop.permute.xlu0 %6961
  %6963 = vrot.lane.b32.xlu0 %v6299, 32
  %v6964 = vpop.permute.xlu0 %6963
  %6965 = vrot.lane.b32.xlu0 %v6301, 32
  %v6966 = vpop.permute.xlu0 %6965
  %6967 = vrot.lane.b32.xlu0 %v6304, 32
  %v6968 = vpop.permute.xlu0 %6967
  %6969 = vrot.lane.b32.xlu0 %v6306, 32
  %v6970 = vpop.permute.xlu0 %6969
  %6971 = vrot.lane.b32.xlu0 %v6309, 32
  %v6972 = vpop.permute.xlu0 %6971
  %6973 = vrot.lane.b32.xlu0 %v6311, 32
  %v6974 = vpop.permute.xlu0 %6973
  %6975 = vrot.lane.b32.xlu0 %v6314, 32
  %v6976 = vpop.permute.xlu0 %6975
  %6977 = vrot.lane.b32.xlu0 %v6316, 32
  %v6978 = vpop.permute.xlu0 %6977
  %6979 = vrot.lane.b32.xlu0 %v6319, 32
  %v6980 = vpop.permute.xlu0 %6979
  %6981 = vrot.lane.b32.xlu0 %v6321, 32
  %v6982 = vpop.permute.xlu0 %6981
  %6983 = vrot.lane.b32.xlu0 %v6324, 32
  %v6984 = vpop.permute.xlu0 %6983
  %6985 = vrot.lane.b32.xlu0 %v6326, 32
  %v6986 = vpop.permute.xlu0 %6985
  %6987 = vrot.lane.b32.xlu0 %v6329, 32
  %v6988 = vpop.permute.xlu0 %6987
  %6989 = vrot.lane.b32.xlu0 %v6331, 32
  %v6990 = vpop.permute.xlu0 %6989
  %6991 = vrot.lane.b32.xlu0 %v6334, 32
  %v6992 = vpop.permute.xlu0 %6991
  %6993 = vrot.lane.b32.xlu0 %v6336, 32
  %v6994 = vpop.permute.xlu0 %6993
  %6995 = vrot.lane.b32.xlu0 %v6635, 32
  %v6996 = vpop.permute.xlu0 %6995
  %6997 = vrot.lane.b32.xlu0 %v6637, 32
  %v6998 = vpop.permute.xlu0 %6997
  %6999 = vrot.lane.b32.xlu0 %v6936, 32
  %v7000 = vpop.permute.xlu0 %6999
  %7001 = vrot.lane.b32.xlu0 %v6938, 32
  %v7002 = vpop.permute.xlu0 %7001
  %v7035 = vsel %vm27, %v5979, %v6162
  %v7036 = vsel %vm27, %v5980, %v6164
  %v7037 = vsel %vm27, %v5982, %v6166
  %v7038 = vsel %vm27, %v5983, %v6168
  %v7039 = vsel %vm27, %v5985, %v6170
  %v7040 = vsel %vm27, %v5986, %v6172
  %v7041 = vsel %vm27, %v5988, %v6174
  %v7042 = vsel %vm27, %v5989, %v6176
  %v7043 = vsel %vm27, %v5991, %v6178
  %v7044 = vsel %vm27, %v5992, %v6180
  %v7045 = vsel %vm27, %v5994, %v6182
  %v7046 = vsel %vm27, %v5995, %v6184
  %v7047 = vsel %vm27, %v5997, %v6186
  %v7048 = vsel %vm27, %v5998, %v6188
  %v7049 = vsel %vm27, %v6000, %v6190
  %v7050 = vsel %vm27, %v6001, %v6192
  %v7051 = vsel %vm27, %v6003, %v6194
  %v7052 = vsel %vm27, %v6004, %v6196
  %v7053 = vsel %vm27, %v6006, %v6198
  %v7054 = vsel %vm27, %v6007, %v6200
  %v7055 = vsel %vm27, %v6009, %v6202
  %v7056 = vsel %vm27, %v6010, %v6204
  %v7057 = vsel %vm27, %v6012, %v6206
  %v7058 = vsel %vm27, %v6013, %v6208
  %v7059 = vsel %vm27, %v6015, %v6210
  %v7060 = vsel %vm27, %v6016, %v6212
  %v7061 = vsel %vm27, %v6018, %v6214
  %v7062 = vsel %vm27, %v6019, %v6216
  %v7063 = vsel %vm27, %v6021, %v6218
  %v7064 = vsel %vm27, %v6022, %v6220
  %v7065 = vsel %vm27, %v6024, %v6222
  %v7066 = vsel %vm27, %v6025, %v6224
  %v7067 = vsel %vm1334, %v7035, %v6338
  %v7068 = vsel %vm1334, %v7036, %v6340
  %v7069 = vsel %vm1334, %v7037, %v6342
  %v7070 = vsel %vm1334, %v7038, %v6344
  %v7071 = vsel %vm1334, %v7039, %v6346
  %v7072 = vsel %vm1334, %v7040, %v6348
  %v7073 = vsel %vm1334, %v7041, %v6350
  %v7074 = vsel %vm1334, %v7042, %v6352
  %v7075 = vsel %vm1334, %v7043, %v6354
  %v7076 = vsel %vm1334, %v7044, %v6356
  %v7077 = vsel %vm1334, %v7045, %v6358
  %v7078 = vsel %vm1334, %v7046, %v6360
  %v7079 = vsel %vm1334, %v7047, %v6362
  %v7080 = vsel %vm1334, %v7048, %v6364
  %v7081 = vsel %vm1334, %v7049, %v6366
  %v7082 = vsel %vm1334, %v7050, %v6368
  %v7083 = vsel %vm1334, %v7051, %v6370
  %v7084 = vsel %vm1334, %v7052, %v6372
  %v7085 = vsel %vm1334, %v7053, %v6374
  %v7086 = vsel %vm1334, %v7054, %v6376
  %v7087 = vsel %vm1334, %v7055, %v6378
  %v7088 = vsel %vm1334, %v7056, %v6380
  %v7089 = vsel %vm1334, %v7057, %v6382
  %v7090 = vsel %vm1334, %v7058, %v6384
  %v7091 = vsel %vm1334, %v7059, %v6386
  %v7092 = vsel %vm1334, %v7060, %v6388
  %v7093 = vsel %vm1334, %v7061, %v6390
  %v7094 = vsel %vm1334, %v7062, %v6392
  %v7095 = vsel %vm1334, %v7063, %v6394
  %v7096 = vsel %vm1334, %v7064, %v6396
  %v7097 = vsel %vm1334, %v7065, %v6398
  %v7098 = vsel %vm1334, %v7066, %v6400
  %v7099 = vsel %vm1367, %v7067, %v6436
  %v7100 = vsel %vm1367, %v7068, %v6438
  %v7101 = vsel %vm1367, %v7069, %v6440
  %v7102 = vsel %vm1367, %v7070, %v6442
  %v7103 = vsel %vm1367, %v7071, %v6444
  %v7104 = vsel %vm1367, %v7072, %v6446
  %v7105 = vsel %vm1367, %v7073, %v6448
  %v7106 = vsel %vm1367, %v7074, %v6450
  %v7107 = vsel %vm1367, %v7075, %v6452
  %v7108 = vsel %vm1367, %v7076, %v6454
  %v7109 = vsel %vm1367, %v7077, %v6456
  %v7110 = vsel %vm1367, %v7078, %v6458
  %v7111 = vsel %vm1367, %v7079, %v6460
  %v7112 = vsel %vm1367, %v7080, %v6462
  %v7113 = vsel %vm1367, %v7081, %v6464
  %v7114 = vsel %vm1367, %v7082, %v6466
  %v7115 = vsel %vm1367, %v7083, %v6468
  %v7116 = vsel %vm1367, %v7084, %v6470
  %v7117 = vsel %vm1367, %v7085, %v6472
  %v7118 = vsel %vm1367, %v7086, %v6474
  %v7119 = vsel %vm1367, %v7087, %v6476
  %v7120 = vsel %vm1367, %v7088, %v6478
  %v7121 = vsel %vm1367, %v7089, %v6480
  %v7122 = vsel %vm1367, %v7090, %v6482
  %v7123 = vsel %vm1367, %v7091, %v6484
  %v7124 = vsel %vm1367, %v7092, %v6486
  %v7125 = vsel %vm1367, %v7093, %v6488
  %v7126 = vsel %vm1367, %v7094, %v6490
  %v7127 = vsel %vm1367, %v7095, %v6492
  %v7128 = vsel %vm1367, %v7096, %v6494
  %v7129 = vsel %vm1367, %v7097, %v6496
  %v7130 = vsel %vm1367, %v7098, %v6498
  %v7131 = vsel %vm1400, %v7099, %v6538
  %v7132 = vsel %vm1400, %v7100, %v6540
  %v7133 = vsel %vm1400, %v7101, %v6542
  %v7134 = vsel %vm1400, %v7102, %v6544
  %v7135 = vsel %vm1400, %v7103, %v6546
  %v7136 = vsel %vm1400, %v7104, %v6548
  %v7137 = vsel %vm1400, %v7105, %v6550
  %v7138 = vsel %vm1400, %v7106, %v6552
  %v7139 = vsel %vm1400, %v7107, %v6554
  %v7140 = vsel %vm1400, %v7108, %v6556
  %v7141 = vsel %vm1400, %v7109, %v6558
  %v7142 = vsel %vm1400, %v7110, %v6560
  %v7143 = vsel %vm1400, %v7111, %v6562
  %v7144 = vsel %vm1400, %v7112, %v6564
  %v7145 = vsel %vm1400, %v7113, %v6566
  %v7146 = vsel %vm1400, %v7114, %v6568
  %v7147 = vsel %vm1400, %v7115, %v6570
  %v7148 = vsel %vm1400, %v7116, %v6572
  %v7149 = vsel %vm1400, %v7117, %v6574
  %v7150 = vsel %vm1400, %v7118, %v6576
  %v7151 = vsel %vm1400, %v7119, %v6578
  %v7152 = vsel %vm1400, %v7120, %v6580
  %v7153 = vsel %vm1400, %v7121, %v6582
  %v7154 = vsel %vm1400, %v7122, %v6584
  %v7155 = vsel %vm1400, %v7123, %v6586
  %v7156 = vsel %vm1400, %v7124, %v6588
  %v7157 = vsel %vm1400, %v7125, %v6590
  %v7158 = vsel %vm1400, %v7126, %v6592
  %v7159 = vsel %vm1400, %v7127, %v6594
  %v7160 = vsel %vm1400, %v7128, %v6596
  %v7161 = vsel %vm1400, %v7129, %v6598
  %v7162 = vsel %vm1400, %v7130, %v6600
  %v7163 = vsel %vm1433, %v7131, %v6639
  %v7164 = vsel %vm1433, %v7132, %v6641
  %v7165 = vsel %vm1433, %v7133, %v6643
  %v7166 = vsel %vm1433, %v7134, %v6645
  %v7167 = vsel %vm1433, %v7135, %v6647
  %v7168 = vsel %vm1433, %v7136, %v6649
  %v7169 = vsel %vm1433, %v7137, %v6651
  %v7170 = vsel %vm1433, %v7138, %v6653
  %v7171 = vsel %vm1433, %v7139, %v6655
  %v7172 = vsel %vm1433, %v7140, %v6657
  %v7173 = vsel %vm1433, %v7141, %v6659
  %v7174 = vsel %vm1433, %v7142, %v6661
  %v7175 = vsel %vm1433, %v7143, %v6663
  %v7176 = vsel %vm1433, %v7144, %v6665
  %v7177 = vsel %vm1433, %v7145, %v6667
  %v7178 = vsel %vm1433, %v7146, %v6669
  %v7179 = vsel %vm1433, %v7147, %v6671
  %v7180 = vsel %vm1433, %v7148, %v6673
  %v7181 = vsel %vm1433, %v7149, %v6675
  %v7182 = vsel %vm1433, %v7150, %v6677
  %v7183 = vsel %vm1433, %v7151, %v6679
  %v7184 = vsel %vm1433, %v7152, %v6681
  %v7185 = vsel %vm1433, %v7153, %v6683
  %v7186 = vsel %vm1433, %v7154, %v6685
  %v7187 = vsel %vm1433, %v7155, %v6687
  %v7188 = vsel %vm1433, %v7156, %v6689
  %v7189 = vsel %vm1433, %v7157, %v6691
  %v7190 = vsel %vm1433, %v7158, %v6693
  %v7191 = vsel %vm1433, %v7159, %v6695
  %v7192 = vsel %vm1433, %v7160, %v6697
  %v7193 = vsel %vm1433, %v7161, %v6699
  %v7194 = vsel %vm1433, %v7162, %v6701
  %v7195 = vsel %vm1466, %v7163, %v6737
  %v7196 = vsel %vm1466, %v7164, %v6739
  %v7197 = vsel %vm1466, %v7165, %v6741
  %v7198 = vsel %vm1466, %v7166, %v6743
  %v7199 = vsel %vm1466, %v7167, %v6745
  %v7200 = vsel %vm1466, %v7168, %v6747
  %v7201 = vsel %vm1466, %v7169, %v6749
  %v7202 = vsel %vm1466, %v7170, %v6751
  %v7203 = vsel %vm1466, %v7171, %v6753
  %v7204 = vsel %vm1466, %v7172, %v6755
  %v7205 = vsel %vm1466, %v7173, %v6757
  %v7206 = vsel %vm1466, %v7174, %v6759
  %v7207 = vsel %vm1466, %v7175, %v6761
  %v7208 = vsel %vm1466, %v7176, %v6763
  %v7209 = vsel %vm1466, %v7177, %v6765
  %v7210 = vsel %vm1466, %v7178, %v6767
  %v7211 = vsel %vm1466, %v7179, %v6769
  %v7212 = vsel %vm1466, %v7180, %v6771
  %v7213 = vsel %vm1466, %v7181, %v6773
  %v7214 = vsel %vm1466, %v7182, %v6775
  %v7215 = vsel %vm1466, %v7183, %v6777
  %v7216 = vsel %vm1466, %v7184, %v6779
  %v7217 = vsel %vm1466, %v7185, %v6781
  %v7218 = vsel %vm1466, %v7186, %v6783
  %v7219 = vsel %vm1466, %v7187, %v6785
  %v7220 = vsel %vm1466, %v7188, %v6787
  %v7221 = vsel %vm1466, %v7189, %v6789
  %v7222 = vsel %vm1466, %v7190, %v6791
  %v7223 = vsel %vm1466, %v7191, %v6793
  %v7224 = vsel %vm1466, %v7192, %v6795
  %v7225 = vsel %vm1466, %v7193, %v6797
  %v7226 = vsel %vm1466, %v7194, %v6799
  %v7227 = vsel %vm1499, %v7195, %v6839
  %v7228 = vsel %vm1499, %v7196, %v6841
  %v7229 = vsel %vm1499, %v7197, %v6843
  %v7230 = vsel %vm1499, %v7198, %v6845
  %v7231 = vsel %vm1499, %v7199, %v6847
  %v7232 = vsel %vm1499, %v7200, %v6849
  %v7233 = vsel %vm1499, %v7201, %v6851
  %v7234 = vsel %vm1499, %v7202, %v6853
  %v7235 = vsel %vm1499, %v7203, %v6855
  %v7236 = vsel %vm1499, %v7204, %v6857
  %v7237 = vsel %vm1499, %v7205, %v6859
  %v7238 = vsel %vm1499, %v7206, %v6861
  %v7239 = vsel %vm1499, %v7207, %v6863
  %v7240 = vsel %vm1499, %v7208, %v6865
  %v7241 = vsel %vm1499, %v7209, %v6867
  %v7242 = vsel %vm1499, %v7210, %v6869
  %v7243 = vsel %vm1499, %v7211, %v6871
  %v7244 = vsel %vm1499, %v7212, %v6873
  %v7245 = vsel %vm1499, %v7213, %v6875
  %v7246 = vsel %vm1499, %v7214, %v6877
  %v7247 = vsel %vm1499, %v7215, %v6879
  %v7248 = vsel %vm1499, %v7216, %v6881
  %v7249 = vsel %vm1499, %v7217, %v6883
  %v7250 = vsel %vm1499, %v7218, %v6885
  %v7251 = vsel %vm1499, %v7219, %v6887
  %v7252 = vsel %vm1499, %v7220, %v6889
  %v7253 = vsel %vm1499, %v7221, %v6891
  %v7254 = vsel %vm1499, %v7222, %v6893
  %v7255 = vsel %vm1499, %v7223, %v6895
  %v7256 = vsel %vm1499, %v7224, %v6897
  %v7257 = vsel %vm1499, %v7225, %v6899
  %v7258 = vsel %vm1499, %v7226, %v6901
  %v7259 = vsel %vm1532, %v7227, %v6940
  %v7260 = vsel %vm1532, %v7228, %v6942
  %v7261 = vsel %vm1532, %v7229, %v6944
  %v7262 = vsel %vm1532, %v7230, %v6946
  %v7263 = vsel %vm1532, %v7231, %v6948
  %v7264 = vsel %vm1532, %v7232, %v6950
  %v7265 = vsel %vm1532, %v7233, %v6952
  %v7266 = vsel %vm1532, %v7234, %v6954
  %v7267 = vsel %vm1532, %v7235, %v6956
  %v7268 = vsel %vm1532, %v7236, %v6958
  %v7269 = vsel %vm1532, %v7237, %v6960
  %v7270 = vsel %vm1532, %v7238, %v6962
  %v7271 = vsel %vm1532, %v7239, %v6964
  %v7272 = vsel %vm1532, %v7240, %v6966
  %v7273 = vsel %vm1532, %v7241, %v6968
  %v7274 = vsel %vm1532, %v7242, %v6970
  %v7275 = vsel %vm1532, %v7243, %v6972
  %v7276 = vsel %vm1532, %v7244, %v6974
  %v7277 = vsel %vm1532, %v7245, %v6976
  %v7278 = vsel %vm1532, %v7246, %v6978
  %v7279 = vsel %vm1532, %v7247, %v6980
  %v7280 = vsel %vm1532, %v7248, %v6982
  %v7281 = vsel %vm1532, %v7249, %v6984
  %v7282 = vsel %vm1532, %v7250, %v6986
  %v7283 = vsel %vm1532, %v7251, %v6988
  %v7284 = vsel %vm1532, %v7252, %v6990
  %v7285 = vsel %vm1532, %v7253, %v6992
  %v7286 = vsel %vm1532, %v7254, %v6994
  %v7287 = vsel %vm1532, %v7255, %v6996
  %v7288 = vsel %vm1532, %v7256, %v6998
  %v7289 = vsel %vm1532, %v7257, %v7000
  %v7290 = vsel %vm1532, %v7258, %v7002
  %v7291 = vpack.c.bf16 %v7260, %v7259
  %v7292 = vpack.c.bf16 %v7262, %v7261
  %v7293 = vpack.c.bf16 %v7264, %v7263
  %v7294 = vpack.c.bf16 %v7266, %v7265
  %v7295 = vpack.c.bf16 %v7268, %v7267
  %v7296 = vpack.c.bf16 %v7270, %v7269
  %v7297 = vpack.c.bf16 %v7272, %v7271
  %v7298 = vpack.c.bf16 %v7274, %v7273
  %v7299 = vpack.c.bf16 %v7276, %v7275
  %v7300 = vpack.c.bf16 %v7278, %v7277
  %v7301 = vpack.c.bf16 %v7280, %v7279
  %v7302 = vpack.c.bf16 %v7282, %v7281
  %v7303 = vpack.c.bf16 %v7284, %v7283
  %v7304 = vpack.c.bf16 %v7286, %v7285
  %v7305 = vpack.c.bf16 %v7288, %v7287
  %v7306 = vpack.c.bf16 %v7290, %v7289
  %v7307 = vld [vmem:[%s4] sm:$0xf]
  %v7308 = vld [vmem:[%s4 + $0x4] sm:$0xf]
  %v7309 = vld [vmem:[%s4 + $0x8] sm:$0xf]
  %v7310 = vld [vmem:[%s4 + $0xc] sm:$0xf]
  %v7311 = vld [vmem:[%s4 + $0x10] sm:$0x3]
  %v7317 = vunpack.c.l.b16 %v7307
  %v7318 = vunpack.c.l.b16 %v7308
  %v7319 = vunpack.c.l.b16 %v7309
  %v7320 = vunpack.c.l.b16 %v7310
  %v7321 = vunpack.c.l.b16 %v7311
  %v7322 = vpack.c.b16 %v7318, %v7317
  %v7323 = vpack.c.b16 %v7320, %v7319
  %v7324 = vpack.c.b16 %v7321, %v7321
  %v7328 = vsel %vm1601, %v7291, 0
  %v7331 = vsel %vm1601, %v7292, 0
  %v7334 = vsel %vm1601, %v7293, 0
  %v7337 = vsel %vm1601, %v7294, 0
  %v7340 = vsel %vm1601, %v7295, 0
  %v7343 = vsel %vm1601, %v7296, 0
  %v7346 = vsel %vm1601, %v7297, 0
  %v7349 = vsel %vm1601, %v7298, 0
  %v7352 = vsel %vm1601, %v7299, 0
  %v7355 = vsel %vm1601, %v7300, 0
  %v7358 = vsel %vm1601, %v7301, 0
  %v7361 = vsel %vm1601, %v7302, 0
  %v7364 = vsel %vm1601, %v7303, 0
  %v7367 = vsel %vm1601, %v7304, 0
  %v7370 = vsel %vm1601, %v7305, 0
  %v7373 = vsel %vm1601, %v7306, 0
  %v7376 = vsel %vm1650, %v7324, 0
  %7378 = vmatprep.subr.bf16.mxu0 0
  %7379 = vmatpush1.bf16.msra.mxu0 %v7322
  %7380 = vmatprep.subr.bf16.mxu0 0
  %7381 = vmatpush1.bf16.msra.mxu0 %v7323
  %7382 = vmatprep.subr.bf16.mxu0 0
  %7383 = vmatpush1.bf16.msra.mxu0 %v7376
  %7384 = vmatprep.subr.bf16.mxu0 0
  %7385 = vmatpush1.bf16.msra.mxu0 0
  %7386 = vmatprep.subr.bf16.mxu0 0
  %7387 = vmatpush1.bf16.msra.mxu0 0
  %7388 = vmatprep.subr.bf16.mxu0 0
  %7389 = vmatpush1.bf16.msra.mxu0 0
  %7390 = vmatprep.subr.bf16.mxu0 0
  %7391 = vmatpush1.bf16.msra.mxu0 0
  %7392 = vmatprep.subr.bf16.mxu0 0
  %7393 = vmatpush1.bf16.msra.mxu0 0
  %7394 = vmatprep.subr.bf16.mxu0 0
  %7395 = vmatpush1.bf16.msra.mxu0 0
  %7396 = vmatprep.subr.bf16.mxu0 0
  %7397 = vmatpush1.bf16.msra.mxu0 0
  %7398 = vmatprep.subr.bf16.mxu0 0
  %7399 = vmatpush1.bf16.msra.mxu0 0
  %7400 = vmatprep.subr.bf16.mxu0 0
  %7401 = vmatpush1.bf16.msra.mxu0 0
  %7402 = vmatprep.subr.bf16.mxu0 0
  %7403 = vmatpush1.bf16.msra.mxu0 0
  %7404 = vmatprep.subr.bf16.mxu0 0
  %7405 = vmatpush1.bf16.msra.mxu0 0
  %7406 = vmatprep.subr.bf16.mxu0 0
  %7407 = vmatpush1.bf16.msra.mxu0 0
  %7408 = vmatprep.subr.bf16.mxu0 0
  %7409 = vmatpush1.bf16.msra.mxu0 0
  %7410 = vmatprep.mubr.bf16.mxu0 0
  %7411 = vmatmul.mubr.bf16.gmra.mrb[0].mxu0 %v7328
  %v7412 = vpop.f32.mrb[0].mxu0
  %v7413 = vadd.f32 0.0, %v7412
  %v7414 = vpop.f32.mrb[0].mxu0
  %v7415 = vpop.f32.mrb[0].mxu0
  %v7416 = vadd.f32 0.0, %v7415
  %v7417 = vpop.f32.mrb[0].mxu0
  %7418 = vmatprep.mubr.bf16.mxu0 0
  %7419 = vmatmul.mubr.bf16.gmra.mrb[0].mxu0 %v7331
  %v7420 = vpop.f32.mrb[0].mxu0
  %v7421 = vadd.f32 0.0, %v7420
  %v7422 = vpop.f32.mrb[0].mxu0
  %v7423 = vpop.f32.mrb[0].mxu0
  %v7424 = vadd.f32 0.0, %v7423
  %v7425 = vpop.f32.mrb[0].mxu0
  %7426 = vmatprep.mubr.bf16.mxu0 0
  %7427 = vmatmul.mubr.bf16.gmra.mrb[0].mxu0 %v7334
  %v7428 = vpop.f32.mrb[0].mxu0
  %v7429 = vadd.f32 0.0, %v7428
  %v7430 = vpop.f32.mrb[0].mxu0
  %v7431 = vpop.f32.mrb[0].mxu0
  %v7432 = vadd.f32 0.0, %v7431
  %v7433 = vpop.f32.mrb[0].mxu0
  %7434 = vmatprep.mubr.bf16.mxu0 0
  %7435 = vmatmul.mubr.bf16.gmra.mrb[0].mxu0 %v7337
  %v7436 = vpop.f32.mrb[0].mxu0
  %v7437 = vadd.f32 0.0, %v7436
  %v7438 = vpop.f32.mrb[0].mxu0
  %v7439 = vpop.f32.mrb[0].mxu0
  %v7440 = vadd.f32 0.0, %v7439
  %v7441 = vpop.f32.mrb[0].mxu0
  %7442 = vmatprep.mubr.bf16.mxu0 0
  %7443 = vmatmul.mubr.bf16.gmra.mrb[0].mxu0 %v7340
  %v7444 = vpop.f32.mrb[0].mxu0
  %v7445 = vadd.f32 0.0, %v7444
  %v7446 = vpop.f32.mrb[0].mxu0
  %v7447 = vpop.f32.mrb[0].mxu0
  %v7448 = vadd.f32 0.0, %v7447
  %v7449 = vpop.f32.mrb[0].mxu0
  %7450 = vmatprep.mubr.bf16.mxu0 0
  %7451 = vmatmul.mubr.bf16.gmra.mrb[0].mxu0 %v7343
  %v7452 = vpop.f32.mrb[0].mxu0
  %v7453 = vadd.f32 0.0, %v7452
  %v7454 = vpop.f32.mrb[0].mxu0
  %v7455 = vpop.f32.mrb[0].mxu0
  %v7456 = vadd.f32 0.0, %v7455
  %v7457 = vpop.f32.mrb[0].mxu0
  %7458 = vmatprep.mubr.bf16.mxu0 0
  %7459 = vmatmul.mubr.bf16.gmra.mrb[0].mxu0 %v7346
  %v7460 = vpop.f32.mrb[0].mxu0
  %v7461 = vadd.f32 0.0, %v7460
  %v7462 = vpop.f32.mrb[0].mxu0
  %v7463 = vpop.f32.mrb[0].mxu0
  %v7464 = vadd.f32 0.0, %v7463
  %v7465 = vpop.f32.mrb[0].mxu0
  %7466 = vmatprep.mubr.bf16.mxu0 0
  %7467 = vmatmul.mubr.bf16.gmra.mrb[0].mxu0 %v7349
  %v7468 = vpop.f32.mrb[0].mxu0
  %v7469 = vadd.f32 0.0, %v7468
  %v7470 = vpop.f32.mrb[0].mxu0
  %v7471 = vpop.f32.mrb[0].mxu0
  %v7472 = vadd.f32 0.0, %v7471
  %v7473 = vpop.f32.mrb[0].mxu0
  %7474 = vmatprep.mubr.bf16.mxu0 0
  %7475 = vmatmul.mubr.bf16.gmra.mrb[0].mxu0 %v7352
  %v7476 = vpop.f32.mrb[0].mxu0
  %v7477 = vadd.f32 0.0, %v7476
  %v7478 = vpop.f32.mrb[0].mxu0
  %v7479 = vpop.f32.mrb[0].mxu0
  %v7480 = vadd.f32 0.0, %v7479
  %v7481 = vpop.f32.mrb[0].mxu0
  %7482 = vmatprep.mubr.bf16.mxu0 0
  %7483 = vmatmul.mubr.bf16.gmra.mrb[0].mxu0 %v7355
  %v7484 = vpop.f32.mrb[0].mxu0
  %v7485 = vadd.f32 0.0, %v7484
  %v7486 = vpop.f32.mrb[0].mxu0
  %v7487 = vpop.f32.mrb[0].mxu0
  %v7488 = vadd.f32 0.0, %v7487
  %v7489 = vpop.f32.mrb[0].mxu0
  %7490 = vmatprep.mubr.bf16.mxu0 0
  %7491 = vmatmul.mubr.bf16.gmra.mrb[0].mxu0 %v7358
  %v7492 = vpop.f32.mrb[0].mxu0
  %v7493 = vadd.f32 0.0, %v7492
  %v7494 = vpop.f32.mrb[0].mxu0
  %v7495 = vpop.f32.mrb[0].mxu0
  %v7496 = vadd.f32 0.0, %v7495
  %v7497 = vpop.f32.mrb[0].mxu0
  %7498 = vmatprep.mubr.bf16.mxu0 0
  %7499 = vmatmul.mubr.bf16.gmra.mrb[0].mxu0 %v7361
  %v7500 = vpop.f32.mrb[0].mxu0
  %v7501 = vadd.f32 0.0, %v7500
  %v7502 = vpop.f32.mrb[0].mxu0
  %v7503 = vpop.f32.mrb[0].mxu0
  %v7504 = vadd.f32 0.0, %v7503
  %v7505 = vpop.f32.mrb[0].mxu0
  %7506 = vmatprep.mubr.bf16.mxu0 0
  %7507 = vmatmul.mubr.bf16.gmra.mrb[0].mxu0 %v7364
  %v7508 = vpop.f32.mrb[0].mxu0
  %v7509 = vadd.f32 0.0, %v7508
  %v7510 = vpop.f32.mrb[0].mxu0
  %v7511 = vpop.f32.mrb[0].mxu0
  %v7512 = vadd.f32 0.0, %v7511
  %v7513 = vpop.f32.mrb[0].mxu0
  %7514 = vmatprep.mubr.bf16.mxu0 0
  %7515 = vmatmul.mubr.bf16.gmra.mrb[0].mxu0 %v7367
  %v7516 = vpop.f32.mrb[0].mxu0
  %v7517 = vadd.f32 0.0, %v7516
  %v7518 = vpop.f32.mrb[0].mxu0
  %v7519 = vpop.f32.mrb[0].mxu0
  %v7520 = vadd.f32 0.0, %v7519
  %v7521 = vpop.f32.mrb[0].mxu0
  %7522 = vmatprep.mubr.bf16.mxu0 0
  %7523 = vmatmul.mubr.bf16.gmra.mrb[0].mxu0 %v7370
  %v7524 = vpop.f32.mrb[0].mxu0
  %v7525 = vadd.f32 0.0, %v7524
  %v7526 = vpop.f32.mrb[0].mxu0
  %v7527 = vpop.f32.mrb[0].mxu0
  %v7528 = vadd.f32 0.0, %v7527
  %v7529 = vpop.f32.mrb[0].mxu0
  %7530 = vmatprep.mubr.bf16.mxu0 0
  %7531 = vmatmul.mubr.bf16.gmra.mrb[0].mxu0 %v7373
  %v7532 = vpop.f32.mrb[0].mxu0
  %v7533 = vadd.f32 0.0, %v7532
  %v7534 = vpop.f32.mrb[0].mxu0
  %v7535 = vpop.f32.mrb[0].mxu0
  %v7536 = vadd.f32 0.0, %v7535
  %v7537 = vpop.f32.mrb[0].mxu0
  %7538 = vdwg.mxu0
  %7539 = vst.msk [vmem:[%s3580] sm:$0xff] %vm27, %v7413
  %7540 = vst.msk [vmem:[%s3580 + $0x8] sm:$0xff] %vm27, %v7416
  %7541 = vst.msk [vmem:[%s3580 + $0x10] sm:$0xff] %vm27, %v7421
  %7542 = vst.msk [vmem:[%s3580 + $0x18] sm:$0xff] %vm27, %v7424
  %7543 = vst.msk [vmem:[%s3580 + $0x20] sm:$0xff] %vm27, %v7429
  %7544 = vst.msk [vmem:[%s3580 + $0x28] sm:$0xff] %vm27, %v7432
  %7545 = vst.msk [vmem:[%s3580 + $0x30] sm:$0xff] %vm27, %v7437
  %7546 = vst.msk [vmem:[%s3580 + $0x38] sm:$0xff] %vm27, %v7440
  %7547 = vst.msk [vmem:[%s3580 + $0x40] sm:$0xff] %vm27, %v7445
  %7548 = vst.msk [vmem:[%s3580 + $0x48] sm:$0xff] %vm27, %v7448
  %7549 = vst.msk [vmem:[%s3580 + $0x50] sm:$0xff] %vm27, %v7453
  %7550 = vst.msk [vmem:[%s3580 + $0x58] sm:$0xff] %vm27, %v7456
  %7551 = vst.msk [vmem:[%s3580 + $0x60] sm:$0xff] %vm27, %v7461
  %7552 = vst.msk [vmem:[%s3580 + $0x68] sm:$0xff] %vm27, %v7464
  %7553 = vst.msk [vmem:[%s3580 + $0x70] sm:$0xff] %vm27, %v7469
  %7554 = vst.msk [vmem:[%s3580 + $0x78] sm:$0xff] %vm27, %v7472
  %7555 = vst.msk [vmem:[%s3580 + $0x80] sm:$0xff] %vm27, %v7477
  %7556 = vst.msk [vmem:[%s3580 + $0x88] sm:$0xff] %vm27, %v7480
  %7557 = vst.msk [vmem:[%s3580 + $0x90] sm:$0xff] %vm27, %v7485
  %7558 = vst.msk [vmem:[%s3580 + $0x98] sm:$0xff] %vm27, %v7488
  %7559 = vst.msk [vmem:[%s3580 + $0xa0] sm:$0xff] %vm27, %v7493
  %7560 = vst.msk [vmem:[%s3580 + $0xa8] sm:$0xff] %vm27, %v7496
  %7561 = vst.msk [vmem:[%s3580 + $0xb0] sm:$0xff] %vm27, %v7501
  %7562 = vst.msk [vmem:[%s3580 + $0xb8] sm:$0xff] %vm27, %v7504
  %7563 = vst.msk [vmem:[%s3580 + $0xc0] sm:$0xff] %vm27, %v7509
  %7564 = vst.msk [vmem:[%s3580 + $0xc8] sm:$0xff] %vm27, %v7512
  %7565 = vst.msk [vmem:[%s3580 + $0xd0] sm:$0xff] %vm27, %v7517
  %7566 = vst.msk [vmem:[%s3580 + $0xd8] sm:$0xff] %vm27, %v7520
  %7567 = vst.msk [vmem:[%s3580 + $0xe0] sm:$0xff] %vm27, %v7525
  %7568 = vst.msk [vmem:[%s3580 + $0xe8] sm:$0xff] %vm27, %v7528
  %7569 = vst.msk [vmem:[%s3580 + $0xf0] sm:$0xff] %vm27, %v7533
  %7570 = vst.msk [vmem:[%s3580 + $0xf8] sm:$0xff] %vm27, %v7536
  %v7571 = vsel %vm27, %v7413, 0.0
  %v7572 = vsel %vm27, %v7416, 0.0
  %v7573 = vadd.f32 %v7571, %v7572
  %v7574 = vsel %vm27, %v7421, 0.0
  %v7575 = vadd.f32 %v7573, %v7574
  %v7576 = vsel %vm27, %v7424, 0.0
  %v7577 = vadd.f32 %v7575, %v7576
  %v7578 = vsel %vm27, %v7429, 0.0
  %v7579 = vadd.f32 %v7577, %v7578
  %v7580 = vsel %vm27, %v7432, 0.0
  %v7581 = vadd.f32 %v7579, %v7580
  %v7582 = vsel %vm27, %v7437, 0.0
  %v7583 = vadd.f32 %v7581, %v7582
  %v7584 = vsel %vm27, %v7440, 0.0
  %v7585 = vadd.f32 %v7583, %v7584
  %v7586 = vsel %vm27, %v7445, 0.0
  %v7587 = vadd.f32 %v7585, %v7586
  %v7588 = vsel %vm27, %v7448, 0.0
  %v7589 = vadd.f32 %v7587, %v7588
  %v7590 = vsel %vm27, %v7453, 0.0
  %v7591 = vadd.f32 %v7589, %v7590
  %v7592 = vsel %vm27, %v7456, 0.0
  %v7593 = vadd.f32 %v7591, %v7592
  %v7594 = vsel %vm27, %v7461, 0.0
  %v7595 = vadd.f32 %v7593, %v7594
  %v7596 = vsel %vm27, %v7464, 0.0
  %v7597 = vadd.f32 %v7595, %v7596
  %v7598 = vsel %vm27, %v7469, 0.0
  %v7599 = vadd.f32 %v7597, %v7598
  %v7600 = vsel %vm27, %v7472, 0.0
  %v7601 = vadd.f32 %v7599, %v7600
  %v7602 = vsel %vm27, %v7477, 0.0
  %v7603 = vadd.f32 %v7601, %v7602
  %v7604 = vsel %vm27, %v7480, 0.0
  %v7605 = vadd.f32 %v7603, %v7604
  %v7606 = vsel %vm27, %v7485, 0.0
  %v7607 = vadd.f32 %v7605, %v7606
  %v7608 = vsel %vm27, %v7488, 0.0
  %v7609 = vadd.f32 %v7607, %v7608
  %v7610 = vsel %vm27, %v7493, 0.0
  %v7611 = vadd.f32 %v7609, %v7610
  %v7612 = vsel %vm27, %v7496, 0.0
  %v7613 = vadd.f32 %v7611, %v7612
  %v7614 = vsel %vm27, %v7501, 0.0
  %v7615 = vadd.f32 %v7613, %v7614
  %v7616 = vsel %vm27, %v7504, 0.0
  %v7617 = vadd.f32 %v7615, %v7616
  %v7618 = vsel %vm27, %v7509, 0.0
  %v7619 = vadd.f32 %v7617, %v7618
  %v7620 = vsel %vm27, %v7512, 0.0
  %v7621 = vadd.f32 %v7619, %v7620
  %v7622 = vsel %vm27, %v7517, 0.0
  %v7623 = vadd.f32 %v7621, %v7622
  %v7624 = vsel %vm27, %v7520, 0.0
  %v7625 = vadd.f32 %v7623, %v7624
  %v7626 = vsel %vm27, %v7525, 0.0
  %v7627 = vadd.f32 %v7625, %v7626
  %v7628 = vsel %vm27, %v7528, 0.0
  %v7629 = vadd.f32 %v7627, %v7628
  %v7630 = vsel %vm27, %v7533, 0.0
  %v7631 = vadd.f32 %v7629, %v7630
  %v7632 = vsel %vm27, %v7536, 0.0
  %v7633 = vadd.f32 %v7631, %v7632
  %v7634 = vrot.slane %v7633, 4
  %v7635 = vadd.f32 %v7633, %v7634
  %v7636 = vrot.slane %v7635, 2
  %v7637 = vadd.f32 %v7635, %v7636
  %v7638 = vrot.slane %v7637, 1
  %v7639 = vadd.f32 %v7637, %v7638
  %v7640 = vadd.f32 %v5875, %v7639
  %v7641 = vmul.f32 %v7413, %v7413
  %v7642 = vmul.f32 %v7416, %v7416
  %v7643 = vmul.f32 %v7421, %v7421
  %v7644 = vmul.f32 %v7424, %v7424
  %v7645 = vmul.f32 %v7429, %v7429
  %v7646 = vmul.f32 %v7432, %v7432
  %v7647 = vmul.f32 %v7437, %v7437
  %v7648 = vmul.f32 %v7440, %v7440
  %v7649 = vmul.f32 %v7445, %v7445
  %v7650 = vmul.f32 %v7448, %v7448
  %v7651 = vmul.f32 %v7453, %v7453
  %v7652 = vmul.f32 %v7456, %v7456
  %v7653 = vmul.f32 %v7461, %v7461
  %v7654 = vmul.f32 %v7464, %v7464
  %v7655 = vmul.f32 %v7469, %v7469
  %v7656 = vmul.f32 %v7472, %v7472
  %v7657 = vmul.f32 %v7477, %v7477
  %v7658 = vmul.f32 %v7480, %v7480
  %v7659 = vmul.f32 %v7485, %v7485
  %v7660 = vmul.f32 %v7488, %v7488
  %v7661 = vmul.f32 %v7493, %v7493
  %v7662 = vmul.f32 %v7496, %v7496
  %v7663 = vmul.f32 %v7501, %v7501
  %v7664 = vmul.f32 %v7504, %v7504
  %v7665 = vmul.f32 %v7509, %v7509
  %v7666 = vmul.f32 %v7512, %v7512
  %v7667 = vmul.f32 %v7517, %v7517
  %v7668 = vmul.f32 %v7520, %v7520
  %v7669 = vmul.f32 %v7525, %v7525
  %v7670 = vmul.f32 %v7528, %v7528
  %v7671 = vmul.f32 %v7533, %v7533
  %v7672 = vmul.f32 %v7536, %v7536
  %v7673 = vsel %vm27, %v7641, 0.0
  %v7674 = vsel %vm27, %v7642, 0.0
  %v7675 = vadd.f32 %v7673, %v7674
  %v7676 = vsel %vm27, %v7643, 0.0
  %v7677 = vadd.f32 %v7675, %v7676
  %v7678 = vsel %vm27, %v7644, 0.0
  %v7679 = vadd.f32 %v7677, %v7678
  %v7680 = vsel %vm27, %v7645, 0.0
  %v7681 = vadd.f32 %v7679, %v7680
  %v7682 = vsel %vm27, %v7646, 0.0
  %v7683 = vadd.f32 %v7681, %v7682
  %v7684 = vsel %vm27, %v7647, 0.0
  %v7685 = vadd.f32 %v7683, %v7684
  %v7686 = vsel %vm27, %v7648, 0.0
  %v7687 = vadd.f32 %v7685, %v7686
  %v7688 = vsel %vm27, %v7649, 0.0
  %v7689 = vadd.f32 %v7687, %v7688
  %v7690 = vsel %vm27, %v7650, 0.0
  %v7691 = vadd.f32 %v7689, %v7690
  %v7692 = vsel %vm27, %v7651, 0.0
  %v7693 = vadd.f32 %v7691, %v7692
  %v7694 = vsel %vm27, %v7652, 0.0
  %v7695 = vadd.f32 %v7693, %v7694
  %v7696 = vsel %vm27, %v7653, 0.0
  %v7697 = vadd.f32 %v7695, %v7696
  %v7698 = vsel %vm27, %v7654, 0.0
  %v7699 = vadd.f32 %v7697, %v7698
  %v7700 = vsel %vm27, %v7655, 0.0
  %v7701 = vadd.f32 %v7699, %v7700
  %v7702 = vsel %vm27, %v7656, 0.0
  %v7703 = vadd.f32 %v7701, %v7702
  %v7704 = vsel %vm27, %v7657, 0.0
  %v7705 = vadd.f32 %v7703, %v7704
  %v7706 = vsel %vm27, %v7658, 0.0
  %v7707 = vadd.f32 %v7705, %v7706
  %v7708 = vsel %vm27, %v7659, 0.0
  %v7709 = vadd.f32 %v7707, %v7708
  %v7710 = vsel %vm27, %v7660, 0.0
  %v7711 = vadd.f32 %v7709, %v7710
  %v7712 = vsel %vm27, %v7661, 0.0
  %v7713 = vadd.f32 %v7711, %v7712
  %v7714 = vsel %vm27, %v7662, 0.0
  %v7715 = vadd.f32 %v7713, %v7714
  %v7716 = vsel %vm27, %v7663, 0.0
  %v7717 = vadd.f32 %v7715, %v7716
  %v7718 = vsel %vm27, %v7664, 0.0
  %v7719 = vadd.f32 %v7717, %v7718
  %v7720 = vsel %vm27, %v7665, 0.0
  %v7721 = vadd.f32 %v7719, %v7720
  %v7722 = vsel %vm27, %v7666, 0.0
  %v7723 = vadd.f32 %v7721, %v7722
  %v7724 = vsel %vm27, %v7667, 0.0
  %v7725 = vadd.f32 %v7723, %v7724
  %v7726 = vsel %vm27, %v7668, 0.0
  %v7727 = vadd.f32 %v7725, %v7726
  %v7728 = vsel %vm27, %v7669, 0.0
  %v7729 = vadd.f32 %v7727, %v7728
  %v7730 = vsel %vm27, %v7670, 0.0
  %v7731 = vadd.f32 %v7729, %v7730
  %v7732 = vsel %vm27, %v7671, 0.0
  %v7733 = vadd.f32 %v7731, %v7732
  %v7734 = vsel %vm27, %v7672, 0.0
  %v7735 = vadd.f32 %v7733, %v7734
  %v7736 = vrot.slane %v7735, 4
  %v7737 = vadd.f32 %v7735, %v7736
  %v7738 = vrot.slane %v7737, 2
  %v7739 = vadd.f32 %v7737, %v7738
  %v7740 = vrot.slane %v7739, 1
  %v7741 = vadd.f32 %v7739, %v7740
  %v7742 = vadd.f32 %v5977, %v7741
  %v7743 = vld [vmem:[%s5] sm:$0x1]
  %v7744 = vld [vmem:[%s6] sm:$0x1]
  %v7745 = vmul.f32 %v7640, 0.001953125
  %v7746 = vmul.f32 %v7742, 0.001953125
  %v7747 = vmul.f32 %v7745, %v7745
  %v7748 = vsub.f32 %v7746, %v7747
  %v7749 = vadd.f32 %v7748, 1e-05
  %v7750 = vrsqrt.pop %v7749
  %v7751 = vmul.f32 %v7743, %v7750
  %v7752 = vmul.f32 %v7745, %v7751
  %v7753 = vsub.f32 %v7744, %v7752
  %v7754 = vld [vmem:[#allocation4] sm:$0xff]
  %v7755 = vld [vmem:[#allocation4 + $0x8] sm:$0xff]
  %v7756 = vld [vmem:[#allocation4 + $0x10] sm:$0xff]
  %v7757 = vld [vmem:[#allocation4 + $0x18] sm:$0xff]
  %v7758 = vld [vmem:[#allocation4 + $0x20] sm:$0xff]
  %v7759 = vld [vmem:[#allocation4 + $0x28] sm:$0xff]
  %v7760 = vld [vmem:[#allocation4 + $0x30] sm:$0xff]
  %v7761 = vld [vmem:[#allocation4 + $0x38] sm:$0xff]
  %v7762 = vld [vmem:[#allocation4 + $0x40] sm:$0xff]
  %v7763 = vld [vmem:[#allocation4 + $0x48] sm:$0xff]
  %v7764 = vld [vmem:[#allocation4 + $0x50] sm:$0xff]
  %v7765 = vld [vmem:[#allocation4 + $0x58] sm:$0xff]
  %v7766 = vld [vmem:[#allocation4 + $0x60] sm:$0xff]
  %v7767 = vld [vmem:[#allocation4 + $0x68] sm:$0xff]
  %v7768 = vld [vmem:[#allocation4 + $0x70] sm:$0xff]
  %v7769 = vld [vmem:[#allocation4 + $0x78] sm:$0xff]
  %v7770 = vld [vmem:[#allocation4 + $0x80] sm:$0xff]
  %v7771 = vld [vmem:[#allocation4 + $0x88] sm:$0xff]
  %v7772 = vld [vmem:[#allocation4 + $0x90] sm:$0xff]
  %v7773 = vld [vmem:[#allocation4 + $0x98] sm:$0xff]
  %v7774 = vld [vmem:[#allocation4 + $0xa0] sm:$0xff]
  %v7775 = vld [vmem:[#allocation4 + $0xa8] sm:$0xff]
  %v7776 = vld [vmem:[#allocation4 + $0xb0] sm:$0xff]
  %v7777 = vld [vmem:[#allocation4 + $0xb8] sm:$0xff]
  %v7778 = vld [vmem:[#allocation4 + $0xc0] sm:$0xff]
  %v7779 = vld [vmem:[#allocation4 + $0xc8] sm:$0xff]
  %v7780 = vld [vmem:[#allocation4 + $0xd0] sm:$0xff]
  %v7781 = vld [vmem:[#allocation4 + $0xd8] sm:$0xff]
  %v7782 = vld [vmem:[#allocation4 + $0xe0] sm:$0xff]
  %v7783 = vld [vmem:[#allocation4 + $0xe8] sm:$0xff]
  %v7784 = vld [vmem:[#allocation4 + $0xf0] sm:$0xff]
  %v7785 = vld [vmem:[#allocation4 + $0xf8] sm:$0xff]
  %v7786 = vld [vmem:[#allocation4 + $0x100] sm:$0xff]
  %v7787 = vld [vmem:[#allocation4 + $0x108] sm:$0xff]
  %v7788 = vld [vmem:[#allocation4 + $0x110] sm:$0xff]
  %v7789 = vld [vmem:[#allocation4 + $0x118] sm:$0xff]
  %v7790 = vld [vmem:[#allocation4 + $0x120] sm:$0xff]
  %v7791 = vld [vmem:[#allocation4 + $0x128] sm:$0xff]
  %v7792 = vld [vmem:[#allocation4 + $0x130] sm:$0xff]
  %v7793 = vld [vmem:[#allocation4 + $0x138] sm:$0xff]
  %v7794 = vld [vmem:[#allocation4 + $0x140] sm:$0xff]
  %v7795 = vld [vmem:[#allocation4 + $0x148] sm:$0xff]
  %v7796 = vld [vmem:[#allocation4 + $0x150] sm:$0xff]
  %v7797 = vld [vmem:[#allocation4 + $0x158] sm:$0xff]
  %v7798 = vld [vmem:[#allocation4 + $0x160] sm:$0xff]
  %v7799 = vld [vmem:[#allocation4 + $0x168] sm:$0xff]
  %v7800 = vld [vmem:[#allocation4 + $0x170] sm:$0xff]
  %v7801 = vld [vmem:[#allocation4 + $0x178] sm:$0xff]
  %v7802 = vld [vmem:[#allocation4 + $0x180] sm:$0xff]
  %v7803 = vld [vmem:[#allocation4 + $0x188] sm:$0xff]
  %v7804 = vld [vmem:[#allocation4 + $0x190] sm:$0xff]
  %v7805 = vld [vmem:[#allocation4 + $0x198] sm:$0xff]
  %v7806 = vld [vmem:[#allocation4 + $0x1a0] sm:$0xff]
  %v7807 = vld [vmem:[#allocation4 + $0x1a8] sm:$0xff]
  %v7808 = vld [vmem:[#allocation4 + $0x1b0] sm:$0xff]
  %v7809 = vld [vmem:[#allocation4 + $0x1b8] sm:$0xff]
  %v7810 = vld [vmem:[#allocation4 + $0x1c0] sm:$0xff]
  %v7811 = vld [vmem:[#allocation4 + $0x1c8] sm:$0xff]
  %v7812 = vld [vmem:[#allocation4 + $0x1d0] sm:$0xff]
  %v7813 = vld [vmem:[#allocation4 + $0x1d8] sm:$0xff]
  %v7814 = vld [vmem:[#allocation4 + $0x1e0] sm:$0xff]
  %v7815 = vld [vmem:[#allocation4 + $0x1e8] sm:$0xff]
  %v7816 = vld [vmem:[#allocation4 + $0x1f0] sm:$0xff]
  %v7817 = vld [vmem:[#allocation4 + $0x1f8] sm:$0xff]
  %v7819 = vlaneseq
  %v7820 = vshrl.u32 %v7819, 7
  %v7821 = vsub.s32 0, %v7820
  %v7822 = vrot.slane %v7751, %v7821
  %v7824 = vmul.f32 %v7754, %v7822
  %v7825 = vmul.f32 %v7755, %v7822
  %v7826 = vmul.f32 %v7756, %v7822
  %v7827 = vmul.f32 %v7757, %v7822
  %v7828 = vmul.f32 %v7758, %v7822
  %v7829 = vmul.f32 %v7759, %v7822
  %v7830 = vmul.f32 %v7760, %v7822
  %v7831 = vmul.f32 %v7761, %v7822
  %v7832 = vmul.f32 %v7762, %v7822
  %v7833 = vmul.f32 %v7763, %v7822
  %v7834 = vmul.f32 %v7764, %v7822
  %v7835 = vmul.f32 %v7765, %v7822
  %v7836 = vmul.f32 %v7766, %v7822
  %v7837 = vmul.f32 %v7767, %v7822
  %v7838 = vmul.f32 %v7768, %v7822
  %v7839 = vmul.f32 %v7769, %v7822
  %v7840 = vmul.f32 %v7770, %v7822
  %v7841 = vmul.f32 %v7771, %v7822
  %v7842 = vmul.f32 %v7772, %v7822
  %v7843 = vmul.f32 %v7773, %v7822
  %v7844 = vmul.f32 %v7774, %v7822
  %v7845 = vmul.f32 %v7775, %v7822
  %v7846 = vmul.f32 %v7776, %v7822
  %v7847 = vmul.f32 %v7777, %v7822
  %v7848 = vmul.f32 %v7778, %v7822
  %v7849 = vmul.f32 %v7779, %v7822
  %v7850 = vmul.f32 %v7780, %v7822
  %v7851 = vmul.f32 %v7781, %v7822
  %v7852 = vmul.f32 %v7782, %v7822
  %v7853 = vmul.f32 %v7783, %v7822
  %v7854 = vmul.f32 %v7784, %v7822
  %v7855 = vmul.f32 %v7785, %v7822
  %v7856 = vmul.f32 %v7786, %v7822
  %v7857 = vmul.f32 %v7787, %v7822
  %v7858 = vmul.f32 %v7788, %v7822
  %v7859 = vmul.f32 %v7789, %v7822
  %v7860 = vmul.f32 %v7790, %v7822
  %v7861 = vmul.f32 %v7791, %v7822
  %v7862 = vmul.f32 %v7792, %v7822
  %v7863 = vmul.f32 %v7793, %v7822
  %v7864 = vmul.f32 %v7794, %v7822
  %v7865 = vmul.f32 %v7795, %v7822
  %v7866 = vmul.f32 %v7796, %v7822
  %v7867 = vmul.f32 %v7797, %v7822
  %v7868 = vmul.f32 %v7798, %v7822
  %v7869 = vmul.f32 %v7799, %v7822
  %v7870 = vmul.f32 %v7800, %v7822
  %v7871 = vmul.f32 %v7801, %v7822
  %v7872 = vmul.f32 %v7802, %v7822
  %v7873 = vmul.f32 %v7803, %v7822
  %v7874 = vmul.f32 %v7804, %v7822
  %v7875 = vmul.f32 %v7805, %v7822
  %v7876 = vmul.f32 %v7806, %v7822
  %v7877 = vmul.f32 %v7807, %v7822
  %v7878 = vmul.f32 %v7808, %v7822
  %v7879 = vmul.f32 %v7809, %v7822
  %v7880 = vmul.f32 %v7810, %v7822
  %v7881 = vmul.f32 %v7811, %v7822
  %v7882 = vmul.f32 %v7812, %v7822
  %v7883 = vmul.f32 %v7813, %v7822
  %v7884 = vmul.f32 %v7814, %v7822
  %v7885 = vmul.f32 %v7815, %v7822
  %v7886 = vmul.f32 %v7816, %v7822
  %v7887 = vmul.f32 %v7817, %v7822
  %v7889 = vlaneseq
  %v7890 = vshrl.u32 %v7889, 7
  %v7891 = vsub.s32 0, %v7890
  %v7892 = vrot.slane %v7753, %v7891
  %v7894 = vadd.f32 %v7824, %v7892
  %v7895 = vadd.f32 %v7825, %v7892
  %v7896 = vadd.f32 %v7826, %v7892
  %v7897 = vadd.f32 %v7827, %v7892
  %v7898 = vadd.f32 %v7828, %v7892
  %v7899 = vadd.f32 %v7829, %v7892
  %v7900 = vadd.f32 %v7830, %v7892
  %v7901 = vadd.f32 %v7831, %v7892
  %v7902 = vadd.f32 %v7832, %v7892
  %v7903 = vadd.f32 %v7833, %v7892
  %v7904 = vadd.f32 %v7834, %v7892
  %v7905 = vadd.f32 %v7835, %v7892
  %v7906 = vadd.f32 %v7836, %v7892
  %v7907 = vadd.f32 %v7837, %v7892
  %v7908 = vadd.f32 %v7838, %v7892
  %v7909 = vadd.f32 %v7839, %v7892
  %v7910 = vadd.f32 %v7840, %v7892
  %v7911 = vadd.f32 %v7841, %v7892
  %v7912 = vadd.f32 %v7842, %v7892
  %v7913 = vadd.f32 %v7843, %v7892
  %v7914 = vadd.f32 %v7844, %v7892
  %v7915 = vadd.f32 %v7845, %v7892
  %v7916 = vadd.f32 %v7846, %v7892
  %v7917 = vadd.f32 %v7847, %v7892
  %v7918 = vadd.f32 %v7848, %v7892
  %v7919 = vadd.f32 %v7849, %v7892
  %v7920 = vadd.f32 %v7850, %v7892
  %v7921 = vadd.f32 %v7851, %v7892
  %v7922 = vadd.f32 %v7852, %v7892
  %v7923 = vadd.f32 %v7853, %v7892
  %v7924 = vadd.f32 %v7854, %v7892
  %v7925 = vadd.f32 %v7855, %v7892
  %v7926 = vadd.f32 %v7856, %v7892
  %v7927 = vadd.f32 %v7857, %v7892
  %v7928 = vadd.f32 %v7858, %v7892
  %v7929 = vadd.f32 %v7859, %v7892
  %v7930 = vadd.f32 %v7860, %v7892
  %v7931 = vadd.f32 %v7861, %v7892
  %v7932 = vadd.f32 %v7862, %v7892
  %v7933 = vadd.f32 %v7863, %v7892
  %v7934 = vadd.f32 %v7864, %v7892
  %v7935 = vadd.f32 %v7865, %v7892
  %v7936 = vadd.f32 %v7866, %v7892
  %v7937 = vadd.f32 %v7867, %v7892
  %v7938 = vadd.f32 %v7868, %v7892
  %v7939 = vadd.f32 %v7869, %v7892
  %v7940 = vadd.f32 %v7870, %v7892
  %v7941 = vadd.f32 %v7871, %v7892
  %v7942 = vadd.f32 %v7872, %v7892
  %v7943 = vadd.f32 %v7873, %v7892
  %v7944 = vadd.f32 %v7874, %v7892
  %v7945 = vadd.f32 %v7875, %v7892
  %v7946 = vadd.f32 %v7876, %v7892
  %v7947 = vadd.f32 %v7877, %v7892
  %v7948 = vadd.f32 %v7878, %v7892
  %v7949 = vadd.f32 %v7879, %v7892
  %v7950 = vadd.f32 %v7880, %v7892
  %v7951 = vadd.f32 %v7881, %v7892
  %v7952 = vadd.f32 %v7882, %v7892
  %v7953 = vadd.f32 %v7883, %v7892
  %v7954 = vadd.f32 %v7884, %v7892
  %v7955 = vadd.f32 %v7885, %v7892
  %v7956 = vadd.f32 %v7886, %v7892
  %v7957 = vadd.f32 %v7887, %v7892
  %v7958 = vld [vmem:[%s0] sm:$0xff]
  %v7959 = vld [vmem:[%s0 + $0x8] sm:$0xff]
  %v7960 = vld [vmem:[%s0 + $0x10] sm:$0xff]
  %v7961 = vld [vmem:[%s0 + $0x18] sm:$0xff]
  %v7962 = vld [vmem:[%s0 + $0x20] sm:$0xff]
  %v7963 = vld [vmem:[%s0 + $0x28] sm:$0xff]
  %v7964 = vld [vmem:[%s0 + $0x30] sm:$0xff]
  %v7965 = vld [vmem:[%s0 + $0x38] sm:$0xff]
  %v7966 = vld [vmem:[%s0 + $0x40] sm:$0xff]
  %v7967 = vld [vmem:[%s0 + $0x48] sm:$0xff]
  %v7968 = vld [vmem:[%s0 + $0x50] sm:$0xff]
  %v7969 = vld [vmem:[%s0 + $0x58] sm:$0xff]
  %v7970 = vld [vmem:[%s0 + $0x60] sm:$0xff]
  %v7971 = vld [vmem:[%s0 + $0x68] sm:$0xff]
  %v7972 = vld [vmem:[%s0 + $0x70] sm:$0xff]
  %v7973 = vld [vmem:[%s0 + $0x78] sm:$0xff]
  %v7974 = vld [vmem:[%s0 + $0x80] sm:$0xff]
  %v7975 = vld [vmem:[%s0 + $0x88] sm:$0xff]
  %v7976 = vld [vmem:[%s0 + $0x90] sm:$0xff]
  %v7977 = vld [vmem:[%s0 + $0x98] sm:$0xff]
  %v7978 = vld [vmem:[%s0 + $0xa0] sm:$0xff]
  %v7979 = vld [vmem:[%s0 + $0xa8] sm:$0xff]
  %v7980 = vld [vmem:[%s0 + $0xb0] sm:$0xff]
  %v7981 = vld [vmem:[%s0 + $0xb8] sm:$0xff]
  %v7982 = vld [vmem:[%s0 + $0xc0] sm:$0xff]
  %v7983 = vld [vmem:[%s0 + $0xc8] sm:$0xff]
  %v7984 = vld [vmem:[%s0 + $0xd0] sm:$0xff]
  %v7985 = vld [vmem:[%s0 + $0xd8] sm:$0xff]
  %v7986 = vld [vmem:[%s0 + $0xe0] sm:$0xff]
  %v7987 = vld [vmem:[%s0 + $0xe8] sm:$0xff]
  %v7988 = vld [vmem:[%s0 + $0xf0] sm:$0xff]
  %v7989 = vld [vmem:[%s0 + $0xf8] sm:$0xff]
  %v7990 = vld [vmem:[%s0 + $0x100] sm:$0xff]
  %v7991 = vld [vmem:[%s0 + $0x108] sm:$0xff]
  %v7992 = vld [vmem:[%s0 + $0x110] sm:$0xff]
  %v7993 = vld [vmem:[%s0 + $0x118] sm:$0xff]
  %v7994 = vld [vmem:[%s0 + $0x120] sm:$0xff]
  %v7995 = vld [vmem:[%s0 + $0x128] sm:$0xff]
  %v7996 = vld [vmem:[%s0 + $0x130] sm:$0xff]
  %v7997 = vld [vmem:[%s0 + $0x138] sm:$0xff]
  %v7998 = vld [vmem:[%s0 + $0x140] sm:$0xff]
  %v7999 = vld [vmem:[%s0 + $0x148] sm:$0xff]
  %v8000 = vld [vmem:[%s0 + $0x150] sm:$0xff]
  %v8001 = vld [vmem:[%s0 + $0x158] sm:$0xff]
  %v8002 = vld [vmem:[%s0 + $0x160] sm:$0xff]
  %v8003 = vld [vmem:[%s0 + $0x168] sm:$0xff]
  %v8004 = vld [vmem:[%s0 + $0x170] sm:$0xff]
  %v8005 = vld [vmem:[%s0 + $0x178] sm:$0xff]
  %v8006 = vld [vmem:[%s0 + $0x180] sm:$0xff]
  %v8007 = vld [vmem:[%s0 + $0x188] sm:$0xff]
  %v8008 = vld [vmem:[%s0 + $0x190] sm:$0xff]
  %v8009 = vld [vmem:[%s0 + $0x198] sm:$0xff]
  %v8010 = vld [vmem:[%s0 + $0x1a0] sm:$0xff]
  %v8011 = vld [vmem:[%s0 + $0x1a8] sm:$0xff]
  %v8012 = vld [vmem:[%s0 + $0x1b0] sm:$0xff]
  %v8013 = vld [vmem:[%s0 + $0x1b8] sm:$0xff]
  %v8014 = vld [vmem:[%s0 + $0x1c0] sm:$0xff]
  %v8015 = vld [vmem:[%s0 + $0x1c8] sm:$0xff]
  %v8016 = vld [vmem:[%s0 + $0x1d0] sm:$0xff]
  %v8017 = vld [vmem:[%s0 + $0x1d8] sm:$0xff]
  %v8018 = vld [vmem:[%s0 + $0x1e0] sm:$0xff]
  %v8019 = vld [vmem:[%s0 + $0x1e8] sm:$0xff]
  %v8020 = vld [vmem:[%s0 + $0x1f0] sm:$0xff]
  %v8021 = vld [vmem:[%s0 + $0x1f8] sm:$0xff]
  %v8022 = vadd.f32 %v7894, %v7958
  %v8023 = vadd.f32 %v7895, %v7959
  %v8024 = vadd.f32 %v7896, %v7960
  %v8025 = vadd.f32 %v7897, %v7961
  %v8026 = vadd.f32 %v7898, %v7962
  %v8027 = vadd.f32 %v7899, %v7963
  %v8028 = vadd.f32 %v7900, %v7964
  %v8029 = vadd.f32 %v7901, %v7965
  %v8030 = vadd.f32 %v7902, %v7966
  %v8031 = vadd.f32 %v7903, %v7967
  %v8032 = vadd.f32 %v7904, %v7968
  %v8033 = vadd.f32 %v7905, %v7969
  %v8034 = vadd.f32 %v7906, %v7970
  %v8035 = vadd.f32 %v7907, %v7971
  %v8036 = vadd.f32 %v7908, %v7972
  %v8037 = vadd.f32 %v7909, %v7973
  %v8038 = vadd.f32 %v7910, %v7974
  %v8039 = vadd.f32 %v7911, %v7975
  %v8040 = vadd.f32 %v7912, %v7976
  %v8041 = vadd.f32 %v7913, %v7977
  %v8042 = vadd.f32 %v7914, %v7978
  %v8043 = vadd.f32 %v7915, %v7979
  %v8044 = vadd.f32 %v7916, %v7980
  %v8045 = vadd.f32 %v7917, %v7981
  %v8046 = vadd.f32 %v7918, %v7982
  %v8047 = vadd.f32 %v7919, %v7983
  %v8048 = vadd.f32 %v7920, %v7984
  %v8049 = vadd.f32 %v7921, %v7985
  %v8050 = vadd.f32 %v7922, %v7986
  %v8051 = vadd.f32 %v7923, %v7987
  %v8052 = vadd.f32 %v7924, %v7988
  %v8053 = vadd.f32 %v7925, %v7989
  %v8054 = vadd.f32 %v7926, %v7990
  %v8055 = vadd.f32 %v7927, %v7991
  %v8056 = vadd.f32 %v7928, %v7992
  %v8057 = vadd.f32 %v7929, %v7993
  %v8058 = vadd.f32 %v7930, %v7994
  %v8059 = vadd.f32 %v7931, %v7995
  %v8060 = vadd.f32 %v7932, %v7996
  %v8061 = vadd.f32 %v7933, %v7997
  %v8062 = vadd.f32 %v7934, %v7998
  %v8063 = vadd.f32 %v7935, %v7999
  %v8064 = vadd.f32 %v7936, %v8000
  %v8065 = vadd.f32 %v7937, %v8001
  %v8066 = vadd.f32 %v7938, %v8002
  %v8067 = vadd.f32 %v7939, %v8003
  %v8068 = vadd.f32 %v7940, %v8004
  %v8069 = vadd.f32 %v7941, %v8005
  %v8070 = vadd.f32 %v7942, %v8006
  %v8071 = vadd.f32 %v7943, %v8007
  %v8072 = vadd.f32 %v7944, %v8008
  %v8073 = vadd.f32 %v7945, %v8009
  %v8074 = vadd.f32 %v7946, %v8010
  %v8075 = vadd.f32 %v7947, %v8011
  %v8076 = vadd.f32 %v7948, %v8012
  %v8077 = vadd.f32 %v7949, %v8013
  %v8078 = vadd.f32 %v7950, %v8014
  %v8079 = vadd.f32 %v7951, %v8015
  %v8080 = vadd.f32 %v7952, %v8016
  %v8081 = vadd.f32 %v7953, %v8017
  %v8082 = vadd.f32 %v7954, %v8018
  %v8083 = vadd.f32 %v7955, %v8019
  %v8084 = vadd.f32 %v7956, %v8020
  %v8085 = vadd.f32 %v7957, %v8021
  %v8086 = vmax.f32 %v8022, 0.0
  %v8087 = vmax.f32 %v8023, 0.0
  %v8088 = vmax.f32 %v8024, 0.0
  %v8089 = vmax.f32 %v8025, 0.0
  %v8090 = vmax.f32 %v8026, 0.0
  %v8091 = vmax.f32 %v8027, 0.0
  %v8092 = vmax.f32 %v8028, 0.0
  %v8093 = vmax.f32 %v8029, 0.0
  %v8094 = vmax.f32 %v8030, 0.0
  %v8095 = vmax.f32 %v8031, 0.0
  %v8096 = vmax.f32 %v8032, 0.0
  %v8097 = vmax.f32 %v8033, 0.0
  %v8098 = vmax.f32 %v8034, 0.0
  %v8099 = vmax.f32 %v8035, 0.0
  %v8100 = vmax.f32 %v8036, 0.0
  %v8101 = vmax.f32 %v8037, 0.0
  %v8102 = vmax.f32 %v8038, 0.0
  %v8103 = vmax.f32 %v8039, 0.0
  %v8104 = vmax.f32 %v8040, 0.0
  %v8105 = vmax.f32 %v8041, 0.0
  %v8106 = vmax.f32 %v8042, 0.0
  %v8107 = vmax.f32 %v8043, 0.0
  %v8108 = vmax.f32 %v8044, 0.0
  %v8109 = vmax.f32 %v8045, 0.0
  %v8110 = vmax.f32 %v8046, 0.0
  %v8111 = vmax.f32 %v8047, 0.0
  %v8112 = vmax.f32 %v8048, 0.0
  %v8113 = vmax.f32 %v8049, 0.0
  %v8114 = vmax.f32 %v8050, 0.0
  %v8115 = vmax.f32 %v8051, 0.0
  %v8116 = vmax.f32 %v8052, 0.0
  %v8117 = vmax.f32 %v8053, 0.0
  %v8118 = vmax.f32 %v8054, 0.0
  %v8119 = vmax.f32 %v8055, 0.0
  %v8120 = vmax.f32 %v8056, 0.0
  %v8121 = vmax.f32 %v8057, 0.0
  %v8122 = vmax.f32 %v8058, 0.0
  %v8123 = vmax.f32 %v8059, 0.0
  %v8124 = vmax.f32 %v8060, 0.0
  %v8125 = vmax.f32 %v8061, 0.0
  %v8126 = vmax.f32 %v8062, 0.0
  %v8127 = vmax.f32 %v8063, 0.0
  %v8128 = vmax.f32 %v8064, 0.0
  %v8129 = vmax.f32 %v8065, 0.0
  %v8130 = vmax.f32 %v8066, 0.0
  %v8131 = vmax.f32 %v8067, 0.0
  %v8132 = vmax.f32 %v8068, 0.0
  %v8133 = vmax.f32 %v8069, 0.0
  %v8134 = vmax.f32 %v8070, 0.0
  %v8135 = vmax.f32 %v8071, 0.0
  %v8136 = vmax.f32 %v8072, 0.0
  %v8137 = vmax.f32 %v8073, 0.0
  %v8138 = vmax.f32 %v8074, 0.0
  %v8139 = vmax.f32 %v8075, 0.0
  %v8140 = vmax.f32 %v8076, 0.0
  %v8141 = vmax.f32 %v8077, 0.0
  %v8142 = vmax.f32 %v8078, 0.0
  %v8143 = vmax.f32 %v8079, 0.0
  %v8144 = vmax.f32 %v8080, 0.0
  %v8145 = vmax.f32 %v8081, 0.0
  %v8146 = vmax.f32 %v8082, 0.0
  %v8147 = vmax.f32 %v8083, 0.0
  %v8148 = vmax.f32 %v8084, 0.0
  %v8149 = vmax.f32 %v8085, 0.0
  %8150 = vst.msk [vmem:[%s7] sm:$0xff] %vm27, %v8086
  %8151 = vst.msk [vmem:[%s7 + $0x8] sm:$0xff] %vm27, %v8087
  %8152 = vst.msk [vmem:[%s7 + $0x10] sm:$0xff] %vm27, %v8088
  %8153 = vst.msk [vmem:[%s7 + $0x18] sm:$0xff] %vm27, %v8089
  %8154 = vst.msk [vmem:[%s7 + $0x20] sm:$0xff] %vm27, %v8090
  %8155 = vst.msk [vmem:[%s7 + $0x28] sm:$0xff] %vm27, %v8091
  %8156 = vst.msk [vmem:[%s7 + $0x30] sm:$0xff] %vm27, %v8092
  %8157 = vst.msk [vmem:[%s7 + $0x38] sm:$0xff] %vm27, %v8093
  %8158 = vst.msk [vmem:[%s7 + $0x40] sm:$0xff] %vm27, %v8094
  %8159 = vst.msk [vmem:[%s7 + $0x48] sm:$0xff] %vm27, %v8095
  %8160 = vst.msk [vmem:[%s7 + $0x50] sm:$0xff] %vm27, %v8096
  %8161 = vst.msk [vmem:[%s7 + $0x58] sm:$0xff] %vm27, %v8097
  %8162 = vst.msk [vmem:[%s7 + $0x60] sm:$0xff] %vm27, %v8098
  %8163 = vst.msk [vmem:[%s7 + $0x68] sm:$0xff] %vm27, %v8099
  %8164 = vst.msk [vmem:[%s7 + $0x70] sm:$0xff] %vm27, %v8100
  %8165 = vst.msk [vmem:[%s7 + $0x78] sm:$0xff] %vm27, %v8101
  %8166 = vst.msk [vmem:[%s7 + $0x80] sm:$0xff] %vm27, %v8102
  %8167 = vst.msk [vmem:[%s7 + $0x88] sm:$0xff] %vm27, %v8103
  %8168 = vst.msk [vmem:[%s7 + $0x90] sm:$0xff] %vm27, %v8104
  %8169 = vst.msk [vmem:[%s7 + $0x98] sm:$0xff] %vm27, %v8105
  %8170 = vst.msk [vmem:[%s7 + $0xa0] sm:$0xff] %vm27, %v8106
  %8171 = vst.msk [vmem:[%s7 + $0xa8] sm:$0xff] %vm27, %v8107
  %8172 = vst.msk [vmem:[%s7 + $0xb0] sm:$0xff] %vm27, %v8108
  %8173 = vst.msk [vmem:[%s7 + $0xb8] sm:$0xff] %vm27, %v8109
  %8174 = vst.msk [vmem:[%s7 + $0xc0] sm:$0xff] %vm27, %v8110
  %8175 = vst.msk [vmem:[%s7 + $0xc8] sm:$0xff] %vm27, %v8111
  %8176 = vst.msk [vmem:[%s7 + $0xd0] sm:$0xff] %vm27, %v8112
  %8177 = vst.msk [vmem:[%s7 + $0xd8] sm:$0xff] %vm27, %v8113
  %8178 = vst.msk [vmem:[%s7 + $0xe0] sm:$0xff] %vm27, %v8114
  %8179 = vst.msk [vmem:[%s7 + $0xe8] sm:$0xff] %vm27, %v8115
  %8180 = vst.msk [vmem:[%s7 + $0xf0] sm:$0xff] %vm27, %v8116
  %8181 = vst.msk [vmem:[%s7 + $0xf8] sm:$0xff] %vm27, %v8117
  %8182 = vst.msk [vmem:[%s7 + $0x100] sm:$0xff] %vm27, %v8118
  %8183 = vst.msk [vmem:[%s7 + $0x108] sm:$0xff] %vm27, %v8119
  %8184 = vst.msk [vmem:[%s7 + $0x110] sm:$0xff] %vm27, %v8120
  %8185 = vst.msk [vmem:[%s7 + $0x118] sm:$0xff] %vm27, %v8121
  %8186 = vst.msk [vmem:[%s7 + $0x120] sm:$0xff] %vm27, %v8122
  %8187 = vst.msk [vmem:[%s7 + $0x128] sm:$0xff] %vm27, %v8123
  %8188 = vst.msk [vmem:[%s7 + $0x130] sm:$0xff] %vm27, %v8124
  %8189 = vst.msk [vmem:[%s7 + $0x138] sm:$0xff] %vm27, %v8125
  %8190 = vst.msk [vmem:[%s7 + $0x140] sm:$0xff] %vm27, %v8126
  %8191 = vst.msk [vmem:[%s7 + $0x148] sm:$0xff] %vm27, %v8127
  %8192 = vst.msk [vmem:[%s7 + $0x150] sm:$0xff] %vm27, %v8128
  %8193 = vst.msk [vmem:[%s7 + $0x158] sm:$0xff] %vm27, %v8129
  %8194 = vst.msk [vmem:[%s7 + $0x160] sm:$0xff] %vm27, %v8130
  %8195 = vst.msk [vmem:[%s7 + $0x168] sm:$0xff] %vm27, %v8131
  %8196 = vst.msk [vmem:[%s7 + $0x170] sm:$0xff] %vm27, %v8132
  %8197 = vst.msk [vmem:[%s7 + $0x178] sm:$0xff] %vm27, %v8133
  %8198 = vst.msk [vmem:[%s7 + $0x180] sm:$0xff] %vm27, %v8134
  %8199 = vst.msk [vmem:[%s7 + $0x188] sm:$0xff] %vm27, %v8135
  %8200 = vst.msk [vmem:[%s7 + $0x190] sm:$0xff] %vm27, %v8136
  %8201 = vst.msk [vmem:[%s7 + $0x198] sm:$0xff] %vm27, %v8137
  %8202 = vst.msk [vmem:[%s7 + $0x1a0] sm:$0xff] %vm27, %v8138
  %8203 = vst.msk [vmem:[%s7 + $0x1a8] sm:$0xff] %vm27, %v8139
  %8204 = vst.msk [vmem:[%s7 + $0x1b0] sm:$0xff] %vm27, %v8140
  %8205 = vst.msk [vmem:[%s7 + $0x1b8] sm:$0xff] %vm27, %v8141
  %8206 = vst.msk [vmem:[%s7 + $0x1c0] sm:$0xff] %vm27, %v8142
  %8207 = vst.msk [vmem:[%s7 + $0x1c8] sm:$0xff] %vm27, %v8143
  %8208 = vst.msk [vmem:[%s7 + $0x1d0] sm:$0xff] %vm27, %v8144
  %8209 = vst.msk [vmem:[%s7 + $0x1d8] sm:$0xff] %vm27, %v8145
  %8210 = vst.msk [vmem:[%s7 + $0x1e0] sm:$0xff] %vm27, %v8146
  %8211 = vst.msk [vmem:[%s7 + $0x1e8] sm:$0xff] %vm27, %v8147
  %8212 = vst.msk [vmem:[%s7 + $0x1f0] sm:$0xff] %vm27, %v8148
  %8213 = vst.msk [vmem:[%s7 + $0x1f8] sm:$0xff] %vm27, %v8149
  // Predicated region
  $region30: #{tpu_custom_call.1} parent=0 // pred_check
    _
  $region31: #{tpu_custom_call.1} parent=0 // pred_check_branch
    %8215 = sbr.rel (0) target = $region33
  $region32: #{tpu_custom_call.1} parent=0 // pred_region
    _
  $region33: #{tpu_custom_call.1} parent=0 // pred_fallthru
    _
  // Predicated region
  $region34: #{tpu_custom_call.1} parent=0 // pred_check
    _
  $region35: #{tpu_custom_call.1} parent=0 // pred_check_branch
    %8217 = sbr.rel (0) target = $region37
  $region36: #{tpu_custom_call.1} parent=0 // pred_region
    _
  $region37: #{tpu_custom_call.1} parent=0 // pred_fallthru
    _

</llo_original>
